<compile_context>
chip_gen: v7x
topology: tpu7x:2x2x1
jax: 0.10.0
libtpu: 0.0.40
codegen_flags: <defaults>
</compile_context>

<pallas_src>
import functools

import jax
import jax.numpy as jnp
from jax import lax
from jax.experimental import pallas as pl
from jax.experimental.pallas import tpu as pltpu

EPS = 1e-5                        # nn.BatchNorm2d default eps
LANE = 128                        # channel padding target (dense lane axis)
VMEM_LIMIT = 48 * 1024 * 1024     # <= v7x 64 MiB/TC physical; fine on v5e/v6e
VMEM_BUDGET = 40 * 1024 * 1024    # working-set target when picking tile_h


def _round_up(x, m):
    return (x + m - 1) // m * m


def _pad_axis(x, axis, new_size):
    if new_size == x.shape[axis]:
        return x
    pad = [(0, 0)] * x.ndim
    pad[axis] = (0, new_size - x.shape[axis])
    return jnp.pad(x, pad)


def _pick_row_tile(m, cap):
    """Largest multiple of 8 that divides m and is <= cap (0 if none)."""
    best, t = 0, 8
    while t <= min(m, cap):
        if m % t == 0:
            best = t
        t += 8
    return best


# --------------------------------------------------------------------------
# Kernel 1: row-tiled matmul + bias  (stride-2 transposed conv), bf16 output
# --------------------------------------------------------------------------
def _matmul_bias_kernel(x_ref, w_ref, b_ref, o_ref):
    o_ref[...] = (
        jnp.dot(x_ref[...], w_ref[...], preferred_element_type=jnp.float32)
        + b_ref[...]
    ).astype(o_ref.dtype)


def matmul_bias(x, w, b, out_dtype=jnp.bfloat16, cap=512):
    """out = x @ w + b.  x:(M,K) bf16, w:(K,N) bf16, b:(N,) f32 -> (M,N)."""
    M, K = x.shape
    _, Nc = w.shape
    tm = _pick_row_tile(M, cap)
    xr, Mr = x, M
    if tm == 0:                              # M not a multiple of 8: pad once
        Mr = _round_up(M, 8)
        xr = _pad_axis(x, 0, Mr)
        tm = _pick_row_tile(Mr, cap)
    out_bytes = Mr * Nc * jnp.dtype(out_dtype).itemsize
    out = pl.pallas_call(
        _matmul_bias_kernel,
        out_shape=jax.ShapeDtypeStruct((Mr, Nc), out_dtype),
        grid=(Mr // tm,),
        in_specs=[
            pl.BlockSpec((tm, K), lambda i: (i, 0)),
            pl.BlockSpec((K, Nc), lambda i: (0, 0)),   # resident across steps
            pl.BlockSpec((1, Nc), lambda i: (0, 0)),   # resident across steps
        ],
        out_specs=pl.BlockSpec((tm, Nc), lambda i: (i, 0)),
        compiler_params=pltpu.CompilerParams(
            dimension_semantics=("parallel",),
            vmem_limit_bytes=VMEM_LIMIT),
        cost_estimate=pl.CostEstimate(
            flops=2 * Mr * K * Nc, transcendentals=0,
            bytes_accessed=Mr * K * 2 + K * Nc * 2 + Nc * 4 + out_bytes),
    )(xr, w, b.reshape(1, Nc))
    return out if Mr == M else out[:M]


# --------------------------------------------------------------------------
# Kernel 2: 3x3 conv.  Double-buffered halo DMA, 3 MXU calls (K = 3*Cin_p),
#           optional fused prev-layer BN affine + ReLU on the input tile,
#           per-tile channel sum / sumsq partials for two-pass BatchNorm.
# --------------------------------------------------------------------------
def _conv_stats_kernel(xp_hbm, w_ref, b_ref, sc_ref, sh_ref,
                       y_ref, st_ref, xbuf, sem,
                       *, th, h_out, w_out, pre_act):
    n = pl.program_id(0)
    i = pl.program_id(1)
    nrt = pl.num_programs(1)

    def fetch(row_blk, slot):
        pltpu.make_async_copy(
            xp_hbm.at[n, pl.ds(row_blk * th, th + 2)],
            xbuf.at[slot], sem.at[slot]).start()

    # Prime the double-buffer at the first row tile of every image.
    @pl.when(i == 0)
    def _():
        fetch(0, 0)

    slot = i % 2
    pltpu.make_async_copy(
        xp_hbm.at[n, pl.ds(i * th, th + 2)],
        xbuf.at[slot], sem.at[slot]).wait()

    # Prefetch the next row tile while we compute on this one.
    @pl.when(i + 1 < nrt)
    def _():
        fetch(i + 1, (i + 1) % 2)

    cin_p = xbuf.shape[3]
    cout_p = w_ref.shape[2]
    wp = xbuf.shape[2]

    x = xbuf[slot]                                   # (th+2, wp, cin_p) bf16
    if pre_act:
        # Fused BatchNorm(prev layer) affine + ReLU on the halo tile.  The
        # spatial zero padding must stay exactly zero, so the border is
        # masked back to 0 after the affine.
        g_row = i * th + lax.broadcasted_iota(jnp.int32, (th + 2, wp, 1), 0)
        col = lax.broadcasted_iota(jnp.int32, (th + 2, wp, 1), 1)
        interior = ((g_row >= 1) & (g_row <= h_out)
                    & (col >= 1) & (col <= w_out))
        xa = jnp.maximum(x.astype(jnp.float32) * sc_ref[...] + sh_ref[...], 0.0)
        x = jnp.where(interior, xa, 0.0).astype(jnp.bfloat16)

    # 3x3 conv as 3 MXU calls: per-kh im2col along kw (K = 3*cin_p).
    acc = jnp.zeros((th * w_out, cout_p), jnp.float32)
    for kh in range(3):
        xr = x[kh:kh + th]
        patch = jnp.concatenate(
            [xr[:, kw:kw + w_out, :] for kw in range(3)],
            axis=-1).reshape(th * w_out, 3 * cin_p)
        acc = acc + jnp.dot(patch, w_ref[kh],
                            preferred_element_type=jnp.float32)

    # BN pass-1 partials on the PRE-bias accumulator (bias-shifted sums avoid
    # catastrophic E[y^2]-E[y]^2 cancellation; _bn_affine adds the bias back).
    s = jnp.sum(acc, axis=0, keepdims=True)
    ss = jnp.sum(acc * acc, axis=0, keepdims=True)
    st_ref[...] = jnp.concatenate([s, ss], axis=0).reshape(1, 1, 2, cout_p)

    y_ref[...] = (acc + b_ref[...]).reshape(1, th, w_out, cout_p).astype(y_ref.dtype)


def conv3x3_stats(xp, w, b, scale_in, shift_in, h_out, w_out, th,
                  pre_act, y_dtype):
    """3x3 'valid' conv over zero-padded NHWC input + bias, plus per-tile
    channel sum / sumsq of the pre-bias output.

    xp: (N, h_out+2, >= w_out+2, Cin_p) bf16   (already zero padded)
    w : (3, 3*Cin_p, Cout_p) bf16              (kh-major, rows ordered (kw,ci))
    b : (Cout_p,) f32
    scale_in/shift_in: (Cin_p,) f32 — applied (with ReLU) to the input tile
        iff pre_act (fused BN of the previous layer).
    """
    N, _, wp, cin_p = xp.shape
    cout_p = w.shape[2]
    nrt = h_out // th
    flops = 2 * N * h_out * w_out * 9 * cin_p * cout_p
    y_bytes = N * h_out * w_out * cout_p * jnp.dtype(y_dtype).itemsize
    bytes_accessed = (xp.size * 2 + w.size * 2 + cout_p * 4 + 2 * cin_p * 4
                      + y_bytes + N * nrt * 2 * cout_p * 4)
    kernel = functools.partial(_conv_stats_kernel, th=th, h_out=h_out,
                               w_out=w_out, pre_act=pre_act)
    y, st = pl.pallas_call(
        kernel,
        out_shape=(
            jax.ShapeDtypeStruct((N, h_out, w_out, cout_p), y_dtype),
            jax.ShapeDtypeStruct((N, nrt, 2, cout_p), jnp.float32),
        ),
        grid=(N, nrt),
        in_specs=[
            pl.BlockSpec(memory_space=pl.ANY),                        # manual halo DMA
            pl.BlockSpec((3, 3 * cin_p, cout_p), lambda n, i: (0, 0, 0)),  # resident
            pl.BlockSpec((1, cout_p), lambda n, i: (0, 0)),                # resident
            pl.BlockSpec((1, cin_p), lambda n, i: (0, 0)),                 # resident
            pl.BlockSpec((1, cin_p), lambda n, i: (0, 0)),                 # resident
        ],
        out_specs=(
            pl.BlockSpec((1, th, w_out, cout_p), lambda n, i: (n, i, 0, 0)),
            pl.BlockSpec((1, 1, 2, cout_p), lambda n, i: (n, i, 0, 0)),
        ),
        scratch_shapes=[
            pltpu.VMEM((2, th + 2, wp, cin_p), jnp.bfloat16),  # double buffer
            pltpu.SemaphoreType.DMA((2,)),
        ],
        compiler_params=pltpu.CompilerParams(
            # N parallel (megacore), row tiles sequential so the manual
            # double-buffer priming at i==0 holds per image on every core.
            dimension_semantics=("parallel", "arbitrary"),
            vmem_limit_bytes=VMEM_LIMIT),
        cost_estimate=pl.CostEstimate(
            flops=flops, transcendentals=0, bytes_accessed=bytes_accessed),
    )(xp, w, b.reshape(1, cout_p),
      scale_in.reshape(1, cin_p), shift_in.reshape(1, cin_p))
    return y, st


# --------------------------------------------------------------------------
# Kernel 3: BatchNorm pass 2 (affine with global batch stats) + ReLU
# --------------------------------------------------------------------------
def _bn_relu_kernel(y_ref, sc_ref, sh_ref, o_ref):
    o_ref[...] = jnp.maximum(
        y_ref[...].astype(jnp.float32) * sc_ref[...] + sh_ref[...], 0.0
    ).astype(o_ref.dtype)


def bn_relu(y, scale, shift, out_dtype, cap=2048):
    M, C = y.shape
    tr = _pick_row_tile(M, cap)
    yr, Mr = y, M
    if tr == 0:
        Mr = _round_up(M, 8)
        yr = _pad_axis(y, 0, Mr)
        tr = _pick_row_tile(Mr, cap)
    in_b = jnp.dtype(y.dtype).itemsize
    out_b = jnp.dtype(out_dtype).itemsize
    out = pl.pallas_call(
        _bn_relu_kernel,
        out_shape=jax.ShapeDtypeStruct((Mr, C), out_dtype),
        grid=(Mr // tr,),
        in_specs=[
            pl.BlockSpec((tr, C), lambda i: (i, 0)),
            pl.BlockSpec((1, C), lambda i: (0, 0)),
            pl.BlockSpec((1, C), lambda i: (0, 0)),
        ],
        out_specs=pl.BlockSpec((tr, C), lambda i: (i, 0)),
        compiler_params=pltpu.CompilerParams(
            dimension_semantics=("parallel",),
            vmem_limit_bytes=VMEM_LIMIT),
        cost_estimate=pl.CostEstimate(
            flops=3 * Mr * C, transcendentals=0,
            bytes_accessed=Mr * C * (in_b + out_b) + 2 * C * 4),
    )(yr, scale.reshape(1, C), shift.reshape(1, C))
    return out if Mr == M else out[:M]


# --------------------------------------------------------------------------
# Glue (layout conversion, padding, 2x2 interleave, concat, stat reduction)
# --------------------------------------------------------------------------
def _pick_tile_h(h_out, w_out, wp, c_in_p, c_out_p, target_rows=2048):
    """Largest divisor of h_out whose halo tile + working set fit the VMEM
    budget (re-derived per call, so the same code is safe on v7x's 64 MiB/TC
    as well as v5e/v6e's 128 MiB)."""
    per_row = (2 * wp * c_in_p * 2                  # double-buffered bf16 halo
               + 2 * w_out * c_out_p * 4            # pipelined y out tile
               + 2 * w_out * (3 * c_in_p * 2 + 2 * c_out_p * 4))  # patch + acc
    th = max(1, min(h_out,
                    target_rows // max(w_out, 1),
                    VMEM_BUDGET // max(per_row, 1)))
    while h_out % th:
        th -= 1
    return th


def _conv3x3_weights(w_oihw, c_in_p, c_out_p):
    """(Cout,Cin,3,3) -> (3, 3*c_in_p, c_out_p) bf16, kh-major, rows (kw,ci)."""
    wk = jnp.transpose(w_oihw, (2, 3, 1, 0))                      # (3,3,ci,co)
    wk = _pad_axis(_pad_axis(wk, 2, c_in_p), 3, c_out_p)
    return wk.reshape(3, 3 * c_in_p, c_out_p).astype(jnp.bfloat16)


def _bn_affine(stats, bias_p, gamma_p, beta_p, count):
    """Combine per-tile (sum, sumsq) partials of the PRE-bias conv output into
    the BatchNorm (scale, shift).  gamma/beta/bias are zero in padded channel
    slots (guaranteed by _pad_axis) so padded lanes map to exactly 0."""
    s = jnp.sum(stats[:, :, 0, :], axis=(0, 1))
    ss = jnp.sum(stats[:, :, 1, :], axis=(0, 1))
    m = s / count
    var = jnp.maximum(ss / count - m * m, 0.0)        # biased (training-mode BN)
    scale = gamma_p * lax.rsqrt(var + EPS)
    shift = beta_p - (m + bias_p) * scale             # mean(y) = mean(acc) + b
    return scale, shift


def _pad_spatial_for_conv(x_nhwc):
    """Zero-pad H and W by 1; extra right pad so padded width is a multiple of 8."""
    _, _, W, _ = x_nhwc.shape
    wp = _round_up(W + 2, 8)
    return jnp.pad(x_nhwc, ((0, 0), (1, 1), (1, wp - W - 1), (0, 0)))


def decoder_block_2d(x_nchw, skip_nchw, params):
    N, Cin, H, W = x_nchw.shape
    Cout = params["b_up"].shape[0]
    H2, W2 = 2 * H, 2 * W
    cin_p = _round_up(Cin, LANE)
    cout_p = _round_up(Cout, LANE)

    x = jnp.transpose(x_nchw, (0, 2, 3, 1))            # NHWC
    skip = jnp.transpose(skip_nchw, (0, 2, 3, 1))      # NHWC

    # ---- ConvTranspose2d(k=2, s=2): per-pixel matmul, columns ordered (a,b,co)
    w_up = jnp.transpose(params["w_up"], (0, 2, 3, 1))             # (Cin,2,2,Cout)
    w_up = _pad_axis(_pad_axis(w_up, 0, cin_p), 3, cout_p)
    w_up = w_up.reshape(cin_p, 4 * cout_p).astype(jnp.bfloat16)
    b_up = jnp.tile(_pad_axis(params["b_up"], 0, cout_p), 4)       # (4*cout_p,)
    x_flat = _pad_axis(x.reshape(N * H * W, Cin), 1, cin_p).astype(jnp.bfloat16)
    y_up = matmul_bias(x_flat, w_up, b_up)                         # bf16
    up = (y_up.reshape(N, H, W, 2, 2, cout_p)
              .transpose(0, 1, 3, 2, 4, 5)
              .reshape(N, H2, W2, cout_p))[..., :Cout]

    # ---- torch.cat([x, skip], dim=1) -> channel concat in NHWC (x first)
    # TODO(synk): fuse the 2x2 interleave + channel concat + zero-pad into
    # conv1's halo DMA (read y_up and skip as separate pl.ANY HBM refs and
    # assemble the tile in VMEM) to remove the remaining XLA glue passes.
    cat = jnp.concatenate([up, skip.astype(jnp.bfloat16)], axis=-1)
    xp1 = _pad_spatial_for_conv(_pad_axis(cat, 3, cin_p))

    th = _pick_tile_h(H2, W2, xp1.shape[2], max(cin_p, cout_p), cout_p)
    cnt = float(N * H2 * W2)

    # ---- conv1 + BN1 pass-1 stats.  y1 is the raw conv output in bf16; its
    # BN affine + ReLU is fused into conv2's input path below.
    wk1 = _conv3x3_weights(params["w1"], cin_p, cout_p)
    b1 = _pad_axis(params["b1"], 0, cout_p)
    y1, st1 = conv3x3_stats(
        xp1, wk1, b1,
        jnp.ones((cin_p,), jnp.float32), jnp.zeros((cin_p,), jnp.float32),
        H2, W2, th, pre_act=False, y_dtype=jnp.bfloat16)
    scale1, shift1 = _bn_affine(st1, b1, _pad_axis(params["g1"], 0, cout_p),
                                _pad_axis(params["be1"], 0, cout_p), cnt)

    # ---- conv2 with fused BN1 affine + ReLU on its halo tiles + BN2 stats.
    xp2 = _pad_spatial_for_conv(y1)                                # bf16
    wk2 = _conv3x3_weights(params["w2"], cout_p, cout_p)
    b2 = _pad_axis(params["b2"], 0, cout_p)
    y2, st2 = conv3x3_stats(xp2, wk2, b2, scale1, shift1,
                            H2, W2, th, pre_act=True, y_dtype=jnp.bfloat16)
    scale2, shift2 = _bn_affine(st2, b2, _pad_axis(params["g2"], 0, cout_p),
                                _pad_axis(params["be2"], 0, cout_p), cnt)

    # ---- BN2 pass-2 + ReLU (final output, f32).
    out = bn_relu(y2.reshape(N * H2 * W2, cout_p), scale2, shift2, jnp.float32)
    out = out.reshape(N, H2, W2, cout_p)[..., :Cout]
    return jnp.transpose(out, (0, 3, 1, 2))                       # back to NCHW


# --------------------------------------------------------------------------
# Pure-JAX reference (independent path via lax.conv_general_dilated)
# --------------------------------------------------------------------------
def reference(x, skip, p):
    dn = ("NCHW", "OIHW", "NCHW")
    w_t = jnp.transpose(p["w_up"], (1, 0, 2, 3))[:, :, ::-1, ::-1]
    up = lax.conv_general_dilated(
        x, w_t, window_strides=(1, 1), padding=((1, 1), (1, 1)),
        lhs_dilation=(2, 2), dimension_numbers=dn,
    ) + p["b_up"][None, :, None, None]
    h = jnp.concatenate([up, skip], axis=1)

    def cbr(h, w, b, g, be):
        y = lax.conv_general_dilated(
            h, w, (1, 1), ((1, 1), (1, 1)), dimension_numbers=dn
        ) + b[None, :, None, None]
        mu = y.mean(axis=(0, 2, 3), keepdims=True)
        var = ((y - mu) ** 2).mean(axis=(0, 2, 3), keepdims=True)
        yh = (y - mu) / jnp.sqrt(var + EPS)
        return jnp.maximum(yh * g[None, :, None, None] + be[None, :, None, None], 0.0)

    h = cbr(h, p["w1"], p["b1"], p["g1"], p["be1"])
    h = cbr(h, p["w2"], p["b2"], p["g2"], p["be2"])
    return h


def init_params(key, in_channels, out_channels):
    ks = jax.random.split(key, 10)
    s = 0.1
    return {
        "w_up": s * jax.random.normal(ks[0], (in_channels, out_channels, 2, 2), jnp.float32),
        "b_up": s * jax.random.normal(ks[1], (out_channels,), jnp.float32),
        "w1":   s * jax.random.normal(ks[2], (out_channels, in_channels, 3, 3), jnp.float32),
        "b1":   s * jax.random.normal(ks[3], (out_channels,), jnp.float32),
        "g1":   1.0 + s * jax.random.normal(ks[4], (out_channels,), jnp.float32),
        "be1":  s * jax.random.normal(ks[5], (out_channels,), jnp.float32),
        "w2":   s * jax.random.normal(ks[6], (out_channels, out_channels, 3, 3), jnp.float32),
        "b2":   s * jax.random.normal(ks[7], (out_channels,), jnp.float32),
        "g2":   1.0 + s * jax.random.normal(ks[8], (out_channels,), jnp.float32),
        "be2":  s * jax.random.normal(ks[9], (out_channels,), jnp.float32),
    }


if __name__ == "__main__":
    key = jax.random.PRNGKey(0)
    k_x, k_skip, k_p = jax.random.split(key, 3)

    # U-Net convention: skip has (in_channels - out_channels) channels so the
    # channel concat matches conv1's in_channels.
    N, Cin, Cout, H, W = 2, 8, 4, 8, 8
    Cskip = Cin - Cout

    x = jax.random.normal(k_x, (N, Cin, H, W), jnp.float32)
    skip = jax.random.normal(k_skip, (N, Cskip, 2 * H, 2 * W), jnp.float32)
    params = init_params(k_p, Cin, Cout)

    decoder = jax.jit(decoder_block_2d)
    out = jax.block_until_ready(decoder(x, skip, params))
    assert out.shape == (N, Cout, 2 * H, 2 * W), out.shape

    ref = reference(x, skip, params)
    max_err = float(jnp.max(jnp.abs(out - ref)))
    # bf16 MXU operands + bf16 intermediates (y_up, y1, y2, fused pre-act)
    # -> looser tolerance than a pure-f32 pipeline.
    assert jnp.allclose(out, ref, atol=7e-2, rtol=7e-2), max_err

    print("KERNEL_OK")
</pallas_src>

<mosaic_0001>
module attributes {stable_mosaic.version = 11 : i64} {
  func.func @_matmul_bias_kernel(%arg0: i32, %arg1: memref<128x128xbf16, #tpu.memory_space<vmem>>, %arg2: memref<128x512xbf16, #tpu.memory_space<vmem>>, %arg3: memref<1x512xf32, #tpu.memory_space<vmem>>, %arg4: memref<128x512xbf16, #tpu.memory_space<vmem>>) attributes {dimension_semantics = [#tpu.dimension_semantics<parallel>], iteration_bounds = array<i64: 1>, scalar_prefetch = 0 : i64, scratch_operands = 0 : i64, tpu.core_type = #tpu.core_type<tc>, window_params = [{transform_indices = @transform_0, window_bounds = array<i64: 128, 128>}, {pipeline_mode = #tpu.pipeline_mode<synchronous>, transform_indices = @transform_1, window_bounds = array<i64: 128, 512>}, {pipeline_mode = #tpu.pipeline_mode<synchronous>, transform_indices = @transform_2, window_bounds = array<i64: 1, 512>}, {transform_indices = @transform_3, window_bounds = array<i64: 128, 512>}]} {
    %c0 = arith.constant 0 : index
    %c0_0 = arith.constant 0 : index
    %0 = vector.load %arg1[%c0, %c0_0] : memref<128x128xbf16, #tpu.memory_space<vmem>>, vector<128x128xbf16>
    %c0_1 = arith.constant 0 : index
    %c0_2 = arith.constant 0 : index
    %1 = vector.load %arg2[%c0_1, %c0_2] : memref<128x512xbf16, #tpu.memory_space<vmem>>, vector<128x512xbf16>
    %cst = arith.constant dense<0.000000e+00> : vector<128x512xf32>
    %2 = tpu.matmul %0, %1, %cst {dimension_numbers = #tpu.dot_dimension_numbers<[1], [0], [0], [1], [0, 0, 1, 1], [], []>} : vector<128x128xbf16>, vector<128x512xbf16>, vector<128x512xf32> -> vector<128x512xf32>
    %c0_3 = arith.constant 0 : index
    %c0_4 = arith.constant 0 : index
    %3 = vector.load %arg3[%c0_3, %c0_4] : memref<1x512xf32, #tpu.memory_space<vmem>>, vector<1x512xf32>
    %4 = vector.broadcast %3 : vector<1x512xf32> to vector<128x512xf32>
    %5 = arith.addf %2, %4 : vector<128x512xf32>
    %6 = arith.truncf %5 : vector<128x512xf32> to vector<128x512xbf16>
    %c0_5 = arith.constant 0 : index
    %c0_6 = arith.constant 0 : index
    %7 = vector.load %arg4[%c0_5, %c0_6] : memref<128x512xbf16, #tpu.memory_space<vmem>>, vector<128x512xbf16>
    tpu.vector_store %arg4[%c0_5, %c0_6], %6 {strides = array<i32>} : memref<128x512xbf16, #tpu.memory_space<vmem>>, vector<128x512xbf16>,
    return
  }
  func.func @transform_0(%arg0: i32) -> (i32, i32) {
    %c0_i32 = arith.constant 0 : i32
    %c0_i32_0 = arith.constant 0 : i32
    return %arg0, %c0_i32 : i32, i32
  }
  func.func @transform_1(%arg0: i32) -> (i32, i32) {
    %c0_i32 = arith.constant 0 : i32
    %c0_i32_0 = arith.constant 0 : i32
    %c0_i32_1 = arith.constant 0 : i32
    return %c0_i32, %c0_i32_0 : i32, i32
  }
  func.func @transform_2(%arg0: i32) -> (i32, i32) {
    %c0_i32 = arith.constant 0 : i32
    %c0_i32_0 = arith.constant 0 : i32
    %c0_i32_1 = arith.constant 0 : i32
    return %c0_i32, %c0_i32_0 : i32, i32
  }
  func.func @transform_3(%arg0: i32) -> (i32, i32) {
    %c0_i32 = arith.constant 0 : i32
    %c0_i32_0 = arith.constant 0 : i32
    return %arg0, %c0_i32 : i32, i32
  }
}

module attributes {stable_mosaic.version = 11 : i64} {
  func.func @_conv_stats_kernel(%arg0: i32, %arg1: i32, %arg2: memref<2x18x24x128xbf16, #tpu.memory_space<any>>, %arg3: memref<3x384x128xbf16, #tpu.memory_space<vmem>>, %arg4: memref<1x128xf32, #tpu.memory_space<vmem>>, %arg5: memref<1x128xf32, #tpu.memory_space<vmem>>, %arg6: memref<1x128xf32, #tpu.memory_space<vmem>>, %arg7: memref<1x16x16x128xbf16, #tpu.memory_space<vmem>>, %arg8: memref<1x1x2x128xf32, #tpu.memory_space<vmem>>, %arg9: memref<2x18x24x128xbf16, #tpu.memory_space<vmem>>, %arg10: memref<2x!tpu.dma_semaphore, #tpu.memory_space<semaphore_mem>>) attributes {dimension_semantics = [#tpu.dimension_semantics<parallel>, #tpu.dimension_semantics<arbitrary>], iteration_bounds = array<i64: 2, 1>, scalar_prefetch = 0 : i64, scratch_operands = 2 : i64, tpu.core_type = #tpu.core_type<tc>, window_params = [{}, {pipeline_mode = #tpu.pipeline_mode<synchronous>, transform_indices = @transform_1, window_bounds = array<i64: 3, 384, 128>}, {pipeline_mode = #tpu.pipeline_mode<synchronous>, transform_indices = @transform_2, window_bounds = array<i64: 1, 128>}, {pipeline_mode = #tpu.pipeline_mode<synchronous>, transform_indices = @transform_3, window_bounds = array<i64: 1, 128>}, {pipeline_mode = #tpu.pipeline_mode<synchronous>, transform_indices = @transform_4, window_bounds = array<i64: 1, 128>}, {transform_indices = @transform_5, window_bounds = array<i64: 1, 16, 16, 128>}, {transform_indices = @transform_6, window_bounds = array<i64: 1, 1, 2, 128>}]} {
    %c0_i32 = arith.constant 0 : i32
    %0 = arith.cmpi eq, %arg1, %c0_i32 : i32
    %1 = arith.extui %0 : i1 to i32
    %c0_i32_0 = arith.constant 0 : i32
    %2 = arith.cmpi ne, %1, %c0_i32_0 : i32
    scf.if %2 {
      %c0_i32_37 = arith.constant 0 : i32
      %c0_i32_38 = arith.constant 0 : i32
      %c0_i32_39 = arith.constant 0 : i32
      %c0_i32_40 = arith.constant 0 : i32
      %c0_i32_41 = arith.constant 0 : i32
      %72 = tpu.memref_slice %arg2[%arg0, %c0_i32_39, %c0_i32_40, %c0_i32_41] : memref<2x18x24x128xbf16, #tpu.memory_space<any>> -> memref<1x18x24x128xbf16, #tpu.memory_space<any>>
      %73 = tpu.memref_squeeze %72 : memref<1x18x24x128xbf16, #tpu.memory_space<any>> -> memref<18x24x128xbf16, #tpu.memory_space<any>>
      %c0_i32_42 = arith.constant 0 : i32
      %c0_i32_43 = arith.constant 0 : i32
      %c0_i32_44 = arith.constant 0 : i32
      %74 = tpu.memref_slice %arg9[%c0_i32_37, %c0_i32_42, %c0_i32_43, %c0_i32_44] : memref<2x18x24x128xbf16, #tpu.memory_space<vmem>> -> memref<1x18x24x128xbf16, #tpu.memory_space<vmem>>
      %75 = tpu.memref_squeeze %74 : memref<1x18x24x128xbf16, #tpu.memory_space<vmem>> -> memref<18x24x128xbf16, #tpu.memory_space<vmem>>
      %76 = tpu.memref_slice %arg10[%c0_i32_38] : memref<2x!tpu.dma_semaphore, #tpu.memory_space<semaphore_mem>> -> memref<1x!tpu.dma_semaphore, #tpu.memory_space<semaphore_mem>>
      %77 = tpu.memref_squeeze %76 : memref<1x!tpu.dma_semaphore, #tpu.memory_space<semaphore_mem>> -> memref<!tpu.dma_semaphore, #tpu.memory_space<semaphore_mem>>
      tpu.enqueue_dma source(%73 : memref<18x24x128xbf16, #tpu.memory_space<any>>) target(%75 : memref<18x24x128xbf16, #tpu.memory_space<vmem>>) target_semaphore(%77 : memref<!tpu.dma_semaphore, #tpu.memory_space<semaphore_mem>>)
    } else {
    }
    %c2_i32 = arith.constant 2 : i32
    %c0_i32_1 = arith.constant 0 : i32
    %3 = arith.cmpi eq, %c2_i32, %c0_i32_1 : i32
    %c1_i32 = arith.constant 1 : i32
    %4 = arith.select %3, %c1_i32, %c2_i32 : i32
    %5 = arith.remsi %arg1, %4 : i32
    %c0_i32_2 = arith.constant 0 : i32
    %6 = arith.cmpi ne, %5, %c0_i32_2 : i32
    %c0_i32_3 = arith.constant 0 : i32
    %7 = arith.cmpi slt, %5, %c0_i32_3 : i32
    %c0_i32_4 = arith.constant 0 : i32
    %8 = arith.cmpi slt, %4, %c0_i32_4 : i32
    %9 = arith.xori %7, %8 : i1
    %10 = arith.andi %9, %6 : i1
    %11 = arith.addi %5, %4 : i32
    %12 = arith.select %10, %11, %5 : i32
    %c16_i32 = arith.constant 16 : i32
    %13 = arith.muli %arg1, %c16_i32 : i32
    %c0_i32_5 = arith.constant 0 : i32
    %c0_i32_6 = arith.constant 0 : i32
    %14 = tpu.memref_slice %arg2[%arg0, %13, %c0_i32_5, %c0_i32_6] : memref<2x18x24x128xbf16, #tpu.memory_space<any>> -> memref<1x18x24x128xbf16, #tpu.memory_space<any>>
    %15 = tpu.memref_squeeze %14 : memref<1x18x24x128xbf16, #tpu.memory_space<any>> -> memref<18x24x128xbf16, #tpu.memory_space<any>>
    %c0_i32_7 = arith.constant 0 : i32
    %c0_i32_8 = arith.constant 0 : i32
    %c0_i32_9 = arith.constant 0 : i32
    %16 = tpu.memref_slice %arg9[%12, %c0_i32_7, %c0_i32_8, %c0_i32_9] : memref<2x18x24x128xbf16, #tpu.memory_space<vmem>> -> memref<1x18x24x128xbf16, #tpu.memory_space<vmem>>
    %17 = tpu.memref_squeeze %16 : memref<1x18x24x128xbf16, #tpu.memory_space<vmem>> -> memref<18x24x128xbf16, #tpu.memory_space<vmem>>
    %18 = tpu.memref_slice %arg10[%12] : memref<2x!tpu.dma_semaphore, #tpu.memory_space<semaphore_mem>> -> memref<1x!tpu.dma_semaphore, #tpu.memory_space<semaphore_mem>>
    %19 = tpu.memref_squeeze %18 : memref<1x!tpu.dma_semaphore, #tpu.memory_space<semaphore_mem>> -> memref<!tpu.dma_semaphore, #tpu.memory_space<semaphore_mem>>
    tpu.wait_dma2 semaphore(%19 : memref<!tpu.dma_semaphore, #tpu.memory_space<semaphore_mem>>) src(%15 : memref<18x24x128xbf16, #tpu.memory_space<any>>) dst(%17 : memref<18x24x128xbf16, #tpu.memory_space<vmem>>)
    %c1_i32_10 = arith.constant 1 : i32
    %20 = arith.addi %arg1, %c1_i32_10 : i32
    %c1_i32_11 = arith.constant 1 : i32
    %21 = arith.cmpi slt, %20, %c1_i32_11 : i32
    %22 = arith.extui %21 : i1 to i32
    %c0_i32_12 = arith.constant 0 : i32
    %23 = arith.cmpi ne, %22, %c0_i32_12 : i32
    scf.if %23 {
      %c1_i32_37 = arith.constant 1 : i32
      %72 = arith.addi %arg1, %c1_i32_37 : i32
      %c1_i32_38 = arith.constant 1 : i32
      %73 = arith.addi %arg1, %c1_i32_38 : i32
      %c2_i32_39 = arith.constant 2 : i32
      %c0_i32_40 = arith.constant 0 : i32
      %74 = arith.cmpi eq, %c2_i32_39, %c0_i32_40 : i32
      %c1_i32_41 = arith.constant 1 : i32
      %75 = arith.select %74, %c1_i32_41, %c2_i32_39 : i32
      %76 = arith.remsi %73, %75 : i32
      %c0_i32_42 = arith.constant 0 : i32
      %77 = arith.cmpi ne, %76, %c0_i32_42 : i32
      %c0_i32_43 = arith.constant 0 : i32
      %78 = arith.cmpi slt, %76, %c0_i32_43 : i32
      %c0_i32_44 = arith.constant 0 : i32
      %79 = arith.cmpi slt, %75, %c0_i32_44 : i32
      %80 = arith.xori %78, %79 : i1
      %81 = arith.andi %80, %77 : i1
      %82 = arith.addi %76, %75 : i32
      %83 = arith.select %81, %82, %76 : i32
      %c16_i32_45 = arith.constant 16 : i32
      %84 = arith.muli %72, %c16_i32_45 : i32
      %c0_i32_46 = arith.constant 0 : i32
      %c0_i32_47 = arith.constant 0 : i32
      %85 = tpu.memref_slice %arg2[%arg0, %84, %c0_i32_46, %c0_i32_47] : memref<2x18x24x128xbf16, #tpu.memory_space<any>> -> memref<1x18x24x128xbf16, #tpu.memory_space<any>>
      %86 = tpu.memref_squeeze %85 : memref<1x18x24x128xbf16, #tpu.memory_space<any>> -> memref<18x24x128xbf16, #tpu.memory_space<any>>
      %c0_i32_48 = arith.constant 0 : i32
      %c0_i32_49 = arith.constant 0 : i32
      %c0_i32_50 = arith.constant 0 : i32
      %87 = tpu.memref_slice %arg9[%83, %c0_i32_48, %c0_i32_49, %c0_i32_50] : memref<2x18x24x128xbf16, #tpu.memory_space<vmem>> -> memref<1x18x24x128xbf16, #tpu.memory_space<vmem>>
      %88 = tpu.memref_squeeze %87 : memref<1x18x24x128xbf16, #tpu.memory_space<vmem>> -> memref<18x24x128xbf16, #tpu.memory_space<vmem>>
      %89 = tpu.memref_slice %arg10[%83] : memref<2x!tpu.dma_semaphore, #tpu.memory_space<semaphore_mem>> -> memref<1x!tpu.dma_semaphore, #tpu.memory_space<semaphore_mem>>
      %90 = tpu.memref_squeeze %89 : memref<1x!tpu.dma_semaphore, #tpu.memory_space<semaphore_mem>> -> memref<!tpu.dma_semaphore, #tpu.memory_space<semaphore_mem>>
      tpu.enqueue_dma source(%86 : memref<18x24x128xbf16, #tpu.memory_space<any>>) target(%88 : memref<18x24x128xbf16, #tpu.memory_space<vmem>>) target_semaphore(%90 : memref<!tpu.dma_semaphore, #tpu.memory_space<semaphore_mem>>)
    } else {
    }
    %24 = arith.index_cast %12 : i32 to index
    %c0 = arith.constant 0 : index
    %c0_13 = arith.constant 0 : index
    %c0_14 = arith.constant 0 : index
    %25 = vector.load %arg9[%24, %c0, %c0_13, %c0_14] : memref<2x18x24x128xbf16, #tpu.memory_space<vmem>>, vector<1x18x24x128xbf16>
    %26 = vector.shape_cast %25 : vector<1x18x24x128xbf16> to vector<18x24x128xbf16>
    %cst = arith.constant 0.000000e+00 : f32
    %27 = vector.broadcast %cst : f32 to vector<256x128xf32>
    %28 = vector.extract_strided_slice %26 {offsets = [0, 0, 0], sizes = [16, 24, 128], strides = [1, 1, 1]} : vector<18x24x128xbf16> to vector<16x24x128xbf16>
    %29 = vector.extract_strided_slice %28 {offsets = [0, 0, 0], sizes = [16, 16, 128], strides = [1, 1, 1]} : vector<16x24x128xbf16> to vector<16x16x128xbf16>
    %30 = vector.extract_strided_slice %28 {offsets = [0, 1, 0], sizes = [16, 16, 128], strides = [1, 1, 1]} : vector<16x24x128xbf16> to vector<16x16x128xbf16>
    %31 = vector.extract_strided_slice %28 {offsets = [0, 2, 0], sizes = [16, 16, 128], strides = [1, 1, 1]} : vector<16x24x128xbf16> to vector<16x16x128xbf16>
    %32 = tpu.concatenate %29, %30, %31 in 2 : vector<16x16x128xbf16>, vector<16x16x128xbf16>, vector<16x16x128xbf16> -> vector<16x16x384xbf16>
    %33 = vector.shape_cast %32 : vector<16x16x384xbf16> to vector<256x384xbf16>
    %c0_15 = arith.constant 0 : index
    %c0_16 = arith.constant 0 : index
    %c0_17 = arith.constant 0 : index
    %34 = vector.load %arg3[%c0_15, %c0_16, %c0_17] : memref<3x384x128xbf16, #tpu.memory_space<vmem>>, vector<1x384x128xbf16>
    %35 = vector.shape_cast %34 : vector<1x384x128xbf16> to vector<384x128xbf16>
    %cst_18 = arith.constant dense<0.000000e+00> : vector<256x128xf32>
    %36 = tpu.matmul %33, %35, %cst_18 {dimension_numbers = #tpu.dot_dimension_numbers<[1], [0], [0], [1], [0, 0, 1, 1], [], []>} : vector<256x384xbf16>, vector<384x128xbf16>, vector<256x128xf32> -> vector<256x128xf32>
    %37 = arith.addf %27, %36 : vector<256x128xf32>
    %38 = vector.extract_strided_slice %26 {offsets = [1, 0, 0], sizes = [16, 24, 128], strides = [1, 1, 1]} : vector<18x24x128xbf16> to vector<16x24x128xbf16>
    %39 = vector.extract_strided_slice %38 {offsets = [0, 0, 0], sizes = [16, 16, 128], strides = [1, 1, 1]} : vector<16x24x128xbf16> to vector<16x16x128xbf16>
    %40 = vector.extract_strided_slice %38 {offsets = [0, 1, 0], sizes = [16, 16, 128], strides = [1, 1, 1]} : vector<16x24x128xbf16> to vector<16x16x128xbf16>
    %41 = vector.extract_strided_slice %38 {offsets = [0, 2, 0], sizes = [16, 16, 128], strides = [1, 1, 1]} : vector<16x24x128xbf16> to vector<16x16x128xbf16>
    %42 = tpu.concatenate %39, %40, %41 in 2 : vector<16x16x128xbf16>, vector<16x16x128xbf16>, vector<16x16x128xbf16> -> vector<16x16x384xbf16>
    %43 = vector.shape_cast %42 : vector<16x16x384xbf16> to vector<256x384xbf16>
    %c1 = arith.constant 1 : index
    %c0_19 = arith.constant 0 : index
    %c0_20 = arith.constant 0 : index
    %44 = vector.load %arg3[%c1, %c0_19, %c0_20] : memref<3x384x128xbf16, #tpu.memory_space<vmem>>, vector<1x384x128xbf16>
    %45 = vector.shape_cast %44 : vector<1x384x128xbf16> to vector<384x128xbf16>
    %cst_21 = arith.constant dense<0.000000e+00> : vector<256x128xf32>
    %46 = tpu.matmul %43, %45, %cst_21 {dimension_numbers = #tpu.dot_dimension_numbers<[1], [0], [0], [1], [0, 0, 1, 1], [], []>} : vector<256x384xbf16>, vector<384x128xbf16>, vector<256x128xf32> -> vector<256x128xf32>
    %47 = arith.addf %37, %46 : vector<256x128xf32>
    %48 = vector.extract_strided_slice %26 {offsets = [2, 0, 0], sizes = [16, 24, 128], strides = [1, 1, 1]} : vector<18x24x128xbf16> to vector<16x24x128xbf16>
    %49 = vector.extract_strided_slice %48 {offsets = [0, 0, 0], sizes = [16, 16, 128], strides = [1, 1, 1]} : vector<16x24x128xbf16> to vector<16x16x128xbf16>
    %50 = vector.extract_strided_slice %48 {offsets = [0, 1, 0], sizes = [16, 16, 128], strides = [1, 1, 1]} : vector<16x24x128xbf16> to vector<16x16x128xbf16>
    %51 = vector.extract_strided_slice %48 {offsets = [0, 2, 0], sizes = [16, 16, 128], strides = [1, 1, 1]} : vector<16x24x128xbf16> to vector<16x16x128xbf16>
    %52 = tpu.concatenate %49, %50, %51 in 2 : vector<16x16x128xbf16>, vector<16x16x128xbf16>, vector<16x16x128xbf16> -> vector<16x16x384xbf16>
    %53 = vector.shape_cast %52 : vector<16x16x384xbf16> to vector<256x384xbf16>
    %c2 = arith.constant 2 : index
    %c0_22 = arith.constant 0 : index
    %c0_23 = arith.constant 0 : index
    %54 = vector.load %arg3[%c2, %c0_22, %c0_23] : memref<3x384x128xbf16, #tpu.memory_space<vmem>>, vector<1x384x128xbf16>
    %55 = vector.shape_cast %54 : vector<1x384x128xbf16> to vector<384x128xbf16>
    %cst_24 = arith.constant dense<0.000000e+00> : vector<256x128xf32>
    %56 = tpu.matmul %53, %55, %cst_24 {dimension_numbers = #tpu.dot_dimension_numbers<[1], [0], [0], [1], [0, 0, 1, 1], [], []>} : vector<256x384xbf16>, vector<384x128xbf16>, vector<256x128xf32> -> vector<256x128xf32>
    %57 = arith.addf %47, %56 : vector<256x128xf32>
    %cst_25 = arith.constant dense<0.000000e+00> : vector<128xf32>
    %58 = vector.multi_reduction <add>, %57, %cst_25 [0] : vector<256x128xf32> to vector<128xf32>
    %59 = vector.shape_cast %58 : vector<128xf32> to vector<1x128xf32>
    %60 = arith.mulf %57, %57 : vector<256x128xf32>
    %cst_26 = arith.constant dense<0.000000e+00> : vector<128xf32>
    %61 = vector.multi_reduction <add>, %60, %cst_26 [0] : vector<256x128xf32> to vector<128xf32>
    %62 = vector.shape_cast %61 : vector<128xf32> to vector<1x128xf32>
    %63 = tpu.concatenate %59, %62 in 0 : vector<1x128xf32>, vector<1x128xf32> -> vector<2x128xf32>
    %64 = vector.shape_cast %63 : vector<2x128xf32> to vector<1x1x2x128xf32>
    %c0_27 = arith.constant 0 : index
    %c0_28 = arith.constant 0 : index
    %c0_29 = arith.constant 0 : index
    %c0_30 = arith.constant 0 : index
    %65 = vector.load %arg8[%c0_27, %c0_28, %c0_29, %c0_30] : memref<1x1x2x128xf32, #tpu.memory_space<vmem>>, vector<1x1x2x128xf32>
    tpu.vector_store %arg8[%c0_27, %c0_28, %c0_29, %c0_30], %64 {strides = array<i32>} : memref<1x1x2x128xf32, #tpu.memory_space<vmem>>, vector<1x1x2x128xf32>,
    %c0_31 = arith.constant 0 : index
    %c0_32 = arith.constant 0 : index
    %66 = vector.load %arg4[%c0_31, %c0_32] : memref<1x128xf32, #tpu.memory_space<vmem>>, vector<1x128xf32>
    %67 = vector.broadcast %66 : vector<1x128xf32> to vector<256x128xf32>
    %68 = arith.addf %57, %67 : vector<256x128xf32>
    %69 = vector.shape_cast %68 : vector<256x128xf32> to vector<1x16x16x128xf32>
    %70 = arith.truncf %69 : vector<1x16x16x128xf32> to vector<1x16x16x128xbf16>
    %c0_33 = arith.constant 0 : index
    %c0_34 = arith.constant 0 : index
    %c0_35 = arith.constant 0 : index
    %c0_36 = arith.constant 0 : index
    %71 = vector.load %arg7[%c0_33, %c0_34, %c0_35, %c0_36] : memref<1x16x16x128xbf16, #tpu.memory_space<vmem>>, vector<1x16x16x128xbf16>
    tpu.vector_store %arg7[%c0_33, %c0_34, %c0_35, %c0_36], %70 {strides = array<i32>} : memref<1x16x16x128xbf16, #tpu.memory_space<vmem>>, vector<1x16x16x128xbf16>,
    return
  }
  func.func @transform_1(%arg0: i32, %arg1: i32) -> (i32, i32, i32) {
    %c0_i32 = arith.constant 0 : i32
    %c0_i32_0 = arith.constant 0 : i32
    %c0_i32_1 = arith.constant 0 : i32
    %c0_i32_2 = arith.constant 0 : i32
    return %c0_i32, %c0_i32_0, %c0_i32_1 : i32, i32, i32
  }
  func.func @transform_2(%arg0: i32, %arg1: i32) -> (i32, i32) {
    %c0_i32 = arith.constant 0 : i32
    %c0_i32_0 = arith.constant 0 : i32
    %c0_i32_1 = arith.constant 0 : i32
    return %c0_i32, %c0_i32_0 : i32, i32
  }
  func.func @transform_3(%arg0: i32, %arg1: i32) -> (i32, i32) {
    %c0_i32 = arith.constant 0 : i32
    %c0_i32_0 = arith.constant 0 : i32
    %c0_i32_1 = arith.constant 0 : i32
    return %c0_i32, %c0_i32_0 : i32, i32
  }
  func.func @transform_4(%arg0: i32, %arg1: i32) -> (i32, i32) {
    %c0_i32 = arith.constant 0 : i32
    %c0_i32_0 = arith.constant 0 : i32
    %c0_i32_1 = arith.constant 0 : i32
    return %c0_i32, %c0_i32_0 : i32, i32
  }
  func.func @transform_5(%arg0: i32, %arg1: i32) -> (i32, i32, i32, i32) {
    %c0_i32 = arith.constant 0 : i32
    %c0_i32_0 = arith.constant 0 : i32
    %c0_i32_1 = arith.constant 0 : i32
    return %arg0, %arg1, %c0_i32, %c0_i32_0 : i32, i32, i32, i32
  }
  func.func @transform_6(%arg0: i32, %arg1: i32) -> (i32, i32, i32, i32) {
    %c0_i32 = arith.constant 0 : i32
    %c0_i32_0 = arith.constant 0 : i32
    %c0_i32_1 = arith.constant 0 : i32
    return %arg0, %arg1, %c0_i32, %c0_i32_0 : i32, i32, i32, i32
  }
}

module attributes {stable_mosaic.version = 11 : i64} {
  func.func @_bn_relu_kernel(%arg0: i32, %arg1: memref<512x128xbf16, #tpu.memory_space<vmem>>, %arg2: memref<1x128xf32, #tpu.memory_space<vmem>>, %arg3: memref<1x128xf32, #tpu.memory_space<vmem>>, %arg4: memref<512x128xf32, #tpu.memory_space<vmem>>) attributes {dimension_semantics = [#tpu.dimension_semantics<parallel>], iteration_bounds = array<i64: 1>, scalar_prefetch = 0 : i64, scratch_operands = 0 : i64, tpu.core_type = #tpu.core_type<tc>, window_params = [{transform_indices = @transform_0, window_bounds = array<i64: 512, 128>}, {pipeline_mode = #tpu.pipeline_mode<synchronous>, transform_indices = @transform_1, window_bounds = array<i64: 1, 128>}, {pipeline_mode = #tpu.pipeline_mode<synchronous>, transform_indices = @transform_2, window_bounds = array<i64: 1, 128>}, {transform_indices = @transform_3, window_bounds = array<i64: 512, 128>}]} {
    %c0 = arith.constant 0 : index
    %c0_0 = arith.constant 0 : index
    %0 = vector.load %arg1[%c0, %c0_0] : memref<512x128xbf16, #tpu.memory_space<vmem>>, vector<512x128xbf16>
    %1 = arith.extf %0 : vector<512x128xbf16> to vector<512x128xf32>
    %c0_1 = arith.constant 0 : index
    %c0_2 = arith.constant 0 : index
    %2 = vector.load %arg2[%c0_1, %c0_2] : memref<1x128xf32, #tpu.memory_space<vmem>>, vector<1x128xf32>
    %3 = vector.broadcast %2 : vector<1x128xf32> to vector<512x128xf32>
    %4 = arith.mulf %1, %3 : vector<512x128xf32>
    %c0_3 = arith.constant 0 : index
    %c0_4 = arith.constant 0 : index
    %5 = vector.load %arg3[%c0_3, %c0_4] : memref<1x128xf32, #tpu.memory_space<vmem>>, vector<1x128xf32>
    %6 = vector.broadcast %5 : vector<1x128xf32> to vector<512x128xf32>
    %7 = arith.addf %4, %6 : vector<512x128xf32>
    %cst = arith.constant 0.000000e+00 : f32
    %8 = vector.broadcast %cst : f32 to vector<512x128xf32>
    %9 = arith.maximumf %7, %8 : vector<512x128xf32>
    %c0_5 = arith.constant 0 : index
    %c0_6 = arith.constant 0 : index
    %10 = vector.load %arg4[%c0_5, %c0_6] : memref<512x128xf32, #tpu.memory_space<vmem>>, vector<512x128xf32>
    tpu.vector_store %arg4[%c0_5, %c0_6], %9 {strides = array<i32>} : memref<512x128xf32, #tpu.memory_space<vmem>>, vector<512x128xf32>,
    return
  }
  func.func @transform_0(%arg0: i32) -> (i32, i32) {
    %c0_i32 = arith.constant 0 : i32
    %c0_i32_0 = arith.constant 0 : i32
    return %arg0, %c0_i32 : i32, i32
  }
  func.func @transform_1(%arg0: i32) -> (i32, i32) {
    %c0_i32 = arith.constant 0 : i32
    %c0_i32_0 = arith.constant 0 : i32
    %c0_i32_1 = arith.constant 0 : i32
    return %c0_i32, %c0_i32_0 : i32, i32
  }
  func.func @transform_2(%arg0: i32) -> (i32, i32) {
    %c0_i32 = arith.constant 0 : i32
    %c0_i32_0 = arith.constant 0 : i32
    %c0_i32_1 = arith.constant 0 : i32
    return %c0_i32, %c0_i32_0 : i32, i32
  }
  func.func @transform_3(%arg0: i32) -> (i32, i32) {
    %c0_i32 = arith.constant 0 : i32
    %c0_i32_0 = arith.constant 0 : i32
    return %arg0, %c0_i32 : i32, i32
  }
}

module attributes {stable_mosaic.version = 11 : i64} {
  func.func @_conv_stats_kernel(%arg0: i32, %arg1: i32, %arg2: memref<2x18x24x128xbf16, #tpu.memory_space<any>>, %arg3: memref<3x384x128xbf16, #tpu.memory_space<vmem>>, %arg4: memref<1x128xf32, #tpu.memory_space<vmem>>, %arg5: memref<1x128xf32, #tpu.memory_space<vmem>>, %arg6: memref<1x128xf32, #tpu.memory_space<vmem>>, %arg7: memref<1x16x16x128xbf16, #tpu.memory_space<vmem>>, %arg8: memref<1x1x2x128xf32, #tpu.memory_space<vmem>>, %arg9: memref<2x18x24x128xbf16, #tpu.memory_space<vmem>>, %arg10: memref<2x!tpu.dma_semaphore, #tpu.memory_space<semaphore_mem>>) attributes {dimension_semantics = [#tpu.dimension_semantics<parallel>, #tpu.dimension_semantics<arbitrary>], iteration_bounds = array<i64: 2, 1>, scalar_prefetch = 0 : i64, scratch_operands = 2 : i64, tpu.core_type = #tpu.core_type<tc>, window_params = [{}, {pipeline_mode = #tpu.pipeline_mode<synchronous>, transform_indices = @transform_1, window_bounds = array<i64: 3, 384, 128>}, {pipeline_mode = #tpu.pipeline_mode<synchronous>, transform_indices = @transform_2, window_bounds = array<i64: 1, 128>}, {pipeline_mode = #tpu.pipeline_mode<synchronous>, transform_indices = @transform_3, window_bounds = array<i64: 1, 128>}, {pipeline_mode = #tpu.pipeline_mode<synchronous>, transform_indices = @transform_4, window_bounds = array<i64: 1, 128>}, {transform_indices = @transform_5, window_bounds = array<i64: 1, 16, 16, 128>}, {transform_indices = @transform_6, window_bounds = array<i64: 1, 1, 2, 128>}]} {
    %c0_i32 = arith.constant 0 : i32
    %0 = arith.cmpi eq, %arg1, %c0_i32 : i32
    %1 = arith.extui %0 : i1 to i32
    %c0_i32_0 = arith.constant 0 : i32
    %2 = arith.cmpi ne, %1, %c0_i32_0 : i32
    scf.if %2 {
      %c0_i32_48 = arith.constant 0 : i32
      %c0_i32_49 = arith.constant 0 : i32
      %c0_i32_50 = arith.constant 0 : i32
      %c0_i32_51 = arith.constant 0 : i32
      %c0_i32_52 = arith.constant 0 : i32
      %104 = tpu.memref_slice %arg2[%arg0, %c0_i32_50, %c0_i32_51, %c0_i32_52] : memref<2x18x24x128xbf16, #tpu.memory_space<any>> -> memref<1x18x24x128xbf16, #tpu.memory_space<any>>
      %105 = tpu.memref_squeeze %104 : memref<1x18x24x128xbf16, #tpu.memory_space<any>> -> memref<18x24x128xbf16, #tpu.memory_space<any>>
      %c0_i32_53 = arith.constant 0 : i32
      %c0_i32_54 = arith.constant 0 : i32
      %c0_i32_55 = arith.constant 0 : i32
      %106 = tpu.memref_slice %arg9[%c0_i32_48, %c0_i32_53, %c0_i32_54, %c0_i32_55] : memref<2x18x24x128xbf16, #tpu.memory_space<vmem>> -> memref<1x18x24x128xbf16, #tpu.memory_space<vmem>>
      %107 = tpu.memref_squeeze %106 : memref<1x18x24x128xbf16, #tpu.memory_space<vmem>> -> memref<18x24x128xbf16, #tpu.memory_space<vmem>>
      %108 = tpu.memref_slice %arg10[%c0_i32_49] : memref<2x!tpu.dma_semaphore, #tpu.memory_space<semaphore_mem>> -> memref<1x!tpu.dma_semaphore, #tpu.memory_space<semaphore_mem>>
      %109 = tpu.memref_squeeze %108 : memref<1x!tpu.dma_semaphore, #tpu.memory_space<semaphore_mem>> -> memref<!tpu.dma_semaphore, #tpu.memory_space<semaphore_mem>>
      tpu.enqueue_dma source(%105 : memref<18x24x128xbf16, #tpu.memory_space<any>>) target(%107 : memref<18x24x128xbf16, #tpu.memory_space<vmem>>) target_semaphore(%109 : memref<!tpu.dma_semaphore, #tpu.memory_space<semaphore_mem>>)
    } else {
    }
    %c2_i32 = arith.constant 2 : i32
    %c0_i32_1 = arith.constant 0 : i32
    %3 = arith.cmpi eq, %c2_i32, %c0_i32_1 : i32
    %c1_i32 = arith.constant 1 : i32
    %4 = arith.select %3, %c1_i32, %c2_i32 : i32
    %5 = arith.remsi %arg1, %4 : i32
    %c0_i32_2 = arith.constant 0 : i32
    %6 = arith.cmpi ne, %5, %c0_i32_2 : i32
    %c0_i32_3 = arith.constant 0 : i32
    %7 = arith.cmpi slt, %5, %c0_i32_3 : i32
    %c0_i32_4 = arith.constant 0 : i32
    %8 = arith.cmpi slt, %4, %c0_i32_4 : i32
    %9 = arith.xori %7, %8 : i1
    %10 = arith.andi %9, %6 : i1
    %11 = arith.addi %5, %4 : i32
    %12 = arith.select %10, %11, %5 : i32
    %c16_i32 = arith.constant 16 : i32
    %13 = arith.muli %arg1, %c16_i32 : i32
    %c0_i32_5 = arith.constant 0 : i32
    %c0_i32_6 = arith.constant 0 : i32
    %14 = tpu.memref_slice %arg2[%arg0, %13, %c0_i32_5, %c0_i32_6] : memref<2x18x24x128xbf16, #tpu.memory_space<any>> -> memref<1x18x24x128xbf16, #tpu.memory_space<any>>
    %15 = tpu.memref_squeeze %14 : memref<1x18x24x128xbf16, #tpu.memory_space<any>> -> memref<18x24x128xbf16, #tpu.memory_space<any>>
    %c0_i32_7 = arith.constant 0 : i32
    %c0_i32_8 = arith.constant 0 : i32
    %c0_i32_9 = arith.constant 0 : i32
    %16 = tpu.memref_slice %arg9[%12, %c0_i32_7, %c0_i32_8, %c0_i32_9] : memref<2x18x24x128xbf16, #tpu.memory_space<vmem>> -> memref<1x18x24x128xbf16, #tpu.memory_space<vmem>>
    %17 = tpu.memref_squeeze %16 : memref<1x18x24x128xbf16, #tpu.memory_space<vmem>> -> memref<18x24x128xbf16, #tpu.memory_space<vmem>>
    %18 = tpu.memref_slice %arg10[%12] : memref<2x!tpu.dma_semaphore, #tpu.memory_space<semaphore_mem>> -> memref<1x!tpu.dma_semaphore, #tpu.memory_space<semaphore_mem>>
    %19 = tpu.memref_squeeze %18 : memref<1x!tpu.dma_semaphore, #tpu.memory_space<semaphore_mem>> -> memref<!tpu.dma_semaphore, #tpu.memory_space<semaphore_mem>>
    tpu.wait_dma2 semaphore(%19 : memref<!tpu.dma_semaphore, #tpu.memory_space<semaphore_mem>>) src(%15 : memref<18x24x128xbf16, #tpu.memory_space<any>>) dst(%17 : memref<18x24x128xbf16, #tpu.memory_space<vmem>>)
    %c1_i32_10 = arith.constant 1 : i32
    %20 = arith.addi %arg1, %c1_i32_10 : i32
    %c1_i32_11 = arith.constant 1 : i32
    %21 = arith.cmpi slt, %20, %c1_i32_11 : i32
    %22 = arith.extui %21 : i1 to i32
    %c0_i32_12 = arith.constant 0 : i32
    %23 = arith.cmpi ne, %22, %c0_i32_12 : i32
    scf.if %23 {
      %c1_i32_48 = arith.constant 1 : i32
      %104 = arith.addi %arg1, %c1_i32_48 : i32
      %c1_i32_49 = arith.constant 1 : i32
      %105 = arith.addi %arg1, %c1_i32_49 : i32
      %c2_i32_50 = arith.constant 2 : i32
      %c0_i32_51 = arith.constant 0 : i32
      %106 = arith.cmpi eq, %c2_i32_50, %c0_i32_51 : i32
      %c1_i32_52 = arith.constant 1 : i32
      %107 = arith.select %106, %c1_i32_52, %c2_i32_50 : i32
      %108 = arith.remsi %105, %107 : i32
      %c0_i32_53 = arith.constant 0 : i32
      %109 = arith.cmpi ne, %108, %c0_i32_53 : i32
      %c0_i32_54 = arith.constant 0 : i32
      %110 = arith.cmpi slt, %108, %c0_i32_54 : i32
      %c0_i32_55 = arith.constant 0 : i32
      %111 = arith.cmpi slt, %107, %c0_i32_55 : i32
      %112 = arith.xori %110, %111 : i1
      %113 = arith.andi %112, %109 : i1
      %114 = arith.addi %108, %107 : i32
      %115 = arith.select %113, %114, %108 : i32
      %c16_i32_56 = arith.constant 16 : i32
      %116 = arith.muli %104, %c16_i32_56 : i32
      %c0_i32_57 = arith.constant 0 : i32
      %c0_i32_58 = arith.constant 0 : i32
      %117 = tpu.memref_slice %arg2[%arg0, %116, %c0_i32_57, %c0_i32_58] : memref<2x18x24x128xbf16, #tpu.memory_space<any>> -> memref<1x18x24x128xbf16, #tpu.memory_space<any>>
      %118 = tpu.memref_squeeze %117 : memref<1x18x24x128xbf16, #tpu.memory_space<any>> -> memref<18x24x128xbf16, #tpu.memory_space<any>>
      %c0_i32_59 = arith.constant 0 : i32
      %c0_i32_60 = arith.constant 0 : i32
      %c0_i32_61 = arith.constant 0 : i32
      %119 = tpu.memref_slice %arg9[%115, %c0_i32_59, %c0_i32_60, %c0_i32_61] : memref<2x18x24x128xbf16, #tpu.memory_space<vmem>> -> memref<1x18x24x128xbf16, #tpu.memory_space<vmem>>
      %120 = tpu.memref_squeeze %119 : memref<1x18x24x128xbf16, #tpu.memory_space<vmem>> -> memref<18x24x128xbf16, #tpu.memory_space<vmem>>
      %121 = tpu.memref_slice %arg10[%115] : memref<2x!tpu.dma_semaphore, #tpu.memory_space<semaphore_mem>> -> memref<1x!tpu.dma_semaphore, #tpu.memory_space<semaphore_mem>>
      %122 = tpu.memref_squeeze %121 : memref<1x!tpu.dma_semaphore, #tpu.memory_space<semaphore_mem>> -> memref<!tpu.dma_semaphore, #tpu.memory_space<semaphore_mem>>
      tpu.enqueue_dma source(%118 : memref<18x24x128xbf16, #tpu.memory_space<any>>) target(%120 : memref<18x24x128xbf16, #tpu.memory_space<vmem>>) target_semaphore(%122 : memref<!tpu.dma_semaphore, #tpu.memory_space<semaphore_mem>>)
    } else {
    }
    %24 = arith.index_cast %12 : i32 to index
    %c0 = arith.constant 0 : index
    %c0_13 = arith.constant 0 : index
    %c0_14 = arith.constant 0 : index
    %25 = vector.load %arg9[%24, %c0, %c0_13, %c0_14] : memref<2x18x24x128xbf16, #tpu.memory_space<vmem>>, vector<1x18x24x128xbf16>
    %26 = vector.shape_cast %25 : vector<1x18x24x128xbf16> to vector<18x24x128xbf16>
    %c16_i32_15 = arith.constant 16 : i32
    %27 = arith.muli %arg1, %c16_i32_15 : i32
    %28 = tpu.iota {dimensions = array<i32: 0>} : vector<18x24x1xi32>
    %29 = vector.broadcast %27 : i32 to vector<18x24x1xi32>
    %30 = arith.addi %29, %28 : vector<18x24x1xi32>
    %31 = tpu.iota {dimensions = array<i32: 1>} : vector<18x24x1xi32>
    %c1_i32_16 = arith.constant 1 : i32
    %32 = vector.broadcast %c1_i32_16 : i32 to vector<18x24x1xi32>
    %33 = arith.cmpi sge, %30, %32 : vector<18x24x1xi32>
    %c16_i32_17 = arith.constant 16 : i32
    %34 = vector.broadcast %c16_i32_17 : i32 to vector<18x24x1xi32>
    %35 = arith.cmpi sle, %30, %34 : vector<18x24x1xi32>
    %36 = arith.andi %33, %35 : vector<18x24x1xi1>
    %c1_i32_18 = arith.constant 1 : i32
    %37 = vector.broadcast %c1_i32_18 : i32 to vector<18x24x1xi32>
    %38 = arith.cmpi sge, %31, %37 : vector<18x24x1xi32>
    %39 = arith.andi %36, %38 : vector<18x24x1xi1>
    %c16_i32_19 = arith.constant 16 : i32
    %40 = vector.broadcast %c16_i32_19 : i32 to vector<18x24x1xi32>
    %41 = arith.cmpi sle, %31, %40 : vector<18x24x1xi32>
    %42 = arith.andi %39, %41 : vector<18x24x1xi1>
    %43 = arith.extf %26 : vector<18x24x128xbf16> to vector<18x24x128xf32>
    %c0_20 = arith.constant 0 : index
    %c0_21 = arith.constant 0 : index
    %44 = vector.load %arg5[%c0_20, %c0_21] : memref<1x128xf32, #tpu.memory_space<vmem>>, vector<1x128xf32>
    %45 = vector.shape_cast %44 : vector<1x128xf32> to vector<1x1x128xf32>
    %46 = vector.broadcast %45 : vector<1x1x128xf32> to vector<18x24x128xf32>
    %47 = arith.mulf %43, %46 : vector<18x24x128xf32>
    %c0_22 = arith.constant 0 : index
    %c0_23 = arith.constant 0 : index
    %48 = vector.load %arg6[%c0_22, %c0_23] : memref<1x128xf32, #tpu.memory_space<vmem>>, vector<1x128xf32>
    %49 = vector.shape_cast %48 : vector<1x128xf32> to vector<1x1x128xf32>
    %50 = vector.broadcast %49 : vector<1x1x128xf32> to vector<18x24x128xf32>
    %51 = arith.addf %47, %50 : vector<18x24x128xf32>
    %cst = arith.constant 0.000000e+00 : f32
    %52 = vector.broadcast %cst : f32 to vector<18x24x128xf32>
    %53 = arith.maximumf %51, %52 : vector<18x24x128xf32>
    %cst_24 = arith.constant 0.000000e+00 : f32
    %54 = vector.shape_cast %42 : vector<18x24x1xi1> to vector<18x24x1xi1>
    %55 = vector.broadcast %54 : vector<18x24x1xi1> to vector<18x24x128xi1>
    %56 = vector.broadcast %cst_24 : f32 to vector<18x24x128xf32>
    %57 = arith.select %55, %53, %56 : vector<18x24x128xi1>, vector<18x24x128xf32>
    %58 = arith.truncf %57 : vector<18x24x128xf32> to vector<18x24x128xbf16>
    %cst_25 = arith.constant 0.000000e+00 : f32
    %59 = vector.broadcast %cst_25 : f32 to vector<256x128xf32>
    %60 = vector.extract_strided_slice %58 {offsets = [0, 0, 0], sizes = [16, 24, 128], strides = [1, 1, 1]} : vector<18x24x128xbf16> to vector<16x24x128xbf16>
    %61 = vector.extract_strided_slice %60 {offsets = [0, 0, 0], sizes = [16, 16, 128], strides = [1, 1, 1]} : vector<16x24x128xbf16> to vector<16x16x128xbf16>
    %62 = vector.extract_strided_slice %60 {offsets = [0, 1, 0], sizes = [16, 16, 128], strides = [1, 1, 1]} : vector<16x24x128xbf16> to vector<16x16x128xbf16>
    %63 = vector.extract_strided_slice %60 {offsets = [0, 2, 0], sizes = [16, 16, 128], strides = [1, 1, 1]} : vector<16x24x128xbf16> to vector<16x16x128xbf16>
    %64 = tpu.concatenate %61, %62, %63 in 2 : vector<16x16x128xbf16>, vector<16x16x128xbf16>, vector<16x16x128xbf16> -> vector<16x16x384xbf16>
    %65 = vector.shape_cast %64 : vector<16x16x384xbf16> to vector<256x384xbf16>
    %c0_26 = arith.constant 0 : index
    %c0_27 = arith.constant 0 : index
    %c0_28 = arith.constant 0 : index
    %66 = vector.load %arg3[%c0_26, %c0_27, %c0_28] : memref<3x384x128xbf16, #tpu.memory_space<vmem>>, vector<1x384x128xbf16>
    %67 = vector.shape_cast %66 : vector<1x384x128xbf16> to vector<384x128xbf16>
    %cst_29 = arith.constant dense<0.000000e+00> : vector<256x128xf32>
    %68 = tpu.matmul %65, %67, %cst_29 {dimension_numbers = #tpu.dot_dimension_numbers<[1], [0], [0], [1], [0, 0, 1, 1], [], []>} : vector<256x384xbf16>, vector<384x128xbf16>, vector<256x128xf32> -> vector<256x128xf32>
    %69 = arith.addf %59, %68 : vector<256x128xf32>
    %70 = vector.extract_strided_slice %58 {offsets = [1, 0, 0], sizes = [16, 24, 128], strides = [1, 1, 1]} : vector<18x24x128xbf16> to vector<16x24x128xbf16>
    %71 = vector.extract_strided_slice %70 {offsets = [0, 0, 0], sizes = [16, 16, 128], strides = [1, 1, 1]} : vector<16x24x128xbf16> to vector<16x16x128xbf16>
    %72 = vector.extract_strided_slice %70 {offsets = [0, 1, 0], sizes = [16, 16, 128], strides = [1, 1, 1]} : vector<16x24x128xbf16> to vector<16x16x128xbf16>
    %73 = vector.extract_strided_slice %70 {offsets = [0, 2, 0], sizes = [16, 16, 128], strides = [1, 1, 1]} : vector<16x24x128xbf16> to vector<16x16x128xbf16>
    %74 = tpu.concatenate %71, %72, %73 in 2 : vector<16x16x128xbf16>, vector<16x16x128xbf16>, vector<16x16x128xbf16> -> vector<16x16x384xbf16>
    %75 = vector.shape_cast %74 : vector<16x16x384xbf16> to vector<256x384xbf16>
    %c1 = arith.constant 1 : index
    %c0_30 = arith.constant 0 : index
    %c0_31 = arith.constant 0 : index
    %76 = vector.load %arg3[%c1, %c0_30, %c0_31] : memref<3x384x128xbf16, #tpu.memory_space<vmem>>, vector<1x384x128xbf16>
    %77 = vector.shape_cast %76 : vector<1x384x128xbf16> to vector<384x128xbf16>
    %cst_32 = arith.constant dense<0.000000e+00> : vector<256x128xf32>
    %78 = tpu.matmul %75, %77, %cst_32 {dimension_numbers = #tpu.dot_dimension_numbers<[1], [0], [0], [1], [0, 0, 1, 1], [], []>} : vector<256x384xbf16>, vector<384x128xbf16>, vector<256x128xf32> -> vector<256x128xf32>
    %79 = arith.addf %69, %78 : vector<256x128xf32>
    %80 = vector.extract_strided_slice %58 {offsets = [2, 0, 0], sizes = [16, 24, 128], strides = [1, 1, 1]} : vector<18x24x128xbf16> to vector<16x24x128xbf16>
    %81 = vector.extract_strided_slice %80 {offsets = [0, 0, 0], sizes = [16, 16, 128], strides = [1, 1, 1]} : vector<16x24x128xbf16> to vector<16x16x128xbf16>
    %82 = vector.extract_strided_slice %80 {offsets = [0, 1, 0], sizes = [16, 16, 128], strides = [1, 1, 1]} : vector<16x24x128xbf16> to vector<16x16x128xbf16>
    %83 = vector.extract_strided_slice %80 {offsets = [0, 2, 0], sizes = [16, 16, 128], strides = [1, 1, 1]} : vector<16x24x128xbf16> to vector<16x16x128xbf16>
    %84 = tpu.concatenate %81, %82, %83 in 2 : vector<16x16x128xbf16>, vector<16x16x128xbf16>, vector<16x16x128xbf16> -> vector<16x16x384xbf16>
    %85 = vector.shape_cast %84 : vector<16x16x384xbf16> to vector<256x384xbf16>
    %c2 = arith.constant 2 : index
    %c0_33 = arith.constant 0 : index
    %c0_34 = arith.constant 0 : index
    %86 = vector.load %arg3[%c2, %c0_33, %c0_34] : memref<3x384x128xbf16, #tpu.memory_space<vmem>>, vector<1x384x128xbf16>
    %87 = vector.shape_cast %86 : vector<1x384x128xbf16> to vector<384x128xbf16>
    %cst_35 = arith.constant dense<0.000000e+00> : vector<256x128xf32>
    %88 = tpu.matmul %85, %87, %cst_35 {dimension_numbers = #tpu.dot_dimension_numbers<[1], [0], [0], [1], [0, 0, 1, 1], [], []>} : vector<256x384xbf16>, vector<384x128xbf16>, vector<256x128xf32> -> vector<256x128xf32>
    %89 = arith.addf %79, %88 : vector<256x128xf32>
    %cst_36 = arith.constant dense<0.000000e+00> : vector<128xf32>
    %90 = vector.multi_reduction <add>, %89, %cst_36 [0] : vector<256x128xf32> to vector<128xf32>
    %91 = vector.shape_cast %90 : vector<128xf32> to vector<1x128xf32>
    %92 = arith.mulf %89, %89 : vector<256x128xf32>
    %cst_37 = arith.constant dense<0.000000e+00> : vector<128xf32>
    %93 = vector.multi_reduction <add>, %92, %cst_37 [0] : vector<256x128xf32> to vector<128xf32>
    %94 = vector.shape_cast %93 : vector<128xf32> to vector<1x128xf32>
    %95 = tpu.concatenate %91, %94 in 0 : vector<1x128xf32>, vector<1x128xf32> -> vector<2x128xf32>
    %96 = vector.shape_cast %95 : vector<2x128xf32> to vector<1x1x2x128xf32>
    %c0_38 = arith.constant 0 : index
    %c0_39 = arith.constant 0 : index
    %c0_40 = arith.constant 0 : index
    %c0_41 = arith.constant 0 : index
    %97 = vector.load %arg8[%c0_38, %c0_39, %c0_40, %c0_41] : memref<1x1x2x128xf32, #tpu.memory_space<vmem>>, vector<1x1x2x128xf32>
    tpu.vector_store %arg8[%c0_38, %c0_39, %c0_40, %c0_41], %96 {strides = array<i32>} : memref<1x1x2x128xf32, #tpu.memory_space<vmem>>, vector<1x1x2x128xf32>,
    %c0_42 = arith.constant 0 : index
    %c0_43 = arith.constant 0 : index
    %98 = vector.load %arg4[%c0_42, %c0_43] : memref<1x128xf32, #tpu.memory_space<vmem>>, vector<1x128xf32>
    %99 = vector.broadcast %98 : vector<1x128xf32> to vector<256x128xf32>
    %100 = arith.addf %89, %99 : vector<256x128xf32>
    %101 = vector.shape_cast %100 : vector<256x128xf32> to vector<1x16x16x128xf32>
    %102 = arith.truncf %101 : vector<1x16x16x128xf32> to vector<1x16x16x128xbf16>
    %c0_44 = arith.constant 0 : index
    %c0_45 = arith.constant 0 : index
    %c0_46 = arith.constant 0 : index
    %c0_47 = arith.constant 0 : index
    %103 = vector.load %arg7[%c0_44, %c0_45, %c0_46, %c0_47] : memref<1x16x16x128xbf16, #tpu.memory_space<vmem>>, vector<1x16x16x128xbf16>
    tpu.vector_store %arg7[%c0_44, %c0_45, %c0_46, %c0_47], %102 {strides = array<i32>} : memref<1x16x16x128xbf16, #tpu.memory_space<vmem>>, vector<1x16x16x128xbf16>,
    return
  }
  func.func @transform_1(%arg0: i32, %arg1: i32) -> (i32, i32, i32) {
    %c0_i32 = arith.constant 0 : i32
    %c0_i32_0 = arith.constant 0 : i32
    %c0_i32_1 = arith.constant 0 : i32
    %c0_i32_2 = arith.constant 0 : i32
    return %c0_i32, %c0_i32_0, %c0_i32_1 : i32, i32, i32
  }
  func.func @transform_2(%arg0: i32, %arg1: i32) -> (i32, i32) {
    %c0_i32 = arith.constant 0 : i32
    %c0_i32_0 = arith.constant 0 : i32
    %c0_i32_1 = arith.constant 0 : i32
    return %c0_i32, %c0_i32_0 : i32, i32
  }
  func.func @transform_3(%arg0: i32, %arg1: i32) -> (i32, i32) {
    %c0_i32 = arith.constant 0 : i32
    %c0_i32_0 = arith.constant 0 : i32
    %c0_i32_1 = arith.constant 0 : i32
    return %c0_i32, %c0_i32_0 : i32, i32
  }
  func.func @transform_4(%arg0: i32, %arg1: i32) -> (i32, i32) {
    %c0_i32 = arith.constant 0 : i32
    %c0_i32_0 = arith.constant 0 : i32
    %c0_i32_1 = arith.constant 0 : i32
    return %c0_i32, %c0_i32_0 : i32, i32
  }
  func.func @transform_5(%arg0: i32, %arg1: i32) -> (i32, i32, i32, i32) {
    %c0_i32 = arith.constant 0 : i32
    %c0_i32_0 = arith.constant 0 : i32
    %c0_i32_1 = arith.constant 0 : i32
    return %arg0, %arg1, %c0_i32, %c0_i32_0 : i32, i32, i32, i32
  }
  func.func @transform_6(%arg0: i32, %arg1: i32) -> (i32, i32, i32, i32) {
    %c0_i32 = arith.constant 0 : i32
    %c0_i32_0 = arith.constant 0 : i32
    %c0_i32_1 = arith.constant 0 : i32
    return %arg0, %arg1, %c0_i32, %c0_i32_0 : i32, i32, i32, i32
  }
}

</mosaic_0001>

<llo_original>
// kernel: tile.8
$region0: #{tile.8}
  #allocation0 [shape = 's32[1]{0}', space=sflag, size = 0x4, scoped, tag = 'scoped memory for tile.8']
  %s0 = inlined_call_operand.vmem [shape: f32[128], index: 0, kind: input, shape index: {}]
  %s1 = inlined_call_operand.vmem [shape: f32[4,128], index: 1, kind: output, shape index: {}]
  // Predicated region
  $region2: #{tile.8} parent=0 // pred_check
    _
  $region3: #{tile.8} parent=0 // pred_check_branch
    %3 = sbr.rel (0) target = $region5
  $region4: #{tile.8} parent=0 // pred_region
    _
  $region5: #{tile.8} parent=0 // pred_fallthru
    _
  %v4 = vld [vmem:[%s0] ss:$0 sm:$0xff]
  %5 = vst [vmem:[%s1] sm:$0xf] %v4

// kernel: decoder_block_2d.4
$region0: #{decoder_block_2d.4}
  #allocation0 [shape = 'u32[]', space=smem, size = 0x4, offset = 0x4, fixed_abs, tag = 'smem constant byte address 0x4 - core index']
  #allocation1 [shape = 'u32[144,128]{1,0:T(1,128)}', space=vmem, size = 0x12000, scoped, tag = 'internal scratch']
  %s0 = inlined_call_operand.vmem [shape: bf16[128,128], index: 0, kind: input, shape index: {}]
  %s1 = inlined_call_operand.vmem [shape: bf16[128,512], index: 1, kind: input, shape index: {}]
  %s2 = inlined_call_operand.vmem [shape: f32[1,512], index: 2, kind: input, shape index: {}]
  %s3 = inlined_call_operand.vmem [shape: bf16[128,512], index: 3, kind: output, shape index: {}]
  %s4 = sld [smem:[#allocation0]]
  $region22: #{decoder_block_2d.4} parent=0
    _
  %s6 = ssub.s32 1, %s4
  %s7 = scalar_select 0, %s6, %s4
  // Predicated region
  $region2: #{decoder_block_2d.4} parent=0 // pred_check
    _
  $region3: #{decoder_block_2d.4} parent=0 // pred_check_branch
    %9 = sbr.rel (0) target = $region5
  $region4: #{decoder_block_2d.4} parent=0 // pred_region
    _
  $region5: #{decoder_block_2d.4} parent=0 // pred_fallthru
    _
  // Predicated region
  $region6: #{decoder_block_2d.4} parent=0 // pred_check
    _
  $region7: #{decoder_block_2d.4} parent=0 // pred_check_branch
    %11 = sbr.rel (0) target = $region9
  $region8: #{decoder_block_2d.4} parent=0 // pred_region
    _
  $region9: #{decoder_block_2d.4} parent=0 // pred_fallthru
    _
  // Predicated region
  $region10: #{decoder_block_2d.4} parent=0 // pred_check
    _
  $region11: #{decoder_block_2d.4} parent=0 // pred_check_branch
    %13 = sbr.rel (0) target = $region13
  $region12: #{decoder_block_2d.4} parent=0 // pred_region
    _
  $region13: #{decoder_block_2d.4} parent=0 // pred_fallthru
    _
  %v15 = vld [vmem:[%s0] sm:$0xf]
  %v16 = vld [vmem:[%s0 + $0x4] sm:$0xf]
  %v17 = vld [vmem:[%s0 + $0x8] sm:$0xf]
  %v18 = vld [vmem:[%s0 + $0xc] sm:$0xf]
  %v19 = vld [vmem:[%s0 + $0x10] sm:$0xf]
  %v20 = vld [vmem:[%s0 + $0x14] sm:$0xf]
  %v21 = vld [vmem:[%s0 + $0x18] sm:$0xf]
  %v22 = vld [vmem:[%s0 + $0x1c] sm:$0xf]
  %v23 = vld [vmem:[%s0 + $0x20] sm:$0xf]
  %v24 = vld [vmem:[%s0 + $0x24] sm:$0xf]
  %v25 = vld [vmem:[%s0 + $0x28] sm:$0xf]
  %v26 = vld [vmem:[%s0 + $0x2c] sm:$0xf]
  %v27 = vld [vmem:[%s0 + $0x30] sm:$0xf]
  %v28 = vld [vmem:[%s0 + $0x34] sm:$0xf]
  %v29 = vld [vmem:[%s0 + $0x38] sm:$0xf]
  %v30 = vld [vmem:[%s0 + $0x3c] sm:$0xf]
  %v31 = vld [vmem:[%s1] sm:$0xff]
  %v32 = vld [vmem:[%s1 + $0x8] sm:$0xff]
  %v33 = vld [vmem:[%s1 + $0x10] sm:$0xff]
  %v34 = vld [vmem:[%s1 + $0x18] sm:$0xff]
  %v35 = vld [vmem:[%s1 + $0x20] sm:$0xff]
  %v36 = vld [vmem:[%s1 + $0x28] sm:$0xff]
  %v37 = vld [vmem:[%s1 + $0x30] sm:$0xff]
  %v38 = vld [vmem:[%s1 + $0x38] sm:$0xff]
  %v39 = vld [vmem:[%s1 + $0x40] sm:$0xff]
  %v40 = vld [vmem:[%s1 + $0x48] sm:$0xff]
  %v41 = vld [vmem:[%s1 + $0x50] sm:$0xff]
  %v42 = vld [vmem:[%s1 + $0x58] sm:$0xff]
  %v43 = vld [vmem:[%s1 + $0x60] sm:$0xff]
  %v44 = vld [vmem:[%s1 + $0x68] sm:$0xff]
  %v45 = vld [vmem:[%s1 + $0x70] sm:$0xff]
  %v46 = vld [vmem:[%s1 + $0x78] sm:$0xff]
  %v47 = vld [vmem:[%s1 + $0x80] sm:$0xff]
  %v48 = vld [vmem:[%s1 + $0x88] sm:$0xff]
  %v49 = vld [vmem:[%s1 + $0x90] sm:$0xff]
  %v50 = vld [vmem:[%s1 + $0x98] sm:$0xff]
  %v51 = vld [vmem:[%s1 + $0xa0] sm:$0xff]
  %v52 = vld [vmem:[%s1 + $0xa8] sm:$0xff]
  %v53 = vld [vmem:[%s1 + $0xb0] sm:$0xff]
  %v54 = vld [vmem:[%s1 + $0xb8] sm:$0xff]
  %v55 = vld [vmem:[%s1 + $0xc0] sm:$0xff]
  %v56 = vld [vmem:[%s1 + $0xc8] sm:$0xff]
  %v57 = vld [vmem:[%s1 + $0xd0] sm:$0xff]
  %v58 = vld [vmem:[%s1 + $0xd8] sm:$0xff]
  %v59 = vld [vmem:[%s1 + $0xe0] sm:$0xff]
  %v60 = vld [vmem:[%s1 + $0xe8] sm:$0xff]
  %v61 = vld [vmem:[%s1 + $0xf0] sm:$0xff]
  %v62 = vld [vmem:[%s1 + $0xf8] sm:$0xff]
  %v63 = vld [vmem:[%s2] sm:$0xf]
  %v65 = vlaneseq
  %v66 = vshrl.u32 %v65, 7
  %v67 = vsub.s32 0, %v66
  %v68 = vrot.slane %v63, %v67
  %v69 = vlaneseq
  %v70 = vshrl.u32 %v69, 7
  %v71 = vsub.s32 1, %v70
  %v72 = vrot.slane %v63, %v71
  %v73 = vlaneseq
  %v74 = vshrl.u32 %v73, 7
  %v75 = vsub.s32 2, %v74
  %v76 = vrot.slane %v63, %v75
  %v77 = vlaneseq
  %v78 = vshrl.u32 %v77, 7
  %v79 = vsub.s32 3, %v78
  %v80 = vrot.slane %v63, %v79
  %v101 = vunpack.c.l.b16 %v15
  %v102 = vunpack.c.l.b16 %v16
  %v103 = vunpack.c.l.b16 %v17
  %v104 = vunpack.c.l.b16 %v18
  %v105 = vunpack.c.l.b16 %v19
  %v106 = vunpack.c.l.b16 %v20
  %v107 = vunpack.c.l.b16 %v21
  %v108 = vunpack.c.l.b16 %v22
  %v109 = vunpack.c.l.b16 %v23
  %v110 = vunpack.c.l.b16 %v24
  %v111 = vunpack.c.l.b16 %v25
  %v112 = vunpack.c.l.b16 %v26
  %v113 = vunpack.c.l.b16 %v27
  %v114 = vunpack.c.l.b16 %v28
  %v115 = vunpack.c.l.b16 %v29
  %v116 = vunpack.c.l.b16 %v30
  %v117 = vpack.c.b16 %v102, %v101
  %v118 = vpack.c.b16 %v104, %v103
  %v119 = vpack.c.b16 %v106, %v105
  %v120 = vpack.c.b16 %v108, %v107
  %v121 = vpack.c.b16 %v110, %v109
  %v122 = vpack.c.b16 %v112, %v111
  %v123 = vpack.c.b16 %v114, %v113
  %v124 = vpack.c.b16 %v116, %v115
  %v165 = vunpack.c.l.b16 %v31
  %v166 = vunpack.c.h.b16 %v31
  %v167 = vunpack.c.l.b16 %v32
  %v168 = vunpack.c.h.b16 %v32
  %v169 = vunpack.c.l.b16 %v33
  %v170 = vunpack.c.h.b16 %v33
  %v171 = vunpack.c.l.b16 %v34
  %v172 = vunpack.c.h.b16 %v34
  %v173 = vunpack.c.l.b16 %v35
  %v174 = vunpack.c.h.b16 %v35
  %v175 = vunpack.c.l.b16 %v36
  %v176 = vunpack.c.h.b16 %v36
  %v177 = vunpack.c.l.b16 %v37
  %v178 = vunpack.c.h.b16 %v37
  %v179 = vunpack.c.l.b16 %v38
  %v180 = vunpack.c.h.b16 %v38
  %v181 = vunpack.c.l.b16 %v39
  %v182 = vunpack.c.h.b16 %v39
  %v183 = vunpack.c.l.b16 %v40
  %v184 = vunpack.c.h.b16 %v40
  %v185 = vunpack.c.l.b16 %v41
  %v186 = vunpack.c.h.b16 %v41
  %v187 = vunpack.c.l.b16 %v42
  %v188 = vunpack.c.h.b16 %v42
  %v189 = vunpack.c.l.b16 %v43
  %v190 = vunpack.c.h.b16 %v43
  %v191 = vunpack.c.l.b16 %v44
  %v192 = vunpack.c.h.b16 %v44
  %v193 = vunpack.c.l.b16 %v45
  %v194 = vunpack.c.h.b16 %v45
  %v195 = vunpack.c.l.b16 %v46
  %v196 = vunpack.c.h.b16 %v46
  %v197 = vunpack.c.l.b16 %v47
  %v198 = vunpack.c.h.b16 %v47
  %v199 = vunpack.c.l.b16 %v48
  %v200 = vunpack.c.h.b16 %v48
  %v201 = vunpack.c.l.b16 %v49
  %v202 = vunpack.c.h.b16 %v49
  %v203 = vunpack.c.l.b16 %v50
  %v204 = vunpack.c.h.b16 %v50
  %v205 = vunpack.c.l.b16 %v51
  %v206 = vunpack.c.h.b16 %v51
  %v207 = vunpack.c.l.b16 %v52
  %v208 = vunpack.c.h.b16 %v52
  %v209 = vunpack.c.l.b16 %v53
  %v210 = vunpack.c.h.b16 %v53
  %v211 = vunpack.c.l.b16 %v54
  %v212 = vunpack.c.h.b16 %v54
  %v213 = vunpack.c.l.b16 %v55
  %v214 = vunpack.c.h.b16 %v55
  %v215 = vunpack.c.l.b16 %v56
  %v216 = vunpack.c.h.b16 %v56
  %v217 = vunpack.c.l.b16 %v57
  %v218 = vunpack.c.h.b16 %v57
  %v219 = vunpack.c.l.b16 %v58
  %v220 = vunpack.c.h.b16 %v58
  %v221 = vunpack.c.l.b16 %v59
  %v222 = vunpack.c.h.b16 %v59
  %v223 = vunpack.c.l.b16 %v60
  %v224 = vunpack.c.h.b16 %v60
  %v225 = vunpack.c.l.b16 %v61
  %v226 = vunpack.c.h.b16 %v61
  %v227 = vunpack.c.l.b16 %v62
  %v228 = vunpack.c.h.b16 %v62
  %v229 = vpack.c.b16 %v169, %v165
  %v230 = vpack.c.b16 %v170, %v166
  %v231 = vpack.c.b16 %v171, %v167
  %v232 = vpack.c.b16 %v172, %v168
  %v233 = vpack.c.b16 %v177, %v173
  %v234 = vpack.c.b16 %v178, %v174
  %v235 = vpack.c.b16 %v179, %v175
  %v236 = vpack.c.b16 %v180, %v176
  %v237 = vpack.c.b16 %v185, %v181
  %v238 = vpack.c.b16 %v186, %v182
  %v239 = vpack.c.b16 %v187, %v183
  %v240 = vpack.c.b16 %v188, %v184
  %v241 = vpack.c.b16 %v193, %v189
  %v242 = vpack.c.b16 %v194, %v190
  %v243 = vpack.c.b16 %v195, %v191
  %v244 = vpack.c.b16 %v196, %v192
  %v245 = vpack.c.b16 %v201, %v197
  %v246 = vpack.c.b16 %v202, %v198
  %v247 = vpack.c.b16 %v203, %v199
  %v248 = vpack.c.b16 %v204, %v200
  %v249 = vpack.c.b16 %v209, %v205
  %v250 = vpack.c.b16 %v210, %v206
  %v251 = vpack.c.b16 %v211, %v207
  %v252 = vpack.c.b16 %v212, %v208
  %v253 = vpack.c.b16 %v217, %v213
  %v254 = vpack.c.b16 %v218, %v214
  %v255 = vpack.c.b16 %v219, %v215
  %v256 = vpack.c.b16 %v220, %v216
  %v257 = vpack.c.b16 %v225, %v221
  %v258 = vpack.c.b16 %v226, %v222
  %v259 = vpack.c.b16 %v227, %v223
  %v260 = vpack.c.b16 %v228, %v224
  %293 = vmatprep.subr.bf16.mxu0 %v230
  %294 = vmatpush1.bf16.msra.mxu0 %v229
  %295 = vmatprep.subr.bf16.mxu0 %v234
  %296 = vmatpush1.bf16.msra.mxu0 %v233
  %297 = vmatprep.subr.bf16.mxu0 %v238
  %298 = vmatpush1.bf16.msra.mxu0 %v237
  %299 = vmatprep.subr.bf16.mxu0 %v242
  %300 = vmatpush1.bf16.msra.mxu0 %v241
  %301 = vmatprep.subr.bf16.mxu0 %v246
  %302 = vmatpush1.bf16.msra.mxu0 %v245
  %303 = vmatprep.subr.bf16.mxu0 %v250
  %304 = vmatpush1.bf16.msra.mxu0 %v249
  %305 = vmatprep.subr.bf16.mxu0 %v254
  %306 = vmatpush1.bf16.msra.mxu0 %v253
  %307 = vmatprep.subr.bf16.mxu0 %v258
  %308 = vmatpush1.bf16.msra.mxu0 %v257
  %309 = vmatprep.subr.bf16.mxu0 0
  %310 = vmatpush1.bf16.msra.mxu0 0
  %311 = vmatprep.subr.bf16.mxu0 0
  %312 = vmatpush1.bf16.msra.mxu0 0
  %313 = vmatprep.subr.bf16.mxu0 0
  %314 = vmatpush1.bf16.msra.mxu0 0
  %315 = vmatprep.subr.bf16.mxu0 0
  %316 = vmatpush1.bf16.msra.mxu0 0
  %317 = vmatprep.subr.bf16.mxu0 0
  %318 = vmatpush1.bf16.msra.mxu0 0
  %319 = vmatprep.subr.bf16.mxu0 0
  %320 = vmatpush1.bf16.msra.mxu0 0
  %321 = vmatprep.subr.bf16.mxu0 0
  %322 = vmatpush1.bf16.msra.mxu0 0
  %323 = vmatprep.subr.bf16.mxu0 0
  %324 = vmatpush1.bf16.msra.mxu0 0
  %325 = vmatprep.mubr.bf16.mxu0 0
  %326 = vmatmul.mubr.bf16.gmra.mrb[0].mxu0 %v117
  %v327 = vpop.f32.mrb[0].mxu0
  %v328 = vadd.f32 %v68, %v327
  %v329 = vpop.f32.mrb[0].mxu0
  %v330 = vadd.f32 %v72, %v329
  %v331 = vpop.f32.mrb[0].mxu0
  %v332 = vadd.f32 %v68, %v331
  %v333 = vpop.f32.mrb[0].mxu0
  %v334 = vadd.f32 %v72, %v333
  %335 = vmatprep.mubr.bf16.mxu0 0
  %336 = vmatmul.mubr.bf16.gmra.mrb[0].mxu0 %v118
  %v337 = vpop.f32.mrb[0].mxu0
  %v338 = vadd.f32 %v68, %v337
  %v339 = vpop.f32.mrb[0].mxu0
  %v340 = vadd.f32 %v72, %v339
  %v341 = vpop.f32.mrb[0].mxu0
  %v342 = vadd.f32 %v68, %v341
  %v343 = vpop.f32.mrb[0].mxu0
  %v344 = vadd.f32 %v72, %v343
  %345 = vmatprep.mubr.bf16.mxu0 0
  %346 = vmatmul.mubr.bf16.gmra.mrb[0].mxu0 %v119
  %v347 = vpop.f32.mrb[0].mxu0
  %v348 = vadd.f32 %v68, %v347
  %v349 = vpop.f32.mrb[0].mxu0
  %v350 = vadd.f32 %v72, %v349
  %v351 = vpop.f32.mrb[0].mxu0
  %v352 = vadd.f32 %v68, %v351
  %v353 = vpop.f32.mrb[0].mxu0
  %v354 = vadd.f32 %v72, %v353
  %355 = vmatprep.mubr.bf16.mxu0 0
  %356 = vmatmul.mubr.bf16.gmra.mrb[0].mxu0 %v120
  %v357 = vpop.f32.mrb[0].mxu0
  %v358 = vadd.f32 %v68, %v357
  %v359 = vpop.f32.mrb[0].mxu0
  %v360 = vadd.f32 %v72, %v359
  %v361 = vpop.f32.mrb[0].mxu0
  %v362 = vadd.f32 %v68, %v361
  %v363 = vpop.f32.mrb[0].mxu0
  %v364 = vadd.f32 %v72, %v363
  %365 = vmatprep.mubr.bf16.mxu0 0
  %366 = vmatmul.mubr.bf16.gmra.mrb[0].mxu0 %v121
  %v367 = vpop.f32.mrb[0].mxu0
  %v368 = vadd.f32 %v68, %v367
  %v369 = vpop.f32.mrb[0].mxu0
  %v370 = vadd.f32 %v72, %v369
  %v371 = vpop.f32.mrb[0].mxu0
  %v372 = vadd.f32 %v68, %v371
  %v373 = vpop.f32.mrb[0].mxu0
  %v374 = vadd.f32 %v72, %v373
  %375 = vmatprep.mubr.bf16.mxu0 0
  %376 = vmatmul.mubr.bf16.gmra.mrb[0].mxu0 %v122
  %v377 = vpop.f32.mrb[0].mxu0
  %v378 = vadd.f32 %v68, %v377
  %v379 = vpop.f32.mrb[0].mxu0
  %v380 = vadd.f32 %v72, %v379
  %v381 = vpop.f32.mrb[0].mxu0
  %v382 = vadd.f32 %v68, %v381
  %v383 = vpop.f32.mrb[0].mxu0
  %v384 = vadd.f32 %v72, %v383
  %385 = vmatprep.mubr.bf16.mxu0 0
  %386 = vmatmul.mubr.bf16.gmra.mrb[0].mxu0 %v123
  %v387 = vpop.f32.mrb[0].mxu0
  %v388 = vadd.f32 %v68, %v387
  %v389 = vpop.f32.mrb[0].mxu0
  %v390 = vadd.f32 %v72, %v389
  %v391 = vpop.f32.mrb[0].mxu0
  %v392 = vadd.f32 %v68, %v391
  %v393 = vpop.f32.mrb[0].mxu0
  %v394 = vadd.f32 %v72, %v393
  %395 = vmatprep.mubr.bf16.mxu0 0
  %396 = vmatmul.mubr.bf16.gmra.mrb[0].mxu0 %v124
  %v397 = vpop.f32.mrb[0].mxu0
  %v398 = vadd.f32 %v68, %v397
  %v399 = vpop.f32.mrb[0].mxu0
  %v400 = vadd.f32 %v72, %v399
  %v401 = vpop.f32.mrb[0].mxu0
  %v402 = vadd.f32 %v68, %v401
  %v403 = vpop.f32.mrb[0].mxu0
  %v404 = vadd.f32 %v72, %v403
  %405 = vdwg.mxu0
  %406 = vmatprep.subr.bf16.mxu0 %v232
  %407 = vmatpush1.bf16.msra.mxu0 %v231
  %408 = vmatprep.subr.bf16.mxu0 %v236
  %409 = vmatpush1.bf16.msra.mxu0 %v235
  %410 = vmatprep.subr.bf16.mxu0 %v240
  %411 = vmatpush1.bf16.msra.mxu0 %v239
  %412 = vmatprep.subr.bf16.mxu0 %v244
  %413 = vmatpush1.bf16.msra.mxu0 %v243
  %414 = vmatprep.subr.bf16.mxu0 %v248
  %415 = vmatpush1.bf16.msra.mxu0 %v247
  %416 = vmatprep.subr.bf16.mxu0 %v252
  %417 = vmatpush1.bf16.msra.mxu0 %v251
  %418 = vmatprep.subr.bf16.mxu0 %v256
  %419 = vmatpush1.bf16.msra.mxu0 %v255
  %420 = vmatprep.subr.bf16.mxu0 %v260
  %421 = vmatpush1.bf16.msra.mxu0 %v259
  %422 = vmatprep.subr.bf16.mxu0 0
  %423 = vmatpush1.bf16.msra.mxu0 0
  %424 = vmatprep.subr.bf16.mxu0 0
  %425 = vmatpush1.bf16.msra.mxu0 0
  %426 = vmatprep.subr.bf16.mxu0 0
  %427 = vmatpush1.bf16.msra.mxu0 0
  %428 = vmatprep.subr.bf16.mxu0 0
  %429 = vmatpush1.bf16.msra.mxu0 0
  %430 = vmatprep.subr.bf16.mxu0 0
  %431 = vmatpush1.bf16.msra.mxu0 0
  %432 = vmatprep.subr.bf16.mxu0 0
  %433 = vmatpush1.bf16.msra.mxu0 0
  %434 = vmatprep.subr.bf16.mxu0 0
  %435 = vmatpush1.bf16.msra.mxu0 0
  %436 = vmatprep.subr.bf16.mxu0 0
  %437 = vmatpush1.bf16.msra.mxu0 0
  %438 = vmatprep.mubr.bf16.mxu0 0
  %439 = vmatmul.mubr.bf16.gmra.mrb[0].mxu0 %v117
  %v440 = vpop.f32.mrb[0].mxu0
  %v441 = vadd.f32 %v76, %v440
  %v442 = vpop.f32.mrb[0].mxu0
  %v443 = vadd.f32 %v80, %v442
  %v444 = vpop.f32.mrb[0].mxu0
  %v445 = vadd.f32 %v76, %v444
  %v446 = vpop.f32.mrb[0].mxu0
  %v447 = vadd.f32 %v80, %v446
  %448 = vmatprep.mubr.bf16.mxu0 0
  %449 = vmatmul.mubr.bf16.gmra.mrb[0].mxu0 %v118
  %v450 = vpop.f32.mrb[0].mxu0
  %v451 = vadd.f32 %v76, %v450
  %v452 = vpop.f32.mrb[0].mxu0
  %v453 = vadd.f32 %v80, %v452
  %v454 = vpop.f32.mrb[0].mxu0
  %v455 = vadd.f32 %v76, %v454
  %v456 = vpop.f32.mrb[0].mxu0
  %v457 = vadd.f32 %v80, %v456
  %458 = vmatprep.mubr.bf16.mxu0 0
  %459 = vmatmul.mubr.bf16.gmra.mrb[0].mxu0 %v119
  %v460 = vpop.f32.mrb[0].mxu0
  %v461 = vadd.f32 %v76, %v460
  %v462 = vpop.f32.mrb[0].mxu0
  %v463 = vadd.f32 %v80, %v462
  %v464 = vpop.f32.mrb[0].mxu0
  %v465 = vadd.f32 %v76, %v464
  %v466 = vpop.f32.mrb[0].mxu0
  %v467 = vadd.f32 %v80, %v466
  %468 = vmatprep.mubr.bf16.mxu0 0
  %469 = vmatmul.mubr.bf16.gmra.mrb[0].mxu0 %v120
  %v470 = vpop.f32.mrb[0].mxu0
  %v471 = vadd.f32 %v76, %v470
  %v472 = vpop.f32.mrb[0].mxu0
  %v473 = vadd.f32 %v80, %v472
  %v474 = vpop.f32.mrb[0].mxu0
  %v475 = vadd.f32 %v76, %v474
  %v476 = vpop.f32.mrb[0].mxu0
  %v477 = vadd.f32 %v80, %v476
  %478 = vmatprep.mubr.bf16.mxu0 0
  %479 = vmatmul.mubr.bf16.gmra.mrb[0].mxu0 %v121
  %v480 = vpop.f32.mrb[0].mxu0
  %v481 = vadd.f32 %v76, %v480
  %v482 = vpop.f32.mrb[0].mxu0
  %v483 = vadd.f32 %v80, %v482
  %v484 = vpop.f32.mrb[0].mxu0
  %v485 = vadd.f32 %v76, %v484
  %v486 = vpop.f32.mrb[0].mxu0
  %v487 = vadd.f32 %v80, %v486
  %488 = vmatprep.mubr.bf16.mxu0 0
  %489 = vmatmul.mubr.bf16.gmra.mrb[0].mxu0 %v122
  %v490 = vpop.f32.mrb[0].mxu0
  %v491 = vadd.f32 %v76, %v490
  %v492 = vpop.f32.mrb[0].mxu0
  %v493 = vadd.f32 %v80, %v492
  %v494 = vpop.f32.mrb[0].mxu0
  %v495 = vadd.f32 %v76, %v494
  %v496 = vpop.f32.mrb[0].mxu0
  %v497 = vadd.f32 %v80, %v496
  %498 = vmatprep.mubr.bf16.mxu0 0
  %499 = vmatmul.mubr.bf16.gmra.mrb[0].mxu0 %v123
  %v500 = vpop.f32.mrb[0].mxu0
  %v501 = vadd.f32 %v76, %v500
  %v502 = vpop.f32.mrb[0].mxu0
  %v503 = vadd.f32 %v80, %v502
  %v504 = vpop.f32.mrb[0].mxu0
  %v505 = vadd.f32 %v76, %v504
  %v506 = vpop.f32.mrb[0].mxu0
  %v507 = vadd.f32 %v80, %v506
  %508 = vmatprep.mubr.bf16.mxu0 0
  %509 = vmatmul.mubr.bf16.gmra.mrb[0].mxu0 %v124
  %v510 = vpop.f32.mrb[0].mxu0
  %v511 = vadd.f32 %v76, %v510
  %v512 = vpop.f32.mrb[0].mxu0
  %v513 = vadd.f32 %v80, %v512
  %v514 = vpop.f32.mrb[0].mxu0
  %v515 = vadd.f32 %v76, %v514
  %v516 = vpop.f32.mrb[0].mxu0
  %v517 = vadd.f32 %v80, %v516
  %518 = vdwg.mxu0
  %v519 = vpack.c.bf16 %v332, %v328
  %v520 = vpack.c.bf16 %v334, %v330
  %v521 = vpack.c.bf16 %v445, %v441
  %v522 = vpack.c.bf16 %v447, %v443
  %v523 = vpack.c.bf16 %v342, %v338
  %v524 = vpack.c.bf16 %v344, %v340
  %v525 = vpack.c.bf16 %v455, %v451
  %v526 = vpack.c.bf16 %v457, %v453
  %v527 = vpack.c.bf16 %v352, %v348
  %v528 = vpack.c.bf16 %v354, %v350
  %v529 = vpack.c.bf16 %v465, %v461
  %v530 = vpack.c.bf16 %v467, %v463
  %v531 = vpack.c.bf16 %v362, %v358
  %v532 = vpack.c.bf16 %v364, %v360
  %v533 = vpack.c.bf16 %v475, %v471
  %v534 = vpack.c.bf16 %v477, %v473
  %v535 = vpack.c.bf16 %v372, %v368
  %v536 = vpack.c.bf16 %v374, %v370
  %v537 = vpack.c.bf16 %v485, %v481
  %v538 = vpack.c.bf16 %v487, %v483
  %v539 = vpack.c.bf16 %v382, %v378
  %v540 = vpack.c.bf16 %v384, %v380
  %v541 = vpack.c.bf16 %v495, %v491
  %v542 = vpack.c.bf16 %v497, %v493
  %v543 = vpack.c.bf16 %v392, %v388
  %v544 = vpack.c.bf16 %v394, %v390
  %v545 = vpack.c.bf16 %v505, %v501
  %v546 = vpack.c.bf16 %v507, %v503
  %v547 = vpack.c.bf16 %v402, %v398
  %v548 = vpack.c.bf16 %v404, %v400
  %v549 = vpack.c.bf16 %v515, %v511
  %v550 = vpack.c.bf16 %v517, %v513
  %v583 = vunpack.c.l.b16 %v519
  %v584 = vunpack.c.l.b16 %v520
  %v585 = vunpack.c.l.b16 %v521
  %v586 = vunpack.c.l.b16 %v522
  %v587 = vunpack.c.h.b16 %v519
  %v588 = vunpack.c.h.b16 %v520
  %v589 = vunpack.c.h.b16 %v521
  %v590 = vunpack.c.h.b16 %v522
  %v591 = vunpack.c.l.b16 %v523
  %v592 = vunpack.c.l.b16 %v524
  %v593 = vunpack.c.l.b16 %v525
  %v594 = vunpack.c.l.b16 %v526
  %v595 = vunpack.c.h.b16 %v523
  %v596 = vunpack.c.h.b16 %v524
  %v597 = vunpack.c.h.b16 %v525
  %v598 = vunpack.c.h.b16 %v526
  %v599 = vunpack.c.l.b16 %v527
  %v600 = vunpack.c.l.b16 %v528
  %v601 = vunpack.c.l.b16 %v529
  %v602 = vunpack.c.l.b16 %v530
  %v603 = vunpack.c.h.b16 %v527
  %v604 = vunpack.c.h.b16 %v528
  %v605 = vunpack.c.h.b16 %v529
  %v606 = vunpack.c.h.b16 %v530
  %v607 = vunpack.c.l.b16 %v531
  %v608 = vunpack.c.l.b16 %v532
  %v609 = vunpack.c.l.b16 %v533
  %v610 = vunpack.c.l.b16 %v534
  %v611 = vunpack.c.h.b16 %v531
  %v612 = vunpack.c.h.b16 %v532
  %v613 = vunpack.c.h.b16 %v533
  %v614 = vunpack.c.h.b16 %v534
  %v615 = vunpack.c.l.b16 %v535
  %v616 = vunpack.c.l.b16 %v536
  %v617 = vunpack.c.l.b16 %v537
  %v618 = vunpack.c.l.b16 %v538
  %v619 = vunpack.c.h.b16 %v535
  %v620 = vunpack.c.h.b16 %v536
  %v621 = vunpack.c.h.b16 %v537
  %v622 = vunpack.c.h.b16 %v538
  %v623 = vunpack.c.l.b16 %v539
  %v624 = vunpack.c.l.b16 %v540
  %v625 = vunpack.c.l.b16 %v541
  %v626 = vunpack.c.l.b16 %v542
  %v627 = vunpack.c.h.b16 %v539
  %v628 = vunpack.c.h.b16 %v540
  %v629 = vunpack.c.h.b16 %v541
  %v630 = vunpack.c.h.b16 %v542
  %v631 = vunpack.c.l.b16 %v543
  %v632 = vunpack.c.l.b16 %v544
  %v633 = vunpack.c.l.b16 %v545
  %v634 = vunpack.c.l.b16 %v546
  %v635 = vunpack.c.h.b16 %v543
  %v636 = vunpack.c.h.b16 %v544
  %v637 = vunpack.c.h.b16 %v545
  %v638 = vunpack.c.h.b16 %v546
  %v639 = vunpack.c.l.b16 %v547
  %v640 = vunpack.c.l.b16 %v548
  %v641 = vunpack.c.l.b16 %v549
  %v642 = vunpack.c.l.b16 %v550
  %v643 = vunpack.c.h.b16 %v547
  %v644 = vunpack.c.h.b16 %v548
  %v645 = vunpack.c.h.b16 %v549
  %v646 = vunpack.c.h.b16 %v550
  %v647 = vpack.c.b16 %v584, %v583
  %v648 = vpack.c.b16 %v586, %v585
  %v649 = vpack.c.b16 %v588, %v587
  %v650 = vpack.c.b16 %v590, %v589
  %v651 = vpack.c.b16 %v592, %v591
  %v652 = vpack.c.b16 %v594, %v593
  %v653 = vpack.c.b16 %v596, %v595
  %v654 = vpack.c.b16 %v598, %v597
  %v655 = vpack.c.b16 %v600, %v599
  %v656 = vpack.c.b16 %v602, %v601
  %v657 = vpack.c.b16 %v604, %v603
  %v658 = vpack.c.b16 %v606, %v605
  %v659 = vpack.c.b16 %v608, %v607
  %v660 = vpack.c.b16 %v610, %v609
  %v661 = vpack.c.b16 %v612, %v611
  %v662 = vpack.c.b16 %v614, %v613
  %v663 = vpack.c.b16 %v616, %v615
  %v664 = vpack.c.b16 %v618, %v617
  %v665 = vpack.c.b16 %v620, %v619
  %v666 = vpack.c.b16 %v622, %v621
  %v667 = vpack.c.b16 %v624, %v623
  %v668 = vpack.c.b16 %v626, %v625
  %v669 = vpack.c.b16 %v628, %v627
  %v670 = vpack.c.b16 %v630, %v629
  %v671 = vpack.c.b16 %v632, %v631
  %v672 = vpack.c.b16 %v634, %v633
  %v673 = vpack.c.b16 %v636, %v635
  %v674 = vpack.c.b16 %v638, %v637
  %v675 = vpack.c.b16 %v640, %v639
  %v676 = vpack.c.b16 %v642, %v641
  %v677 = vpack.c.b16 %v644, %v643
  %v678 = vpack.c.b16 %v646, %v645
  %711 = vst [vmem:[%s3] sm:$0xff] %v647
  %712 = vst [vmem:[%s3 + $0x8] sm:$0xff] %v648
  %713 = vst [vmem:[%s3 + $0x10] sm:$0xff] %v649
  %714 = vst [vmem:[%s3 + $0x18] sm:$0xff] %v650
  %715 = vst [vmem:[%s3 + $0x20] sm:$0xff] %v651
  %716 = vst [vmem:[%s3 + $0x28] sm:$0xff] %v652
  %717 = vst [vmem:[%s3 + $0x30] sm:$0xff] %v653
  %718 = vst [vmem:[%s3 + $0x38] sm:$0xff] %v654
  %719 = vst [vmem:[%s3 + $0x40] sm:$0xff] %v655
  %720 = vst [vmem:[%s3 + $0x48] sm:$0xff] %v656
  %721 = vst [vmem:[%s3 + $0x50] sm:$0xff] %v657
  %722 = vst [vmem:[%s3 + $0x58] sm:$0xff] %v658
  %723 = vst [vmem:[%s3 + $0x60] sm:$0xff] %v659
  %724 = vst [vmem:[%s3 + $0x68] sm:$0xff] %v660
  %725 = vst [vmem:[%s3 + $0x70] sm:$0xff] %v661
  %726 = vst [vmem:[%s3 + $0x78] sm:$0xff] %v662
  %727 = vst [vmem:[%s3 + $0x80] sm:$0xff] %v663
  %728 = vst [vmem:[%s3 + $0x88] sm:$0xff] %v664
  %729 = vst [vmem:[%s3 + $0x90] sm:$0xff] %v665
  %730 = vst [vmem:[%s3 + $0x98] sm:$0xff] %v666
  %731 = vst [vmem:[%s3 + $0xa0] sm:$0xff] %v667
  %732 = vst [vmem:[%s3 + $0xa8] sm:$0xff] %v668
  %733 = vst [vmem:[%s3 + $0xb0] sm:$0xff] %v669
  %734 = vst [vmem:[%s3 + $0xb8] sm:$0xff] %v670
  %735 = vst [vmem:[%s3 + $0xc0] sm:$0xff] %v671
  %736 = vst [vmem:[%s3 + $0xc8] sm:$0xff] %v672
  %737 = vst [vmem:[%s3 + $0xd0] sm:$0xff] %v673
  %738 = vst [vmem:[%s3 + $0xd8] sm:$0xff] %v674
  %739 = vst [vmem:[%s3 + $0xe0] sm:$0xff] %v675
  %740 = vst [vmem:[%s3 + $0xe8] sm:$0xff] %v676
  %741 = vst [vmem:[%s3 + $0xf0] sm:$0xff] %v677
  %742 = vst [vmem:[%s3 + $0xf8] sm:$0xff] %v678
  // Predicated region
  $region14: #{decoder_block_2d.4} parent=0 // pred_check
    _
  $region15: #{decoder_block_2d.4} parent=0 // pred_check_branch
    %744 = sbr.rel (0) target = $region17
  $region16: #{decoder_block_2d.4} parent=0 // pred_region
    _
  $region17: #{decoder_block_2d.4} parent=0 // pred_fallthru
    _
  // Predicated region
  $region18: #{decoder_block_2d.4} parent=0 // pred_check
    _
  $region19: #{decoder_block_2d.4} parent=0 // pred_check_branch
    %746 = sbr.rel (0) target = $region21
  $region20: #{decoder_block_2d.4} parent=0 // pred_region
    _
  $region21: #{decoder_block_2d.4} parent=0 // pred_fallthru
    _

// kernel: decoder_block_2d.7
$region0: #{decoder_block_2d.7}
  #allocation0 [shape = 'u32[]', space=smem, size = 0x4, offset = 0x4, fixed_abs, tag = 'smem constant byte address 0x4 - core index']
  #allocation1 [shape = 'u32[144,128]{1,0:T(1,128)}', space=vmem, size = 0x12000, scoped, tag = 'internal scratch']
  %s0 = inlined_call_operand.vmem [shape: bf16[512,128], index: 0, kind: input, shape index: {}]
  %s1 = inlined_call_operand.vmem [shape: f32[1,128], index: 1, kind: input, shape index: {}]
  %s2 = inlined_call_operand.vmem [shape: f32[1,128], index: 2, kind: input, shape index: {}]
  %s3 = inlined_call_operand.vmem [shape: f32[512,128], index: 3, kind: output, shape index: {}]
  %s4 = sld [smem:[#allocation0]]
  $region22: #{decoder_block_2d.7} parent=0
    _
  %s6 = ssub.s32 1, %s4
  %s7 = scalar_select 0, %s6, %s4
  // Predicated region
  $region2: #{decoder_block_2d.7} parent=0 // pred_check
    _
  $region3: #{decoder_block_2d.7} parent=0 // pred_check_branch
    %9 = sbr.rel (0) target = $region5
  $region4: #{decoder_block_2d.7} parent=0 // pred_region
    _
  $region5: #{decoder_block_2d.7} parent=0 // pred_fallthru
    _
  // Predicated region
  $region6: #{decoder_block_2d.7} parent=0 // pred_check
    _
  $region7: #{decoder_block_2d.7} parent=0 // pred_check_branch
    %11 = sbr.rel (0) target = $region9
  $region8: #{decoder_block_2d.7} parent=0 // pred_region
    _
  $region9: #{decoder_block_2d.7} parent=0 // pred_fallthru
    _
  // Predicated region
  $region10: #{decoder_block_2d.7} parent=0 // pred_check
    _
  $region11: #{decoder_block_2d.7} parent=0 // pred_check_branch
    %13 = sbr.rel (0) target = $region13
  $region12: #{decoder_block_2d.7} parent=0 // pred_region
    _
  $region13: #{decoder_block_2d.7} parent=0 // pred_fallthru
    _
  %v14 = vld [vmem:[%s0] sm:$0xf]
  %v15 = vld [vmem:[%s0 + $0x4] sm:$0xf]
  %v16 = vld [vmem:[%s0 + $0x8] sm:$0xf]
  %v17 = vld [vmem:[%s0 + $0xc] sm:$0xf]
  %v18 = vld [vmem:[%s0 + $0x10] sm:$0xf]
  %v19 = vld [vmem:[%s0 + $0x14] sm:$0xf]
  %v20 = vld [vmem:[%s0 + $0x18] sm:$0xf]
  %v21 = vld [vmem:[%s0 + $0x1c] sm:$0xf]
  %v22 = vld [vmem:[%s0 + $0x20] sm:$0xf]
  %v23 = vld [vmem:[%s0 + $0x24] sm:$0xf]
  %v24 = vld [vmem:[%s0 + $0x28] sm:$0xf]
  %v25 = vld [vmem:[%s0 + $0x2c] sm:$0xf]
  %v26 = vld [vmem:[%s0 + $0x30] sm:$0xf]
  %v27 = vld [vmem:[%s0 + $0x34] sm:$0xf]
  %v28 = vld [vmem:[%s0 + $0x38] sm:$0xf]
  %v29 = vld [vmem:[%s0 + $0x3c] sm:$0xf]
  %v30 = vld [vmem:[%s0 + $0x40] sm:$0xf]
  %v31 = vld [vmem:[%s0 + $0x44] sm:$0xf]
  %v32 = vld [vmem:[%s0 + $0x48] sm:$0xf]
  %v33 = vld [vmem:[%s0 + $0x4c] sm:$0xf]
  %v34 = vld [vmem:[%s0 + $0x50] sm:$0xf]
  %v35 = vld [vmem:[%s0 + $0x54] sm:$0xf]
  %v36 = vld [vmem:[%s0 + $0x58] sm:$0xf]
  %v37 = vld [vmem:[%s0 + $0x5c] sm:$0xf]
  %v38 = vld [vmem:[%s0 + $0x60] sm:$0xf]
  %v39 = vld [vmem:[%s0 + $0x64] sm:$0xf]
  %v40 = vld [vmem:[%s0 + $0x68] sm:$0xf]
  %v41 = vld [vmem:[%s0 + $0x6c] sm:$0xf]
  %v42 = vld [vmem:[%s0 + $0x70] sm:$0xf]
  %v43 = vld [vmem:[%s0 + $0x74] sm:$0xf]
  %v44 = vld [vmem:[%s0 + $0x78] sm:$0xf]
  %v45 = vld [vmem:[%s0 + $0x7c] sm:$0xf]
  %v46 = vld [vmem:[%s0 + $0x80] sm:$0xf]
  %v47 = vld [vmem:[%s0 + $0x84] sm:$0xf]
  %v48 = vld [vmem:[%s0 + $0x88] sm:$0xf]
  %v49 = vld [vmem:[%s0 + $0x8c] sm:$0xf]
  %v50 = vld [vmem:[%s0 + $0x90] sm:$0xf]
  %v51 = vld [vmem:[%s0 + $0x94] sm:$0xf]
  %v52 = vld [vmem:[%s0 + $0x98] sm:$0xf]
  %v53 = vld [vmem:[%s0 + $0x9c] sm:$0xf]
  %v54 = vld [vmem:[%s0 + $0xa0] sm:$0xf]
  %v55 = vld [vmem:[%s0 + $0xa4] sm:$0xf]
  %v56 = vld [vmem:[%s0 + $0xa8] sm:$0xf]
  %v57 = vld [vmem:[%s0 + $0xac] sm:$0xf]
  %v58 = vld [vmem:[%s0 + $0xb0] sm:$0xf]
  %v59 = vld [vmem:[%s0 + $0xb4] sm:$0xf]
  %v60 = vld [vmem:[%s0 + $0xb8] sm:$0xf]
  %v61 = vld [vmem:[%s0 + $0xbc] sm:$0xf]
  %v62 = vld [vmem:[%s0 + $0xc0] sm:$0xf]
  %v63 = vld [vmem:[%s0 + $0xc4] sm:$0xf]
  %v64 = vld [vmem:[%s0 + $0xc8] sm:$0xf]
  %v65 = vld [vmem:[%s0 + $0xcc] sm:$0xf]
  %v66 = vld [vmem:[%s0 + $0xd0] sm:$0xf]
  %v67 = vld [vmem:[%s0 + $0xd4] sm:$0xf]
  %v68 = vld [vmem:[%s0 + $0xd8] sm:$0xf]
  %v69 = vld [vmem:[%s0 + $0xdc] sm:$0xf]
  %v70 = vld [vmem:[%s0 + $0xe0] sm:$0xf]
  %v71 = vld [vmem:[%s0 + $0xe4] sm:$0xf]
  %v72 = vld [vmem:[%s0 + $0xe8] sm:$0xf]
  %v73 = vld [vmem:[%s0 + $0xec] sm:$0xf]
  %v74 = vld [vmem:[%s0 + $0xf0] sm:$0xf]
  %v75 = vld [vmem:[%s0 + $0xf4] sm:$0xf]
  %v76 = vld [vmem:[%s0 + $0xf8] sm:$0xf]
  %v77 = vld [vmem:[%s0 + $0xfc] sm:$0xf]
  %v78 = vunpack.c.l.bf16 %v14
  %v79 = vunpack.c.l.bf16 %v15
  %v80 = vunpack.c.l.bf16 %v16
  %v81 = vunpack.c.l.bf16 %v17
  %v82 = vunpack.c.l.bf16 %v18
  %v83 = vunpack.c.l.bf16 %v19
  %v84 = vunpack.c.l.bf16 %v20
  %v85 = vunpack.c.l.bf16 %v21
  %v86 = vunpack.c.l.bf16 %v22
  %v87 = vunpack.c.l.bf16 %v23
  %v88 = vunpack.c.l.bf16 %v24
  %v89 = vunpack.c.l.bf16 %v25
  %v90 = vunpack.c.l.bf16 %v26
  %v91 = vunpack.c.l.bf16 %v27
  %v92 = vunpack.c.l.bf16 %v28
  %v93 = vunpack.c.l.bf16 %v29
  %v94 = vunpack.c.l.bf16 %v30
  %v95 = vunpack.c.l.bf16 %v31
  %v96 = vunpack.c.l.bf16 %v32
  %v97 = vunpack.c.l.bf16 %v33
  %v98 = vunpack.c.l.bf16 %v34
  %v99 = vunpack.c.l.bf16 %v35
  %v100 = vunpack.c.l.bf16 %v36
  %v101 = vunpack.c.l.bf16 %v37
  %v102 = vunpack.c.l.bf16 %v38
  %v103 = vunpack.c.l.bf16 %v39
  %v104 = vunpack.c.l.bf16 %v40
  %v105 = vunpack.c.l.bf16 %v41
  %v106 = vunpack.c.l.bf16 %v42
  %v107 = vunpack.c.l.bf16 %v43
  %v108 = vunpack.c.l.bf16 %v44
  %v109 = vunpack.c.l.bf16 %v45
  %v110 = vunpack.c.l.bf16 %v46
  %v111 = vunpack.c.l.bf16 %v47
  %v112 = vunpack.c.l.bf16 %v48
  %v113 = vunpack.c.l.bf16 %v49
  %v114 = vunpack.c.l.bf16 %v50
  %v115 = vunpack.c.l.bf16 %v51
  %v116 = vunpack.c.l.bf16 %v52
  %v117 = vunpack.c.l.bf16 %v53
  %v118 = vunpack.c.l.bf16 %v54
  %v119 = vunpack.c.l.bf16 %v55
  %v120 = vunpack.c.l.bf16 %v56
  %v121 = vunpack.c.l.bf16 %v57
  %v122 = vunpack.c.l.bf16 %v58
  %v123 = vunpack.c.l.bf16 %v59
  %v124 = vunpack.c.l.bf16 %v60
  %v125 = vunpack.c.l.bf16 %v61
  %v126 = vunpack.c.l.bf16 %v62
  %v127 = vunpack.c.l.bf16 %v63
  %v128 = vunpack.c.l.bf16 %v64
  %v129 = vunpack.c.l.bf16 %v65
  %v130 = vunpack.c.l.bf16 %v66
  %v131 = vunpack.c.l.bf16 %v67
  %v132 = vunpack.c.l.bf16 %v68
  %v133 = vunpack.c.l.bf16 %v69
  %v134 = vunpack.c.l.bf16 %v70
  %v135 = vunpack.c.l.bf16 %v71
  %v136 = vunpack.c.l.bf16 %v72
  %v137 = vunpack.c.l.bf16 %v73
  %v138 = vunpack.c.l.bf16 %v74
  %v139 = vunpack.c.l.bf16 %v75
  %v140 = vunpack.c.l.bf16 %v76
  %v141 = vunpack.c.l.bf16 %v77
  %v142 = vld [vmem:[%s1] sm:$0x1]
  %v144 = vlaneseq
  %v145 = vshrl.u32 %v144, 7
  %v146 = vsub.s32 0, %v145
  %v147 = vrot.slane %v142, %v146
  %v149 = vmul.f32 %v78, %v147
  %v150 = vmul.f32 %v79, %v147
  %v151 = vmul.f32 %v80, %v147
  %v152 = vmul.f32 %v81, %v147
  %v153 = vmul.f32 %v82, %v147
  %v154 = vmul.f32 %v83, %v147
  %v155 = vmul.f32 %v84, %v147
  %v156 = vmul.f32 %v85, %v147
  %v157 = vmul.f32 %v86, %v147
  %v158 = vmul.f32 %v87, %v147
  %v159 = vmul.f32 %v88, %v147
  %v160 = vmul.f32 %v89, %v147
  %v161 = vmul.f32 %v90, %v147
  %v162 = vmul.f32 %v91, %v147
  %v163 = vmul.f32 %v92, %v147
  %v164 = vmul.f32 %v93, %v147
  %v165 = vmul.f32 %v94, %v147
  %v166 = vmul.f32 %v95, %v147
  %v167 = vmul.f32 %v96, %v147
  %v168 = vmul.f32 %v97, %v147
  %v169 = vmul.f32 %v98, %v147
  %v170 = vmul.f32 %v99, %v147
  %v171 = vmul.f32 %v100, %v147
  %v172 = vmul.f32 %v101, %v147
  %v173 = vmul.f32 %v102, %v147
  %v174 = vmul.f32 %v103, %v147
  %v175 = vmul.f32 %v104, %v147
  %v176 = vmul.f32 %v105, %v147
  %v177 = vmul.f32 %v106, %v147
  %v178 = vmul.f32 %v107, %v147
  %v179 = vmul.f32 %v108, %v147
  %v180 = vmul.f32 %v109, %v147
  %v181 = vmul.f32 %v110, %v147
  %v182 = vmul.f32 %v111, %v147
  %v183 = vmul.f32 %v112, %v147
  %v184 = vmul.f32 %v113, %v147
  %v185 = vmul.f32 %v114, %v147
  %v186 = vmul.f32 %v115, %v147
  %v187 = vmul.f32 %v116, %v147
  %v188 = vmul.f32 %v117, %v147
  %v189 = vmul.f32 %v118, %v147
  %v190 = vmul.f32 %v119, %v147
  %v191 = vmul.f32 %v120, %v147
  %v192 = vmul.f32 %v121, %v147
  %v193 = vmul.f32 %v122, %v147
  %v194 = vmul.f32 %v123, %v147
  %v195 = vmul.f32 %v124, %v147
  %v196 = vmul.f32 %v125, %v147
  %v197 = vmul.f32 %v126, %v147
  %v198 = vmul.f32 %v127, %v147
  %v199 = vmul.f32 %v128, %v147
  %v200 = vmul.f32 %v129, %v147
  %v201 = vmul.f32 %v130, %v147
  %v202 = vmul.f32 %v131, %v147
  %v203 = vmul.f32 %v132, %v147
  %v204 = vmul.f32 %v133, %v147
  %v205 = vmul.f32 %v134, %v147
  %v206 = vmul.f32 %v135, %v147
  %v207 = vmul.f32 %v136, %v147
  %v208 = vmul.f32 %v137, %v147
  %v209 = vmul.f32 %v138, %v147
  %v210 = vmul.f32 %v139, %v147
  %v211 = vmul.f32 %v140, %v147
  %v212 = vmul.f32 %v141, %v147
  %v213 = vld [vmem:[%s2] sm:$0x1]
  %v215 = vlaneseq
  %v216 = vshrl.u32 %v215, 7
  %v217 = vsub.s32 0, %v216
  %v218 = vrot.slane %v213, %v217
  %v220 = vadd.f32 %v149, %v218
  %v221 = vadd.f32 %v150, %v218
  %v222 = vadd.f32 %v151, %v218
  %v223 = vadd.f32 %v152, %v218
  %v224 = vadd.f32 %v153, %v218
  %v225 = vadd.f32 %v154, %v218
  %v226 = vadd.f32 %v155, %v218
  %v227 = vadd.f32 %v156, %v218
  %v228 = vadd.f32 %v157, %v218
  %v229 = vadd.f32 %v158, %v218
  %v230 = vadd.f32 %v159, %v218
  %v231 = vadd.f32 %v160, %v218
  %v232 = vadd.f32 %v161, %v218
  %v233 = vadd.f32 %v162, %v218
  %v234 = vadd.f32 %v163, %v218
  %v235 = vadd.f32 %v164, %v218
  %v236 = vadd.f32 %v165, %v218
  %v237 = vadd.f32 %v166, %v218
  %v238 = vadd.f32 %v167, %v218
  %v239 = vadd.f32 %v168, %v218
  %v240 = vadd.f32 %v169, %v218
  %v241 = vadd.f32 %v170, %v218
  %v242 = vadd.f32 %v171, %v218
  %v243 = vadd.f32 %v172, %v218
  %v244 = vadd.f32 %v173, %v218
  %v245 = vadd.f32 %v174, %v218
  %v246 = vadd.f32 %v175, %v218
  %v247 = vadd.f32 %v176, %v218
  %v248 = vadd.f32 %v177, %v218
  %v249 = vadd.f32 %v178, %v218
  %v250 = vadd.f32 %v179, %v218
  %v251 = vadd.f32 %v180, %v218
  %v252 = vadd.f32 %v181, %v218
  %v253 = vadd.f32 %v182, %v218
  %v254 = vadd.f32 %v183, %v218
  %v255 = vadd.f32 %v184, %v218
  %v256 = vadd.f32 %v185, %v218
  %v257 = vadd.f32 %v186, %v218
  %v258 = vadd.f32 %v187, %v218
  %v259 = vadd.f32 %v188, %v218
  %v260 = vadd.f32 %v189, %v218
  %v261 = vadd.f32 %v190, %v218
  %v262 = vadd.f32 %v191, %v218
  %v263 = vadd.f32 %v192, %v218
  %v264 = vadd.f32 %v193, %v218
  %v265 = vadd.f32 %v194, %v218
  %v266 = vadd.f32 %v195, %v218
  %v267 = vadd.f32 %v196, %v218
  %v268 = vadd.f32 %v197, %v218
  %v269 = vadd.f32 %v198, %v218
  %v270 = vadd.f32 %v199, %v218
  %v271 = vadd.f32 %v200, %v218
  %v272 = vadd.f32 %v201, %v218
  %v273 = vadd.f32 %v202, %v218
  %v274 = vadd.f32 %v203, %v218
  %v275 = vadd.f32 %v204, %v218
  %v276 = vadd.f32 %v205, %v218
  %v277 = vadd.f32 %v206, %v218
  %v278 = vadd.f32 %v207, %v218
  %v279 = vadd.f32 %v208, %v218
  %v280 = vadd.f32 %v209, %v218
  %v281 = vadd.f32 %v210, %v218
  %v282 = vadd.f32 %v211, %v218
  %v283 = vadd.f32 %v212, %v218
  %v284 = vmax.f32 %v220, 0.0
  %v285 = vmax.f32 %v221, 0.0
  %v286 = vmax.f32 %v222, 0.0
  %v287 = vmax.f32 %v223, 0.0
  %v288 = vmax.f32 %v224, 0.0
  %v289 = vmax.f32 %v225, 0.0
  %v290 = vmax.f32 %v226, 0.0
  %v291 = vmax.f32 %v227, 0.0
  %v292 = vmax.f32 %v228, 0.0
  %v293 = vmax.f32 %v229, 0.0
  %v294 = vmax.f32 %v230, 0.0
  %v295 = vmax.f32 %v231, 0.0
  %v296 = vmax.f32 %v232, 0.0
  %v297 = vmax.f32 %v233, 0.0
  %v298 = vmax.f32 %v234, 0.0
  %v299 = vmax.f32 %v235, 0.0
  %v300 = vmax.f32 %v236, 0.0
  %v301 = vmax.f32 %v237, 0.0
  %v302 = vmax.f32 %v238, 0.0
  %v303 = vmax.f32 %v239, 0.0
  %v304 = vmax.f32 %v240, 0.0
  %v305 = vmax.f32 %v241, 0.0
  %v306 = vmax.f32 %v242, 0.0
  %v307 = vmax.f32 %v243, 0.0
  %v308 = vmax.f32 %v244, 0.0
  %v309 = vmax.f32 %v245, 0.0
  %v310 = vmax.f32 %v246, 0.0
  %v311 = vmax.f32 %v247, 0.0
  %v312 = vmax.f32 %v248, 0.0
  %v313 = vmax.f32 %v249, 0.0
  %v314 = vmax.f32 %v250, 0.0
  %v315 = vmax.f32 %v251, 0.0
  %v316 = vmax.f32 %v252, 0.0
  %v317 = vmax.f32 %v253, 0.0
  %v318 = vmax.f32 %v254, 0.0
  %v319 = vmax.f32 %v255, 0.0
  %v320 = vmax.f32 %v256, 0.0
  %v321 = vmax.f32 %v257, 0.0
  %v322 = vmax.f32 %v258, 0.0
  %v323 = vmax.f32 %v259, 0.0
  %v324 = vmax.f32 %v260, 0.0
  %v325 = vmax.f32 %v261, 0.0
  %v326 = vmax.f32 %v262, 0.0
  %v327 = vmax.f32 %v263, 0.0
  %v328 = vmax.f32 %v264, 0.0
  %v329 = vmax.f32 %v265, 0.0
  %v330 = vmax.f32 %v266, 0.0
  %v331 = vmax.f32 %v267, 0.0
  %v332 = vmax.f32 %v268, 0.0
  %v333 = vmax.f32 %v269, 0.0
  %v334 = vmax.f32 %v270, 0.0
  %v335 = vmax.f32 %v271, 0.0
  %v336 = vmax.f32 %v272, 0.0
  %v337 = vmax.f32 %v273, 0.0
  %v338 = vmax.f32 %v274, 0.0
  %v339 = vmax.f32 %v275, 0.0
  %v340 = vmax.f32 %v276, 0.0
  %v341 = vmax.f32 %v277, 0.0
  %v342 = vmax.f32 %v278, 0.0
  %v343 = vmax.f32 %v279, 0.0
  %v344 = vmax.f32 %v280, 0.0
  %v345 = vmax.f32 %v281, 0.0
  %v346 = vmax.f32 %v282, 0.0
  %v347 = vmax.f32 %v283, 0.0
  %348 = vst [vmem:[%s3] sm:$0xff] %v284
  %349 = vst [vmem:[%s3 + $0x8] sm:$0xff] %v285
  %350 = vst [vmem:[%s3 + $0x10] sm:$0xff] %v286
  %351 = vst [vmem:[%s3 + $0x18] sm:$0xff] %v287
  %352 = vst [vmem:[%s3 + $0x20] sm:$0xff] %v288
  %353 = vst [vmem:[%s3 + $0x28] sm:$0xff] %v289
  %354 = vst [vmem:[%s3 + $0x30] sm:$0xff] %v290
  %355 = vst [vmem:[%s3 + $0x38] sm:$0xff] %v291
  %356 = vst [vmem:[%s3 + $0x40] sm:$0xff] %v292
  %357 = vst [vmem:[%s3 + $0x48] sm:$0xff] %v293
  %358 = vst [vmem:[%s3 + $0x50] sm:$0xff] %v294
  %359 = vst [vmem:[%s3 + $0x58] sm:$0xff] %v295
  %360 = vst [vmem:[%s3 + $0x60] sm:$0xff] %v296
  %361 = vst [vmem:[%s3 + $0x68] sm:$0xff] %v297
  %362 = vst [vmem:[%s3 + $0x70] sm:$0xff] %v298
  %363 = vst [vmem:[%s3 + $0x78] sm:$0xff] %v299
  %364 = vst [vmem:[%s3 + $0x80] sm:$0xff] %v300
  %365 = vst [vmem:[%s3 + $0x88] sm:$0xff] %v301
  %366 = vst [vmem:[%s3 + $0x90] sm:$0xff] %v302
  %367 = vst [vmem:[%s3 + $0x98] sm:$0xff] %v303
  %368 = vst [vmem:[%s3 + $0xa0] sm:$0xff] %v304
  %369 = vst [vmem:[%s3 + $0xa8] sm:$0xff] %v305
  %370 = vst [vmem:[%s3 + $0xb0] sm:$0xff] %v306
  %371 = vst [vmem:[%s3 + $0xb8] sm:$0xff] %v307
  %372 = vst [vmem:[%s3 + $0xc0] sm:$0xff] %v308
  %373 = vst [vmem:[%s3 + $0xc8] sm:$0xff] %v309
  %374 = vst [vmem:[%s3 + $0xd0] sm:$0xff] %v310
  %375 = vst [vmem:[%s3 + $0xd8] sm:$0xff] %v311
  %376 = vst [vmem:[%s3 + $0xe0] sm:$0xff] %v312
  %377 = vst [vmem:[%s3 + $0xe8] sm:$0xff] %v313
  %378 = vst [vmem:[%s3 + $0xf0] sm:$0xff] %v314
  %379 = vst [vmem:[%s3 + $0xf8] sm:$0xff] %v315
  %380 = vst [vmem:[%s3 + $0x100] sm:$0xff] %v316
  %381 = vst [vmem:[%s3 + $0x108] sm:$0xff] %v317
  %382 = vst [vmem:[%s3 + $0x110] sm:$0xff] %v318
  %383 = vst [vmem:[%s3 + $0x118] sm:$0xff] %v319
  %384 = vst [vmem:[%s3 + $0x120] sm:$0xff] %v320
  %385 = vst [vmem:[%s3 + $0x128] sm:$0xff] %v321
  %386 = vst [vmem:[%s3 + $0x130] sm:$0xff] %v322
  %387 = vst [vmem:[%s3 + $0x138] sm:$0xff] %v323
  %388 = vst [vmem:[%s3 + $0x140] sm:$0xff] %v324
  %389 = vst [vmem:[%s3 + $0x148] sm:$0xff] %v325
  %390 = vst [vmem:[%s3 + $0x150] sm:$0xff] %v326
  %391 = vst [vmem:[%s3 + $0x158] sm:$0xff] %v327
  %392 = vst [vmem:[%s3 + $0x160] sm:$0xff] %v328
  %393 = vst [vmem:[%s3 + $0x168] sm:$0xff] %v329
  %394 = vst [vmem:[%s3 + $0x170] sm:$0xff] %v330
  %395 = vst [vmem:[%s3 + $0x178] sm:$0xff] %v331
  %396 = vst [vmem:[%s3 + $0x180] sm:$0xff] %v332
  %397 = vst [vmem:[%s3 + $0x188] sm:$0xff] %v333
  %398 = vst [vmem:[%s3 + $0x190] sm:$0xff] %v334
  %399 = vst [vmem:[%s3 + $0x198] sm:$0xff] %v335
  %400 = vst [vmem:[%s3 + $0x1a0] sm:$0xff] %v336
  %401 = vst [vmem:[%s3 + $0x1a8] sm:$0xff] %v337
  %402 = vst [vmem:[%s3 + $0x1b0] sm:$0xff] %v338
  %403 = vst [vmem:[%s3 + $0x1b8] sm:$0xff] %v339
  %404 = vst [vmem:[%s3 + $0x1c0] sm:$0xff] %v340
  %405 = vst [vmem:[%s3 + $0x1c8] sm:$0xff] %v341
  %406 = vst [vmem:[%s3 + $0x1d0] sm:$0xff] %v342
  %407 = vst [vmem:[%s3 + $0x1d8] sm:$0xff] %v343
  %408 = vst [vmem:[%s3 + $0x1e0] sm:$0xff] %v344
  %409 = vst [vmem:[%s3 + $0x1e8] sm:$0xff] %v345
  %410 = vst [vmem:[%s3 + $0x1f0] sm:$0xff] %v346
  %411 = vst [vmem:[%s3 + $0x1f8] sm:$0xff] %v347
  // Predicated region
  $region14: #{decoder_block_2d.7} parent=0 // pred_check
    _
  $region15: #{decoder_block_2d.7} parent=0 // pred_check_branch
    %413 = sbr.rel (0) target = $region17
  $region16: #{decoder_block_2d.7} parent=0 // pred_region
    _
  $region17: #{decoder_block_2d.7} parent=0 // pred_fallthru
    _
  // Predicated region
  $region18: #{decoder_block_2d.7} parent=0 // pred_check
    _
  $region19: #{decoder_block_2d.7} parent=0 // pred_check_branch
    %415 = sbr.rel (0) target = $region21
  $region20: #{decoder_block_2d.7} parent=0 // pred_region
    _
  $region21: #{decoder_block_2d.7} parent=0 // pred_fallthru
    _

// kernel: decoder_block_2d.5
$region0: #{decoder_block_2d.5}
  #allocation0 [shape = 'u32[]', space=smem, size = 0x4, offset = 0x4, fixed_abs, tag = 'smem constant byte address 0x4 - core index']
  #allocation1 [shape = 'u32[144,128]{1,0:T(1,128)}', space=vmem, size = 0x12000, scoped, tag = 'internal scratch']
  #allocation2 [shape = 'bf16[2,18,24,128]{3,2,1,0:T(8,128)(2,1)}', space=vmem, size = 0x36000, scoped, tag = 'scratch operand']
  #allocation3 [shape = 's32[2]{0}', space=sflag, size = 0x8, scoped, tag = 'scratch operand']
  #allocation4 [shape = 's32[]', space=sflag, size = 0x4, offset = 0, fixed_abs, tag = 'sflag constant byte address 0x0 - dummy sync flag']
  #allocation5 [shape = 's32[]', space=sflag, size = 0x4, offset = 0, fixed_abs, tag = 'sflag constant byte address 0x0 - dummy sync flag']
  %s0 = inlined_call_operand.vmem [shape: bf16[2,18,24,128], index: 0, kind: input, shape index: {}]
  %s1 = inlined_call_operand.vmem [shape: bf16[3,384,128], index: 1, kind: input, shape index: {}]
  %s2 = inlined_call_operand.vmem [shape: f32[1,128], index: 2, kind: input, shape index: {}]
  %s3 = inlined_call_operand.vmem [shape: f32[1,128], index: 3, kind: input, shape index: {}]
  %s4 = inlined_call_operand.vmem [shape: f32[1,128], index: 4, kind: input, shape index: {}]
  %s5 = inlined_call_operand.vmem [shape: bf16[2,16,16,128], index: 5, kind: output, shape index: {0}]
  %s6 = inlined_call_operand.vmem [shape: f32[2,1,2,128], index: 6, kind: output, shape index: {1}]
  %7 = xla_tuple %s5, %s6
  %s8 = sld [smem:[#allocation0]]
  $region133: #{decoder_block_2d.5} parent=0
    _
  %s10 = ssub.s32 1, %s8
  %s11 = scalar_select 0, %s10, %s8
  loop: start=0, step=1, limit=4
  $region2: #{decoder_block_2d.5} parent=0 // loop_pre_header
    _
  $region3: #{decoder_block_2d.5} parent=0 // loop_header
    %s13 = sphi 0, %s17
    %p14 = scmp.ge.s32.totalorder %s13, 4
    %s20 = sphi 0, %s32
    %s21 = sphi 0, %s28
    %s22 = sphi 0, %s20
    %s23 = sphi 0, %s21
    %s24 = sphi 0, %s22
    %s25 = sphi 0, %s23
    %s33 = sphi 0, %s33
    %s35 = sphi 0, %s33
    %s36 = sphi 0, %s35
    %s50 = sphi 0, %s36
    %s54 = sphi 0, %s54
    %s56 = sphi 0, %s54
    %s57 = sphi 0, %s56
    %s71 = sphi 0, %s57
    %s75 = sphi 0, %s75
    %s77 = sphi 0, %s75
    %s78 = sphi 0, %s77
    %s92 = sphi 0, %s78
    %s96 = sphi 0, %s96
    %s98 = sphi 0, %s96
    %s99 = sphi 0, %s98
    %s113 = sphi 0, %s99
    %s121 = sphi 0, %s123
    %s124 = sphi 0, %s121
    %s125 = sphi 0, %s124
    %s141 = sphi 0, %s125
    %s149 = sphi 0, %s151
    %s152 = sphi 0, %s149
    %s153 = sphi 0, %s152
    %s169 = sphi 0, %s153
  $region4: #{decoder_block_2d.5} parent=0 // loop_header_branch
    %16 = sbr.rel (%p14) target = $region8
  $region5: #{decoder_block_2d.5} parent=0 // loop_body
    %s18 = ssub.s32 %s13, 1
    %s19 = ssub.s32 %s13, 2
    %s26 = sadd.s32 1, %s21
    %p27 = scmp.ge.s32.totalorder %s26, 1
    %s28 = scalar_select %p27, 0, %s26
    %s29 = sadd.s32 1, %s20
    %s30 = scalar_select %p27, %s29, %s20
    %p31 = scmp.ge.s32.totalorder %s30, 2
    %s32 = scalar_select %p31, 0, %s30
    %s34 = sadd.s32 %s33, 1
    %p37 = scmp.eq.s32.totalorder %s13, 1
    %p38 = scmp.ne.s32.totalorder %s33, %s35
    %p39 = scmp.eq.s32.totalorder %s13, 0
    %p40 = por %p38, %p39
    %p41 = scmp.ne.s32.totalorder %s33, %s35
    %p42 = scmp.eq.s32.totalorder %s18, 1
    %p43 = por %p41, %p42
    %p44 = scmp.ne.s32.totalorder %s35, %s36
    %p45 = scmp.eq.s32.totalorder %s18, 0
    %p46 = por %p44, %p45
    %p47 = scmp.ne.s32.totalorder %s35, %s36
    %p48 = scmp.eq.s32.totalorder %s19, 1
    %p49 = por %p47, %p48
    %p51 = scmp.ne.s32.totalorder %s36, %s50
    %p52 = scmp.eq.s32.totalorder %s19, 0
    %p53 = por %p51, %p52
    %s55 = sadd.s32 %s54, 1
    %p58 = scmp.eq.s32.totalorder %s13, 1
    %p59 = scmp.ne.s32.totalorder %s54, %s56
    %p60 = scmp.eq.s32.totalorder %s13, 0
    %p61 = por %p59, %p60
    %p62 = scmp.ne.s32.totalorder %s54, %s56
    %p63 = scmp.eq.s32.totalorder %s18, 1
    %p64 = por %p62, %p63
    %p65 = scmp.ne.s32.totalorder %s56, %s57
    %p66 = scmp.eq.s32.totalorder %s18, 0
    %p67 = por %p65, %p66
    %p68 = scmp.ne.s32.totalorder %s56, %s57
    %p69 = scmp.eq.s32.totalorder %s19, 1
    %p70 = por %p68, %p69
    %p72 = scmp.ne.s32.totalorder %s57, %s71
    %p73 = scmp.eq.s32.totalorder %s19, 0
    %p74 = por %p72, %p73
    %s76 = sadd.s32 %s75, 1
    %p79 = scmp.eq.s32.totalorder %s13, 1
    %p80 = scmp.ne.s32.totalorder %s75, %s77
    %p81 = scmp.eq.s32.totalorder %s13, 0
    %p82 = por %p80, %p81
    %p83 = scmp.ne.s32.totalorder %s75, %s77
    %p84 = scmp.eq.s32.totalorder %s18, 1
    %p85 = por %p83, %p84
    %p86 = scmp.ne.s32.totalorder %s77, %s78
    %p87 = scmp.eq.s32.totalorder %s18, 0
    %p88 = por %p86, %p87
    %p89 = scmp.ne.s32.totalorder %s77, %s78
    %p90 = scmp.eq.s32.totalorder %s19, 1
    %p91 = por %p89, %p90
    %p93 = scmp.ne.s32.totalorder %s78, %s92
    %p94 = scmp.eq.s32.totalorder %s19, 0
    %p95 = por %p93, %p94
    %s97 = sadd.s32 %s96, 1
    %p100 = scmp.eq.s32.totalorder %s13, 1
    %p101 = scmp.ne.s32.totalorder %s96, %s98
    %p102 = scmp.eq.s32.totalorder %s13, 0
    %p103 = por %p101, %p102
    %p104 = scmp.ne.s32.totalorder %s96, %s98
    %p105 = scmp.eq.s32.totalorder %s18, 1
    %p106 = por %p104, %p105
    %p107 = scmp.ne.s32.totalorder %s98, %s99
    %p108 = scmp.eq.s32.totalorder %s18, 0
    %p109 = por %p107, %p108
    %p110 = scmp.ne.s32.totalorder %s98, %s99
    %p111 = scmp.eq.s32.totalorder %s19, 1
    %p112 = por %p110, %p111
    %p114 = scmp.ne.s32.totalorder %s99, %s113
    %p115 = scmp.eq.s32.totalorder %s19, 0
    %p116 = por %p114, %p115
    %s117 = ssub.s32 %s20, %s32
    %s118 = ssub.s32 %s21, %s28
    %s119 = sor.u32 %s117, %s118
    %p120 = scmp.eq.s32.totalorder %s119, 0
    %s122 = sadd.s32 %s121, 1
    %s123 = scalar_select %p120, %s121, %s122
    %p126 = pneg %p120
    %p127 = scmp.eq.s32.totalorder %s13, 1
    %p128 = por %p126, %p127
    %p129 = scmp.ne.s32.totalorder %s121, %s124
    %p130 = scmp.eq.s32.totalorder %s13, 0
    %p131 = por %p129, %p130
    %p132 = scmp.ne.s32.totalorder %s121, %s124
    %p133 = scmp.eq.s32.totalorder %s18, 1
    %p134 = por %p132, %p133
    %p135 = scmp.ne.s32.totalorder %s124, %s125
    %p136 = scmp.eq.s32.totalorder %s18, 0
    %p137 = por %p135, %p136
    %p138 = scmp.ne.s32.totalorder %s124, %s125
    %p139 = scmp.eq.s32.totalorder %s19, 1
    %p140 = por %p138, %p139
    %p142 = scmp.ne.s32.totalorder %s125, %s141
    %p143 = scmp.eq.s32.totalorder %s19, 0
    %p144 = por %p142, %p143
    %s145 = ssub.s32 %s20, %s32
    %s146 = ssub.s32 %s21, %s28
    %s147 = sor.u32 %s145, %s146
    %p148 = scmp.eq.s32.totalorder %s147, 0
    %s150 = sadd.s32 %s149, 1
    %s151 = scalar_select %p148, %s149, %s150
    %p154 = pneg %p148
    %p155 = scmp.eq.s32.totalorder %s13, 1
    %p156 = por %p154, %p155
    %p157 = scmp.ne.s32.totalorder %s149, %s152
    %p158 = scmp.eq.s32.totalorder %s13, 0
    %p159 = por %p157, %p158
    %p160 = scmp.ne.s32.totalorder %s149, %s152
    %p161 = scmp.eq.s32.totalorder %s18, 1
    %p162 = por %p160, %p161
    %p163 = scmp.ne.s32.totalorder %s152, %s153
    %p164 = scmp.eq.s32.totalorder %s18, 0
    %p165 = por %p163, %p164
    %p166 = scmp.ne.s32.totalorder %s152, %s153
    %p167 = scmp.eq.s32.totalorder %s19, 1
    %p168 = por %p166, %p167
    %p170 = scmp.ne.s32.totalorder %s153, %s169
    %p171 = scmp.eq.s32.totalorder %s19, 0
    %p172 = por %p170, %p171
    %p173 = scmp.le.s32.totalorder 1, %s13
    %p174 = scmp.lt.s32.totalorder %s13, 3
    %p175 = pnand %p173, %p174
    %p176 = pneg %p175
    // Predicated region
    $region9: #{decoder_block_2d.5} parent=5 // pred_check
      _
    $region10: #{decoder_block_2d.5} parent=5 // pred_check_branch
      %178 = sbr.rel (%p175) target = $region12
    $region11: #{decoder_block_2d.5} parent=5 // pred_region
      %s179 = ssub.s32 %s13, 1
      // Predicated region
      $region13: #{decoder_block_2d.5} parent=11 // pred_check
        %p180 = pneg %p46
      $region14: #{decoder_block_2d.5} parent=11 // pred_check_branch
        %182 = sbr.rel (%p180) target = $region16
      $region15: #{decoder_block_2d.5} parent=11 // pred_region
        _
      $region16: #{decoder_block_2d.5} parent=11 // pred_fallthru
        _
      // Predicated region
      $region17: #{decoder_block_2d.5} parent=11 // pred_check
        %p183 = pneg %p67
      $region18: #{decoder_block_2d.5} parent=11 // pred_check_branch
        %185 = sbr.rel (%p183) target = $region20
      $region19: #{decoder_block_2d.5} parent=11 // pred_region
        _
      $region20: #{decoder_block_2d.5} parent=11 // pred_fallthru
        _
      // Predicated region
      $region21: #{decoder_block_2d.5} parent=11 // pred_check
        %p186 = pneg %p88
      $region22: #{decoder_block_2d.5} parent=11 // pred_check_branch
        %188 = sbr.rel (%p186) target = $region24
      $region23: #{decoder_block_2d.5} parent=11 // pred_region
        _
      $region24: #{decoder_block_2d.5} parent=11 // pred_fallthru
        _
      // Predicated region
      $region25: #{decoder_block_2d.5} parent=11 // pred_check
        %p189 = pneg %p109
      $region26: #{decoder_block_2d.5} parent=11 // pred_check_branch
        %191 = sbr.rel (%p189) target = $region28
      $region27: #{decoder_block_2d.5} parent=11 // pred_region
        _
      $region28: #{decoder_block_2d.5} parent=11 // pred_fallthru
        _
    $region12: #{decoder_block_2d.5} parent=5 // pred_fallthru
      _
    %p192 = scmp.lt.s32.totalorder %s13, 2
    // Predicated region
    $region29: #{decoder_block_2d.5} parent=5 // pred_check
      %p193 = pneg %p192
    $region30: #{decoder_block_2d.5} parent=5 // pred_check_branch
      %195 = sbr.rel (%p193) target = $region32
    $region31: #{decoder_block_2d.5} parent=5 // pred_region
      _
    $region32: #{decoder_block_2d.5} parent=5 // pred_fallthru
      _
    %p196 = scmp.le.s32.totalorder 1, %s13
    %p197 = scmp.lt.s32.totalorder %s13, 3
    %p198 = pnand %p196, %p197
    %p199 = pneg %p198
    // Predicated region
    $region33: #{decoder_block_2d.5} parent=5 // pred_check
      _
    $region34: #{decoder_block_2d.5} parent=5 // pred_check_branch
      %201 = sbr.rel (%p198) target = $region36
    $region35: #{decoder_block_2d.5} parent=5 // pred_region
      %s202 = ssub.s32 %s13, 1
      %p203 = pneg %p46
      %p204 = pneg %p43
      %p205 = pneg %p67
      %p206 = pneg %p64
      %p207 = pneg %p88
      %p208 = pneg %p85
      %p209 = pneg %p109
      %p210 = pneg %p106
      %p211 = pneg %p137
      %p212 = pneg %p134
      %s213 = smul.u32 16, %s23
      %p214 = scmp.lt.s32.totalorder %s22, 1
      %s215 = scalar_select %p214, %s22, 1
      %p216 = scmp.lt.s32.totalorder %s213, 15
      %s217 = scalar_select %p216, %s213, 15
      %s218 = smul.addr %s217, 2
      %s219 = smul.addr %s215, 32
      %s220 = sadd.s32 %s218, %s219
      %s221 = smul.addr %s220, 4
      %s222 = scalar_lea.vmem %s5, %s221
      %p223 = pneg %p165
      %p224 = pneg %p162
      %p225 = scmp.lt.s32.totalorder %s22, 1
      %s226 = scalar_select %p225, %s22, 1
      %p227 = scmp.lt.s32.totalorder %s23, 0
      %s228 = scalar_select %p227, %s23, 0
      %s229 = sadd.s32 %s228, %s226
      %s230 = smul.addr %s229, 2
      %s231 = scalar_lea.vmem %s6, %s230
      %s232 = smul.u32 16, %s23
      %p233 = scmp.lt.s32.totalorder %s22, 1
      %s234 = scalar_select %p233, %s22, 1
      %p235 = scmp.lt.s32.totalorder %s232, 15
      %s236 = scalar_select %p235, %s232, 15
      %s237 = smul.addr %s236, 2
      %s238 = smul.addr %s234, 32
      %s239 = sadd.s32 %s237, %s238
      %s240 = smul.addr %s239, 4
      %s241 = scalar_lea.vmem %s5, %s240
      %s242 = smul.u32 16, %s23
      %p243 = scmp.lt.s32.totalorder %s22, 1
      %s244 = scalar_select %p243, %s22, 1
      %p245 = scmp.lt.s32.totalorder %s23, 0
      %s246 = scalar_select %p245, %s23, 0
      %s247 = sadd.s32 %s246, %s244
      %s248 = smul.addr %s247, 2
      %s249 = scalar_lea.vmem %s6, %s248
      %p251 = scmp.eq.s32.totalorder %s23, 0
      // Predicated region
      $region37: #{decoder_block_2d.5} parent=35 // pred_check
        %p252 = pneg %p251
      $region38: #{decoder_block_2d.5} parent=35 // pred_check_branch
        %254 = sbr.rel (%p252) target = $region40
      $region39: #{decoder_block_2d.5} parent=35 // pred_region
        %s255 = smul.u32 %s22, 54
        %s256 = smul.addr %s255, 4
        %s257 = scalar_lea.vmem %s0, %s256
        %p259 = scmp.lt.u32.totalorder 216, 8
        %p260 = pneg %p259
        // Predicated region
        $region41: #{decoder_block_2d.5} parent=39 // pred_check
          _
        $region42: #{decoder_block_2d.5} parent=39 // pred_check_branch
          %262 = sbr.rel (%p259) target = $region44
        $region43: #{decoder_block_2d.5} parent=39 // pred_region
          %s277 = sand.u32 216, 7
          %p278 = scmp.eq.s32.totalorder %s277, 0
          // Predicated region
          $region56: #{decoder_block_2d.5} parent=43 // pred_check
            %p279 = pneg %p278
          $region57: #{decoder_block_2d.5} parent=43 // pred_check_branch
            %281 = sbr.rel (%p279) target = $region59
          $region58: #{decoder_block_2d.5} parent=43 // pred_region
            loop: start=0, step=1, limit=1
            $region60: #{decoder_block_2d.5} parent=58 // loop_pre_header
              _
            $region61: #{decoder_block_2d.5} parent=58 // loop_header
              %s283 = sphi 0, %s287
              %p284 = scmp.ge.s32.totalorder %s283, 1
              %s288 = sphi %s257, %s257
              %s289 = sphi [#allocation2], [#allocation2]
            $region62: #{decoder_block_2d.5} parent=58 // loop_header_branch
              %286 = sbr.rel (%p284) target = $region66
            $region63: #{decoder_block_2d.5} parent=58 // loop_body
              %v290 = vld [vmem:[%s288] sm:$0xff]
              %291 = vst [vmem:[%s289] sm:$0xff] %v290
              %v292 = vld [vmem:[%s288 + $0x8] sm:$0xff]
              %293 = vst [vmem:[%s289 + $0x8] sm:$0xff] %v292
              %v294 = vld [vmem:[%s288 + $0x10] sm:$0xff]
              %295 = vst [vmem:[%s289 + $0x10] sm:$0xff] %v294
              %v296 = vld [vmem:[%s288 + $0x18] sm:$0xff]
              %297 = vst [vmem:[%s289 + $0x18] sm:$0xff] %v296
              %v298 = vld [vmem:[%s288 + $0x20] sm:$0xff]
              %299 = vst [vmem:[%s289 + $0x20] sm:$0xff] %v298
              %v300 = vld [vmem:[%s288 + $0x28] sm:$0xff]
              %301 = vst [vmem:[%s289 + $0x28] sm:$0xff] %v300
              %v302 = vld [vmem:[%s288 + $0x30] sm:$0xff]
              %303 = vst [vmem:[%s289 + $0x30] sm:$0xff] %v302
              %v304 = vld [vmem:[%s288 + $0x38] sm:$0xff]
              %305 = vst [vmem:[%s289 + $0x38] sm:$0xff] %v304
              %v306 = vld [vmem:[%s288 + $0x40] sm:$0xff]
              %307 = vst [vmem:[%s289 + $0x40] sm:$0xff] %v306
              %v308 = vld [vmem:[%s288 + $0x48] sm:$0xff]
              %309 = vst [vmem:[%s289 + $0x48] sm:$0xff] %v308
              %v310 = vld [vmem:[%s288 + $0x50] sm:$0xff]
              %311 = vst [vmem:[%s289 + $0x50] sm:$0xff] %v310
              %v312 = vld [vmem:[%s288 + $0x58] sm:$0xff]
              %313 = vst [vmem:[%s289 + $0x58] sm:$0xff] %v312
              %v314 = vld [vmem:[%s288 + $0x60] sm:$0xff]
              %315 = vst [vmem:[%s289 + $0x60] sm:$0xff] %v314
              %v316 = vld [vmem:[%s288 + $0x68] sm:$0xff]
              %317 = vst [vmem:[%s289 + $0x68] sm:$0xff] %v316
              %v318 = vld [vmem:[%s288 + $0x70] sm:$0xff]
              %319 = vst [vmem:[%s289 + $0x70] sm:$0xff] %v318
              %v320 = vld [vmem:[%s288 + $0x78] sm:$0xff]
              %321 = vst [vmem:[%s289 + $0x78] sm:$0xff] %v320
              %v322 = vld [vmem:[%s288 + $0x80] sm:$0xff]
              %323 = vst [vmem:[%s289 + $0x80] sm:$0xff] %v322
              %v324 = vld [vmem:[%s288 + $0x88] sm:$0xff]
              %325 = vst [vmem:[%s289 + $0x88] sm:$0xff] %v324
              %v326 = vld [vmem:[%s288 + $0x90] sm:$0xff]
              %327 = vst [vmem:[%s289 + $0x90] sm:$0xff] %v326
              %v328 = vld [vmem:[%s288 + $0x98] sm:$0xff]
              %329 = vst [vmem:[%s289 + $0x98] sm:$0xff] %v328
              %v330 = vld [vmem:[%s288 + $0xa0] sm:$0xff]
              %331 = vst [vmem:[%s289 + $0xa0] sm:$0xff] %v330
              %v332 = vld [vmem:[%s288 + $0xa8] sm:$0xff]
              %333 = vst [vmem:[%s289 + $0xa8] sm:$0xff] %v332
              %v334 = vld [vmem:[%s288 + $0xb0] sm:$0xff]
              %335 = vst [vmem:[%s289 + $0xb0] sm:$0xff] %v334
              %v336 = vld [vmem:[%s288 + $0xb8] sm:$0xff]
              %337 = vst [vmem:[%s289 + $0xb8] sm:$0xff] %v336
              %v338 = vld [vmem:[%s288 + $0xc0] sm:$0xff]
              %339 = vst [vmem:[%s289 + $0xc0] sm:$0xff] %v338
              %v340 = vld [vmem:[%s288 + $0xc8] sm:$0xff]
              %341 = vst [vmem:[%s289 + $0xc8] sm:$0xff] %v340
              %v342 = vld [vmem:[%s288 + $0xd0] sm:$0xff]
              %343 = vst [vmem:[%s289 + $0xd0] sm:$0xff] %v342
            $region64: #{decoder_block_2d.5} parent=58 // loop_footer
              %s287 = sadd.s32 1, %s283
            $region65: #{decoder_block_2d.5} parent=58 // loop_footer_branch
              %282 = sbr.rel target = $region61
            $region66: #{decoder_block_2d.5} parent=58 // loop_exit
              _
          $region59: #{decoder_block_2d.5} parent=43 // pred_fallthru
            _
          %p344 = pneg %p278
          // Predicated region
          $region67: #{decoder_block_2d.5} parent=43 // pred_check
            _
          $region68: #{decoder_block_2d.5} parent=43 // pred_check_branch
            %346 = sbr.rel (%p278) target = $region70
          $region69: #{decoder_block_2d.5} parent=43 // pred_region
            %s347 = sand.u32 216, 7
          $region70: #{decoder_block_2d.5} parent=43 // pred_fallthru
            _
        $region44: #{decoder_block_2d.5} parent=39 // pred_fallthru
          _
        // Predicated region
        $region45: #{decoder_block_2d.5} parent=39 // pred_check
          %p263 = pneg %p259
        $region46: #{decoder_block_2d.5} parent=39 // pred_check_branch
          %265 = sbr.rel (%p263) target = $region48
        $region47: #{decoder_block_2d.5} parent=39 // pred_region
          %s266 = sshllo.u32 0, 216
          loop: start=0, step=1, limit=1
          $region49: #{decoder_block_2d.5} parent=47 // loop_pre_header
            _
          $region50: #{decoder_block_2d.5} parent=47 // loop_header
            %s268 = sphi 0, %s272
            %p269 = scmp.ge.s32.totalorder %s268, 1
            %s273 = sphi %s257, %s257
            %s274 = sphi [#allocation2], [#allocation2]
          $region51: #{decoder_block_2d.5} parent=47 // loop_header_branch
            %271 = sbr.rel (%p269) target = $region55
          $region52: #{decoder_block_2d.5} parent=47 // loop_body
            %v275 = vld [vmem:[%s273] sm:%s266]
            %276 = vst [vmem:[%s274] sm:%s266] %v275
          $region53: #{decoder_block_2d.5} parent=47 // loop_footer
            %s272 = sadd.s32 1, %s268
          $region54: #{decoder_block_2d.5} parent=47 // loop_footer_branch
            %267 = sbr.rel target = $region50
          $region55: #{decoder_block_2d.5} parent=47 // loop_exit
            _
        $region48: #{decoder_block_2d.5} parent=39 // pred_fallthru
          _
        // Predicated region
        $region71: #{decoder_block_2d.5} parent=39 // pred_check
          _
        $region72: #{decoder_block_2d.5} parent=39 // pred_check_branch
          %350 = sbr.rel (0) target = $region74
        $region73: #{decoder_block_2d.5} parent=39 // pred_region
          %351 = vsyncadd [#allocation3], 3456
        $region74: #{decoder_block_2d.5} parent=39 // pred_fallthru
          _
      $region40: #{decoder_block_2d.5} parent=35 // pred_fallthru
        _
      %p352 = scmp.lt.s32.totalorder %s23, 0
      %s353 = ssub.s32 0, %s23
      %s354 = scalar_select %p352, %s353, %s23
      %s355 = sand.u32 %s354, 1
      %s356 = ssub.s32 0, %s355
      %s357 = scalar_select %p352, %s356, %s355
      %p358 = scmp.ne.s32.totalorder %s357, 0
      %p359 = scmp.lt.s32.totalorder %s357, 0
      %p360 = pnand %p359, %p358
      %p361 = pneg %p360
      %s362 = sadd.s32 %s357, 2
      %s363 = scalar_select %p361, %s362, %s357
      %s364 = smul.u32 %s363, 54
      %s365 = smul.addr %s364, 4
      %s366 = scalar_lea.vmem [#allocation2], %s365
      %s367 = scalar_lea.sflag [#allocation3], %s363
      %s368 = smul.u32 4, 18
      %s369 = smul.u32 %s368, 3
      %s370 = smul.u32 %s369, 1
      %s371 = sshll.u32 %s370, 4
      %372 = dma.done %s367, %s371
      %s373 = sadd.s32 %s23, 1
      %p374 = scmp.lt.s32.totalorder %s373, 1
      // Predicated region
      $region75: #{decoder_block_2d.5} parent=35 // pred_check
        %p375 = pneg %p374
      $region76: #{decoder_block_2d.5} parent=35 // pred_check_branch
        %377 = sbr.rel (%p375) target = $region78
      $region77: #{decoder_block_2d.5} parent=35 // pred_region
        %p378 = scmp.lt.s32.totalorder %s373, 0
        %s379 = ssub.s32 0, %s373
        %s380 = scalar_select %p378, %s379, %s373
        %s381 = sand.u32 %s380, 1
        %s382 = ssub.s32 0, %s381
        %s383 = scalar_select %p378, %s382, %s381
        %p384 = scmp.ne.s32.totalorder %s383, 0
        %p385 = scmp.lt.s32.totalorder %s383, 0
        %p386 = pnand %p385, %p384
        %p387 = pneg %p386
        %s388 = sadd.s32 %s383, 2
        %s389 = scalar_select %p387, %s388, %s383
        %s390 = smul.u32 %s373, 16
        %s391 = smul.u32 %s390, 3
        %s392 = smul.u32 %s22, 54
        %s393 = sadd.s32 %s391, %s392
        %s394 = smul.addr %s393, 4
        %s395 = scalar_lea.vmem %s0, %s394
        %s396 = smul.u32 %s389, 54
        %s397 = smul.addr %s396, 4
        %s398 = scalar_lea.vmem [#allocation2], %s397
        %s399 = scalar_lea.sflag [#allocation3], %s389
        %p401 = scmp.lt.u32.totalorder 216, 8
        %p402 = pneg %p401
        // Predicated region
        $region79: #{decoder_block_2d.5} parent=77 // pred_check
          _
        $region80: #{decoder_block_2d.5} parent=77 // pred_check_branch
          %404 = sbr.rel (%p401) target = $region82
        $region81: #{decoder_block_2d.5} parent=77 // pred_region
          %s419 = sand.u32 216, 7
          %p420 = scmp.eq.s32.totalorder %s419, 0
          // Predicated region
          $region94: #{decoder_block_2d.5} parent=81 // pred_check
            %p421 = pneg %p420
          $region95: #{decoder_block_2d.5} parent=81 // pred_check_branch
            %423 = sbr.rel (%p421) target = $region97
          $region96: #{decoder_block_2d.5} parent=81 // pred_region
            loop: start=0, step=1, limit=1
            $region98: #{decoder_block_2d.5} parent=96 // loop_pre_header
              _
            $region99: #{decoder_block_2d.5} parent=96 // loop_header
              %s425 = sphi 0, %s429
              %p426 = scmp.ge.s32.totalorder %s425, 1
              %s430 = sphi %s395, %s395
              %s431 = sphi %s398, %s398
            $region100: #{decoder_block_2d.5} parent=96 // loop_header_branch
              %428 = sbr.rel (%p426) target = $region104
            $region101: #{decoder_block_2d.5} parent=96 // loop_body
              %v432 = vld [vmem:[%s430] sm:$0xff]
              %433 = vst [vmem:[%s431] sm:$0xff] %v432
              %v434 = vld [vmem:[%s430 + $0x8] sm:$0xff]
              %435 = vst [vmem:[%s431 + $0x8] sm:$0xff] %v434
              %v436 = vld [vmem:[%s430 + $0x10] sm:$0xff]
              %437 = vst [vmem:[%s431 + $0x10] sm:$0xff] %v436
              %v438 = vld [vmem:[%s430 + $0x18] sm:$0xff]
              %439 = vst [vmem:[%s431 + $0x18] sm:$0xff] %v438
              %v440 = vld [vmem:[%s430 + $0x20] sm:$0xff]
              %441 = vst [vmem:[%s431 + $0x20] sm:$0xff] %v440
              %v442 = vld [vmem:[%s430 + $0x28] sm:$0xff]
              %443 = vst [vmem:[%s431 + $0x28] sm:$0xff] %v442
              %v444 = vld [vmem:[%s430 + $0x30] sm:$0xff]
              %445 = vst [vmem:[%s431 + $0x30] sm:$0xff] %v444
              %v446 = vld [vmem:[%s430 + $0x38] sm:$0xff]
              %447 = vst [vmem:[%s431 + $0x38] sm:$0xff] %v446
              %v448 = vld [vmem:[%s430 + $0x40] sm:$0xff]
              %449 = vst [vmem:[%s431 + $0x40] sm:$0xff] %v448
              %v450 = vld [vmem:[%s430 + $0x48] sm:$0xff]
              %451 = vst [vmem:[%s431 + $0x48] sm:$0xff] %v450
              %v452 = vld [vmem:[%s430 + $0x50] sm:$0xff]
              %453 = vst [vmem:[%s431 + $0x50] sm:$0xff] %v452
              %v454 = vld [vmem:[%s430 + $0x58] sm:$0xff]
              %455 = vst [vmem:[%s431 + $0x58] sm:$0xff] %v454
              %v456 = vld [vmem:[%s430 + $0x60] sm:$0xff]
              %457 = vst [vmem:[%s431 + $0x60] sm:$0xff] %v456
              %v458 = vld [vmem:[%s430 + $0x68] sm:$0xff]
              %459 = vst [vmem:[%s431 + $0x68] sm:$0xff] %v458
              %v460 = vld [vmem:[%s430 + $0x70] sm:$0xff]
              %461 = vst [vmem:[%s431 + $0x70] sm:$0xff] %v460
              %v462 = vld [vmem:[%s430 + $0x78] sm:$0xff]
              %463 = vst [vmem:[%s431 + $0x78] sm:$0xff] %v462
              %v464 = vld [vmem:[%s430 + $0x80] sm:$0xff]
              %465 = vst [vmem:[%s431 + $0x80] sm:$0xff] %v464
              %v466 = vld [vmem:[%s430 + $0x88] sm:$0xff]
              %467 = vst [vmem:[%s431 + $0x88] sm:$0xff] %v466
              %v468 = vld [vmem:[%s430 + $0x90] sm:$0xff]
              %469 = vst [vmem:[%s431 + $0x90] sm:$0xff] %v468
              %v470 = vld [vmem:[%s430 + $0x98] sm:$0xff]
              %471 = vst [vmem:[%s431 + $0x98] sm:$0xff] %v470
              %v472 = vld [vmem:[%s430 + $0xa0] sm:$0xff]
              %473 = vst [vmem:[%s431 + $0xa0] sm:$0xff] %v472
              %v474 = vld [vmem:[%s430 + $0xa8] sm:$0xff]
              %475 = vst [vmem:[%s431 + $0xa8] sm:$0xff] %v474
              %v476 = vld [vmem:[%s430 + $0xb0] sm:$0xff]
              %477 = vst [vmem:[%s431 + $0xb0] sm:$0xff] %v476
              %v478 = vld [vmem:[%s430 + $0xb8] sm:$0xff]
              %479 = vst [vmem:[%s431 + $0xb8] sm:$0xff] %v478
              %v480 = vld [vmem:[%s430 + $0xc0] sm:$0xff]
              %481 = vst [vmem:[%s431 + $0xc0] sm:$0xff] %v480
              %v482 = vld [vmem:[%s430 + $0xc8] sm:$0xff]
              %483 = vst [vmem:[%s431 + $0xc8] sm:$0xff] %v482
              %v484 = vld [vmem:[%s430 + $0xd0] sm:$0xff]
              %485 = vst [vmem:[%s431 + $0xd0] sm:$0xff] %v484
            $region102: #{decoder_block_2d.5} parent=96 // loop_footer
              %s429 = sadd.s32 1, %s425
            $region103: #{decoder_block_2d.5} parent=96 // loop_footer_branch
              %424 = sbr.rel target = $region99
            $region104: #{decoder_block_2d.5} parent=96 // loop_exit
              _
          $region97: #{decoder_block_2d.5} parent=81 // pred_fallthru
            _
          %p486 = pneg %p420
          // Predicated region
          $region105: #{decoder_block_2d.5} parent=81 // pred_check
            _
          $region106: #{decoder_block_2d.5} parent=81 // pred_check_branch
            %488 = sbr.rel (%p420) target = $region108
          $region107: #{decoder_block_2d.5} parent=81 // pred_region
            %s489 = sand.u32 216, 7
          $region108: #{decoder_block_2d.5} parent=81 // pred_fallthru
            _
        $region82: #{decoder_block_2d.5} parent=77 // pred_fallthru
          _
        // Predicated region
        $region83: #{decoder_block_2d.5} parent=77 // pred_check
          %p405 = pneg %p401
        $region84: #{decoder_block_2d.5} parent=77 // pred_check_branch
          %407 = sbr.rel (%p405) target = $region86
        $region85: #{decoder_block_2d.5} parent=77 // pred_region
          %s408 = sshllo.u32 0, 216
          loop: start=0, step=1, limit=1
          $region87: #{decoder_block_2d.5} parent=85 // loop_pre_header
            _
          $region88: #{decoder_block_2d.5} parent=85 // loop_header
            %s410 = sphi 0, %s414
            %p411 = scmp.ge.s32.totalorder %s410, 1
            %s415 = sphi %s395, %s395
            %s416 = sphi %s398, %s398
          $region89: #{decoder_block_2d.5} parent=85 // loop_header_branch
            %413 = sbr.rel (%p411) target = $region93
          $region90: #{decoder_block_2d.5} parent=85 // loop_body
            %v417 = vld [vmem:[%s415] sm:%s408]
            %418 = vst [vmem:[%s416] sm:%s408] %v417
          $region91: #{decoder_block_2d.5} parent=85 // loop_footer
            %s414 = sadd.s32 1, %s410
          $region92: #{decoder_block_2d.5} parent=85 // loop_footer_branch
            %409 = sbr.rel target = $region88
          $region93: #{decoder_block_2d.5} parent=85 // loop_exit
            _
        $region86: #{decoder_block_2d.5} parent=77 // pred_fallthru
          _
        // Predicated region
        $region109: #{decoder_block_2d.5} parent=77 // pred_check
          _
        $region110: #{decoder_block_2d.5} parent=77 // pred_check_branch
          %492 = sbr.rel (0) target = $region112
        $region111: #{decoder_block_2d.5} parent=77 // pred_region
          %493 = vsyncadd %s399, 3456
        $region112: #{decoder_block_2d.5} parent=77 // pred_fallthru
          _
      $region78: #{decoder_block_2d.5} parent=35 // pred_fallthru
        _
      %v494 = vld [vmem:[%s366] sm:$0xf]
      %v495 = vld [vmem:[%s366 + $0x4] sm:$0xf]
      %v496 = vld [vmem:[%s366 + $0x8] sm:$0xf]
      %v497 = vld [vmem:[%s366 + $0xc] sm:$0xf]
      %v498 = vld [vmem:[%s366 + $0x10] sm:$0xf]
      %v499 = vld [vmem:[%s366 + $0x14] sm:$0xf]
      %v500 = vld [vmem:[%s366 + $0x18] sm:$0xf]
      %v501 = vld [vmem:[%s366 + $0x1c] sm:$0xf]
      %v502 = vld [vmem:[%s366 + $0x20] sm:$0xf]
      %v503 = vld [vmem:[%s366 + $0x24] sm:$0xf]
      %v504 = vld [vmem:[%s366 + $0x28] sm:$0xf]
      %v505 = vld [vmem:[%s366 + $0x2c] sm:$0xf]
      %v506 = vld [vmem:[%s366 + $0x30] sm:$0xf]
      %v507 = vld [vmem:[%s366 + $0x34] sm:$0xf]
      %v508 = vld [vmem:[%s366 + $0x38] sm:$0xf]
      %v509 = vld [vmem:[%s366 + $0x3c] sm:$0xf]
      %v510 = vld [vmem:[%s366 + $0x40] sm:$0xf]
      %v511 = vld [vmem:[%s366 + $0x44] sm:$0xf]
      %v512 = vld [vmem:[%s366 + $0x48] sm:$0xf]
      %v513 = vld [vmem:[%s366 + $0x4c] sm:$0xf]
      %v514 = vld [vmem:[%s366 + $0x50] sm:$0xf]
      %v515 = vld [vmem:[%s366 + $0x54] sm:$0xf]
      %v516 = vld [vmem:[%s366 + $0x58] sm:$0xf]
      %v517 = vld [vmem:[%s366 + $0x5c] sm:$0xf]
      %v518 = vld [vmem:[%s366 + $0x60] sm:$0xf]
      %v519 = vld [vmem:[%s366 + $0x64] sm:$0xf]
      %v520 = vld [vmem:[%s366 + $0x68] sm:$0xf]
      %v521 = vld [vmem:[%s366 + $0x6c] sm:$0xf]
      %v522 = vld [vmem:[%s366 + $0x70] sm:$0xf]
      %v523 = vld [vmem:[%s366 + $0x74] sm:$0xf]
      %v524 = vld [vmem:[%s366 + $0x78] sm:$0xf]
      %v525 = vld [vmem:[%s366 + $0x7c] sm:$0xf]
      %v526 = vld [vmem:[%s366 + $0x80] sm:$0xf]
      %v527 = vld [vmem:[%s366 + $0x84] sm:$0xf]
      %v528 = vld [vmem:[%s366 + $0x88] sm:$0xf]
      %v529 = vld [vmem:[%s366 + $0x8c] sm:$0xf]
      %v530 = vld [vmem:[%s366 + $0x90] sm:$0xf]
      %v531 = vld [vmem:[%s366 + $0x94] sm:$0xf]
      %v532 = vld [vmem:[%s366 + $0x98] sm:$0xf]
      %v533 = vld [vmem:[%s366 + $0x9c] sm:$0xf]
      %v534 = vld [vmem:[%s366 + $0xa0] sm:$0xf]
      %v535 = vld [vmem:[%s366 + $0xa4] sm:$0xf]
      %v536 = vld [vmem:[%s366 + $0xa8] sm:$0xf]
      %v537 = vld [vmem:[%s366 + $0xac] sm:$0xf]
      %v538 = vld [vmem:[%s366 + $0xb0] sm:$0xf]
      %v539 = vld [vmem:[%s366 + $0xb4] sm:$0xf]
      %v540 = vld [vmem:[%s366 + $0xb8] sm:$0xf]
      %v541 = vld [vmem:[%s366 + $0xbc] sm:$0xf]
      %v542 = vld [vmem:[%s366 + $0xc0] sm:$0xf]
      %v543 = vld [vmem:[%s366 + $0xc4] sm:$0xf]
      %v544 = vld [vmem:[%s366 + $0xc8] sm:$0xf]
      %v545 = vld [vmem:[%s366 + $0xcc] sm:$0xf]
      %v546 = vld [vmem:[%s366 + $0xd0] sm:$0xf]
      %v547 = vld [vmem:[%s366 + $0xd4] sm:$0xf]
      %v580 = vunpack.c.l.b16 %v494
      %v581 = vunpack.c.l.b16 %v495
      %v582 = vunpack.c.l.b16 %v497
      %v583 = vunpack.c.l.b16 %v498
      %v584 = vunpack.c.l.b16 %v500
      %v585 = vunpack.c.l.b16 %v501
      %v586 = vunpack.c.l.b16 %v503
      %v587 = vunpack.c.l.b16 %v504
      %v588 = vunpack.c.l.b16 %v506
      %v589 = vunpack.c.l.b16 %v507
      %v590 = vunpack.c.l.b16 %v509
      %v591 = vunpack.c.l.b16 %v510
      %v592 = vunpack.c.l.b16 %v512
      %v593 = vunpack.c.l.b16 %v513
      %v594 = vunpack.c.l.b16 %v515
      %v595 = vunpack.c.l.b16 %v516
      %v596 = vunpack.c.l.b16 %v518
      %v597 = vunpack.c.l.b16 %v519
      %v598 = vunpack.c.l.b16 %v521
      %v599 = vunpack.c.l.b16 %v522
      %v600 = vunpack.c.l.b16 %v524
      %v601 = vunpack.c.l.b16 %v525
      %v602 = vunpack.c.l.b16 %v527
      %v603 = vunpack.c.l.b16 %v528
      %v604 = vunpack.c.l.b16 %v530
      %v605 = vunpack.c.l.b16 %v531
      %v606 = vunpack.c.l.b16 %v533
      %v607 = vunpack.c.l.b16 %v534
      %v608 = vunpack.c.l.b16 %v536
      %v609 = vunpack.c.l.b16 %v537
      %v610 = vunpack.c.l.b16 %v539
      %v611 = vunpack.c.l.b16 %v540
      %v612 = vpack.c.b16 %v581, %v580
      %v613 = vpack.c.b16 %v583, %v582
      %v614 = vpack.c.b16 %v585, %v584
      %v615 = vpack.c.b16 %v587, %v586
      %v616 = vpack.c.b16 %v589, %v588
      %v617 = vpack.c.b16 %v591, %v590
      %v618 = vpack.c.b16 %v593, %v592
      %v619 = vpack.c.b16 %v595, %v594
      %v620 = vpack.c.b16 %v597, %v596
      %v621 = vpack.c.b16 %v599, %v598
      %v622 = vpack.c.b16 %v601, %v600
      %v623 = vpack.c.b16 %v603, %v602
      %v624 = vpack.c.b16 %v605, %v604
      %v625 = vpack.c.b16 %v607, %v606
      %v626 = vpack.c.b16 %v609, %v608
      %v627 = vpack.c.b16 %v611, %v610
      %v660 = vunpack.c.l.b16 %v496
      %v661 = vunpack.c.l.b16 %v499
      %v662 = vunpack.c.l.b16 %v502
      %v663 = vunpack.c.l.b16 %v505
      %v664 = vunpack.c.l.b16 %v508
      %v665 = vunpack.c.l.b16 %v511
      %v666 = vunpack.c.l.b16 %v514
      %v667 = vunpack.c.l.b16 %v517
      %v668 = vunpack.c.l.b16 %v520
      %v669 = vunpack.c.l.b16 %v523
      %v670 = vunpack.c.l.b16 %v526
      %v671 = vunpack.c.l.b16 %v529
      %v672 = vunpack.c.l.b16 %v532
      %v673 = vunpack.c.l.b16 %v535
      %v674 = vunpack.c.l.b16 %v538
      %v675 = vunpack.c.l.b16 %v541
      %v676 = vpack.c.b16 %v660, %v660
      %v677 = vpack.c.b16 %v661, %v661
      %v678 = vpack.c.b16 %v662, %v662
      %v679 = vpack.c.b16 %v663, %v663
      %v680 = vpack.c.b16 %v664, %v664
      %v681 = vpack.c.b16 %v665, %v665
      %v682 = vpack.c.b16 %v666, %v666
      %v683 = vpack.c.b16 %v667, %v667
      %v684 = vpack.c.b16 %v668, %v668
      %v685 = vpack.c.b16 %v669, %v669
      %v686 = vpack.c.b16 %v670, %v670
      %v687 = vpack.c.b16 %v671, %v671
      %v688 = vpack.c.b16 %v672, %v672
      %v689 = vpack.c.b16 %v673, %v673
      %v690 = vpack.c.b16 %v674, %v674
      %v691 = vpack.c.b16 %v675, %v675
      %vm692 = vsmask.f32 7424
      %v694 = vshrl.u32 %v612, 16
      %v696 = vshll.u32 %v612, 16
      %v698 = vrot.slane %v696, 1
      %v699 = vor.u32 %v694, %v698
      %v701 = vshll.u32 %v676, 16
      %v703 = vrot.slane %v701, 1
      %v704 = vsel %vm692, %v699, %v703
      %v706 = vshrl.u32 %v613, 16
      %v708 = vshll.u32 %v613, 16
      %v710 = vrot.slane %v708, 1
      %v711 = vor.u32 %v706, %v710
      %v713 = vshll.u32 %v677, 16
      %v715 = vrot.slane %v713, 1
      %v716 = vsel %vm692, %v711, %v715
      %v718 = vshrl.u32 %v614, 16
      %v720 = vshll.u32 %v614, 16
      %v722 = vrot.slane %v720, 1
      %v723 = vor.u32 %v718, %v722
      %v725 = vshll.u32 %v678, 16
      %v727 = vrot.slane %v725, 1
      %v728 = vsel %vm692, %v723, %v727
      %v730 = vshrl.u32 %v615, 16
      %v732 = vshll.u32 %v615, 16
      %v734 = vrot.slane %v732, 1
      %v735 = vor.u32 %v730, %v734
      %v737 = vshll.u32 %v679, 16
      %v739 = vrot.slane %v737, 1
      %v740 = vsel %vm692, %v735, %v739
      %v742 = vshrl.u32 %v616, 16
      %v744 = vshll.u32 %v616, 16
      %v746 = vrot.slane %v744, 1
      %v747 = vor.u32 %v742, %v746
      %v749 = vshll.u32 %v680, 16
      %v751 = vrot.slane %v749, 1
      %v752 = vsel %vm692, %v747, %v751
      %v754 = vshrl.u32 %v617, 16
      %v756 = vshll.u32 %v617, 16
      %v758 = vrot.slane %v756, 1
      %v759 = vor.u32 %v754, %v758
      %v761 = vshll.u32 %v681, 16
      %v763 = vrot.slane %v761, 1
      %v764 = vsel %vm692, %v759, %v763
      %v766 = vshrl.u32 %v618, 16
      %v768 = vshll.u32 %v618, 16
      %v770 = vrot.slane %v768, 1
      %v771 = vor.u32 %v766, %v770
      %v773 = vshll.u32 %v682, 16
      %v775 = vrot.slane %v773, 1
      %v776 = vsel %vm692, %v771, %v775
      %v778 = vshrl.u32 %v619, 16
      %v780 = vshll.u32 %v619, 16
      %v782 = vrot.slane %v780, 1
      %v783 = vor.u32 %v778, %v782
      %v785 = vshll.u32 %v683, 16
      %v787 = vrot.slane %v785, 1
      %v788 = vsel %vm692, %v783, %v787
      %v790 = vshrl.u32 %v620, 16
      %v792 = vshll.u32 %v620, 16
      %v794 = vrot.slane %v792, 1
      %v795 = vor.u32 %v790, %v794
      %v797 = vshll.u32 %v684, 16
      %v799 = vrot.slane %v797, 1
      %v800 = vsel %vm692, %v795, %v799
      %v802 = vshrl.u32 %v621, 16
      %v804 = vshll.u32 %v621, 16
      %v806 = vrot.slane %v804, 1
      %v807 = vor.u32 %v802, %v806
      %v809 = vshll.u32 %v685, 16
      %v811 = vrot.slane %v809, 1
      %v812 = vsel %vm692, %v807, %v811
      %v814 = vshrl.u32 %v622, 16
      %v816 = vshll.u32 %v622, 16
      %v818 = vrot.slane %v816, 1
      %v819 = vor.u32 %v814, %v818
      %v821 = vshll.u32 %v686, 16
      %v823 = vrot.slane %v821, 1
      %v824 = vsel %vm692, %v819, %v823
      %v826 = vshrl.u32 %v623, 16
      %v828 = vshll.u32 %v623, 16
      %v830 = vrot.slane %v828, 1
      %v831 = vor.u32 %v826, %v830
      %v833 = vshll.u32 %v687, 16
      %v835 = vrot.slane %v833, 1
      %v836 = vsel %vm692, %v831, %v835
      %v838 = vshrl.u32 %v624, 16
      %v840 = vshll.u32 %v624, 16
      %v842 = vrot.slane %v840, 1
      %v843 = vor.u32 %v838, %v842
      %v845 = vshll.u32 %v688, 16
      %v847 = vrot.slane %v845, 1
      %v848 = vsel %vm692, %v843, %v847
      %v850 = vshrl.u32 %v625, 16
      %v852 = vshll.u32 %v625, 16
      %v854 = vrot.slane %v852, 1
      %v855 = vor.u32 %v850, %v854
      %v857 = vshll.u32 %v689, 16
      %v859 = vrot.slane %v857, 1
      %v860 = vsel %vm692, %v855, %v859
      %v862 = vshrl.u32 %v626, 16
      %v864 = vshll.u32 %v626, 16
      %v866 = vrot.slane %v864, 1
      %v867 = vor.u32 %v862, %v866
      %v869 = vshll.u32 %v690, 16
      %v871 = vrot.slane %v869, 1
      %v872 = vsel %vm692, %v867, %v871
      %v874 = vshrl.u32 %v627, 16
      %v876 = vshll.u32 %v627, 16
      %v878 = vrot.slane %v876, 1
      %v879 = vor.u32 %v874, %v878
      %v881 = vshll.u32 %v691, 16
      %v883 = vrot.slane %v881, 1
      %v884 = vsel %vm692, %v879, %v883
      %vm901 = vcmask 1046528
      %v902 = vrot.slane %v612, 1
      %v903 = vrot.slane %v676, 1
      %v904 = vsel %vm901, %v902, %v903
      %v905 = vrot.slane %v613, 1
      %v906 = vrot.slane %v677, 1
      %v907 = vsel %vm901, %v905, %v906
      %v908 = vrot.slane %v614, 1
      %v909 = vrot.slane %v678, 1
      %v910 = vsel %vm901, %v908, %v909
      %v911 = vrot.slane %v615, 1
      %v912 = vrot.slane %v679, 1
      %v913 = vsel %vm901, %v911, %v912
      %v914 = vrot.slane %v616, 1
      %v915 = vrot.slane %v680, 1
      %v916 = vsel %vm901, %v914, %v915
      %v917 = vrot.slane %v617, 1
      %v918 = vrot.slane %v681, 1
      %v919 = vsel %vm901, %v917, %v918
      %v920 = vrot.slane %v618, 1
      %v921 = vrot.slane %v682, 1
      %v922 = vsel %vm901, %v920, %v921
      %v923 = vrot.slane %v619, 1
      %v924 = vrot.slane %v683, 1
      %v925 = vsel %vm901, %v923, %v924
      %v926 = vrot.slane %v620, 1
      %v927 = vrot.slane %v684, 1
      %v928 = vsel %vm901, %v926, %v927
      %v929 = vrot.slane %v621, 1
      %v930 = vrot.slane %v685, 1
      %v931 = vsel %vm901, %v929, %v930
      %v932 = vrot.slane %v622, 1
      %v933 = vrot.slane %v686, 1
      %v934 = vsel %vm901, %v932, %v933
      %v935 = vrot.slane %v623, 1
      %v936 = vrot.slane %v687, 1
      %v937 = vsel %vm901, %v935, %v936
      %v938 = vrot.slane %v624, 1
      %v939 = vrot.slane %v688, 1
      %v940 = vsel %vm901, %v938, %v939
      %v941 = vrot.slane %v625, 1
      %v942 = vrot.slane %v689, 1
      %v943 = vsel %vm901, %v941, %v942
      %v944 = vrot.slane %v626, 1
      %v945 = vrot.slane %v690, 1
      %v946 = vsel %vm901, %v944, %v945
      %v947 = vrot.slane %v627, 1
      %v948 = vrot.slane %v691, 1
      %v949 = vsel %vm901, %v947, %v948
      %v966 = vld [vmem:[%s1] sm:$0xf]
      %v967 = vld [vmem:[%s1 + $0x4] sm:$0xf]
      %v968 = vld [vmem:[%s1 + $0x8] sm:$0xf]
      %v969 = vld [vmem:[%s1 + $0xc] sm:$0xf]
      %v970 = vld [vmem:[%s1 + $0x10] sm:$0xf]
      %v971 = vld [vmem:[%s1 + $0x14] sm:$0xf]
      %v972 = vld [vmem:[%s1 + $0x18] sm:$0xf]
      %v973 = vld [vmem:[%s1 + $0x1c] sm:$0xf]
      %v974 = vld [vmem:[%s1 + $0x20] sm:$0xf]
      %v975 = vld [vmem:[%s1 + $0x24] sm:$0xf]
      %v976 = vld [vmem:[%s1 + $0x28] sm:$0xf]
      %v977 = vld [vmem:[%s1 + $0x2c] sm:$0xf]
      %v978 = vld [vmem:[%s1 + $0x30] sm:$0xf]
      %v979 = vld [vmem:[%s1 + $0x34] sm:$0xf]
      %v980 = vld [vmem:[%s1 + $0x38] sm:$0xf]
      %v981 = vld [vmem:[%s1 + $0x3c] sm:$0xf]
      %v982 = vld [vmem:[%s1 + $0x40] sm:$0xf]
      %v983 = vld [vmem:[%s1 + $0x44] sm:$0xf]
      %v984 = vld [vmem:[%s1 + $0x48] sm:$0xf]
      %v985 = vld [vmem:[%s1 + $0x4c] sm:$0xf]
      %v986 = vld [vmem:[%s1 + $0x50] sm:$0xf]
      %v987 = vld [vmem:[%s1 + $0x54] sm:$0xf]
      %v988 = vld [vmem:[%s1 + $0x58] sm:$0xf]
      %v989 = vld [vmem:[%s1 + $0x5c] sm:$0xf]
      %v990 = vld [vmem:[%s1 + $0x60] sm:$0xf]
      %v991 = vld [vmem:[%s1 + $0x64] sm:$0xf]
      %v992 = vld [vmem:[%s1 + $0x68] sm:$0xf]
      %v993 = vld [vmem:[%s1 + $0x6c] sm:$0xf]
      %v994 = vld [vmem:[%s1 + $0x70] sm:$0xf]
      %v995 = vld [vmem:[%s1 + $0x74] sm:$0xf]
      %v996 = vld [vmem:[%s1 + $0x78] sm:$0xf]
      %v997 = vld [vmem:[%s1 + $0x7c] sm:$0xf]
      %v998 = vld [vmem:[%s1 + $0x80] sm:$0xf]
      %v999 = vld [vmem:[%s1 + $0x84] sm:$0xf]
      %v1000 = vld [vmem:[%s1 + $0x88] sm:$0xf]
      %v1001 = vld [vmem:[%s1 + $0x8c] sm:$0xf]
      %v1002 = vld [vmem:[%s1 + $0x90] sm:$0xf]
      %v1003 = vld [vmem:[%s1 + $0x94] sm:$0xf]
      %v1004 = vld [vmem:[%s1 + $0x98] sm:$0xf]
      %v1005 = vld [vmem:[%s1 + $0x9c] sm:$0xf]
      %v1006 = vld [vmem:[%s1 + $0xa0] sm:$0xf]
      %v1007 = vld [vmem:[%s1 + $0xa4] sm:$0xf]
      %v1008 = vld [vmem:[%s1 + $0xa8] sm:$0xf]
      %v1009 = vld [vmem:[%s1 + $0xac] sm:$0xf]
      %v1010 = vld [vmem:[%s1 + $0xb0] sm:$0xf]
      %v1011 = vld [vmem:[%s1 + $0xb4] sm:$0xf]
      %v1012 = vld [vmem:[%s1 + $0xb8] sm:$0xf]
      %v1013 = vld [vmem:[%s1 + $0xbc] sm:$0xf]
      %v1016 = vunpack.c.l.b16 %v542
      %v1017 = vunpack.c.l.b16 %v543
      %v1018 = vpack.c.b16 %v1017, %v1016
      %v1021 = vunpack.c.l.b16 %v544
      %v1022 = vpack.c.b16 %v1021, %v1021
      %v1024 = vshrl.u32 %v1018, 16
      %v1026 = vshll.u32 %v1018, 16
      %v1028 = vrot.slane %v1026, 1
      %v1029 = vor.u32 %v1024, %v1028
      %v1031 = vshll.u32 %v1022, 16
      %v1033 = vrot.slane %v1031, 1
      %v1034 = vsel %vm692, %v1029, %v1033
      %v1036 = vrot.slane %v1018, 1
      %v1037 = vrot.slane %v1022, 1
      %v1038 = vsel %vm901, %v1036, %v1037
      %s1040 = scalar_lea.vmem %s1, 192
      %v1041 = vld [vmem:[%s1040] sm:$0xf]
      %v1042 = vld [vmem:[%s1040 + $0x4] sm:$0xf]
      %v1043 = vld [vmem:[%s1040 + $0x8] sm:$0xf]
      %v1044 = vld [vmem:[%s1040 + $0xc] sm:$0xf]
      %v1045 = vld [vmem:[%s1040 + $0x10] sm:$0xf]
      %v1046 = vld [vmem:[%s1040 + $0x14] sm:$0xf]
      %v1047 = vld [vmem:[%s1040 + $0x18] sm:$0xf]
      %v1048 = vld [vmem:[%s1040 + $0x1c] sm:$0xf]
      %v1049 = vld [vmem:[%s1040 + $0x20] sm:$0xf]
      %v1050 = vld [vmem:[%s1040 + $0x24] sm:$0xf]
      %v1051 = vld [vmem:[%s1040 + $0x28] sm:$0xf]
      %v1052 = vld [vmem:[%s1040 + $0x2c] sm:$0xf]
      %v1053 = vld [vmem:[%s1040 + $0x30] sm:$0xf]
      %v1054 = vld [vmem:[%s1040 + $0x34] sm:$0xf]
      %v1055 = vld [vmem:[%s1040 + $0x38] sm:$0xf]
      %v1056 = vld [vmem:[%s1040 + $0x3c] sm:$0xf]
      %v1057 = vld [vmem:[%s1040 + $0x40] sm:$0xf]
      %v1058 = vld [vmem:[%s1040 + $0x44] sm:$0xf]
      %v1059 = vld [vmem:[%s1040 + $0x48] sm:$0xf]
      %v1060 = vld [vmem:[%s1040 + $0x4c] sm:$0xf]
      %v1061 = vld [vmem:[%s1040 + $0x50] sm:$0xf]
      %v1062 = vld [vmem:[%s1040 + $0x54] sm:$0xf]
      %v1063 = vld [vmem:[%s1040 + $0x58] sm:$0xf]
      %v1064 = vld [vmem:[%s1040 + $0x5c] sm:$0xf]
      %v1065 = vld [vmem:[%s1040 + $0x60] sm:$0xf]
      %v1066 = vld [vmem:[%s1040 + $0x64] sm:$0xf]
      %v1067 = vld [vmem:[%s1040 + $0x68] sm:$0xf]
      %v1068 = vld [vmem:[%s1040 + $0x6c] sm:$0xf]
      %v1069 = vld [vmem:[%s1040 + $0x70] sm:$0xf]
      %v1070 = vld [vmem:[%s1040 + $0x74] sm:$0xf]
      %v1071 = vld [vmem:[%s1040 + $0x78] sm:$0xf]
      %v1072 = vld [vmem:[%s1040 + $0x7c] sm:$0xf]
      %v1073 = vld [vmem:[%s1040 + $0x80] sm:$0xf]
      %v1074 = vld [vmem:[%s1040 + $0x84] sm:$0xf]
      %v1075 = vld [vmem:[%s1040 + $0x88] sm:$0xf]
      %v1076 = vld [vmem:[%s1040 + $0x8c] sm:$0xf]
      %v1077 = vld [vmem:[%s1040 + $0x90] sm:$0xf]
      %v1078 = vld [vmem:[%s1040 + $0x94] sm:$0xf]
      %v1079 = vld [vmem:[%s1040 + $0x98] sm:$0xf]
      %v1080 = vld [vmem:[%s1040 + $0x9c] sm:$0xf]
      %v1081 = vld [vmem:[%s1040 + $0xa0] sm:$0xf]
      %v1082 = vld [vmem:[%s1040 + $0xa4] sm:$0xf]
      %v1083 = vld [vmem:[%s1040 + $0xa8] sm:$0xf]
      %v1084 = vld [vmem:[%s1040 + $0xac] sm:$0xf]
      %v1085 = vld [vmem:[%s1040 + $0xb0] sm:$0xf]
      %v1086 = vld [vmem:[%s1040 + $0xb4] sm:$0xf]
      %v1087 = vld [vmem:[%s1040 + $0xb8] sm:$0xf]
      %v1088 = vld [vmem:[%s1040 + $0xbc] sm:$0xf]
      %v1137 = vunpack.c.l.b16 %v1041
      %v1138 = vunpack.c.l.b16 %v1042
      %v1139 = vunpack.c.l.b16 %v1043
      %v1140 = vunpack.c.l.b16 %v1044
      %v1141 = vunpack.c.l.b16 %v1045
      %v1142 = vunpack.c.l.b16 %v1046
      %v1143 = vunpack.c.l.b16 %v1047
      %v1144 = vunpack.c.l.b16 %v1048
      %v1145 = vunpack.c.l.b16 %v1049
      %v1146 = vunpack.c.l.b16 %v1050
      %v1147 = vunpack.c.l.b16 %v1051
      %v1148 = vunpack.c.l.b16 %v1052
      %v1149 = vunpack.c.l.b16 %v1053
      %v1150 = vunpack.c.l.b16 %v1054
      %v1151 = vunpack.c.l.b16 %v1055
      %v1152 = vunpack.c.l.b16 %v1056
      %v1153 = vunpack.c.l.b16 %v1057
      %v1154 = vunpack.c.l.b16 %v1058
      %v1155 = vunpack.c.l.b16 %v1059
      %v1156 = vunpack.c.l.b16 %v1060
      %v1157 = vunpack.c.l.b16 %v1061
      %v1158 = vunpack.c.l.b16 %v1062
      %v1159 = vunpack.c.l.b16 %v1063
      %v1160 = vunpack.c.l.b16 %v1064
      %v1161 = vunpack.c.l.b16 %v1065
      %v1162 = vunpack.c.l.b16 %v1066
      %v1163 = vunpack.c.l.b16 %v1067
      %v1164 = vunpack.c.l.b16 %v1068
      %v1165 = vunpack.c.l.b16 %v1069
      %v1166 = vunpack.c.l.b16 %v1070
      %v1167 = vunpack.c.l.b16 %v1071
      %v1168 = vunpack.c.l.b16 %v1072
      %v1169 = vunpack.c.l.b16 %v1073
      %v1170 = vunpack.c.l.b16 %v1074
      %v1171 = vunpack.c.l.b16 %v1075
      %v1172 = vunpack.c.l.b16 %v1076
      %v1173 = vunpack.c.l.b16 %v1077
      %v1174 = vunpack.c.l.b16 %v1078
      %v1175 = vunpack.c.l.b16 %v1079
      %v1176 = vunpack.c.l.b16 %v1080
      %v1177 = vunpack.c.l.b16 %v1081
      %v1178 = vunpack.c.l.b16 %v1082
      %v1179 = vunpack.c.l.b16 %v1083
      %v1180 = vunpack.c.l.b16 %v1084
      %v1181 = vunpack.c.l.b16 %v1085
      %v1182 = vunpack.c.l.b16 %v1086
      %v1183 = vunpack.c.l.b16 %v1087
      %v1184 = vunpack.c.l.b16 %v1088
      %v1185 = vpack.c.b16 %v1138, %v1137
      %v1186 = vpack.c.b16 %v1140, %v1139
      %v1187 = vpack.c.b16 %v1142, %v1141
      %v1188 = vpack.c.b16 %v1144, %v1143
      %v1189 = vpack.c.b16 %v1146, %v1145
      %v1190 = vpack.c.b16 %v1148, %v1147
      %v1191 = vpack.c.b16 %v1150, %v1149
      %v1192 = vpack.c.b16 %v1152, %v1151
      %v1193 = vpack.c.b16 %v1154, %v1153
      %v1194 = vpack.c.b16 %v1156, %v1155
      %v1195 = vpack.c.b16 %v1158, %v1157
      %v1196 = vpack.c.b16 %v1160, %v1159
      %v1197 = vpack.c.b16 %v1162, %v1161
      %v1198 = vpack.c.b16 %v1164, %v1163
      %v1199 = vpack.c.b16 %v1166, %v1165
      %v1200 = vpack.c.b16 %v1168, %v1167
      %v1201 = vpack.c.b16 %v1170, %v1169
      %v1202 = vpack.c.b16 %v1172, %v1171
      %v1203 = vpack.c.b16 %v1174, %v1173
      %v1204 = vpack.c.b16 %v1176, %v1175
      %v1205 = vpack.c.b16 %v1178, %v1177
      %v1206 = vpack.c.b16 %v1180, %v1179
      %v1207 = vpack.c.b16 %v1182, %v1181
      %v1208 = vpack.c.b16 %v1184, %v1183
      %1233 = vmatprep.subr.bf16.mxu0 0
      %1234 = vmatpush1.bf16.msra.mxu0 %v1185
      %1235 = vmatprep.subr.bf16.mxu0 0
      %1236 = vmatpush1.bf16.msra.mxu0 %v1186
      %1237 = vmatprep.subr.bf16.mxu0 0
      %1238 = vmatpush1.bf16.msra.mxu0 %v1187
      %1239 = vmatprep.subr.bf16.mxu0 0
      %1240 = vmatpush1.bf16.msra.mxu0 %v1188
      %1241 = vmatprep.subr.bf16.mxu0 0
      %1242 = vmatpush1.bf16.msra.mxu0 %v1189
      %1243 = vmatprep.subr.bf16.mxu0 0
      %1244 = vmatpush1.bf16.msra.mxu0 %v1190
      %1245 = vmatprep.subr.bf16.mxu0 0
      %1246 = vmatpush1.bf16.msra.mxu0 %v1191
      %1247 = vmatprep.subr.bf16.mxu0 0
      %1248 = vmatpush1.bf16.msra.mxu0 %v1192
      %1249 = vmatprep.subr.bf16.mxu0 0
      %1250 = vmatpush1.bf16.msra.mxu0 %v1193
      %1251 = vmatprep.subr.bf16.mxu0 0
      %1252 = vmatpush1.bf16.msra.mxu0 %v1194
      %1253 = vmatprep.subr.bf16.mxu0 0
      %1254 = vmatpush1.bf16.msra.mxu0 %v1195
      %1255 = vmatprep.subr.bf16.mxu0 0
      %1256 = vmatpush1.bf16.msra.mxu0 %v1196
      %1257 = vmatprep.subr.bf16.mxu0 0
      %1258 = vmatpush1.bf16.msra.mxu0 %v1197
      %1259 = vmatprep.subr.bf16.mxu0 0
      %1260 = vmatpush1.bf16.msra.mxu0 %v1198
      %1261 = vmatprep.subr.bf16.mxu0 0
      %1262 = vmatpush1.bf16.msra.mxu0 %v1199
      %1263 = vmatprep.subr.bf16.mxu0 0
      %1264 = vmatpush1.bf16.msra.mxu0 %v1200
      %1265 = vmatprep.mubr.bf16.mxu0 %v716
      %1266 = vmatmul.mubr.bf16.gmra.mrb[0].mxu0 %v613
      %v1267 = vpop.f32.mrb[0].mxu0
      %v1268 = vadd.f32 0.0, %v1267
      %v1269 = vpop.f32.mrb[0].mxu0
      %v1270 = vpop.f32.mrb[0].mxu0
      %v1271 = vadd.f32 0.0, %v1270
      %v1272 = vpop.f32.mrb[0].mxu0
      %1273 = vmatprep.mubr.bf16.mxu0 %v728
      %1274 = vmatmul.mubr.bf16.gmra.mrb[0].mxu0 %v614
      %v1275 = vpop.f32.mrb[0].mxu0
      %v1276 = vadd.f32 0.0, %v1275
      %v1277 = vpop.f32.mrb[0].mxu0
      %v1278 = vpop.f32.mrb[0].mxu0
      %v1279 = vadd.f32 0.0, %v1278
      %v1280 = vpop.f32.mrb[0].mxu0
      %1281 = vmatprep.mubr.bf16.mxu0 %v740
      %1282 = vmatmul.mubr.bf16.gmra.mrb[0].mxu0 %v615
      %v1283 = vpop.f32.mrb[0].mxu0
      %v1284 = vadd.f32 0.0, %v1283
      %v1285 = vpop.f32.mrb[0].mxu0
      %v1286 = vpop.f32.mrb[0].mxu0
      %v1287 = vadd.f32 0.0, %v1286
      %v1288 = vpop.f32.mrb[0].mxu0
      %1289 = vmatprep.mubr.bf16.mxu0 %v752
      %1290 = vmatmul.mubr.bf16.gmra.mrb[0].mxu0 %v616
      %v1291 = vpop.f32.mrb[0].mxu0
      %v1292 = vadd.f32 0.0, %v1291
      %v1293 = vpop.f32.mrb[0].mxu0
      %v1294 = vpop.f32.mrb[0].mxu0
      %v1295 = vadd.f32 0.0, %v1294
      %v1296 = vpop.f32.mrb[0].mxu0
      %1297 = vmatprep.mubr.bf16.mxu0 %v764
      %1298 = vmatmul.mubr.bf16.gmra.mrb[0].mxu0 %v617
      %v1299 = vpop.f32.mrb[0].mxu0
      %v1300 = vadd.f32 0.0, %v1299
      %v1301 = vpop.f32.mrb[0].mxu0
      %v1302 = vpop.f32.mrb[0].mxu0
      %v1303 = vadd.f32 0.0, %v1302
      %v1304 = vpop.f32.mrb[0].mxu0
      %1305 = vmatprep.mubr.bf16.mxu0 %v776
      %1306 = vmatmul.mubr.bf16.gmra.mrb[0].mxu0 %v618
      %v1307 = vpop.f32.mrb[0].mxu0
      %v1308 = vadd.f32 0.0, %v1307
      %v1309 = vpop.f32.mrb[0].mxu0
      %v1310 = vpop.f32.mrb[0].mxu0
      %v1311 = vadd.f32 0.0, %v1310
      %v1312 = vpop.f32.mrb[0].mxu0
      %1313 = vmatprep.mubr.bf16.mxu0 %v788
      %1314 = vmatmul.mubr.bf16.gmra.mrb[0].mxu0 %v619
      %v1315 = vpop.f32.mrb[0].mxu0
      %v1316 = vadd.f32 0.0, %v1315
      %v1317 = vpop.f32.mrb[0].mxu0
      %v1318 = vpop.f32.mrb[0].mxu0
      %v1319 = vadd.f32 0.0, %v1318
      %v1320 = vpop.f32.mrb[0].mxu0
      %1321 = vmatprep.mubr.bf16.mxu0 %v800
      %1322 = vmatmul.mubr.bf16.gmra.mrb[0].mxu0 %v620
      %v1323 = vpop.f32.mrb[0].mxu0
      %v1324 = vadd.f32 0.0, %v1323
      %v1325 = vpop.f32.mrb[0].mxu0
      %v1326 = vpop.f32.mrb[0].mxu0
      %v1327 = vadd.f32 0.0, %v1326
      %v1328 = vpop.f32.mrb[0].mxu0
      %1329 = vmatprep.mubr.bf16.mxu0 %v812
      %1330 = vmatmul.mubr.bf16.gmra.mrb[0].mxu0 %v621
      %v1331 = vpop.f32.mrb[0].mxu0
      %v1332 = vadd.f32 0.0, %v1331
      %v1333 = vpop.f32.mrb[0].mxu0
      %v1334 = vpop.f32.mrb[0].mxu0
      %v1335 = vadd.f32 0.0, %v1334
      %v1336 = vpop.f32.mrb[0].mxu0
      %1337 = vmatprep.mubr.bf16.mxu0 %v824
      %1338 = vmatmul.mubr.bf16.gmra.mrb[0].mxu0 %v622
      %v1339 = vpop.f32.mrb[0].mxu0
      %v1340 = vadd.f32 0.0, %v1339
      %v1341 = vpop.f32.mrb[0].mxu0
      %v1342 = vpop.f32.mrb[0].mxu0
      %v1343 = vadd.f32 0.0, %v1342
      %v1344 = vpop.f32.mrb[0].mxu0
      %1345 = vmatprep.mubr.bf16.mxu0 %v836
      %1346 = vmatmul.mubr.bf16.gmra.mrb[0].mxu0 %v623
      %v1347 = vpop.f32.mrb[0].mxu0
      %v1348 = vadd.f32 0.0, %v1347
      %v1349 = vpop.f32.mrb[0].mxu0
      %v1350 = vpop.f32.mrb[0].mxu0
      %v1351 = vadd.f32 0.0, %v1350
      %v1352 = vpop.f32.mrb[0].mxu0
      %1353 = vmatprep.mubr.bf16.mxu0 %v848
      %1354 = vmatmul.mubr.bf16.gmra.mrb[0].mxu0 %v624
      %v1355 = vpop.f32.mrb[0].mxu0
      %v1356 = vadd.f32 0.0, %v1355
      %v1357 = vpop.f32.mrb[0].mxu0
      %v1358 = vpop.f32.mrb[0].mxu0
      %v1359 = vadd.f32 0.0, %v1358
      %v1360 = vpop.f32.mrb[0].mxu0
      %1361 = vmatprep.mubr.bf16.mxu0 %v860
      %1362 = vmatmul.mubr.bf16.gmra.mrb[0].mxu0 %v625
      %v1363 = vpop.f32.mrb[0].mxu0
      %v1364 = vadd.f32 0.0, %v1363
      %v1365 = vpop.f32.mrb[0].mxu0
      %v1366 = vpop.f32.mrb[0].mxu0
      %v1367 = vadd.f32 0.0, %v1366
      %v1368 = vpop.f32.mrb[0].mxu0
      %1369 = vmatprep.mubr.bf16.mxu0 %v872
      %1370 = vmatmul.mubr.bf16.gmra.mrb[0].mxu0 %v626
      %v1371 = vpop.f32.mrb[0].mxu0
      %v1372 = vadd.f32 0.0, %v1371
      %v1373 = vpop.f32.mrb[0].mxu0
      %v1374 = vpop.f32.mrb[0].mxu0
      %v1375 = vadd.f32 0.0, %v1374
      %v1376 = vpop.f32.mrb[0].mxu0
      %1377 = vmatprep.mubr.bf16.mxu0 %v884
      %1378 = vmatmul.mubr.bf16.gmra.mrb[0].mxu0 %v627
      %v1379 = vpop.f32.mrb[0].mxu0
      %v1380 = vadd.f32 0.0, %v1379
      %v1381 = vpop.f32.mrb[0].mxu0
      %v1382 = vpop.f32.mrb[0].mxu0
      %v1383 = vadd.f32 0.0, %v1382
      %v1384 = vpop.f32.mrb[0].mxu0
      %1385 = vmatprep.mubr.bf16.mxu0 %v1034
      %1386 = vmatmul.mubr.bf16.gmra.mrb[0].mxu0 %v1018
      %v1387 = vpop.f32.mrb[0].mxu0
      %v1388 = vadd.f32 0.0, %v1387
      %v1389 = vpop.f32.mrb[0].mxu0
      %v1390 = vpop.f32.mrb[0].mxu0
      %v1391 = vadd.f32 0.0, %v1390
      %v1392 = vpop.f32.mrb[0].mxu0
      %1393 = vdwg.mxu0
      %1394 = vmatprep.subr.bf16.mxu0 0
      %1395 = vmatpush1.bf16.msra.mxu0 %v1201
      %1396 = vmatprep.subr.bf16.mxu0 0
      %1397 = vmatpush1.bf16.msra.mxu0 %v1202
      %1398 = vmatprep.subr.bf16.mxu0 0
      %1399 = vmatpush1.bf16.msra.mxu0 %v1203
      %1400 = vmatprep.subr.bf16.mxu0 0
      %1401 = vmatpush1.bf16.msra.mxu0 %v1204
      %1402 = vmatprep.subr.bf16.mxu0 0
      %1403 = vmatpush1.bf16.msra.mxu0 %v1205
      %1404 = vmatprep.subr.bf16.mxu0 0
      %1405 = vmatpush1.bf16.msra.mxu0 %v1206
      %1406 = vmatprep.subr.bf16.mxu0 0
      %1407 = vmatpush1.bf16.msra.mxu0 %v1207
      %1408 = vmatprep.subr.bf16.mxu0 0
      %1409 = vmatpush1.bf16.msra.mxu0 %v1208
      %1410 = vmatprep.subr.bf16.mxu0 0
      %1411 = vmatpush1.bf16.msra.mxu0 0
      %1412 = vmatprep.subr.bf16.mxu0 0
      %1413 = vmatpush1.bf16.msra.mxu0 0
      %1414 = vmatprep.subr.bf16.mxu0 0
      %1415 = vmatpush1.bf16.msra.mxu0 0
      %1416 = vmatprep.subr.bf16.mxu0 0
      %1417 = vmatpush1.bf16.msra.mxu0 0
      %1418 = vmatprep.subr.bf16.mxu0 0
      %1419 = vmatpush1.bf16.msra.mxu0 0
      %1420 = vmatprep.subr.bf16.mxu0 0
      %1421 = vmatpush1.bf16.msra.mxu0 0
      %1422 = vmatprep.subr.bf16.mxu0 0
      %1423 = vmatpush1.bf16.msra.mxu0 0
      %1424 = vmatprep.subr.bf16.mxu0 0
      %1425 = vmatpush1.bf16.msra.mxu0 0
      %1426 = vmatprep.mubr.bf16.mxu0 0
      %1427 = vmatmul.mubr.bf16.gmra.mrb[0].mxu0 %v907
      %v1428 = vpop.f32.mrb[0].mxu0
      %v1429 = vadd.f32 %v1268, %v1428
      %v1430 = vpop.f32.mrb[0].mxu0
      %v1431 = vpop.f32.mrb[0].mxu0
      %v1432 = vadd.f32 %v1271, %v1431
      %v1433 = vpop.f32.mrb[0].mxu0
      %1434 = vmatprep.mubr.bf16.mxu0 0
      %1435 = vmatmul.mubr.bf16.gmra.mrb[0].mxu0 %v910
      %v1436 = vpop.f32.mrb[0].mxu0
      %v1437 = vadd.f32 %v1276, %v1436
      %v1438 = vpop.f32.mrb[0].mxu0
      %v1439 = vpop.f32.mrb[0].mxu0
      %v1440 = vadd.f32 %v1279, %v1439
      %v1441 = vpop.f32.mrb[0].mxu0
      %1442 = vmatprep.mubr.bf16.mxu0 0
      %1443 = vmatmul.mubr.bf16.gmra.mrb[0].mxu0 %v913
      %v1444 = vpop.f32.mrb[0].mxu0
      %v1445 = vadd.f32 %v1284, %v1444
      %v1446 = vpop.f32.mrb[0].mxu0
      %v1447 = vpop.f32.mrb[0].mxu0
      %v1448 = vadd.f32 %v1287, %v1447
      %v1449 = vpop.f32.mrb[0].mxu0
      %1450 = vmatprep.mubr.bf16.mxu0 0
      %1451 = vmatmul.mubr.bf16.gmra.mrb[0].mxu0 %v916
      %v1452 = vpop.f32.mrb[0].mxu0
      %v1453 = vadd.f32 %v1292, %v1452
      %v1454 = vpop.f32.mrb[0].mxu0
      %v1455 = vpop.f32.mrb[0].mxu0
      %v1456 = vadd.f32 %v1295, %v1455
      %v1457 = vpop.f32.mrb[0].mxu0
      %1458 = vmatprep.mubr.bf16.mxu0 0
      %1459 = vmatmul.mubr.bf16.gmra.mrb[0].mxu0 %v919
      %v1460 = vpop.f32.mrb[0].mxu0
      %v1461 = vadd.f32 %v1300, %v1460
      %v1462 = vpop.f32.mrb[0].mxu0
      %v1463 = vpop.f32.mrb[0].mxu0
      %v1464 = vadd.f32 %v1303, %v1463
      %v1465 = vpop.f32.mrb[0].mxu0
      %1466 = vmatprep.mubr.bf16.mxu0 0
      %1467 = vmatmul.mubr.bf16.gmra.mrb[0].mxu0 %v922
      %v1468 = vpop.f32.mrb[0].mxu0
      %v1469 = vadd.f32 %v1308, %v1468
      %v1470 = vpop.f32.mrb[0].mxu0
      %v1471 = vpop.f32.mrb[0].mxu0
      %v1472 = vadd.f32 %v1311, %v1471
      %v1473 = vpop.f32.mrb[0].mxu0
      %1474 = vmatprep.mubr.bf16.mxu0 0
      %1475 = vmatmul.mubr.bf16.gmra.mrb[0].mxu0 %v925
      %v1476 = vpop.f32.mrb[0].mxu0
      %v1477 = vadd.f32 %v1316, %v1476
      %v1478 = vpop.f32.mrb[0].mxu0
      %v1479 = vpop.f32.mrb[0].mxu0
      %v1480 = vadd.f32 %v1319, %v1479
      %v1481 = vpop.f32.mrb[0].mxu0
      %1482 = vmatprep.mubr.bf16.mxu0 0
      %1483 = vmatmul.mubr.bf16.gmra.mrb[0].mxu0 %v928
      %v1484 = vpop.f32.mrb[0].mxu0
      %v1485 = vadd.f32 %v1324, %v1484
      %v1486 = vpop.f32.mrb[0].mxu0
      %v1487 = vpop.f32.mrb[0].mxu0
      %v1488 = vadd.f32 %v1327, %v1487
      %v1489 = vpop.f32.mrb[0].mxu0
      %1490 = vmatprep.mubr.bf16.mxu0 0
      %1491 = vmatmul.mubr.bf16.gmra.mrb[0].mxu0 %v931
      %v1492 = vpop.f32.mrb[0].mxu0
      %v1493 = vadd.f32 %v1332, %v1492
      %v1494 = vpop.f32.mrb[0].mxu0
      %v1495 = vpop.f32.mrb[0].mxu0
      %v1496 = vadd.f32 %v1335, %v1495
      %v1497 = vpop.f32.mrb[0].mxu0
      %1498 = vmatprep.mubr.bf16.mxu0 0
      %1499 = vmatmul.mubr.bf16.gmra.mrb[0].mxu0 %v934
      %v1500 = vpop.f32.mrb[0].mxu0
      %v1501 = vadd.f32 %v1340, %v1500
      %v1502 = vpop.f32.mrb[0].mxu0
      %v1503 = vpop.f32.mrb[0].mxu0
      %v1504 = vadd.f32 %v1343, %v1503
      %v1505 = vpop.f32.mrb[0].mxu0
      %1506 = vmatprep.mubr.bf16.mxu0 0
      %1507 = vmatmul.mubr.bf16.gmra.mrb[0].mxu0 %v937
      %v1508 = vpop.f32.mrb[0].mxu0
      %v1509 = vadd.f32 %v1348, %v1508
      %v1510 = vpop.f32.mrb[0].mxu0
      %v1511 = vpop.f32.mrb[0].mxu0
      %v1512 = vadd.f32 %v1351, %v1511
      %v1513 = vpop.f32.mrb[0].mxu0
      %1514 = vmatprep.mubr.bf16.mxu0 0
      %1515 = vmatmul.mubr.bf16.gmra.mrb[0].mxu0 %v940
      %v1516 = vpop.f32.mrb[0].mxu0
      %v1517 = vadd.f32 %v1356, %v1516
      %v1518 = vpop.f32.mrb[0].mxu0
      %v1519 = vpop.f32.mrb[0].mxu0
      %v1520 = vadd.f32 %v1359, %v1519
      %v1521 = vpop.f32.mrb[0].mxu0
      %1522 = vmatprep.mubr.bf16.mxu0 0
      %1523 = vmatmul.mubr.bf16.gmra.mrb[0].mxu0 %v943
      %v1524 = vpop.f32.mrb[0].mxu0
      %v1525 = vadd.f32 %v1364, %v1524
      %v1526 = vpop.f32.mrb[0].mxu0
      %v1527 = vpop.f32.mrb[0].mxu0
      %v1528 = vadd.f32 %v1367, %v1527
      %v1529 = vpop.f32.mrb[0].mxu0
      %1530 = vmatprep.mubr.bf16.mxu0 0
      %1531 = vmatmul.mubr.bf16.gmra.mrb[0].mxu0 %v946
      %v1532 = vpop.f32.mrb[0].mxu0
      %v1533 = vadd.f32 %v1372, %v1532
      %v1534 = vpop.f32.mrb[0].mxu0
      %v1535 = vpop.f32.mrb[0].mxu0
      %v1536 = vadd.f32 %v1375, %v1535
      %v1537 = vpop.f32.mrb[0].mxu0
      %1538 = vmatprep.mubr.bf16.mxu0 0
      %1539 = vmatmul.mubr.bf16.gmra.mrb[0].mxu0 %v949
      %v1540 = vpop.f32.mrb[0].mxu0
      %v1541 = vadd.f32 %v1380, %v1540
      %v1542 = vpop.f32.mrb[0].mxu0
      %v1543 = vpop.f32.mrb[0].mxu0
      %v1544 = vadd.f32 %v1383, %v1543
      %v1545 = vpop.f32.mrb[0].mxu0
      %1546 = vmatprep.mubr.bf16.mxu0 0
      %1547 = vmatmul.mubr.bf16.gmra.mrb[0].mxu0 %v1038
      %v1548 = vpop.f32.mrb[0].mxu0
      %v1549 = vadd.f32 %v1388, %v1548
      %v1550 = vpop.f32.mrb[0].mxu0
      %v1551 = vpop.f32.mrb[0].mxu0
      %v1552 = vadd.f32 %v1391, %v1551
      %v1553 = vpop.f32.mrb[0].mxu0
      %1554 = vdwg.mxu0
      %v1603 = vunpack.c.l.b16 %v966
      %v1604 = vunpack.c.l.b16 %v967
      %v1605 = vunpack.c.l.b16 %v968
      %v1606 = vunpack.c.l.b16 %v969
      %v1607 = vunpack.c.l.b16 %v970
      %v1608 = vunpack.c.l.b16 %v971
      %v1609 = vunpack.c.l.b16 %v972
      %v1610 = vunpack.c.l.b16 %v973
      %v1611 = vunpack.c.l.b16 %v974
      %v1612 = vunpack.c.l.b16 %v975
      %v1613 = vunpack.c.l.b16 %v976
      %v1614 = vunpack.c.l.b16 %v977
      %v1615 = vunpack.c.l.b16 %v978
      %v1616 = vunpack.c.l.b16 %v979
      %v1617 = vunpack.c.l.b16 %v980
      %v1618 = vunpack.c.l.b16 %v981
      %v1619 = vunpack.c.l.b16 %v982
      %v1620 = vunpack.c.l.b16 %v983
      %v1621 = vunpack.c.l.b16 %v984
      %v1622 = vunpack.c.l.b16 %v985
      %v1623 = vunpack.c.l.b16 %v986
      %v1624 = vunpack.c.l.b16 %v987
      %v1625 = vunpack.c.l.b16 %v988
      %v1626 = vunpack.c.l.b16 %v989
      %v1627 = vunpack.c.l.b16 %v990
      %v1628 = vunpack.c.l.b16 %v991
      %v1629 = vunpack.c.l.b16 %v992
      %v1630 = vunpack.c.l.b16 %v993
      %v1631 = vunpack.c.l.b16 %v994
      %v1632 = vunpack.c.l.b16 %v995
      %v1633 = vunpack.c.l.b16 %v996
      %v1634 = vunpack.c.l.b16 %v997
      %v1635 = vunpack.c.l.b16 %v998
      %v1636 = vunpack.c.l.b16 %v999
      %v1637 = vunpack.c.l.b16 %v1000
      %v1638 = vunpack.c.l.b16 %v1001
      %v1639 = vunpack.c.l.b16 %v1002
      %v1640 = vunpack.c.l.b16 %v1003
      %v1641 = vunpack.c.l.b16 %v1004
      %v1642 = vunpack.c.l.b16 %v1005
      %v1643 = vunpack.c.l.b16 %v1006
      %v1644 = vunpack.c.l.b16 %v1007
      %v1645 = vunpack.c.l.b16 %v1008
      %v1646 = vunpack.c.l.b16 %v1009
      %v1647 = vunpack.c.l.b16 %v1010
      %v1648 = vunpack.c.l.b16 %v1011
      %v1649 = vunpack.c.l.b16 %v1012
      %v1650 = vunpack.c.l.b16 %v1013
      %v1651 = vpack.c.b16 %v1604, %v1603
      %v1652 = vpack.c.b16 %v1606, %v1605
      %v1653 = vpack.c.b16 %v1608, %v1607
      %v1654 = vpack.c.b16 %v1610, %v1609
      %v1655 = vpack.c.b16 %v1612, %v1611
      %v1656 = vpack.c.b16 %v1614, %v1613
      %v1657 = vpack.c.b16 %v1616, %v1615
      %v1658 = vpack.c.b16 %v1618, %v1617
      %v1659 = vpack.c.b16 %v1620, %v1619
      %v1660 = vpack.c.b16 %v1622, %v1621
      %v1661 = vpack.c.b16 %v1624, %v1623
      %v1662 = vpack.c.b16 %v1626, %v1625
      %v1663 = vpack.c.b16 %v1628, %v1627
      %v1664 = vpack.c.b16 %v1630, %v1629
      %v1665 = vpack.c.b16 %v1632, %v1631
      %v1666 = vpack.c.b16 %v1634, %v1633
      %v1667 = vpack.c.b16 %v1636, %v1635
      %v1668 = vpack.c.b16 %v1638, %v1637
      %v1669 = vpack.c.b16 %v1640, %v1639
      %v1670 = vpack.c.b16 %v1642, %v1641
      %v1671 = vpack.c.b16 %v1644, %v1643
      %v1672 = vpack.c.b16 %v1646, %v1645
      %v1673 = vpack.c.b16 %v1648, %v1647
      %v1674 = vpack.c.b16 %v1650, %v1649
      %1699 = vmatprep.subr.bf16.mxu0 0
      %1700 = vmatpush1.bf16.msra.mxu0 %v1651
      %1701 = vmatprep.subr.bf16.mxu0 0
      %1702 = vmatpush1.bf16.msra.mxu0 %v1652
      %1703 = vmatprep.subr.bf16.mxu0 0
      %1704 = vmatpush1.bf16.msra.mxu0 %v1653
      %1705 = vmatprep.subr.bf16.mxu0 0
      %1706 = vmatpush1.bf16.msra.mxu0 %v1654
      %1707 = vmatprep.subr.bf16.mxu0 0
      %1708 = vmatpush1.bf16.msra.mxu0 %v1655
      %1709 = vmatprep.subr.bf16.mxu0 0
      %1710 = vmatpush1.bf16.msra.mxu0 %v1656
      %1711 = vmatprep.subr.bf16.mxu0 0
      %1712 = vmatpush1.bf16.msra.mxu0 %v1657
      %1713 = vmatprep.subr.bf16.mxu0 0
      %1714 = vmatpush1.bf16.msra.mxu0 %v1658
      %1715 = vmatprep.subr.bf16.mxu0 0
      %1716 = vmatpush1.bf16.msra.mxu0 %v1659
      %1717 = vmatprep.subr.bf16.mxu0 0
      %1718 = vmatpush1.bf16.msra.mxu0 %v1660
      %1719 = vmatprep.subr.bf16.mxu0 0
      %1720 = vmatpush1.bf16.msra.mxu0 %v1661
      %1721 = vmatprep.subr.bf16.mxu0 0
      %1722 = vmatpush1.bf16.msra.mxu0 %v1662
      %1723 = vmatprep.subr.bf16.mxu0 0
      %1724 = vmatpush1.bf16.msra.mxu0 %v1663
      %1725 = vmatprep.subr.bf16.mxu0 0
      %1726 = vmatpush1.bf16.msra.mxu0 %v1664
      %1727 = vmatprep.subr.bf16.mxu0 0
      %1728 = vmatpush1.bf16.msra.mxu0 %v1665
      %1729 = vmatprep.subr.bf16.mxu0 0
      %1730 = vmatpush1.bf16.msra.mxu0 %v1666
      %1731 = vmatprep.mubr.bf16.mxu0 %v704
      %1732 = vmatmul.mubr.bf16.gmra.mrb[0].mxu0 %v612
      %v1733 = vpop.f32.mrb[0].mxu0
      %v1734 = vadd.f32 %v1429, %v1733
      %v1735 = vpop.f32.mrb[0].mxu0
      %v1736 = vpop.f32.mrb[0].mxu0
      %v1737 = vadd.f32 %v1432, %v1736
      %v1738 = vpop.f32.mrb[0].mxu0
      %1739 = vmatprep.mubr.bf16.mxu0 %v716
      %1740 = vmatmul.mubr.bf16.gmra.mrb[0].mxu0 %v613
      %v1741 = vpop.f32.mrb[0].mxu0
      %v1742 = vadd.f32 %v1437, %v1741
      %v1743 = vpop.f32.mrb[0].mxu0
      %v1744 = vpop.f32.mrb[0].mxu0
      %v1745 = vadd.f32 %v1440, %v1744
      %v1746 = vpop.f32.mrb[0].mxu0
      %1747 = vmatprep.mubr.bf16.mxu0 %v728
      %1748 = vmatmul.mubr.bf16.gmra.mrb[0].mxu0 %v614
      %v1749 = vpop.f32.mrb[0].mxu0
      %v1750 = vadd.f32 %v1445, %v1749
      %v1751 = vpop.f32.mrb[0].mxu0
      %v1752 = vpop.f32.mrb[0].mxu0
      %v1753 = vadd.f32 %v1448, %v1752
      %v1754 = vpop.f32.mrb[0].mxu0
      %1755 = vmatprep.mubr.bf16.mxu0 %v740
      %1756 = vmatmul.mubr.bf16.gmra.mrb[0].mxu0 %v615
      %v1757 = vpop.f32.mrb[0].mxu0
      %v1758 = vadd.f32 %v1453, %v1757
      %v1759 = vpop.f32.mrb[0].mxu0
      %v1760 = vpop.f32.mrb[0].mxu0
      %v1761 = vadd.f32 %v1456, %v1760
      %v1762 = vpop.f32.mrb[0].mxu0
      %1763 = vmatprep.mubr.bf16.mxu0 %v752
      %1764 = vmatmul.mubr.bf16.gmra.mrb[0].mxu0 %v616
      %v1765 = vpop.f32.mrb[0].mxu0
      %v1766 = vadd.f32 %v1461, %v1765
      %v1767 = vpop.f32.mrb[0].mxu0
      %v1768 = vpop.f32.mrb[0].mxu0
      %v1769 = vadd.f32 %v1464, %v1768
      %v1770 = vpop.f32.mrb[0].mxu0
      %1771 = vmatprep.mubr.bf16.mxu0 %v764
      %1772 = vmatmul.mubr.bf16.gmra.mrb[0].mxu0 %v617
      %v1773 = vpop.f32.mrb[0].mxu0
      %v1774 = vadd.f32 %v1469, %v1773
      %v1775 = vpop.f32.mrb[0].mxu0
      %v1776 = vpop.f32.mrb[0].mxu0
      %v1777 = vadd.f32 %v1472, %v1776
      %v1778 = vpop.f32.mrb[0].mxu0
      %1779 = vmatprep.mubr.bf16.mxu0 %v776
      %1780 = vmatmul.mubr.bf16.gmra.mrb[0].mxu0 %v618
      %v1781 = vpop.f32.mrb[0].mxu0
      %v1782 = vadd.f32 %v1477, %v1781
      %v1783 = vpop.f32.mrb[0].mxu0
      %v1784 = vpop.f32.mrb[0].mxu0
      %v1785 = vadd.f32 %v1480, %v1784
      %v1786 = vpop.f32.mrb[0].mxu0
      %1787 = vmatprep.mubr.bf16.mxu0 %v788
      %1788 = vmatmul.mubr.bf16.gmra.mrb[0].mxu0 %v619
      %v1789 = vpop.f32.mrb[0].mxu0
      %v1790 = vadd.f32 %v1485, %v1789
      %v1791 = vpop.f32.mrb[0].mxu0
      %v1792 = vpop.f32.mrb[0].mxu0
      %v1793 = vadd.f32 %v1488, %v1792
      %v1794 = vpop.f32.mrb[0].mxu0
      %1795 = vmatprep.mubr.bf16.mxu0 %v800
      %1796 = vmatmul.mubr.bf16.gmra.mrb[0].mxu0 %v620
      %v1797 = vpop.f32.mrb[0].mxu0
      %v1798 = vadd.f32 %v1493, %v1797
      %v1799 = vpop.f32.mrb[0].mxu0
      %v1800 = vpop.f32.mrb[0].mxu0
      %v1801 = vadd.f32 %v1496, %v1800
      %v1802 = vpop.f32.mrb[0].mxu0
      %1803 = vmatprep.mubr.bf16.mxu0 %v812
      %1804 = vmatmul.mubr.bf16.gmra.mrb[0].mxu0 %v621
      %v1805 = vpop.f32.mrb[0].mxu0
      %v1806 = vadd.f32 %v1501, %v1805
      %v1807 = vpop.f32.mrb[0].mxu0
      %v1808 = vpop.f32.mrb[0].mxu0
      %v1809 = vadd.f32 %v1504, %v1808
      %v1810 = vpop.f32.mrb[0].mxu0
      %1811 = vmatprep.mubr.bf16.mxu0 %v824
      %1812 = vmatmul.mubr.bf16.gmra.mrb[0].mxu0 %v622
      %v1813 = vpop.f32.mrb[0].mxu0
      %v1814 = vadd.f32 %v1509, %v1813
      %v1815 = vpop.f32.mrb[0].mxu0
      %v1816 = vpop.f32.mrb[0].mxu0
      %v1817 = vadd.f32 %v1512, %v1816
      %v1818 = vpop.f32.mrb[0].mxu0
      %1819 = vmatprep.mubr.bf16.mxu0 %v836
      %1820 = vmatmul.mubr.bf16.gmra.mrb[0].mxu0 %v623
      %v1821 = vpop.f32.mrb[0].mxu0
      %v1822 = vadd.f32 %v1517, %v1821
      %v1823 = vpop.f32.mrb[0].mxu0
      %v1824 = vpop.f32.mrb[0].mxu0
      %v1825 = vadd.f32 %v1520, %v1824
      %v1826 = vpop.f32.mrb[0].mxu0
      %1827 = vmatprep.mubr.bf16.mxu0 %v848
      %1828 = vmatmul.mubr.bf16.gmra.mrb[0].mxu0 %v624
      %v1829 = vpop.f32.mrb[0].mxu0
      %v1830 = vadd.f32 %v1525, %v1829
      %v1831 = vpop.f32.mrb[0].mxu0
      %v1832 = vpop.f32.mrb[0].mxu0
      %v1833 = vadd.f32 %v1528, %v1832
      %v1834 = vpop.f32.mrb[0].mxu0
      %1835 = vmatprep.mubr.bf16.mxu0 %v860
      %1836 = vmatmul.mubr.bf16.gmra.mrb[0].mxu0 %v625
      %v1837 = vpop.f32.mrb[0].mxu0
      %v1838 = vadd.f32 %v1533, %v1837
      %v1839 = vpop.f32.mrb[0].mxu0
      %v1840 = vpop.f32.mrb[0].mxu0
      %v1841 = vadd.f32 %v1536, %v1840
      %v1842 = vpop.f32.mrb[0].mxu0
      %1843 = vmatprep.mubr.bf16.mxu0 %v872
      %1844 = vmatmul.mubr.bf16.gmra.mrb[0].mxu0 %v626
      %v1845 = vpop.f32.mrb[0].mxu0
      %v1846 = vadd.f32 %v1541, %v1845
      %v1847 = vpop.f32.mrb[0].mxu0
      %v1848 = vpop.f32.mrb[0].mxu0
      %v1849 = vadd.f32 %v1544, %v1848
      %v1850 = vpop.f32.mrb[0].mxu0
      %1851 = vmatprep.mubr.bf16.mxu0 %v884
      %1852 = vmatmul.mubr.bf16.gmra.mrb[0].mxu0 %v627
      %v1853 = vpop.f32.mrb[0].mxu0
      %v1854 = vadd.f32 %v1549, %v1853
      %v1855 = vpop.f32.mrb[0].mxu0
      %v1856 = vpop.f32.mrb[0].mxu0
      %v1857 = vadd.f32 %v1552, %v1856
      %v1858 = vpop.f32.mrb[0].mxu0
      %1859 = vdwg.mxu0
      %1860 = vmatprep.subr.bf16.mxu0 0
      %1861 = vmatpush1.bf16.msra.mxu0 %v1667
      %1862 = vmatprep.subr.bf16.mxu0 0
      %1863 = vmatpush1.bf16.msra.mxu0 %v1668
      %1864 = vmatprep.subr.bf16.mxu0 0
      %1865 = vmatpush1.bf16.msra.mxu0 %v1669
      %1866 = vmatprep.subr.bf16.mxu0 0
      %1867 = vmatpush1.bf16.msra.mxu0 %v1670
      %1868 = vmatprep.subr.bf16.mxu0 0
      %1869 = vmatpush1.bf16.msra.mxu0 %v1671
      %1870 = vmatprep.subr.bf16.mxu0 0
      %1871 = vmatpush1.bf16.msra.mxu0 %v1672
      %1872 = vmatprep.subr.bf16.mxu0 0
      %1873 = vmatpush1.bf16.msra.mxu0 %v1673
      %1874 = vmatprep.subr.bf16.mxu0 0
      %1875 = vmatpush1.bf16.msra.mxu0 %v1674
      %1876 = vmatprep.subr.bf16.mxu0 0
      %1877 = vmatpush1.bf16.msra.mxu0 0
      %1878 = vmatprep.subr.bf16.mxu0 0
      %1879 = vmatpush1.bf16.msra.mxu0 0
      %1880 = vmatprep.subr.bf16.mxu0 0
      %1881 = vmatpush1.bf16.msra.mxu0 0
      %1882 = vmatprep.subr.bf16.mxu0 0
      %1883 = vmatpush1.bf16.msra.mxu0 0
      %1884 = vmatprep.subr.bf16.mxu0 0
      %1885 = vmatpush1.bf16.msra.mxu0 0
      %1886 = vmatprep.subr.bf16.mxu0 0
      %1887 = vmatpush1.bf16.msra.mxu0 0
      %1888 = vmatprep.subr.bf16.mxu0 0
      %1889 = vmatpush1.bf16.msra.mxu0 0
      %1890 = vmatprep.subr.bf16.mxu0 0
      %1891 = vmatpush1.bf16.msra.mxu0 0
      %1892 = vmatprep.mubr.bf16.mxu0 0
      %1893 = vmatmul.mubr.bf16.gmra.mrb[0].mxu0 %v904
      %v1894 = vpop.f32.mrb[0].mxu0
      %v1895 = vadd.f32 %v1734, %v1894
      %v1896 = vpop.f32.mrb[0].mxu0
      %v1897 = vpop.f32.mrb[0].mxu0
      %v1898 = vadd.f32 %v1737, %v1897
      %v1899 = vpop.f32.mrb[0].mxu0
      %1900 = vmatprep.mubr.bf16.mxu0 0
      %1901 = vmatmul.mubr.bf16.gmra.mrb[0].mxu0 %v907
      %v1902 = vpop.f32.mrb[0].mxu0
      %v1903 = vadd.f32 %v1742, %v1902
      %v1904 = vpop.f32.mrb[0].mxu0
      %v1905 = vpop.f32.mrb[0].mxu0
      %v1906 = vadd.f32 %v1745, %v1905
      %v1907 = vpop.f32.mrb[0].mxu0
      %1908 = vmatprep.mubr.bf16.mxu0 0
      %1909 = vmatmul.mubr.bf16.gmra.mrb[0].mxu0 %v910
      %v1910 = vpop.f32.mrb[0].mxu0
      %v1911 = vadd.f32 %v1750, %v1910
      %v1912 = vpop.f32.mrb[0].mxu0
      %v1913 = vpop.f32.mrb[0].mxu0
      %v1914 = vadd.f32 %v1753, %v1913
      %v1915 = vpop.f32.mrb[0].mxu0
      %1916 = vmatprep.mubr.bf16.mxu0 0
      %1917 = vmatmul.mubr.bf16.gmra.mrb[0].mxu0 %v913
      %v1918 = vpop.f32.mrb[0].mxu0
      %v1919 = vadd.f32 %v1758, %v1918
      %v1920 = vpop.f32.mrb[0].mxu0
      %v1921 = vpop.f32.mrb[0].mxu0
      %v1922 = vadd.f32 %v1761, %v1921
      %v1923 = vpop.f32.mrb[0].mxu0
      %1924 = vmatprep.mubr.bf16.mxu0 0
      %1925 = vmatmul.mubr.bf16.gmra.mrb[0].mxu0 %v916
      %v1926 = vpop.f32.mrb[0].mxu0
      %v1927 = vadd.f32 %v1766, %v1926
      %v1928 = vpop.f32.mrb[0].mxu0
      %v1929 = vpop.f32.mrb[0].mxu0
      %v1930 = vadd.f32 %v1769, %v1929
      %v1931 = vpop.f32.mrb[0].mxu0
      %1932 = vmatprep.mubr.bf16.mxu0 0
      %1933 = vmatmul.mubr.bf16.gmra.mrb[0].mxu0 %v919
      %v1934 = vpop.f32.mrb[0].mxu0
      %v1935 = vadd.f32 %v1774, %v1934
      %v1936 = vpop.f32.mrb[0].mxu0
      %v1937 = vpop.f32.mrb[0].mxu0
      %v1938 = vadd.f32 %v1777, %v1937
      %v1939 = vpop.f32.mrb[0].mxu0
      %1940 = vmatprep.mubr.bf16.mxu0 0
      %1941 = vmatmul.mubr.bf16.gmra.mrb[0].mxu0 %v922
      %v1942 = vpop.f32.mrb[0].mxu0
      %v1943 = vadd.f32 %v1782, %v1942
      %v1944 = vpop.f32.mrb[0].mxu0
      %v1945 = vpop.f32.mrb[0].mxu0
      %v1946 = vadd.f32 %v1785, %v1945
      %v1947 = vpop.f32.mrb[0].mxu0
      %1948 = vmatprep.mubr.bf16.mxu0 0
      %1949 = vmatmul.mubr.bf16.gmra.mrb[0].mxu0 %v925
      %v1950 = vpop.f32.mrb[0].mxu0
      %v1951 = vadd.f32 %v1790, %v1950
      %v1952 = vpop.f32.mrb[0].mxu0
      %v1953 = vpop.f32.mrb[0].mxu0
      %v1954 = vadd.f32 %v1793, %v1953
      %v1955 = vpop.f32.mrb[0].mxu0
      %1956 = vmatprep.mubr.bf16.mxu0 0
      %1957 = vmatmul.mubr.bf16.gmra.mrb[0].mxu0 %v928
      %v1958 = vpop.f32.mrb[0].mxu0
      %v1959 = vadd.f32 %v1798, %v1958
      %v1960 = vpop.f32.mrb[0].mxu0
      %v1961 = vpop.f32.mrb[0].mxu0
      %v1962 = vadd.f32 %v1801, %v1961
      %v1963 = vpop.f32.mrb[0].mxu0
      %1964 = vmatprep.mubr.bf16.mxu0 0
      %1965 = vmatmul.mubr.bf16.gmra.mrb[0].mxu0 %v931
      %v1966 = vpop.f32.mrb[0].mxu0
      %v1967 = vadd.f32 %v1806, %v1966
      %v1968 = vpop.f32.mrb[0].mxu0
      %v1969 = vpop.f32.mrb[0].mxu0
      %v1970 = vadd.f32 %v1809, %v1969
      %v1971 = vpop.f32.mrb[0].mxu0
      %1972 = vmatprep.mubr.bf16.mxu0 0
      %1973 = vmatmul.mubr.bf16.gmra.mrb[0].mxu0 %v934
      %v1974 = vpop.f32.mrb[0].mxu0
      %v1975 = vadd.f32 %v1814, %v1974
      %v1976 = vpop.f32.mrb[0].mxu0
      %v1977 = vpop.f32.mrb[0].mxu0
      %v1978 = vadd.f32 %v1817, %v1977
      %v1979 = vpop.f32.mrb[0].mxu0
      %1980 = vmatprep.mubr.bf16.mxu0 0
      %1981 = vmatmul.mubr.bf16.gmra.mrb[0].mxu0 %v937
      %v1982 = vpop.f32.mrb[0].mxu0
      %v1983 = vadd.f32 %v1822, %v1982
      %v1984 = vpop.f32.mrb[0].mxu0
      %v1985 = vpop.f32.mrb[0].mxu0
      %v1986 = vadd.f32 %v1825, %v1985
      %v1987 = vpop.f32.mrb[0].mxu0
      %1988 = vmatprep.mubr.bf16.mxu0 0
      %1989 = vmatmul.mubr.bf16.gmra.mrb[0].mxu0 %v940
      %v1990 = vpop.f32.mrb[0].mxu0
      %v1991 = vadd.f32 %v1830, %v1990
      %v1992 = vpop.f32.mrb[0].mxu0
      %v1993 = vpop.f32.mrb[0].mxu0
      %v1994 = vadd.f32 %v1833, %v1993
      %v1995 = vpop.f32.mrb[0].mxu0
      %1996 = vmatprep.mubr.bf16.mxu0 0
      %1997 = vmatmul.mubr.bf16.gmra.mrb[0].mxu0 %v943
      %v1998 = vpop.f32.mrb[0].mxu0
      %v1999 = vadd.f32 %v1838, %v1998
      %v2000 = vpop.f32.mrb[0].mxu0
      %v2001 = vpop.f32.mrb[0].mxu0
      %v2002 = vadd.f32 %v1841, %v2001
      %v2003 = vpop.f32.mrb[0].mxu0
      %2004 = vmatprep.mubr.bf16.mxu0 0
      %2005 = vmatmul.mubr.bf16.gmra.mrb[0].mxu0 %v946
      %v2006 = vpop.f32.mrb[0].mxu0
      %v2007 = vadd.f32 %v1846, %v2006
      %v2008 = vpop.f32.mrb[0].mxu0
      %v2009 = vpop.f32.mrb[0].mxu0
      %v2010 = vadd.f32 %v1849, %v2009
      %v2011 = vpop.f32.mrb[0].mxu0
      %2012 = vmatprep.mubr.bf16.mxu0 0
      %2013 = vmatmul.mubr.bf16.gmra.mrb[0].mxu0 %v949
      %v2014 = vpop.f32.mrb[0].mxu0
      %v2015 = vadd.f32 %v1854, %v2014
      %v2016 = vpop.f32.mrb[0].mxu0
      %v2017 = vpop.f32.mrb[0].mxu0
      %v2018 = vadd.f32 %v1857, %v2017
      %v2019 = vpop.f32.mrb[0].mxu0
      %2020 = vdwg.mxu0
      %v2023 = vunpack.c.l.b16 %v545
      %v2024 = vunpack.c.l.b16 %v546
      %v2025 = vpack.c.b16 %v2024, %v2023
      %v2028 = vunpack.c.l.b16 %v547
      %v2029 = vpack.c.b16 %v2028, %v2028
      %v2031 = vshrl.u32 %v2025, 16
      %v2033 = vshll.u32 %v2025, 16
      %v2035 = vrot.slane %v2033, 1
      %v2036 = vor.u32 %v2031, %v2035
      %v2038 = vshll.u32 %v2029, 16
      %v2040 = vrot.slane %v2038, 1
      %v2041 = vsel %vm692, %v2036, %v2040
      %v2043 = vrot.slane %v2025, 1
      %v2044 = vrot.slane %v2029, 1
      %v2045 = vsel %vm901, %v2043, %v2044
      %s2047 = scalar_lea.vmem %s1, 384
      %v2048 = vld [vmem:[%s2047] sm:$0xf]
      %v2049 = vld [vmem:[%s2047 + $0x4] sm:$0xf]
      %v2050 = vld [vmem:[%s2047 + $0x8] sm:$0xf]
      %v2051 = vld [vmem:[%s2047 + $0xc] sm:$0xf]
      %v2052 = vld [vmem:[%s2047 + $0x10] sm:$0xf]
      %v2053 = vld [vmem:[%s2047 + $0x14] sm:$0xf]
      %v2054 = vld [vmem:[%s2047 + $0x18] sm:$0xf]
      %v2055 = vld [vmem:[%s2047 + $0x1c] sm:$0xf]
      %v2056 = vld [vmem:[%s2047 + $0x20] sm:$0xf]
      %v2057 = vld [vmem:[%s2047 + $0x24] sm:$0xf]
      %v2058 = vld [vmem:[%s2047 + $0x28] sm:$0xf]
      %v2059 = vld [vmem:[%s2047 + $0x2c] sm:$0xf]
      %v2060 = vld [vmem:[%s2047 + $0x30] sm:$0xf]
      %v2061 = vld [vmem:[%s2047 + $0x34] sm:$0xf]
      %v2062 = vld [vmem:[%s2047 + $0x38] sm:$0xf]
      %v2063 = vld [vmem:[%s2047 + $0x3c] sm:$0xf]
      %v2064 = vld [vmem:[%s2047 + $0x40] sm:$0xf]
      %v2065 = vld [vmem:[%s2047 + $0x44] sm:$0xf]
      %v2066 = vld [vmem:[%s2047 + $0x48] sm:$0xf]
      %v2067 = vld [vmem:[%s2047 + $0x4c] sm:$0xf]
      %v2068 = vld [vmem:[%s2047 + $0x50] sm:$0xf]
      %v2069 = vld [vmem:[%s2047 + $0x54] sm:$0xf]
      %v2070 = vld [vmem:[%s2047 + $0x58] sm:$0xf]
      %v2071 = vld [vmem:[%s2047 + $0x5c] sm:$0xf]
      %v2072 = vld [vmem:[%s2047 + $0x60] sm:$0xf]
      %v2073 = vld [vmem:[%s2047 + $0x64] sm:$0xf]
      %v2074 = vld [vmem:[%s2047 + $0x68] sm:$0xf]
      %v2075 = vld [vmem:[%s2047 + $0x6c] sm:$0xf]
      %v2076 = vld [vmem:[%s2047 + $0x70] sm:$0xf]
      %v2077 = vld [vmem:[%s2047 + $0x74] sm:$0xf]
      %v2078 = vld [vmem:[%s2047 + $0x78] sm:$0xf]
      %v2079 = vld [vmem:[%s2047 + $0x7c] sm:$0xf]
      %v2080 = vld [vmem:[%s2047 + $0x80] sm:$0xf]
      %v2081 = vld [vmem:[%s2047 + $0x84] sm:$0xf]
      %v2082 = vld [vmem:[%s2047 + $0x88] sm:$0xf]
      %v2083 = vld [vmem:[%s2047 + $0x8c] sm:$0xf]
      %v2084 = vld [vmem:[%s2047 + $0x90] sm:$0xf]
      %v2085 = vld [vmem:[%s2047 + $0x94] sm:$0xf]
      %v2086 = vld [vmem:[%s2047 + $0x98] sm:$0xf]
      %v2087 = vld [vmem:[%s2047 + $0x9c] sm:$0xf]
      %v2088 = vld [vmem:[%s2047 + $0xa0] sm:$0xf]
      %v2089 = vld [vmem:[%s2047 + $0xa4] sm:$0xf]
      %v2090 = vld [vmem:[%s2047 + $0xa8] sm:$0xf]
      %v2091 = vld [vmem:[%s2047 + $0xac] sm:$0xf]
      %v2092 = vld [vmem:[%s2047 + $0xb0] sm:$0xf]
      %v2093 = vld [vmem:[%s2047 + $0xb4] sm:$0xf]
      %v2094 = vld [vmem:[%s2047 + $0xb8] sm:$0xf]
      %v2095 = vld [vmem:[%s2047 + $0xbc] sm:$0xf]
      %v2144 = vunpack.c.l.b16 %v2048
      %v2145 = vunpack.c.l.b16 %v2049
      %v2146 = vunpack.c.l.b16 %v2050
      %v2147 = vunpack.c.l.b16 %v2051
      %v2148 = vunpack.c.l.b16 %v2052
      %v2149 = vunpack.c.l.b16 %v2053
      %v2150 = vunpack.c.l.b16 %v2054
      %v2151 = vunpack.c.l.b16 %v2055
      %v2152 = vunpack.c.l.b16 %v2056
      %v2153 = vunpack.c.l.b16 %v2057
      %v2154 = vunpack.c.l.b16 %v2058
      %v2155 = vunpack.c.l.b16 %v2059
      %v2156 = vunpack.c.l.b16 %v2060
      %v2157 = vunpack.c.l.b16 %v2061
      %v2158 = vunpack.c.l.b16 %v2062
      %v2159 = vunpack.c.l.b16 %v2063
      %v2160 = vunpack.c.l.b16 %v2064
      %v2161 = vunpack.c.l.b16 %v2065
      %v2162 = vunpack.c.l.b16 %v2066
      %v2163 = vunpack.c.l.b16 %v2067
      %v2164 = vunpack.c.l.b16 %v2068
      %v2165 = vunpack.c.l.b16 %v2069
      %v2166 = vunpack.c.l.b16 %v2070
      %v2167 = vunpack.c.l.b16 %v2071
      %v2168 = vunpack.c.l.b16 %v2072
      %v2169 = vunpack.c.l.b16 %v2073
      %v2170 = vunpack.c.l.b16 %v2074
      %v2171 = vunpack.c.l.b16 %v2075
      %v2172 = vunpack.c.l.b16 %v2076
      %v2173 = vunpack.c.l.b16 %v2077
      %v2174 = vunpack.c.l.b16 %v2078
      %v2175 = vunpack.c.l.b16 %v2079
      %v2176 = vunpack.c.l.b16 %v2080
      %v2177 = vunpack.c.l.b16 %v2081
      %v2178 = vunpack.c.l.b16 %v2082
      %v2179 = vunpack.c.l.b16 %v2083
      %v2180 = vunpack.c.l.b16 %v2084
      %v2181 = vunpack.c.l.b16 %v2085
      %v2182 = vunpack.c.l.b16 %v2086
      %v2183 = vunpack.c.l.b16 %v2087
      %v2184 = vunpack.c.l.b16 %v2088
      %v2185 = vunpack.c.l.b16 %v2089
      %v2186 = vunpack.c.l.b16 %v2090
      %v2187 = vunpack.c.l.b16 %v2091
      %v2188 = vunpack.c.l.b16 %v2092
      %v2189 = vunpack.c.l.b16 %v2093
      %v2190 = vunpack.c.l.b16 %v2094
      %v2191 = vunpack.c.l.b16 %v2095
      %v2192 = vpack.c.b16 %v2145, %v2144
      %v2193 = vpack.c.b16 %v2147, %v2146
      %v2194 = vpack.c.b16 %v2149, %v2148
      %v2195 = vpack.c.b16 %v2151, %v2150
      %v2196 = vpack.c.b16 %v2153, %v2152
      %v2197 = vpack.c.b16 %v2155, %v2154
      %v2198 = vpack.c.b16 %v2157, %v2156
      %v2199 = vpack.c.b16 %v2159, %v2158
      %v2200 = vpack.c.b16 %v2161, %v2160
      %v2201 = vpack.c.b16 %v2163, %v2162
      %v2202 = vpack.c.b16 %v2165, %v2164
      %v2203 = vpack.c.b16 %v2167, %v2166
      %v2204 = vpack.c.b16 %v2169, %v2168
      %v2205 = vpack.c.b16 %v2171, %v2170
      %v2206 = vpack.c.b16 %v2173, %v2172
      %v2207 = vpack.c.b16 %v2175, %v2174
      %v2208 = vpack.c.b16 %v2177, %v2176
      %v2209 = vpack.c.b16 %v2179, %v2178
      %v2210 = vpack.c.b16 %v2181, %v2180
      %v2211 = vpack.c.b16 %v2183, %v2182
      %v2212 = vpack.c.b16 %v2185, %v2184
      %v2213 = vpack.c.b16 %v2187, %v2186
      %v2214 = vpack.c.b16 %v2189, %v2188
      %v2215 = vpack.c.b16 %v2191, %v2190
      %2240 = vmatprep.subr.bf16.mxu0 0
      %2241 = vmatpush1.bf16.msra.mxu0 %v2192
      %2242 = vmatprep.subr.bf16.mxu0 0
      %2243 = vmatpush1.bf16.msra.mxu0 %v2193
      %2244 = vmatprep.subr.bf16.mxu0 0
      %2245 = vmatpush1.bf16.msra.mxu0 %v2194
      %2246 = vmatprep.subr.bf16.mxu0 0
      %2247 = vmatpush1.bf16.msra.mxu0 %v2195
      %2248 = vmatprep.subr.bf16.mxu0 0
      %2249 = vmatpush1.bf16.msra.mxu0 %v2196
      %2250 = vmatprep.subr.bf16.mxu0 0
      %2251 = vmatpush1.bf16.msra.mxu0 %v2197
      %2252 = vmatprep.subr.bf16.mxu0 0
      %2253 = vmatpush1.bf16.msra.mxu0 %v2198
      %2254 = vmatprep.subr.bf16.mxu0 0
      %2255 = vmatpush1.bf16.msra.mxu0 %v2199
      %2256 = vmatprep.subr.bf16.mxu0 0
      %2257 = vmatpush1.bf16.msra.mxu0 %v2200
      %2258 = vmatprep.subr.bf16.mxu0 0
      %2259 = vmatpush1.bf16.msra.mxu0 %v2201
      %2260 = vmatprep.subr.bf16.mxu0 0
      %2261 = vmatpush1.bf16.msra.mxu0 %v2202
      %2262 = vmatprep.subr.bf16.mxu0 0
      %2263 = vmatpush1.bf16.msra.mxu0 %v2203
      %2264 = vmatprep.subr.bf16.mxu0 0
      %2265 = vmatpush1.bf16.msra.mxu0 %v2204
      %2266 = vmatprep.subr.bf16.mxu0 0
      %2267 = vmatpush1.bf16.msra.mxu0 %v2205
      %2268 = vmatprep.subr.bf16.mxu0 0
      %2269 = vmatpush1.bf16.msra.mxu0 %v2206
      %2270 = vmatprep.subr.bf16.mxu0 0
      %2271 = vmatpush1.bf16.msra.mxu0 %v2207
      %2272 = vmatprep.mubr.bf16.mxu0 %v728
      %2273 = vmatmul.mubr.bf16.gmra.mrb[0].mxu0 %v614
      %v2274 = vpop.f32.mrb[0].mxu0
      %v2275 = vadd.f32 0.0, %v2274
      %v2276 = vpop.f32.mrb[0].mxu0
      %v2277 = vpop.f32.mrb[0].mxu0
      %v2278 = vadd.f32 0.0, %v2277
      %v2279 = vpop.f32.mrb[0].mxu0
      %2280 = vmatprep.mubr.bf16.mxu0 %v740
      %2281 = vmatmul.mubr.bf16.gmra.mrb[0].mxu0 %v615
      %v2282 = vpop.f32.mrb[0].mxu0
      %v2283 = vadd.f32 0.0, %v2282
      %v2284 = vpop.f32.mrb[0].mxu0
      %v2285 = vpop.f32.mrb[0].mxu0
      %v2286 = vadd.f32 0.0, %v2285
      %v2287 = vpop.f32.mrb[0].mxu0
      %2288 = vmatprep.mubr.bf16.mxu0 %v752
      %2289 = vmatmul.mubr.bf16.gmra.mrb[0].mxu0 %v616
      %v2290 = vpop.f32.mrb[0].mxu0
      %v2291 = vadd.f32 0.0, %v2290
      %v2292 = vpop.f32.mrb[0].mxu0
      %v2293 = vpop.f32.mrb[0].mxu0
      %v2294 = vadd.f32 0.0, %v2293
      %v2295 = vpop.f32.mrb[0].mxu0
      %2296 = vmatprep.mubr.bf16.mxu0 %v764
      %2297 = vmatmul.mubr.bf16.gmra.mrb[0].mxu0 %v617
      %v2298 = vpop.f32.mrb[0].mxu0
      %v2299 = vadd.f32 0.0, %v2298
      %v2300 = vpop.f32.mrb[0].mxu0
      %v2301 = vpop.f32.mrb[0].mxu0
      %v2302 = vadd.f32 0.0, %v2301
      %v2303 = vpop.f32.mrb[0].mxu0
      %2304 = vmatprep.mubr.bf16.mxu0 %v776
      %2305 = vmatmul.mubr.bf16.gmra.mrb[0].mxu0 %v618
      %v2306 = vpop.f32.mrb[0].mxu0
      %v2307 = vadd.f32 0.0, %v2306
      %v2308 = vpop.f32.mrb[0].mxu0
      %v2309 = vpop.f32.mrb[0].mxu0
      %v2310 = vadd.f32 0.0, %v2309
      %v2311 = vpop.f32.mrb[0].mxu0
      %2312 = vmatprep.mubr.bf16.mxu0 %v788
      %2313 = vmatmul.mubr.bf16.gmra.mrb[0].mxu0 %v619
      %v2314 = vpop.f32.mrb[0].mxu0
      %v2315 = vadd.f32 0.0, %v2314
      %v2316 = vpop.f32.mrb[0].mxu0
      %v2317 = vpop.f32.mrb[0].mxu0
      %v2318 = vadd.f32 0.0, %v2317
      %v2319 = vpop.f32.mrb[0].mxu0
      %2320 = vmatprep.mubr.bf16.mxu0 %v800
      %2321 = vmatmul.mubr.bf16.gmra.mrb[0].mxu0 %v620
      %v2322 = vpop.f32.mrb[0].mxu0
      %v2323 = vadd.f32 0.0, %v2322
      %v2324 = vpop.f32.mrb[0].mxu0
      %v2325 = vpop.f32.mrb[0].mxu0
      %v2326 = vadd.f32 0.0, %v2325
      %v2327 = vpop.f32.mrb[0].mxu0
      %2328 = vmatprep.mubr.bf16.mxu0 %v812
      %2329 = vmatmul.mubr.bf16.gmra.mrb[0].mxu0 %v621
      %v2330 = vpop.f32.mrb[0].mxu0
      %v2331 = vadd.f32 0.0, %v2330
      %v2332 = vpop.f32.mrb[0].mxu0
      %v2333 = vpop.f32.mrb[0].mxu0
      %v2334 = vadd.f32 0.0, %v2333
      %v2335 = vpop.f32.mrb[0].mxu0
      %2336 = vmatprep.mubr.bf16.mxu0 %v824
      %2337 = vmatmul.mubr.bf16.gmra.mrb[0].mxu0 %v622
      %v2338 = vpop.f32.mrb[0].mxu0
      %v2339 = vadd.f32 0.0, %v2338
      %v2340 = vpop.f32.mrb[0].mxu0
      %v2341 = vpop.f32.mrb[0].mxu0
      %v2342 = vadd.f32 0.0, %v2341
      %v2343 = vpop.f32.mrb[0].mxu0
      %2344 = vmatprep.mubr.bf16.mxu0 %v836
      %2345 = vmatmul.mubr.bf16.gmra.mrb[0].mxu0 %v623
      %v2346 = vpop.f32.mrb[0].mxu0
      %v2347 = vadd.f32 0.0, %v2346
      %v2348 = vpop.f32.mrb[0].mxu0
      %v2349 = vpop.f32.mrb[0].mxu0
      %v2350 = vadd.f32 0.0, %v2349
      %v2351 = vpop.f32.mrb[0].mxu0
      %2352 = vmatprep.mubr.bf16.mxu0 %v848
      %2353 = vmatmul.mubr.bf16.gmra.mrb[0].mxu0 %v624
      %v2354 = vpop.f32.mrb[0].mxu0
      %v2355 = vadd.f32 0.0, %v2354
      %v2356 = vpop.f32.mrb[0].mxu0
      %v2357 = vpop.f32.mrb[0].mxu0
      %v2358 = vadd.f32 0.0, %v2357
      %v2359 = vpop.f32.mrb[0].mxu0
      %2360 = vmatprep.mubr.bf16.mxu0 %v860
      %2361 = vmatmul.mubr.bf16.gmra.mrb[0].mxu0 %v625
      %v2362 = vpop.f32.mrb[0].mxu0
      %v2363 = vadd.f32 0.0, %v2362
      %v2364 = vpop.f32.mrb[0].mxu0
      %v2365 = vpop.f32.mrb[0].mxu0
      %v2366 = vadd.f32 0.0, %v2365
      %v2367 = vpop.f32.mrb[0].mxu0
      %2368 = vmatprep.mubr.bf16.mxu0 %v872
      %2369 = vmatmul.mubr.bf16.gmra.mrb[0].mxu0 %v626
      %v2370 = vpop.f32.mrb[0].mxu0
      %v2371 = vadd.f32 0.0, %v2370
      %v2372 = vpop.f32.mrb[0].mxu0
      %v2373 = vpop.f32.mrb[0].mxu0
      %v2374 = vadd.f32 0.0, %v2373
      %v2375 = vpop.f32.mrb[0].mxu0
      %2376 = vmatprep.mubr.bf16.mxu0 %v884
      %2377 = vmatmul.mubr.bf16.gmra.mrb[0].mxu0 %v627
      %v2378 = vpop.f32.mrb[0].mxu0
      %v2379 = vadd.f32 0.0, %v2378
      %v2380 = vpop.f32.mrb[0].mxu0
      %v2381 = vpop.f32.mrb[0].mxu0
      %v2382 = vadd.f32 0.0, %v2381
      %v2383 = vpop.f32.mrb[0].mxu0
      %2384 = vmatprep.mubr.bf16.mxu0 %v1034
      %2385 = vmatmul.mubr.bf16.gmra.mrb[0].mxu0 %v1018
      %v2386 = vpop.f32.mrb[0].mxu0
      %v2387 = vadd.f32 0.0, %v2386
      %v2388 = vpop.f32.mrb[0].mxu0
      %v2389 = vpop.f32.mrb[0].mxu0
      %v2390 = vadd.f32 0.0, %v2389
      %v2391 = vpop.f32.mrb[0].mxu0
      %2392 = vmatprep.mubr.bf16.mxu0 %v2041
      %2393 = vmatmul.mubr.bf16.gmra.mrb[0].mxu0 %v2025
      %v2394 = vpop.f32.mrb[0].mxu0
      %v2395 = vadd.f32 0.0, %v2394
      %v2396 = vpop.f32.mrb[0].mxu0
      %v2397 = vpop.f32.mrb[0].mxu0
      %v2398 = vadd.f32 0.0, %v2397
      %v2399 = vpop.f32.mrb[0].mxu0
      %2400 = vdwg.mxu0
      %2401 = vmatprep.subr.bf16.mxu0 0
      %2402 = vmatpush1.bf16.msra.mxu0 %v2208
      %2403 = vmatprep.subr.bf16.mxu0 0
      %2404 = vmatpush1.bf16.msra.mxu0 %v2209
      %2405 = vmatprep.subr.bf16.mxu0 0
      %2406 = vmatpush1.bf16.msra.mxu0 %v2210
      %2407 = vmatprep.subr.bf16.mxu0 0
      %2408 = vmatpush1.bf16.msra.mxu0 %v2211
      %2409 = vmatprep.subr.bf16.mxu0 0
      %2410 = vmatpush1.bf16.msra.mxu0 %v2212
      %2411 = vmatprep.subr.bf16.mxu0 0
      %2412 = vmatpush1.bf16.msra.mxu0 %v2213
      %2413 = vmatprep.subr.bf16.mxu0 0
      %2414 = vmatpush1.bf16.msra.mxu0 %v2214
      %2415 = vmatprep.subr.bf16.mxu0 0
      %2416 = vmatpush1.bf16.msra.mxu0 %v2215
      %2417 = vmatprep.subr.bf16.mxu0 0
      %2418 = vmatpush1.bf16.msra.mxu0 0
      %2419 = vmatprep.subr.bf16.mxu0 0
      %2420 = vmatpush1.bf16.msra.mxu0 0
      %2421 = vmatprep.subr.bf16.mxu0 0
      %2422 = vmatpush1.bf16.msra.mxu0 0
      %2423 = vmatprep.subr.bf16.mxu0 0
      %2424 = vmatpush1.bf16.msra.mxu0 0
      %2425 = vmatprep.subr.bf16.mxu0 0
      %2426 = vmatpush1.bf16.msra.mxu0 0
      %2427 = vmatprep.subr.bf16.mxu0 0
      %2428 = vmatpush1.bf16.msra.mxu0 0
      %2429 = vmatprep.subr.bf16.mxu0 0
      %2430 = vmatpush1.bf16.msra.mxu0 0
      %2431 = vmatprep.subr.bf16.mxu0 0
      %2432 = vmatpush1.bf16.msra.mxu0 0
      %2433 = vmatprep.mubr.bf16.mxu0 0
      %2434 = vmatmul.mubr.bf16.gmra.mrb[0].mxu0 %v910
      %v2435 = vpop.f32.mrb[0].mxu0
      %v2436 = vadd.f32 %v2275, %v2435
      %v2437 = vpop.f32.mrb[0].mxu0
      %v2438 = vpop.f32.mrb[0].mxu0
      %v2439 = vadd.f32 %v2278, %v2438
      %v2440 = vpop.f32.mrb[0].mxu0
      %2441 = vmatprep.mubr.bf16.mxu0 0
      %2442 = vmatmul.mubr.bf16.gmra.mrb[0].mxu0 %v913
      %v2443 = vpop.f32.mrb[0].mxu0
      %v2444 = vadd.f32 %v2283, %v2443
      %v2445 = vpop.f32.mrb[0].mxu0
      %v2446 = vpop.f32.mrb[0].mxu0
      %v2447 = vadd.f32 %v2286, %v2446
      %v2448 = vpop.f32.mrb[0].mxu0
      %2449 = vmatprep.mubr.bf16.mxu0 0
      %2450 = vmatmul.mubr.bf16.gmra.mrb[0].mxu0 %v916
      %v2451 = vpop.f32.mrb[0].mxu0
      %v2452 = vadd.f32 %v2291, %v2451
      %v2453 = vpop.f32.mrb[0].mxu0
      %v2454 = vpop.f32.mrb[0].mxu0
      %v2455 = vadd.f32 %v2294, %v2454
      %v2456 = vpop.f32.mrb[0].mxu0
      %2457 = vmatprep.mubr.bf16.mxu0 0
      %2458 = vmatmul.mubr.bf16.gmra.mrb[0].mxu0 %v919
      %v2459 = vpop.f32.mrb[0].mxu0
      %v2460 = vadd.f32 %v2299, %v2459
      %v2461 = vpop.f32.mrb[0].mxu0
      %v2462 = vpop.f32.mrb[0].mxu0
      %v2463 = vadd.f32 %v2302, %v2462
      %v2464 = vpop.f32.mrb[0].mxu0
      %2465 = vmatprep.mubr.bf16.mxu0 0
      %2466 = vmatmul.mubr.bf16.gmra.mrb[0].mxu0 %v922
      %v2467 = vpop.f32.mrb[0].mxu0
      %v2468 = vadd.f32 %v2307, %v2467
      %v2469 = vpop.f32.mrb[0].mxu0
      %v2470 = vpop.f32.mrb[0].mxu0
      %v2471 = vadd.f32 %v2310, %v2470
      %v2472 = vpop.f32.mrb[0].mxu0
      %2473 = vmatprep.mubr.bf16.mxu0 0
      %2474 = vmatmul.mubr.bf16.gmra.mrb[0].mxu0 %v925
      %v2475 = vpop.f32.mrb[0].mxu0
      %v2476 = vadd.f32 %v2315, %v2475
      %v2477 = vpop.f32.mrb[0].mxu0
      %v2478 = vpop.f32.mrb[0].mxu0
      %v2479 = vadd.f32 %v2318, %v2478
      %v2480 = vpop.f32.mrb[0].mxu0
      %2481 = vmatprep.mubr.bf16.mxu0 0
      %2482 = vmatmul.mubr.bf16.gmra.mrb[0].mxu0 %v928
      %v2483 = vpop.f32.mrb[0].mxu0
      %v2484 = vadd.f32 %v2323, %v2483
      %v2485 = vpop.f32.mrb[0].mxu0
      %v2486 = vpop.f32.mrb[0].mxu0
      %v2487 = vadd.f32 %v2326, %v2486
      %v2488 = vpop.f32.mrb[0].mxu0
      %2489 = vmatprep.mubr.bf16.mxu0 0
      %2490 = vmatmul.mubr.bf16.gmra.mrb[0].mxu0 %v931
      %v2491 = vpop.f32.mrb[0].mxu0
      %v2492 = vadd.f32 %v2331, %v2491
      %v2493 = vpop.f32.mrb[0].mxu0
      %v2494 = vpop.f32.mrb[0].mxu0
      %v2495 = vadd.f32 %v2334, %v2494
      %v2496 = vpop.f32.mrb[0].mxu0
      %2497 = vmatprep.mubr.bf16.mxu0 0
      %2498 = vmatmul.mubr.bf16.gmra.mrb[0].mxu0 %v934
      %v2499 = vpop.f32.mrb[0].mxu0
      %v2500 = vadd.f32 %v2339, %v2499
      %v2501 = vpop.f32.mrb[0].mxu0
      %v2502 = vpop.f32.mrb[0].mxu0
      %v2503 = vadd.f32 %v2342, %v2502
      %v2504 = vpop.f32.mrb[0].mxu0
      %2505 = vmatprep.mubr.bf16.mxu0 0
      %2506 = vmatmul.mubr.bf16.gmra.mrb[0].mxu0 %v937
      %v2507 = vpop.f32.mrb[0].mxu0
      %v2508 = vadd.f32 %v2347, %v2507
      %v2509 = vpop.f32.mrb[0].mxu0
      %v2510 = vpop.f32.mrb[0].mxu0
      %v2511 = vadd.f32 %v2350, %v2510
      %v2512 = vpop.f32.mrb[0].mxu0
      %2513 = vmatprep.mubr.bf16.mxu0 0
      %2514 = vmatmul.mubr.bf16.gmra.mrb[0].mxu0 %v940
      %v2515 = vpop.f32.mrb[0].mxu0
      %v2516 = vadd.f32 %v2355, %v2515
      %v2517 = vpop.f32.mrb[0].mxu0
      %v2518 = vpop.f32.mrb[0].mxu0
      %v2519 = vadd.f32 %v2358, %v2518
      %v2520 = vpop.f32.mrb[0].mxu0
      %2521 = vmatprep.mubr.bf16.mxu0 0
      %2522 = vmatmul.mubr.bf16.gmra.mrb[0].mxu0 %v943
      %v2523 = vpop.f32.mrb[0].mxu0
      %v2524 = vadd.f32 %v2363, %v2523
      %v2525 = vpop.f32.mrb[0].mxu0
      %v2526 = vpop.f32.mrb[0].mxu0
      %v2527 = vadd.f32 %v2366, %v2526
      %v2528 = vpop.f32.mrb[0].mxu0
      %2529 = vmatprep.mubr.bf16.mxu0 0
      %2530 = vmatmul.mubr.bf16.gmra.mrb[0].mxu0 %v946
      %v2531 = vpop.f32.mrb[0].mxu0
      %v2532 = vadd.f32 %v2371, %v2531
      %v2533 = vpop.f32.mrb[0].mxu0
      %v2534 = vpop.f32.mrb[0].mxu0
      %v2535 = vadd.f32 %v2374, %v2534
      %v2536 = vpop.f32.mrb[0].mxu0
      %2537 = vmatprep.mubr.bf16.mxu0 0
      %2538 = vmatmul.mubr.bf16.gmra.mrb[0].mxu0 %v949
      %v2539 = vpop.f32.mrb[0].mxu0
      %v2540 = vadd.f32 %v2379, %v2539
      %v2541 = vpop.f32.mrb[0].mxu0
      %v2542 = vpop.f32.mrb[0].mxu0
      %v2543 = vadd.f32 %v2382, %v2542
      %v2544 = vpop.f32.mrb[0].mxu0
      %2545 = vmatprep.mubr.bf16.mxu0 0
      %2546 = vmatmul.mubr.bf16.gmra.mrb[0].mxu0 %v1038
      %v2547 = vpop.f32.mrb[0].mxu0
      %v2548 = vadd.f32 %v2387, %v2547
      %v2549 = vpop.f32.mrb[0].mxu0
      %v2550 = vpop.f32.mrb[0].mxu0
      %v2551 = vadd.f32 %v2390, %v2550
      %v2552 = vpop.f32.mrb[0].mxu0
      %2553 = vmatprep.mubr.bf16.mxu0 0
      %2554 = vmatmul.mubr.bf16.gmra.mrb[0].mxu0 %v2045
      %v2555 = vpop.f32.mrb[0].mxu0
      %v2556 = vadd.f32 %v2395, %v2555
      %v2557 = vpop.f32.mrb[0].mxu0
      %v2558 = vpop.f32.mrb[0].mxu0
      %v2559 = vadd.f32 %v2398, %v2558
      %v2560 = vpop.f32.mrb[0].mxu0
      %2561 = vdwg.mxu0
      %v2562 = vadd.f32 %v1895, %v2436
      %v2563 = vadd.f32 %v1898, %v2439
      %v2564 = vadd.f32 %v1903, %v2444
      %v2565 = vadd.f32 %v1906, %v2447
      %v2566 = vadd.f32 %v1911, %v2452
      %v2567 = vadd.f32 %v1914, %v2455
      %v2568 = vadd.f32 %v1919, %v2460
      %v2569 = vadd.f32 %v1922, %v2463
      %v2570 = vadd.f32 %v1927, %v2468
      %v2571 = vadd.f32 %v1930, %v2471
      %v2572 = vadd.f32 %v1935, %v2476
      %v2573 = vadd.f32 %v1938, %v2479
      %v2574 = vadd.f32 %v1943, %v2484
      %v2575 = vadd.f32 %v1946, %v2487
      %v2576 = vadd.f32 %v1951, %v2492
      %v2577 = vadd.f32 %v1954, %v2495
      %v2578 = vadd.f32 %v1959, %v2500
      %v2579 = vadd.f32 %v1962, %v2503
      %v2580 = vadd.f32 %v1967, %v2508
      %v2581 = vadd.f32 %v1970, %v2511
      %v2582 = vadd.f32 %v1975, %v2516
      %v2583 = vadd.f32 %v1978, %v2519
      %v2584 = vadd.f32 %v1983, %v2524
      %v2585 = vadd.f32 %v1986, %v2527
      %v2586 = vadd.f32 %v1991, %v2532
      %v2587 = vadd.f32 %v1994, %v2535
      %v2588 = vadd.f32 %v1999, %v2540
      %v2589 = vadd.f32 %v2002, %v2543
      %v2590 = vadd.f32 %v2007, %v2548
      %v2591 = vadd.f32 %v2010, %v2551
      %v2592 = vadd.f32 %v2015, %v2556
      %v2593 = vadd.f32 %v2018, %v2559
      %v2594 = vadd.f32 %v2562, %v2563
      %v2595 = vadd.f32 %v2594, %v2564
      %v2596 = vadd.f32 %v2595, %v2565
      %v2597 = vadd.f32 %v2596, %v2566
      %v2598 = vadd.f32 %v2597, %v2567
      %v2599 = vadd.f32 %v2598, %v2568
      %v2600 = vadd.f32 %v2599, %v2569
      %v2601 = vadd.f32 %v2600, %v2570
      %v2602 = vadd.f32 %v2601, %v2571
      %v2603 = vadd.f32 %v2602, %v2572
      %v2604 = vadd.f32 %v2603, %v2573
      %v2605 = vadd.f32 %v2604, %v2574
      %v2606 = vadd.f32 %v2605, %v2575
      %v2607 = vadd.f32 %v2606, %v2576
      %v2608 = vadd.f32 %v2607, %v2577
      %v2609 = vadd.f32 %v2608, %v2578
      %v2610 = vadd.f32 %v2609, %v2579
      %v2611 = vadd.f32 %v2610, %v2580
      %v2612 = vadd.f32 %v2611, %v2581
      %v2613 = vadd.f32 %v2612, %v2582
      %v2614 = vadd.f32 %v2613, %v2583
      %v2615 = vadd.f32 %v2614, %v2584
      %v2616 = vadd.f32 %v2615, %v2585
      %v2617 = vadd.f32 %v2616, %v2586
      %v2618 = vadd.f32 %v2617, %v2587
      %v2619 = vadd.f32 %v2618, %v2588
      %v2620 = vadd.f32 %v2619, %v2589
      %v2621 = vadd.f32 %v2620, %v2590
      %v2622 = vadd.f32 %v2621, %v2591
      %v2623 = vadd.f32 %v2622, %v2592
      %v2624 = vadd.f32 %v2623, %v2593
      %v2625 = vrot.slane %v2624, 4
      %v2626 = vadd.f32 %v2624, %v2625
      %v2627 = vrot.slane %v2626, 2
      %v2628 = vadd.f32 %v2626, %v2627
      %v2629 = vrot.slane %v2628, 1
      %v2630 = vadd.f32 %v2628, %v2629
      %v2631 = vmul.f32 %v2562, %v2562
      %v2632 = vmul.f32 %v2563, %v2563
      %v2633 = vmul.f32 %v2564, %v2564
      %v2634 = vmul.f32 %v2565, %v2565
      %v2635 = vmul.f32 %v2566, %v2566
      %v2636 = vmul.f32 %v2567, %v2567
      %v2637 = vmul.f32 %v2568, %v2568
      %v2638 = vmul.f32 %v2569, %v2569
      %v2639 = vmul.f32 %v2570, %v2570
      %v2640 = vmul.f32 %v2571, %v2571
      %v2641 = vmul.f32 %v2572, %v2572
      %v2642 = vmul.f32 %v2573, %v2573
      %v2643 = vmul.f32 %v2574, %v2574
      %v2644 = vmul.f32 %v2575, %v2575
      %v2645 = vmul.f32 %v2576, %v2576
      %v2646 = vmul.f32 %v2577, %v2577
      %v2647 = vmul.f32 %v2578, %v2578
      %v2648 = vmul.f32 %v2579, %v2579
      %v2649 = vmul.f32 %v2580, %v2580
      %v2650 = vmul.f32 %v2581, %v2581
      %v2651 = vmul.f32 %v2582, %v2582
      %v2652 = vmul.f32 %v2583, %v2583
      %v2653 = vmul.f32 %v2584, %v2584
      %v2654 = vmul.f32 %v2585, %v2585
      %v2655 = vmul.f32 %v2586, %v2586
      %v2656 = vmul.f32 %v2587, %v2587
      %v2657 = vmul.f32 %v2588, %v2588
      %v2658 = vmul.f32 %v2589, %v2589
      %v2659 = vmul.f32 %v2590, %v2590
      %v2660 = vmul.f32 %v2591, %v2591
      %v2661 = vmul.f32 %v2592, %v2592
      %v2662 = vmul.f32 %v2593, %v2593
      %v2663 = vadd.f32 %v2631, %v2632
      %v2664 = vadd.f32 %v2663, %v2633
      %v2665 = vadd.f32 %v2664, %v2634
      %v2666 = vadd.f32 %v2665, %v2635
      %v2667 = vadd.f32 %v2666, %v2636
      %v2668 = vadd.f32 %v2667, %v2637
      %v2669 = vadd.f32 %v2668, %v2638
      %v2670 = vadd.f32 %v2669, %v2639
      %v2671 = vadd.f32 %v2670, %v2640
      %v2672 = vadd.f32 %v2671, %v2641
      %v2673 = vadd.f32 %v2672, %v2642
      %v2674 = vadd.f32 %v2673, %v2643
      %v2675 = vadd.f32 %v2674, %v2644
      %v2676 = vadd.f32 %v2675, %v2645
      %v2677 = vadd.f32 %v2676, %v2646
      %v2678 = vadd.f32 %v2677, %v2647
      %v2679 = vadd.f32 %v2678, %v2648
      %v2680 = vadd.f32 %v2679, %v2649
      %v2681 = vadd.f32 %v2680, %v2650
      %v2682 = vadd.f32 %v2681, %v2651
      %v2683 = vadd.f32 %v2682, %v2652
      %v2684 = vadd.f32 %v2683, %v2653
      %v2685 = vadd.f32 %v2684, %v2654
      %v2686 = vadd.f32 %v2685, %v2655
      %v2687 = vadd.f32 %v2686, %v2656
      %v2688 = vadd.f32 %v2687, %v2657
      %v2689 = vadd.f32 %v2688, %v2658
      %v2690 = vadd.f32 %v2689, %v2659
      %v2691 = vadd.f32 %v2690, %v2660
      %v2692 = vadd.f32 %v2691, %v2661
      %v2693 = vadd.f32 %v2692, %v2662
      %v2694 = vrot.slane %v2693, 4
      %v2695 = vadd.f32 %v2693, %v2694
      %v2696 = vrot.slane %v2695, 2
      %v2697 = vadd.f32 %v2695, %v2696
      %v2698 = vrot.slane %v2697, 1
      %v2699 = vadd.f32 %v2697, %v2698
      %vm2700 = vcmask 1040384
      %v2701 = vsel %vm2700, %v2630, %v2699
      %2702 = vst [vmem:[%s249] sm:$0x3] %v2701
      %v2703 = vld [vmem:[%s2] sm:$0x1]
      %v2705 = vlaneseq
      %v2706 = vshrl.u32 %v2705, 7
      %v2707 = vsub.s32 0, %v2706
      %v2708 = vrot.slane %v2703, %v2707
      %v2710 = vadd.f32 %v2562, %v2708
      %v2711 = vadd.f32 %v2563, %v2708
      %v2712 = vadd.f32 %v2564, %v2708
      %v2713 = vadd.f32 %v2565, %v2708
      %v2714 = vadd.f32 %v2566, %v2708
      %v2715 = vadd.f32 %v2567, %v2708
      %v2716 = vadd.f32 %v2568, %v2708
      %v2717 = vadd.f32 %v2569, %v2708
      %v2718 = vadd.f32 %v2570, %v2708
      %v2719 = vadd.f32 %v2571, %v2708
      %v2720 = vadd.f32 %v2572, %v2708
      %v2721 = vadd.f32 %v2573, %v2708
      %v2722 = vadd.f32 %v2574, %v2708
      %v2723 = vadd.f32 %v2575, %v2708
      %v2724 = vadd.f32 %v2576, %v2708
      %v2725 = vadd.f32 %v2577, %v2708
      %v2726 = vadd.f32 %v2578, %v2708
      %v2727 = vadd.f32 %v2579, %v2708
      %v2728 = vadd.f32 %v2580, %v2708
      %v2729 = vadd.f32 %v2581, %v2708
      %v2730 = vadd.f32 %v2582, %v2708
      %v2731 = vadd.f32 %v2583, %v2708
      %v2732 = vadd.f32 %v2584, %v2708
      %v2733 = vadd.f32 %v2585, %v2708
      %v2734 = vadd.f32 %v2586, %v2708
      %v2735 = vadd.f32 %v2587, %v2708
      %v2736 = vadd.f32 %v2588, %v2708
      %v2737 = vadd.f32 %v2589, %v2708
      %v2738 = vadd.f32 %v2590, %v2708
      %v2739 = vadd.f32 %v2591, %v2708
      %v2740 = vadd.f32 %v2592, %v2708
      %v2741 = vadd.f32 %v2593, %v2708
      %v2742 = vpack.c.bf16 %v2711, %v2710
      %v2743 = vpack.c.bf16 %v2713, %v2712
      %v2744 = vpack.c.bf16 %v2715, %v2714
      %v2745 = vpack.c.bf16 %v2717, %v2716
      %v2746 = vpack.c.bf16 %v2719, %v2718
      %v2747 = vpack.c.bf16 %v2721, %v2720
      %v2748 = vpack.c.bf16 %v2723, %v2722
      %v2749 = vpack.c.bf16 %v2725, %v2724
      %v2750 = vpack.c.bf16 %v2727, %v2726
      %v2751 = vpack.c.bf16 %v2729, %v2728
      %v2752 = vpack.c.bf16 %v2731, %v2730
      %v2753 = vpack.c.bf16 %v2733, %v2732
      %v2754 = vpack.c.bf16 %v2735, %v2734
      %v2755 = vpack.c.bf16 %v2737, %v2736
      %v2756 = vpack.c.bf16 %v2739, %v2738
      %v2757 = vpack.c.bf16 %v2741, %v2740
      %v2774 = vunpack.c.l.b16 %v2742
      %v2775 = vunpack.c.h.b16 %v2742
      %v2776 = vunpack.c.l.b16 %v2743
      %v2777 = vunpack.c.h.b16 %v2743
      %v2778 = vunpack.c.l.b16 %v2744
      %v2779 = vunpack.c.h.b16 %v2744
      %v2780 = vunpack.c.l.b16 %v2745
      %v2781 = vunpack.c.h.b16 %v2745
      %v2782 = vunpack.c.l.b16 %v2746
      %v2783 = vunpack.c.h.b16 %v2746
      %v2784 = vunpack.c.l.b16 %v2747
      %v2785 = vunpack.c.h.b16 %v2747
      %v2786 = vunpack.c.l.b16 %v2748
      %v2787 = vunpack.c.h.b16 %v2748
      %v2788 = vunpack.c.l.b16 %v2749
      %v2789 = vunpack.c.h.b16 %v2749
      %v2790 = vunpack.c.l.b16 %v2750
      %v2791 = vunpack.c.h.b16 %v2750
      %v2792 = vunpack.c.l.b16 %v2751
      %v2793 = vunpack.c.h.b16 %v2751
      %v2794 = vunpack.c.l.b16 %v2752
      %v2795 = vunpack.c.h.b16 %v2752
      %v2796 = vunpack.c.l.b16 %v2753
      %v2797 = vunpack.c.h.b16 %v2753
      %v2798 = vunpack.c.l.b16 %v2754
      %v2799 = vunpack.c.h.b16 %v2754
      %v2800 = vunpack.c.l.b16 %v2755
      %v2801 = vunpack.c.h.b16 %v2755
      %v2802 = vunpack.c.l.b16 %v2756
      %v2803 = vunpack.c.h.b16 %v2756
      %v2804 = vunpack.c.l.b16 %v2757
      %v2805 = vunpack.c.h.b16 %v2757
      %v2806 = vpack.c.b16 %v2774, %v2774
      %v2807 = vpack.c.b16 %v2775, %v2775
      %v2808 = vpack.c.b16 %v2776, %v2776
      %v2809 = vpack.c.b16 %v2777, %v2777
      %v2810 = vpack.c.b16 %v2778, %v2778
      %v2811 = vpack.c.b16 %v2779, %v2779
      %v2812 = vpack.c.b16 %v2780, %v2780
      %v2813 = vpack.c.b16 %v2781, %v2781
      %v2814 = vpack.c.b16 %v2782, %v2782
      %v2815 = vpack.c.b16 %v2783, %v2783
      %v2816 = vpack.c.b16 %v2784, %v2784
      %v2817 = vpack.c.b16 %v2785, %v2785
      %v2818 = vpack.c.b16 %v2786, %v2786
      %v2819 = vpack.c.b16 %v2787, %v2787
      %v2820 = vpack.c.b16 %v2788, %v2788
      %v2821 = vpack.c.b16 %v2789, %v2789
      %v2822 = vpack.c.b16 %v2790, %v2790
      %v2823 = vpack.c.b16 %v2791, %v2791
      %v2824 = vpack.c.b16 %v2792, %v2792
      %v2825 = vpack.c.b16 %v2793, %v2793
      %v2826 = vpack.c.b16 %v2794, %v2794
      %v2827 = vpack.c.b16 %v2795, %v2795
      %v2828 = vpack.c.b16 %v2796, %v2796
      %v2829 = vpack.c.b16 %v2797, %v2797
      %v2830 = vpack.c.b16 %v2798, %v2798
      %v2831 = vpack.c.b16 %v2799, %v2799
      %v2832 = vpack.c.b16 %v2800, %v2800
      %v2833 = vpack.c.b16 %v2801, %v2801
      %v2834 = vpack.c.b16 %v2802, %v2802
      %v2835 = vpack.c.b16 %v2803, %v2803
      %v2836 = vpack.c.b16 %v2804, %v2804
      %v2837 = vpack.c.b16 %v2805, %v2805
      %2870 = vst [vmem:[%s241] sm:$0xf] %v2806
      %2871 = vst [vmem:[%s241 + $0x4] sm:$0xf] %v2807
      %2872 = vst [vmem:[%s241 + $0x8] sm:$0xf] %v2808
      %2873 = vst [vmem:[%s241 + $0xc] sm:$0xf] %v2809
      %2874 = vst [vmem:[%s241 + $0x10] sm:$0xf] %v2810
      %2875 = vst [vmem:[%s241 + $0x14] sm:$0xf] %v2811
      %2876 = vst [vmem:[%s241 + $0x18] sm:$0xf] %v2812
      %2877 = vst [vmem:[%s241 + $0x1c] sm:$0xf] %v2813
      %2878 = vst [vmem:[%s241 + $0x20] sm:$0xf] %v2814
      %2879 = vst [vmem:[%s241 + $0x24] sm:$0xf] %v2815
      %2880 = vst [vmem:[%s241 + $0x28] sm:$0xf] %v2816
      %2881 = vst [vmem:[%s241 + $0x2c] sm:$0xf] %v2817
      %2882 = vst [vmem:[%s241 + $0x30] sm:$0xf] %v2818
      %2883 = vst [vmem:[%s241 + $0x34] sm:$0xf] %v2819
      %2884 = vst [vmem:[%s241 + $0x38] sm:$0xf] %v2820
      %2885 = vst [vmem:[%s241 + $0x3c] sm:$0xf] %v2821
      %2886 = vst [vmem:[%s241 + $0x40] sm:$0xf] %v2822
      %2887 = vst [vmem:[%s241 + $0x44] sm:$0xf] %v2823
      %2888 = vst [vmem:[%s241 + $0x48] sm:$0xf] %v2824
      %2889 = vst [vmem:[%s241 + $0x4c] sm:$0xf] %v2825
      %2890 = vst [vmem:[%s241 + $0x50] sm:$0xf] %v2826
      %2891 = vst [vmem:[%s241 + $0x54] sm:$0xf] %v2827
      %2892 = vst [vmem:[%s241 + $0x58] sm:$0xf] %v2828
      %2893 = vst [vmem:[%s241 + $0x5c] sm:$0xf] %v2829
      %2894 = vst [vmem:[%s241 + $0x60] sm:$0xf] %v2830
      %2895 = vst [vmem:[%s241 + $0x64] sm:$0xf] %v2831
      %2896 = vst [vmem:[%s241 + $0x68] sm:$0xf] %v2832
      %2897 = vst [vmem:[%s241 + $0x6c] sm:$0xf] %v2833
      %2898 = vst [vmem:[%s241 + $0x70] sm:$0xf] %v2834
      %2899 = vst [vmem:[%s241 + $0x74] sm:$0xf] %v2835
      %2900 = vst [vmem:[%s241 + $0x78] sm:$0xf] %v2836
      %2901 = vst [vmem:[%s241 + $0x7c] sm:$0xf] %v2837
      %s2902 = smul.u32 16, %s23
      %p2903 = scmp.lt.s32.totalorder %s22, 1
      %s2904 = scalar_select %p2903, %s22, 1
      %p2905 = scmp.lt.s32.totalorder %s2902, 15
      %s2906 = scalar_select %p2905, %s2902, 15
      %s2907 = smul.addr %s2906, 2
      %s2908 = smul.addr %s2904, 32
      %s2909 = sadd.s32 %s2907, %s2908
      %s2910 = smul.addr %s2909, 4
      %s2911 = scalar_lea.vmem %s5, %s2910
      %p2912 = scmp.lt.s32.totalorder %s22, 1
      %s2913 = scalar_select %p2912, %s22, 1
      %p2914 = scmp.lt.s32.totalorder %s23, 0
      %s2915 = scalar_select %p2914, %s23, 0
      %s2916 = sadd.s32 %s2915, %s2913
      %s2917 = smul.addr %s2916, 2
      %s2918 = scalar_lea.vmem %s6, %s2917
      // Predicated region
      $region113: #{decoder_block_2d.5} parent=35 // pred_check
        %p2919 = pneg %p134
      $region114: #{decoder_block_2d.5} parent=35 // pred_check_branch
        %2921 = sbr.rel (%p2919) target = $region116
      $region115: #{decoder_block_2d.5} parent=35 // pred_region
        %s2922 = smul.u32 16, %s23
      $region116: #{decoder_block_2d.5} parent=35 // pred_fallthru
        _
      // Predicated region
      $region117: #{decoder_block_2d.5} parent=35 // pred_check
        %p2923 = pneg %p162
      $region118: #{decoder_block_2d.5} parent=35 // pred_check_branch
        %2925 = sbr.rel (%p2923) target = $region120
      $region119: #{decoder_block_2d.5} parent=35 // pred_region
        _
      $region120: #{decoder_block_2d.5} parent=35 // pred_fallthru
        _
    $region36: #{decoder_block_2d.5} parent=5 // pred_fallthru
      _
    %p2926 = scmp.le.s32.totalorder 2, %s13
    // Predicated region
    $region121: #{decoder_block_2d.5} parent=5 // pred_check
      %p2927 = pneg %p2926
    $region122: #{decoder_block_2d.5} parent=5 // pred_check_branch
      %2929 = sbr.rel (%p2927) target = $region124
    $region123: #{decoder_block_2d.5} parent=5 // pred_region
      %s2930 = ssub.s32 %s13, 2
      // Predicated region
      $region125: #{decoder_block_2d.5} parent=123 // pred_check
        %p2931 = pneg %p140
      $region126: #{decoder_block_2d.5} parent=123 // pred_check_branch
        %2933 = sbr.rel (%p2931) target = $region128
      $region127: #{decoder_block_2d.5} parent=123 // pred_region
        %s2934 = smul.u32 16, %s25
        %p2935 = scmp.lt.s32.totalorder %s24, 1
        %s2936 = scalar_select %p2935, %s24, 1
        %p2937 = scmp.lt.s32.totalorder %s2934, 15
        %s2938 = scalar_select %p2937, %s2934, 15
        %s2939 = smul.addr %s2938, 2
        %s2940 = smul.addr %s2936, 32
        %s2941 = sadd.s32 %s2939, %s2940
        %s2942 = smul.addr %s2941, 4
        %s2943 = scalar_lea.vmem %s5, %s2942
      $region128: #{decoder_block_2d.5} parent=123 // pred_fallthru
        _
      // Predicated region
      $region129: #{decoder_block_2d.5} parent=123 // pred_check
        %p2944 = pneg %p168
      $region130: #{decoder_block_2d.5} parent=123 // pred_check_branch
        %2946 = sbr.rel (%p2944) target = $region132
      $region131: #{decoder_block_2d.5} parent=123 // pred_region
        %p2947 = scmp.lt.s32.totalorder %s24, 1
        %s2948 = scalar_select %p2947, %s24, 1
        %p2949 = scmp.lt.s32.totalorder %s25, 0
        %s2950 = scalar_select %p2949, %s25, 0
        %s2951 = sadd.s32 %s2950, %s2948
        %s2952 = smul.addr %s2951, 2
        %s2953 = scalar_lea.vmem %s6, %s2952
      $region132: #{decoder_block_2d.5} parent=123 // pred_fallthru
        _
    $region124: #{decoder_block_2d.5} parent=5 // pred_fallthru
      _
  $region6: #{decoder_block_2d.5} parent=0 // loop_footer
    %s17 = sadd.s32 1, %s13
  $region7: #{decoder_block_2d.5} parent=0 // loop_footer_branch
    %12 = sbr.rel target = $region3
  $region8: #{decoder_block_2d.5} parent=0 // loop_exit
    _
  %2954 = vsyncmov [#allocation3]
  %s2955 = vpop.sfrf %2954
  %p2956 = scmp.eq.s32.totalorder %s2955, 0
  %p2957 = pneg %p2956
  %2959 = shalt.err (%p2957)
  %s2960 = scalar_lea.sflag [#allocation3], 1
  %2961 = vsyncmov %s2960
  %s2962 = vpop.sfrf %2961
  %p2963 = scmp.eq.s32.totalorder %s2962, 0
  %p2964 = pneg %p2963
  %2966 = shalt.err (%p2964)

// kernel: decoder_block_2d.6
$region0: #{decoder_block_2d.6}
  #allocation0 [shape = 'u32[]', space=smem, size = 0x4, offset = 0x4, fixed_abs, tag = 'smem constant byte address 0x4 - core index']
  #allocation1 [shape = 'u32[144,128]{1,0:T(1,128)}', space=vmem, size = 0x12000, scoped, tag = 'internal scratch']
  #allocation2 [shape = 'bf16[2,18,24,128]{3,2,1,0:T(8,128)(2,1)}', space=vmem, size = 0x36000, scoped, tag = 'scratch operand']
  #allocation3 [shape = 's32[2]{0}', space=sflag, size = 0x8, scoped, tag = 'scratch operand']
  #allocation4 [shape = 's32[]', space=sflag, size = 0x4, offset = 0, fixed_abs, tag = 'sflag constant byte address 0x0 - dummy sync flag']
  #allocation5 [shape = 's32[]', space=sflag, size = 0x4, offset = 0, fixed_abs, tag = 'sflag constant byte address 0x0 - dummy sync flag']
  %s0 = inlined_call_operand.vmem [shape: bf16[2,18,24,128], index: 0, kind: input, shape index: {}]
  %s1 = inlined_call_operand.vmem [shape: bf16[3,384,128], index: 1, kind: input, shape index: {}]
  %s2 = inlined_call_operand.vmem [shape: f32[1,128], index: 2, kind: input, shape index: {}]
  %s3 = inlined_call_operand.vmem [shape: f32[1,128], index: 3, kind: input, shape index: {}]
  %s4 = inlined_call_operand.vmem [shape: f32[1,128], index: 4, kind: input, shape index: {}]
  %s5 = inlined_call_operand.vmem [shape: bf16[2,16,16,128], index: 5, kind: output, shape index: {0}]
  %s6 = inlined_call_operand.vmem [shape: f32[2,1,2,128], index: 6, kind: output, shape index: {1}]
  %7 = xla_tuple %s5, %s6
  %s8 = sld [smem:[#allocation0]]
  $region133: #{decoder_block_2d.6} parent=0
    _
  %s10 = ssub.s32 1, %s8
  %s11 = scalar_select 0, %s10, %s8
  loop: start=0, step=1, limit=4
  $region2: #{decoder_block_2d.6} parent=0 // loop_pre_header
    _
  $region3: #{decoder_block_2d.6} parent=0 // loop_header
    %s13 = sphi 0, %s17
    %p14 = scmp.ge.s32.totalorder %s13, 4
    %s20 = sphi 0, %s32
    %s21 = sphi 0, %s28
    %s22 = sphi 0, %s20
    %s23 = sphi 0, %s21
    %s24 = sphi 0, %s22
    %s25 = sphi 0, %s23
    %s33 = sphi 0, %s33
    %s35 = sphi 0, %s33
    %s36 = sphi 0, %s35
    %s50 = sphi 0, %s36
    %s54 = sphi 0, %s54
    %s56 = sphi 0, %s54
    %s57 = sphi 0, %s56
    %s71 = sphi 0, %s57
    %s75 = sphi 0, %s75
    %s77 = sphi 0, %s75
    %s78 = sphi 0, %s77
    %s92 = sphi 0, %s78
    %s96 = sphi 0, %s96
    %s98 = sphi 0, %s96
    %s99 = sphi 0, %s98
    %s113 = sphi 0, %s99
    %s121 = sphi 0, %s123
    %s124 = sphi 0, %s121
    %s125 = sphi 0, %s124
    %s141 = sphi 0, %s125
    %s149 = sphi 0, %s151
    %s152 = sphi 0, %s149
    %s153 = sphi 0, %s152
    %s169 = sphi 0, %s153
  $region4: #{decoder_block_2d.6} parent=0 // loop_header_branch
    %16 = sbr.rel (%p14) target = $region8
  $region5: #{decoder_block_2d.6} parent=0 // loop_body
    %s18 = ssub.s32 %s13, 1
    %s19 = ssub.s32 %s13, 2
    %s26 = sadd.s32 1, %s21
    %p27 = scmp.ge.s32.totalorder %s26, 1
    %s28 = scalar_select %p27, 0, %s26
    %s29 = sadd.s32 1, %s20
    %s30 = scalar_select %p27, %s29, %s20
    %p31 = scmp.ge.s32.totalorder %s30, 2
    %s32 = scalar_select %p31, 0, %s30
    %s34 = sadd.s32 %s33, 1
    %p37 = scmp.eq.s32.totalorder %s13, 1
    %p38 = scmp.ne.s32.totalorder %s33, %s35
    %p39 = scmp.eq.s32.totalorder %s13, 0
    %p40 = por %p38, %p39
    %p41 = scmp.ne.s32.totalorder %s33, %s35
    %p42 = scmp.eq.s32.totalorder %s18, 1
    %p43 = por %p41, %p42
    %p44 = scmp.ne.s32.totalorder %s35, %s36
    %p45 = scmp.eq.s32.totalorder %s18, 0
    %p46 = por %p44, %p45
    %p47 = scmp.ne.s32.totalorder %s35, %s36
    %p48 = scmp.eq.s32.totalorder %s19, 1
    %p49 = por %p47, %p48
    %p51 = scmp.ne.s32.totalorder %s36, %s50
    %p52 = scmp.eq.s32.totalorder %s19, 0
    %p53 = por %p51, %p52
    %s55 = sadd.s32 %s54, 1
    %p58 = scmp.eq.s32.totalorder %s13, 1
    %p59 = scmp.ne.s32.totalorder %s54, %s56
    %p60 = scmp.eq.s32.totalorder %s13, 0
    %p61 = por %p59, %p60
    %p62 = scmp.ne.s32.totalorder %s54, %s56
    %p63 = scmp.eq.s32.totalorder %s18, 1
    %p64 = por %p62, %p63
    %p65 = scmp.ne.s32.totalorder %s56, %s57
    %p66 = scmp.eq.s32.totalorder %s18, 0
    %p67 = por %p65, %p66
    %p68 = scmp.ne.s32.totalorder %s56, %s57
    %p69 = scmp.eq.s32.totalorder %s19, 1
    %p70 = por %p68, %p69
    %p72 = scmp.ne.s32.totalorder %s57, %s71
    %p73 = scmp.eq.s32.totalorder %s19, 0
    %p74 = por %p72, %p73
    %s76 = sadd.s32 %s75, 1
    %p79 = scmp.eq.s32.totalorder %s13, 1
    %p80 = scmp.ne.s32.totalorder %s75, %s77
    %p81 = scmp.eq.s32.totalorder %s13, 0
    %p82 = por %p80, %p81
    %p83 = scmp.ne.s32.totalorder %s75, %s77
    %p84 = scmp.eq.s32.totalorder %s18, 1
    %p85 = por %p83, %p84
    %p86 = scmp.ne.s32.totalorder %s77, %s78
    %p87 = scmp.eq.s32.totalorder %s18, 0
    %p88 = por %p86, %p87
    %p89 = scmp.ne.s32.totalorder %s77, %s78
    %p90 = scmp.eq.s32.totalorder %s19, 1
    %p91 = por %p89, %p90
    %p93 = scmp.ne.s32.totalorder %s78, %s92
    %p94 = scmp.eq.s32.totalorder %s19, 0
    %p95 = por %p93, %p94
    %s97 = sadd.s32 %s96, 1
    %p100 = scmp.eq.s32.totalorder %s13, 1
    %p101 = scmp.ne.s32.totalorder %s96, %s98
    %p102 = scmp.eq.s32.totalorder %s13, 0
    %p103 = por %p101, %p102
    %p104 = scmp.ne.s32.totalorder %s96, %s98
    %p105 = scmp.eq.s32.totalorder %s18, 1
    %p106 = por %p104, %p105
    %p107 = scmp.ne.s32.totalorder %s98, %s99
    %p108 = scmp.eq.s32.totalorder %s18, 0
    %p109 = por %p107, %p108
    %p110 = scmp.ne.s32.totalorder %s98, %s99
    %p111 = scmp.eq.s32.totalorder %s19, 1
    %p112 = por %p110, %p111
    %p114 = scmp.ne.s32.totalorder %s99, %s113
    %p115 = scmp.eq.s32.totalorder %s19, 0
    %p116 = por %p114, %p115
    %s117 = ssub.s32 %s20, %s32
    %s118 = ssub.s32 %s21, %s28
    %s119 = sor.u32 %s117, %s118
    %p120 = scmp.eq.s32.totalorder %s119, 0
    %s122 = sadd.s32 %s121, 1
    %s123 = scalar_select %p120, %s121, %s122
    %p126 = pneg %p120
    %p127 = scmp.eq.s32.totalorder %s13, 1
    %p128 = por %p126, %p127
    %p129 = scmp.ne.s32.totalorder %s121, %s124
    %p130 = scmp.eq.s32.totalorder %s13, 0
    %p131 = por %p129, %p130
    %p132 = scmp.ne.s32.totalorder %s121, %s124
    %p133 = scmp.eq.s32.totalorder %s18, 1
    %p134 = por %p132, %p133
    %p135 = scmp.ne.s32.totalorder %s124, %s125
    %p136 = scmp.eq.s32.totalorder %s18, 0
    %p137 = por %p135, %p136
    %p138 = scmp.ne.s32.totalorder %s124, %s125
    %p139 = scmp.eq.s32.totalorder %s19, 1
    %p140 = por %p138, %p139
    %p142 = scmp.ne.s32.totalorder %s125, %s141
    %p143 = scmp.eq.s32.totalorder %s19, 0
    %p144 = por %p142, %p143
    %s145 = ssub.s32 %s20, %s32
    %s146 = ssub.s32 %s21, %s28
    %s147 = sor.u32 %s145, %s146
    %p148 = scmp.eq.s32.totalorder %s147, 0
    %s150 = sadd.s32 %s149, 1
    %s151 = scalar_select %p148, %s149, %s150
    %p154 = pneg %p148
    %p155 = scmp.eq.s32.totalorder %s13, 1
    %p156 = por %p154, %p155
    %p157 = scmp.ne.s32.totalorder %s149, %s152
    %p158 = scmp.eq.s32.totalorder %s13, 0
    %p159 = por %p157, %p158
    %p160 = scmp.ne.s32.totalorder %s149, %s152
    %p161 = scmp.eq.s32.totalorder %s18, 1
    %p162 = por %p160, %p161
    %p163 = scmp.ne.s32.totalorder %s152, %s153
    %p164 = scmp.eq.s32.totalorder %s18, 0
    %p165 = por %p163, %p164
    %p166 = scmp.ne.s32.totalorder %s152, %s153
    %p167 = scmp.eq.s32.totalorder %s19, 1
    %p168 = por %p166, %p167
    %p170 = scmp.ne.s32.totalorder %s153, %s169
    %p171 = scmp.eq.s32.totalorder %s19, 0
    %p172 = por %p170, %p171
    %p173 = scmp.le.s32.totalorder 1, %s13
    %p174 = scmp.lt.s32.totalorder %s13, 3
    %p175 = pnand %p173, %p174
    %p176 = pneg %p175
    // Predicated region
    $region9: #{decoder_block_2d.6} parent=5 // pred_check
      _
    $region10: #{decoder_block_2d.6} parent=5 // pred_check_branch
      %178 = sbr.rel (%p175) target = $region12
    $region11: #{decoder_block_2d.6} parent=5 // pred_region
      %s179 = ssub.s32 %s13, 1
      // Predicated region
      $region13: #{decoder_block_2d.6} parent=11 // pred_check
        %p180 = pneg %p46
      $region14: #{decoder_block_2d.6} parent=11 // pred_check_branch
        %182 = sbr.rel (%p180) target = $region16
      $region15: #{decoder_block_2d.6} parent=11 // pred_region
        _
      $region16: #{decoder_block_2d.6} parent=11 // pred_fallthru
        _
      // Predicated region
      $region17: #{decoder_block_2d.6} parent=11 // pred_check
        %p183 = pneg %p67
      $region18: #{decoder_block_2d.6} parent=11 // pred_check_branch
        %185 = sbr.rel (%p183) target = $region20
      $region19: #{decoder_block_2d.6} parent=11 // pred_region
        _
      $region20: #{decoder_block_2d.6} parent=11 // pred_fallthru
        _
      // Predicated region
      $region21: #{decoder_block_2d.6} parent=11 // pred_check
        %p186 = pneg %p88
      $region22: #{decoder_block_2d.6} parent=11 // pred_check_branch
        %188 = sbr.rel (%p186) target = $region24
      $region23: #{decoder_block_2d.6} parent=11 // pred_region
        _
      $region24: #{decoder_block_2d.6} parent=11 // pred_fallthru
        _
      // Predicated region
      $region25: #{decoder_block_2d.6} parent=11 // pred_check
        %p189 = pneg %p109
      $region26: #{decoder_block_2d.6} parent=11 // pred_check_branch
        %191 = sbr.rel (%p189) target = $region28
      $region27: #{decoder_block_2d.6} parent=11 // pred_region
        _
      $region28: #{decoder_block_2d.6} parent=11 // pred_fallthru
        _
    $region12: #{decoder_block_2d.6} parent=5 // pred_fallthru
      _
    %p192 = scmp.lt.s32.totalorder %s13, 2
    // Predicated region
    $region29: #{decoder_block_2d.6} parent=5 // pred_check
      %p193 = pneg %p192
    $region30: #{decoder_block_2d.6} parent=5 // pred_check_branch
      %195 = sbr.rel (%p193) target = $region32
    $region31: #{decoder_block_2d.6} parent=5 // pred_region
      _
    $region32: #{decoder_block_2d.6} parent=5 // pred_fallthru
      _
    %p196 = scmp.le.s32.totalorder 1, %s13
    %p197 = scmp.lt.s32.totalorder %s13, 3
    %p198 = pnand %p196, %p197
    %p199 = pneg %p198
    // Predicated region
    $region33: #{decoder_block_2d.6} parent=5 // pred_check
      _
    $region34: #{decoder_block_2d.6} parent=5 // pred_check_branch
      %201 = sbr.rel (%p198) target = $region36
    $region35: #{decoder_block_2d.6} parent=5 // pred_region
      %s202 = ssub.s32 %s13, 1
      %p203 = pneg %p46
      %p204 = pneg %p43
      %p205 = pneg %p67
      %p206 = pneg %p64
      %p207 = pneg %p88
      %p208 = pneg %p85
      %p209 = pneg %p109
      %p210 = pneg %p106
      %p211 = pneg %p137
      %p212 = pneg %p134
      %s213 = smul.u32 16, %s23
      %p214 = scmp.lt.s32.totalorder %s22, 1
      %s215 = scalar_select %p214, %s22, 1
      %p216 = scmp.lt.s32.totalorder %s213, 15
      %s217 = scalar_select %p216, %s213, 15
      %s218 = smul.addr %s217, 2
      %s219 = smul.addr %s215, 32
      %s220 = sadd.s32 %s218, %s219
      %s221 = smul.addr %s220, 4
      %s222 = scalar_lea.vmem %s5, %s221
      %p223 = pneg %p165
      %p224 = pneg %p162
      %p225 = scmp.lt.s32.totalorder %s22, 1
      %s226 = scalar_select %p225, %s22, 1
      %p227 = scmp.lt.s32.totalorder %s23, 0
      %s228 = scalar_select %p227, %s23, 0
      %s229 = sadd.s32 %s228, %s226
      %s230 = smul.addr %s229, 2
      %s231 = scalar_lea.vmem %s6, %s230
      %s232 = smul.u32 16, %s23
      %p233 = scmp.lt.s32.totalorder %s22, 1
      %s234 = scalar_select %p233, %s22, 1
      %p235 = scmp.lt.s32.totalorder %s232, 15
      %s236 = scalar_select %p235, %s232, 15
      %s237 = smul.addr %s236, 2
      %s238 = smul.addr %s234, 32
      %s239 = sadd.s32 %s237, %s238
      %s240 = smul.addr %s239, 4
      %s241 = scalar_lea.vmem %s5, %s240
      %s242 = smul.u32 16, %s23
      %p243 = scmp.lt.s32.totalorder %s22, 1
      %s244 = scalar_select %p243, %s22, 1
      %p245 = scmp.lt.s32.totalorder %s23, 0
      %s246 = scalar_select %p245, %s23, 0
      %s247 = sadd.s32 %s246, %s244
      %s248 = smul.addr %s247, 2
      %s249 = scalar_lea.vmem %s6, %s248
      %p251 = scmp.eq.s32.totalorder %s23, 0
      // Predicated region
      $region37: #{decoder_block_2d.6} parent=35 // pred_check
        %p252 = pneg %p251
      $region38: #{decoder_block_2d.6} parent=35 // pred_check_branch
        %254 = sbr.rel (%p252) target = $region40
      $region39: #{decoder_block_2d.6} parent=35 // pred_region
        %s255 = smul.u32 %s22, 54
        %s256 = smul.addr %s255, 4
        %s257 = scalar_lea.vmem %s0, %s256
        %p259 = scmp.lt.u32.totalorder 216, 8
        %p260 = pneg %p259
        // Predicated region
        $region41: #{decoder_block_2d.6} parent=39 // pred_check
          _
        $region42: #{decoder_block_2d.6} parent=39 // pred_check_branch
          %262 = sbr.rel (%p259) target = $region44
        $region43: #{decoder_block_2d.6} parent=39 // pred_region
          %s277 = sand.u32 216, 7
          %p278 = scmp.eq.s32.totalorder %s277, 0
          // Predicated region
          $region56: #{decoder_block_2d.6} parent=43 // pred_check
            %p279 = pneg %p278
          $region57: #{decoder_block_2d.6} parent=43 // pred_check_branch
            %281 = sbr.rel (%p279) target = $region59
          $region58: #{decoder_block_2d.6} parent=43 // pred_region
            loop: start=0, step=1, limit=1
            $region60: #{decoder_block_2d.6} parent=58 // loop_pre_header
              _
            $region61: #{decoder_block_2d.6} parent=58 // loop_header
              %s283 = sphi 0, %s287
              %p284 = scmp.ge.s32.totalorder %s283, 1
              %s288 = sphi %s257, %s257
              %s289 = sphi [#allocation2], [#allocation2]
            $region62: #{decoder_block_2d.6} parent=58 // loop_header_branch
              %286 = sbr.rel (%p284) target = $region66
            $region63: #{decoder_block_2d.6} parent=58 // loop_body
              %v290 = vld [vmem:[%s288] sm:$0xff]
              %291 = vst [vmem:[%s289] sm:$0xff] %v290
              %v292 = vld [vmem:[%s288 + $0x8] sm:$0xff]
              %293 = vst [vmem:[%s289 + $0x8] sm:$0xff] %v292
              %v294 = vld [vmem:[%s288 + $0x10] sm:$0xff]
              %295 = vst [vmem:[%s289 + $0x10] sm:$0xff] %v294
              %v296 = vld [vmem:[%s288 + $0x18] sm:$0xff]
              %297 = vst [vmem:[%s289 + $0x18] sm:$0xff] %v296
              %v298 = vld [vmem:[%s288 + $0x20] sm:$0xff]
              %299 = vst [vmem:[%s289 + $0x20] sm:$0xff] %v298
              %v300 = vld [vmem:[%s288 + $0x28] sm:$0xff]
              %301 = vst [vmem:[%s289 + $0x28] sm:$0xff] %v300
              %v302 = vld [vmem:[%s288 + $0x30] sm:$0xff]
              %303 = vst [vmem:[%s289 + $0x30] sm:$0xff] %v302
              %v304 = vld [vmem:[%s288 + $0x38] sm:$0xff]
              %305 = vst [vmem:[%s289 + $0x38] sm:$0xff] %v304
              %v306 = vld [vmem:[%s288 + $0x40] sm:$0xff]
              %307 = vst [vmem:[%s289 + $0x40] sm:$0xff] %v306
              %v308 = vld [vmem:[%s288 + $0x48] sm:$0xff]
              %309 = vst [vmem:[%s289 + $0x48] sm:$0xff] %v308
              %v310 = vld [vmem:[%s288 + $0x50] sm:$0xff]
              %311 = vst [vmem:[%s289 + $0x50] sm:$0xff] %v310
              %v312 = vld [vmem:[%s288 + $0x58] sm:$0xff]
              %313 = vst [vmem:[%s289 + $0x58] sm:$0xff] %v312
              %v314 = vld [vmem:[%s288 + $0x60] sm:$0xff]
              %315 = vst [vmem:[%s289 + $0x60] sm:$0xff] %v314
              %v316 = vld [vmem:[%s288 + $0x68] sm:$0xff]
              %317 = vst [vmem:[%s289 + $0x68] sm:$0xff] %v316
              %v318 = vld [vmem:[%s288 + $0x70] sm:$0xff]
              %319 = vst [vmem:[%s289 + $0x70] sm:$0xff] %v318
              %v320 = vld [vmem:[%s288 + $0x78] sm:$0xff]
              %321 = vst [vmem:[%s289 + $0x78] sm:$0xff] %v320
              %v322 = vld [vmem:[%s288 + $0x80] sm:$0xff]
              %323 = vst [vmem:[%s289 + $0x80] sm:$0xff] %v322
              %v324 = vld [vmem:[%s288 + $0x88] sm:$0xff]
              %325 = vst [vmem:[%s289 + $0x88] sm:$0xff] %v324
              %v326 = vld [vmem:[%s288 + $0x90] sm:$0xff]
              %327 = vst [vmem:[%s289 + $0x90] sm:$0xff] %v326
              %v328 = vld [vmem:[%s288 + $0x98] sm:$0xff]
              %329 = vst [vmem:[%s289 + $0x98] sm:$0xff] %v328
              %v330 = vld [vmem:[%s288 + $0xa0] sm:$0xff]
              %331 = vst [vmem:[%s289 + $0xa0] sm:$0xff] %v330
              %v332 = vld [vmem:[%s288 + $0xa8] sm:$0xff]
              %333 = vst [vmem:[%s289 + $0xa8] sm:$0xff] %v332
              %v334 = vld [vmem:[%s288 + $0xb0] sm:$0xff]
              %335 = vst [vmem:[%s289 + $0xb0] sm:$0xff] %v334
              %v336 = vld [vmem:[%s288 + $0xb8] sm:$0xff]
              %337 = vst [vmem:[%s289 + $0xb8] sm:$0xff] %v336
              %v338 = vld [vmem:[%s288 + $0xc0] sm:$0xff]
              %339 = vst [vmem:[%s289 + $0xc0] sm:$0xff] %v338
              %v340 = vld [vmem:[%s288 + $0xc8] sm:$0xff]
              %341 = vst [vmem:[%s289 + $0xc8] sm:$0xff] %v340
              %v342 = vld [vmem:[%s288 + $0xd0] sm:$0xff]
              %343 = vst [vmem:[%s289 + $0xd0] sm:$0xff] %v342
            $region64: #{decoder_block_2d.6} parent=58 // loop_footer
              %s287 = sadd.s32 1, %s283
            $region65: #{decoder_block_2d.6} parent=58 // loop_footer_branch
              %282 = sbr.rel target = $region61
            $region66: #{decoder_block_2d.6} parent=58 // loop_exit
              _
          $region59: #{decoder_block_2d.6} parent=43 // pred_fallthru
            _
          %p344 = pneg %p278
          // Predicated region
          $region67: #{decoder_block_2d.6} parent=43 // pred_check
            _
          $region68: #{decoder_block_2d.6} parent=43 // pred_check_branch
            %346 = sbr.rel (%p278) target = $region70
          $region69: #{decoder_block_2d.6} parent=43 // pred_region
            %s347 = sand.u32 216, 7
          $region70: #{decoder_block_2d.6} parent=43 // pred_fallthru
            _
        $region44: #{decoder_block_2d.6} parent=39 // pred_fallthru
          _
        // Predicated region
        $region45: #{decoder_block_2d.6} parent=39 // pred_check
          %p263 = pneg %p259
        $region46: #{decoder_block_2d.6} parent=39 // pred_check_branch
          %265 = sbr.rel (%p263) target = $region48
        $region47: #{decoder_block_2d.6} parent=39 // pred_region
          %s266 = sshllo.u32 0, 216
          loop: start=0, step=1, limit=1
          $region49: #{decoder_block_2d.6} parent=47 // loop_pre_header
            _
          $region50: #{decoder_block_2d.6} parent=47 // loop_header
            %s268 = sphi 0, %s272
            %p269 = scmp.ge.s32.totalorder %s268, 1
            %s273 = sphi %s257, %s257
            %s274 = sphi [#allocation2], [#allocation2]
          $region51: #{decoder_block_2d.6} parent=47 // loop_header_branch
            %271 = sbr.rel (%p269) target = $region55
          $region52: #{decoder_block_2d.6} parent=47 // loop_body
            %v275 = vld [vmem:[%s273] sm:%s266]
            %276 = vst [vmem:[%s274] sm:%s266] %v275
          $region53: #{decoder_block_2d.6} parent=47 // loop_footer
            %s272 = sadd.s32 1, %s268
          $region54: #{decoder_block_2d.6} parent=47 // loop_footer_branch
            %267 = sbr.rel target = $region50
          $region55: #{decoder_block_2d.6} parent=47 // loop_exit
            _
        $region48: #{decoder_block_2d.6} parent=39 // pred_fallthru
          _
        // Predicated region
        $region71: #{decoder_block_2d.6} parent=39 // pred_check
          _
        $region72: #{decoder_block_2d.6} parent=39 // pred_check_branch
          %350 = sbr.rel (0) target = $region74
        $region73: #{decoder_block_2d.6} parent=39 // pred_region
          %351 = vsyncadd [#allocation3], 3456
        $region74: #{decoder_block_2d.6} parent=39 // pred_fallthru
          _
      $region40: #{decoder_block_2d.6} parent=35 // pred_fallthru
        _
      %p352 = scmp.lt.s32.totalorder %s23, 0
      %s353 = ssub.s32 0, %s23
      %s354 = scalar_select %p352, %s353, %s23
      %s355 = sand.u32 %s354, 1
      %s356 = ssub.s32 0, %s355
      %s357 = scalar_select %p352, %s356, %s355
      %p358 = scmp.ne.s32.totalorder %s357, 0
      %p359 = scmp.lt.s32.totalorder %s357, 0
      %p360 = pnand %p359, %p358
      %p361 = pneg %p360
      %s362 = sadd.s32 %s357, 2
      %s363 = scalar_select %p361, %s362, %s357
      %s364 = smul.u32 %s23, 16
      %s365 = smul.u32 %s363, 54
      %s366 = smul.addr %s365, 4
      %s367 = scalar_lea.vmem [#allocation2], %s366
      %s368 = scalar_lea.sflag [#allocation3], %s363
      %s369 = smul.u32 4, 18
      %s370 = smul.u32 %s369, 3
      %s371 = smul.u32 %s370, 1
      %s372 = sshll.u32 %s371, 4
      %373 = dma.done %s368, %s372
      %s374 = sadd.s32 %s23, 1
      %p375 = scmp.lt.s32.totalorder %s374, 1
      // Predicated region
      $region75: #{decoder_block_2d.6} parent=35 // pred_check
        %p376 = pneg %p375
      $region76: #{decoder_block_2d.6} parent=35 // pred_check_branch
        %378 = sbr.rel (%p376) target = $region78
      $region77: #{decoder_block_2d.6} parent=35 // pred_region
        %p379 = scmp.lt.s32.totalorder %s374, 0
        %s380 = ssub.s32 0, %s374
        %s381 = scalar_select %p379, %s380, %s374
        %s382 = sand.u32 %s381, 1
        %s383 = ssub.s32 0, %s382
        %s384 = scalar_select %p379, %s383, %s382
        %p385 = scmp.ne.s32.totalorder %s384, 0
        %p386 = scmp.lt.s32.totalorder %s384, 0
        %p387 = pnand %p386, %p385
        %p388 = pneg %p387
        %s389 = sadd.s32 %s384, 2
        %s390 = scalar_select %p388, %s389, %s384
        %s391 = smul.u32 %s374, 16
        %s392 = smul.u32 %s391, 3
        %s393 = smul.u32 %s22, 54
        %s394 = sadd.s32 %s392, %s393
        %s395 = smul.addr %s394, 4
        %s396 = scalar_lea.vmem %s0, %s395
        %s397 = smul.u32 %s390, 54
        %s398 = smul.addr %s397, 4
        %s399 = scalar_lea.vmem [#allocation2], %s398
        %s400 = scalar_lea.sflag [#allocation3], %s390
        %p402 = scmp.lt.u32.totalorder 216, 8
        %p403 = pneg %p402
        // Predicated region
        $region79: #{decoder_block_2d.6} parent=77 // pred_check
          _
        $region80: #{decoder_block_2d.6} parent=77 // pred_check_branch
          %405 = sbr.rel (%p402) target = $region82
        $region81: #{decoder_block_2d.6} parent=77 // pred_region
          %s420 = sand.u32 216, 7
          %p421 = scmp.eq.s32.totalorder %s420, 0
          // Predicated region
          $region94: #{decoder_block_2d.6} parent=81 // pred_check
            %p422 = pneg %p421
          $region95: #{decoder_block_2d.6} parent=81 // pred_check_branch
            %424 = sbr.rel (%p422) target = $region97
          $region96: #{decoder_block_2d.6} parent=81 // pred_region
            loop: start=0, step=1, limit=1
            $region98: #{decoder_block_2d.6} parent=96 // loop_pre_header
              _
            $region99: #{decoder_block_2d.6} parent=96 // loop_header
              %s426 = sphi 0, %s430
              %p427 = scmp.ge.s32.totalorder %s426, 1
              %s431 = sphi %s396, %s396
              %s432 = sphi %s399, %s399
            $region100: #{decoder_block_2d.6} parent=96 // loop_header_branch
              %429 = sbr.rel (%p427) target = $region104
            $region101: #{decoder_block_2d.6} parent=96 // loop_body
              %v433 = vld [vmem:[%s431] sm:$0xff]
              %434 = vst [vmem:[%s432] sm:$0xff] %v433
              %v435 = vld [vmem:[%s431 + $0x8] sm:$0xff]
              %436 = vst [vmem:[%s432 + $0x8] sm:$0xff] %v435
              %v437 = vld [vmem:[%s431 + $0x10] sm:$0xff]
              %438 = vst [vmem:[%s432 + $0x10] sm:$0xff] %v437
              %v439 = vld [vmem:[%s431 + $0x18] sm:$0xff]
              %440 = vst [vmem:[%s432 + $0x18] sm:$0xff] %v439
              %v441 = vld [vmem:[%s431 + $0x20] sm:$0xff]
              %442 = vst [vmem:[%s432 + $0x20] sm:$0xff] %v441
              %v443 = vld [vmem:[%s431 + $0x28] sm:$0xff]
              %444 = vst [vmem:[%s432 + $0x28] sm:$0xff] %v443
              %v445 = vld [vmem:[%s431 + $0x30] sm:$0xff]
              %446 = vst [vmem:[%s432 + $0x30] sm:$0xff] %v445
              %v447 = vld [vmem:[%s431 + $0x38] sm:$0xff]
              %448 = vst [vmem:[%s432 + $0x38] sm:$0xff] %v447
              %v449 = vld [vmem:[%s431 + $0x40] sm:$0xff]
              %450 = vst [vmem:[%s432 + $0x40] sm:$0xff] %v449
              %v451 = vld [vmem:[%s431 + $0x48] sm:$0xff]
              %452 = vst [vmem:[%s432 + $0x48] sm:$0xff] %v451
              %v453 = vld [vmem:[%s431 + $0x50] sm:$0xff]
              %454 = vst [vmem:[%s432 + $0x50] sm:$0xff] %v453
              %v455 = vld [vmem:[%s431 + $0x58] sm:$0xff]
              %456 = vst [vmem:[%s432 + $0x58] sm:$0xff] %v455
              %v457 = vld [vmem:[%s431 + $0x60] sm:$0xff]
              %458 = vst [vmem:[%s432 + $0x60] sm:$0xff] %v457
              %v459 = vld [vmem:[%s431 + $0x68] sm:$0xff]
              %460 = vst [vmem:[%s432 + $0x68] sm:$0xff] %v459
              %v461 = vld [vmem:[%s431 + $0x70] sm:$0xff]
              %462 = vst [vmem:[%s432 + $0x70] sm:$0xff] %v461
              %v463 = vld [vmem:[%s431 + $0x78] sm:$0xff]
              %464 = vst [vmem:[%s432 + $0x78] sm:$0xff] %v463
              %v465 = vld [vmem:[%s431 + $0x80] sm:$0xff]
              %466 = vst [vmem:[%s432 + $0x80] sm:$0xff] %v465
              %v467 = vld [vmem:[%s431 + $0x88] sm:$0xff]
              %468 = vst [vmem:[%s432 + $0x88] sm:$0xff] %v467
              %v469 = vld [vmem:[%s431 + $0x90] sm:$0xff]
              %470 = vst [vmem:[%s432 + $0x90] sm:$0xff] %v469
              %v471 = vld [vmem:[%s431 + $0x98] sm:$0xff]
              %472 = vst [vmem:[%s432 + $0x98] sm:$0xff] %v471
              %v473 = vld [vmem:[%s431 + $0xa0] sm:$0xff]
              %474 = vst [vmem:[%s432 + $0xa0] sm:$0xff] %v473
              %v475 = vld [vmem:[%s431 + $0xa8] sm:$0xff]
              %476 = vst [vmem:[%s432 + $0xa8] sm:$0xff] %v475
              %v477 = vld [vmem:[%s431 + $0xb0] sm:$0xff]
              %478 = vst [vmem:[%s432 + $0xb0] sm:$0xff] %v477
              %v479 = vld [vmem:[%s431 + $0xb8] sm:$0xff]
              %480 = vst [vmem:[%s432 + $0xb8] sm:$0xff] %v479
              %v481 = vld [vmem:[%s431 + $0xc0] sm:$0xff]
              %482 = vst [vmem:[%s432 + $0xc0] sm:$0xff] %v481
              %v483 = vld [vmem:[%s431 + $0xc8] sm:$0xff]
              %484 = vst [vmem:[%s432 + $0xc8] sm:$0xff] %v483
              %v485 = vld [vmem:[%s431 + $0xd0] sm:$0xff]
              %486 = vst [vmem:[%s432 + $0xd0] sm:$0xff] %v485
            $region102: #{decoder_block_2d.6} parent=96 // loop_footer
              %s430 = sadd.s32 1, %s426
            $region103: #{decoder_block_2d.6} parent=96 // loop_footer_branch
              %425 = sbr.rel target = $region99
            $region104: #{decoder_block_2d.6} parent=96 // loop_exit
              _
          $region97: #{decoder_block_2d.6} parent=81 // pred_fallthru
            _
          %p487 = pneg %p421
          // Predicated region
          $region105: #{decoder_block_2d.6} parent=81 // pred_check
            _
          $region106: #{decoder_block_2d.6} parent=81 // pred_check_branch
            %489 = sbr.rel (%p421) target = $region108
          $region107: #{decoder_block_2d.6} parent=81 // pred_region
            %s490 = sand.u32 216, 7
          $region108: #{decoder_block_2d.6} parent=81 // pred_fallthru
            _
        $region82: #{decoder_block_2d.6} parent=77 // pred_fallthru
          _
        // Predicated region
        $region83: #{decoder_block_2d.6} parent=77 // pred_check
          %p406 = pneg %p402
        $region84: #{decoder_block_2d.6} parent=77 // pred_check_branch
          %408 = sbr.rel (%p406) target = $region86
        $region85: #{decoder_block_2d.6} parent=77 // pred_region
          %s409 = sshllo.u32 0, 216
          loop: start=0, step=1, limit=1
          $region87: #{decoder_block_2d.6} parent=85 // loop_pre_header
            _
          $region88: #{decoder_block_2d.6} parent=85 // loop_header
            %s411 = sphi 0, %s415
            %p412 = scmp.ge.s32.totalorder %s411, 1
            %s416 = sphi %s396, %s396
            %s417 = sphi %s399, %s399
          $region89: #{decoder_block_2d.6} parent=85 // loop_header_branch
            %414 = sbr.rel (%p412) target = $region93
          $region90: #{decoder_block_2d.6} parent=85 // loop_body
            %v418 = vld [vmem:[%s416] sm:%s409]
            %419 = vst [vmem:[%s417] sm:%s409] %v418
          $region91: #{decoder_block_2d.6} parent=85 // loop_footer
            %s415 = sadd.s32 1, %s411
          $region92: #{decoder_block_2d.6} parent=85 // loop_footer_branch
            %410 = sbr.rel target = $region88
          $region93: #{decoder_block_2d.6} parent=85 // loop_exit
            _
        $region86: #{decoder_block_2d.6} parent=77 // pred_fallthru
          _
        // Predicated region
        $region109: #{decoder_block_2d.6} parent=77 // pred_check
          _
        $region110: #{decoder_block_2d.6} parent=77 // pred_check_branch
          %493 = sbr.rel (0) target = $region112
        $region111: #{decoder_block_2d.6} parent=77 // pred_region
          %494 = vsyncadd %s400, 3456
        $region112: #{decoder_block_2d.6} parent=77 // pred_fallthru
          _
      $region78: #{decoder_block_2d.6} parent=35 // pred_fallthru
        _
      %v495 = vld [vmem:[%s367] sm:$0xf]
      %v496 = vld [vmem:[%s367 + $0x4] sm:$0xf]
      %v497 = vld [vmem:[%s367 + $0x8] sm:$0xf]
      %v498 = vld [vmem:[%s367 + $0xc] sm:$0xf]
      %v499 = vld [vmem:[%s367 + $0x10] sm:$0xf]
      %v500 = vld [vmem:[%s367 + $0x14] sm:$0xf]
      %v501 = vld [vmem:[%s367 + $0x18] sm:$0xf]
      %v502 = vld [vmem:[%s367 + $0x1c] sm:$0xf]
      %v503 = vld [vmem:[%s367 + $0x20] sm:$0xf]
      %v504 = vld [vmem:[%s367 + $0x24] sm:$0xf]
      %v505 = vld [vmem:[%s367 + $0x28] sm:$0xf]
      %v506 = vld [vmem:[%s367 + $0x2c] sm:$0xf]
      %v507 = vld [vmem:[%s367 + $0x30] sm:$0xf]
      %v508 = vld [vmem:[%s367 + $0x34] sm:$0xf]
      %v509 = vld [vmem:[%s367 + $0x38] sm:$0xf]
      %v510 = vld [vmem:[%s367 + $0x3c] sm:$0xf]
      %v511 = vld [vmem:[%s367 + $0x40] sm:$0xf]
      %v512 = vld [vmem:[%s367 + $0x44] sm:$0xf]
      %v513 = vld [vmem:[%s367 + $0x48] sm:$0xf]
      %v514 = vld [vmem:[%s367 + $0x4c] sm:$0xf]
      %v515 = vld [vmem:[%s367 + $0x50] sm:$0xf]
      %v516 = vld [vmem:[%s367 + $0x54] sm:$0xf]
      %v517 = vld [vmem:[%s367 + $0x58] sm:$0xf]
      %v518 = vld [vmem:[%s367 + $0x5c] sm:$0xf]
      %v519 = vld [vmem:[%s367 + $0x60] sm:$0xf]
      %v520 = vld [vmem:[%s367 + $0x64] sm:$0xf]
      %v521 = vld [vmem:[%s367 + $0x68] sm:$0xf]
      %v522 = vld [vmem:[%s367 + $0x6c] sm:$0xf]
      %v523 = vld [vmem:[%s367 + $0x70] sm:$0xf]
      %v524 = vld [vmem:[%s367 + $0x74] sm:$0xf]
      %v525 = vld [vmem:[%s367 + $0x78] sm:$0xf]
      %v526 = vld [vmem:[%s367 + $0x7c] sm:$0xf]
      %v527 = vld [vmem:[%s367 + $0x80] sm:$0xf]
      %v528 = vld [vmem:[%s367 + $0x84] sm:$0xf]
      %v529 = vld [vmem:[%s367 + $0x88] sm:$0xf]
      %v530 = vld [vmem:[%s367 + $0x8c] sm:$0xf]
      %v531 = vld [vmem:[%s367 + $0x90] sm:$0xf]
      %v532 = vld [vmem:[%s367 + $0x94] sm:$0xf]
      %v533 = vld [vmem:[%s367 + $0x98] sm:$0xf]
      %v534 = vld [vmem:[%s367 + $0x9c] sm:$0xf]
      %v535 = vld [vmem:[%s367 + $0xa0] sm:$0xf]
      %v536 = vld [vmem:[%s367 + $0xa4] sm:$0xf]
      %v537 = vld [vmem:[%s367 + $0xa8] sm:$0xf]
      %v538 = vld [vmem:[%s367 + $0xac] sm:$0xf]
      %v539 = vld [vmem:[%s367 + $0xb0] sm:$0xf]
      %v540 = vld [vmem:[%s367 + $0xb4] sm:$0xf]
      %v541 = vld [vmem:[%s367 + $0xb8] sm:$0xf]
      %v542 = vld [vmem:[%s367 + $0xbc] sm:$0xf]
      %v543 = vld [vmem:[%s367 + $0xc0] sm:$0xf]
      %v544 = vld [vmem:[%s367 + $0xc4] sm:$0xf]
      %v545 = vld [vmem:[%s367 + $0xc8] sm:$0xf]
      %v546 = vld [vmem:[%s367 + $0xcc] sm:$0xf]
      %v547 = vld [vmem:[%s367 + $0xd0] sm:$0xf]
      %v548 = vld [vmem:[%s367 + $0xd4] sm:$0xf]
      %v549 = vstv %s364
      %v550 = vadd.s32 %v549, 1
      %v551 = vadd.s32 %v549, 2
      %v552 = vadd.s32 %v549, 3
      %v553 = vadd.s32 %v549, 4
      %v554 = vadd.s32 %v549, 5
      %v555 = vadd.s32 %v549, 6
      %v556 = vadd.s32 %v549, 7
      %v557 = vadd.s32 %v549, 8
      %v558 = vadd.s32 %v549, 9
      %v559 = vadd.s32 %v549, 10
      %v560 = vadd.s32 %v549, 11
      %v561 = vadd.s32 %v549, 12
      %v562 = vadd.s32 %v549, 13
      %v563 = vadd.s32 %v549, 14
      %v564 = vadd.s32 %v549, 15
      %v565 = vadd.s32 %v549, 16
      %v566 = vadd.s32 %v549, 17
      %v567 = vlaneseq
      %v568 = vshrl.u32 %v567, 7
      %v569 = vadd.s32 %v568, 8
      %v570 = vadd.s32 %v568, 16
      %vm571 = vcmp.ge.s32.totalorder %v549, 1
      %vm572 = vcmp.ge.s32.totalorder %v550, 1
      %vm573 = vcmp.ge.s32.totalorder %v551, 1
      %vm574 = vcmp.ge.s32.totalorder %v552, 1
      %vm575 = vcmp.ge.s32.totalorder %v553, 1
      %vm576 = vcmp.ge.s32.totalorder %v554, 1
      %vm577 = vcmp.ge.s32.totalorder %v555, 1
      %vm578 = vcmp.ge.s32.totalorder %v556, 1
      %vm579 = vcmp.ge.s32.totalorder %v557, 1
      %vm580 = vcmp.ge.s32.totalorder %v558, 1
      %vm581 = vcmp.ge.s32.totalorder %v559, 1
      %vm582 = vcmp.ge.s32.totalorder %v560, 1
      %vm583 = vcmp.ge.s32.totalorder %v561, 1
      %vm584 = vcmp.ge.s32.totalorder %v562, 1
      %vm585 = vcmp.ge.s32.totalorder %v563, 1
      %vm586 = vcmp.ge.s32.totalorder %v564, 1
      %vm587 = vcmp.ge.s32.totalorder %v565, 1
      %vm588 = vcmp.ge.s32.totalorder %v566, 1
      %vm589 = vcmp.le.s32.totalorder %v549, 16
      %vm590 = vcmp.le.s32.totalorder %v550, 16
      %vm591 = vcmp.le.s32.totalorder %v551, 16
      %vm592 = vcmp.le.s32.totalorder %v552, 16
      %vm593 = vcmp.le.s32.totalorder %v553, 16
      %vm594 = vcmp.le.s32.totalorder %v554, 16
      %vm595 = vcmp.le.s32.totalorder %v555, 16
      %vm596 = vcmp.le.s32.totalorder %v556, 16
      %vm597 = vcmp.le.s32.totalorder %v557, 16
      %vm598 = vcmp.le.s32.totalorder %v558, 16
      %vm599 = vcmp.le.s32.totalorder %v559, 16
      %vm600 = vcmp.le.s32.totalorder %v560, 16
      %vm601 = vcmp.le.s32.totalorder %v561, 16
      %vm602 = vcmp.le.s32.totalorder %v562, 16
      %vm603 = vcmp.le.s32.totalorder %v563, 16
      %vm604 = vcmp.le.s32.totalorder %v564, 16
      %vm605 = vcmp.le.s32.totalorder %v565, 16
      %vm606 = vcmp.le.s32.totalorder %v566, 16
      %vm607 = vmand %vm571, %vm589
      %vm608 = vmand %vm572, %vm590
      %vm609 = vmand %vm573, %vm591
      %vm610 = vmand %vm574, %vm592
      %vm611 = vmand %vm575, %vm593
      %vm612 = vmand %vm576, %vm594
      %vm613 = vmand %vm577, %vm595
      %vm614 = vmand %vm578, %vm596
      %vm615 = vmand %vm579, %vm597
      %vm616 = vmand %vm580, %vm598
      %vm617 = vmand %vm581, %vm599
      %vm618 = vmand %vm582, %vm600
      %vm619 = vmand %vm583, %vm601
      %vm620 = vmand %vm584, %vm602
      %vm621 = vmand %vm585, %vm603
      %vm622 = vmand %vm586, %vm604
      %vm623 = vmand %vm587, %vm605
      %vm624 = vmand %vm588, %vm606
      %vm625 = vcmp.ge.s32.totalorder %v568, 1
      %vm626 = vcmp.ge.s32.totalorder %v569, 1
      %vm627 = vcmp.ge.s32.totalorder %v570, 1
      %vm628 = vmand %vm607, %vm625
      %vm629 = vmand %vm607, %vm626
      %vm630 = vmand %vm607, %vm627
      %vm631 = vmand %vm608, %vm625
      %vm632 = vmand %vm608, %vm626
      %vm633 = vmand %vm608, %vm627
      %vm634 = vmand %vm609, %vm625
      %vm635 = vmand %vm609, %vm626
      %vm636 = vmand %vm609, %vm627
      %vm637 = vmand %vm610, %vm625
      %vm638 = vmand %vm610, %vm626
      %vm639 = vmand %vm610, %vm627
      %vm640 = vmand %vm611, %vm625
      %vm641 = vmand %vm611, %vm626
      %vm642 = vmand %vm611, %vm627
      %vm643 = vmand %vm612, %vm625
      %vm644 = vmand %vm612, %vm626
      %vm645 = vmand %vm612, %vm627
      %vm646 = vmand %vm613, %vm625
      %vm647 = vmand %vm613, %vm626
      %vm648 = vmand %vm613, %vm627
      %vm649 = vmand %vm614, %vm625
      %vm650 = vmand %vm614, %vm626
      %vm651 = vmand %vm614, %vm627
      %vm652 = vmand %vm615, %vm625
      %vm653 = vmand %vm615, %vm626
      %vm654 = vmand %vm615, %vm627
      %vm655 = vmand %vm616, %vm625
      %vm656 = vmand %vm616, %vm626
      %vm657 = vmand %vm616, %vm627
      %vm658 = vmand %vm617, %vm625
      %vm659 = vmand %vm617, %vm626
      %vm660 = vmand %vm617, %vm627
      %vm661 = vmand %vm618, %vm625
      %vm662 = vmand %vm618, %vm626
      %vm663 = vmand %vm618, %vm627
      %vm664 = vmand %vm619, %vm625
      %vm665 = vmand %vm619, %vm626
      %vm666 = vmand %vm619, %vm627
      %vm667 = vmand %vm620, %vm625
      %vm668 = vmand %vm620, %vm626
      %vm669 = vmand %vm620, %vm627
      %vm670 = vmand %vm621, %vm625
      %vm671 = vmand %vm621, %vm626
      %vm672 = vmand %vm621, %vm627
      %vm673 = vmand %vm622, %vm625
      %vm674 = vmand %vm622, %vm626
      %vm675 = vmand %vm622, %vm627
      %vm676 = vmand %vm623, %vm625
      %vm677 = vmand %vm623, %vm626
      %vm678 = vmand %vm623, %vm627
      %vm679 = vmand %vm624, %vm625
      %vm680 = vmand %vm624, %vm626
      %vm681 = vmand %vm624, %vm627
      %vm682 = vcmp.le.s32.totalorder %v568, 16
      %vm683 = vcmp.le.s32.totalorder %v569, 16
      %vm684 = vcmp.le.s32.totalorder %v570, 16
      %vm685 = vmand %vm628, %vm682
      %vm686 = vmand %vm629, %vm683
      %vm687 = vmand %vm630, %vm684
      %vm688 = vmand %vm631, %vm682
      %vm689 = vmand %vm632, %vm683
      %vm690 = vmand %vm633, %vm684
      %vm691 = vmand %vm634, %vm682
      %vm692 = vmand %vm635, %vm683
      %vm693 = vmand %vm636, %vm684
      %vm694 = vmand %vm637, %vm682
      %vm695 = vmand %vm638, %vm683
      %vm696 = vmand %vm639, %vm684
      %vm697 = vmand %vm640, %vm682
      %vm698 = vmand %vm641, %vm683
      %vm699 = vmand %vm642, %vm684
      %vm700 = vmand %vm643, %vm682
      %vm701 = vmand %vm644, %vm683
      %vm702 = vmand %vm645, %vm684
      %vm703 = vmand %vm646, %vm682
      %vm704 = vmand %vm647, %vm683
      %vm705 = vmand %vm648, %vm684
      %vm706 = vmand %vm649, %vm682
      %vm707 = vmand %vm650, %vm683
      %vm708 = vmand %vm651, %vm684
      %vm709 = vmand %vm652, %vm682
      %vm710 = vmand %vm653, %vm683
      %vm711 = vmand %vm654, %vm684
      %vm712 = vmand %vm655, %vm682
      %vm713 = vmand %vm656, %vm683
      %vm714 = vmand %vm657, %vm684
      %vm715 = vmand %vm658, %vm682
      %vm716 = vmand %vm659, %vm683
      %vm717 = vmand %vm660, %vm684
      %vm718 = vmand %vm661, %vm682
      %vm719 = vmand %vm662, %vm683
      %vm720 = vmand %vm663, %vm684
      %vm721 = vmand %vm664, %vm682
      %vm722 = vmand %vm665, %vm683
      %vm723 = vmand %vm666, %vm684
      %vm724 = vmand %vm667, %vm682
      %vm725 = vmand %vm668, %vm683
      %vm726 = vmand %vm669, %vm684
      %vm727 = vmand %vm670, %vm682
      %vm728 = vmand %vm671, %vm683
      %vm729 = vmand %vm672, %vm684
      %vm730 = vmand %vm673, %vm682
      %vm731 = vmand %vm674, %vm683
      %vm732 = vmand %vm675, %vm684
      %vm733 = vmand %vm676, %vm682
      %vm734 = vmand %vm677, %vm683
      %vm735 = vmand %vm678, %vm684
      %vm736 = vmand %vm679, %vm682
      %vm737 = vmand %vm680, %vm683
      %vm738 = vmand %vm681, %vm684
      %v739 = vunpack.c.l.bf16 %v495
      %v740 = vunpack.c.l.bf16 %v496
      %v741 = vunpack.c.l.bf16 %v497
      %v742 = vunpack.c.l.bf16 %v498
      %v743 = vunpack.c.l.bf16 %v499
      %v744 = vunpack.c.l.bf16 %v500
      %v745 = vunpack.c.l.bf16 %v501
      %v746 = vunpack.c.l.bf16 %v502
      %v747 = vunpack.c.l.bf16 %v503
      %v748 = vunpack.c.l.bf16 %v504
      %v749 = vunpack.c.l.bf16 %v505
      %v750 = vunpack.c.l.bf16 %v506
      %v751 = vunpack.c.l.bf16 %v507
      %v752 = vunpack.c.l.bf16 %v508
      %v753 = vunpack.c.l.bf16 %v509
      %v754 = vunpack.c.l.bf16 %v510
      %v755 = vunpack.c.l.bf16 %v511
      %v756 = vunpack.c.l.bf16 %v512
      %v757 = vunpack.c.l.bf16 %v513
      %v758 = vunpack.c.l.bf16 %v514
      %v759 = vunpack.c.l.bf16 %v515
      %v760 = vunpack.c.l.bf16 %v516
      %v761 = vunpack.c.l.bf16 %v517
      %v762 = vunpack.c.l.bf16 %v518
      %v763 = vunpack.c.l.bf16 %v519
      %v764 = vunpack.c.l.bf16 %v520
      %v765 = vunpack.c.l.bf16 %v521
      %v766 = vunpack.c.l.bf16 %v522
      %v767 = vunpack.c.l.bf16 %v523
      %v768 = vunpack.c.l.bf16 %v524
      %v769 = vunpack.c.l.bf16 %v525
      %v770 = vunpack.c.l.bf16 %v526
      %v771 = vunpack.c.l.bf16 %v527
      %v772 = vunpack.c.l.bf16 %v528
      %v773 = vunpack.c.l.bf16 %v529
      %v774 = vunpack.c.l.bf16 %v530
      %v775 = vunpack.c.l.bf16 %v531
      %v776 = vunpack.c.l.bf16 %v532
      %v777 = vunpack.c.l.bf16 %v533
      %v778 = vunpack.c.l.bf16 %v534
      %v779 = vunpack.c.l.bf16 %v535
      %v780 = vunpack.c.l.bf16 %v536
      %v781 = vunpack.c.l.bf16 %v537
      %v782 = vunpack.c.l.bf16 %v538
      %v783 = vunpack.c.l.bf16 %v539
      %v784 = vunpack.c.l.bf16 %v540
      %v785 = vunpack.c.l.bf16 %v541
      %v786 = vunpack.c.l.bf16 %v542
      %v787 = vunpack.c.l.bf16 %v543
      %v788 = vunpack.c.l.bf16 %v544
      %v789 = vunpack.c.l.bf16 %v545
      %v790 = vunpack.c.l.bf16 %v546
      %v791 = vunpack.c.l.bf16 %v547
      %v792 = vunpack.c.l.bf16 %v548
      %v793 = vld [vmem:[%s3] sm:$0x1]
      %v795 = vlaneseq
      %v796 = vshrl.u32 %v795, 7
      %v797 = vsub.s32 0, %v796
      %v798 = vrot.slane %v793, %v797
      %v800 = vmul.f32 %v739, %v798
      %v801 = vmul.f32 %v740, %v798
      %v802 = vmul.f32 %v741, %v798
      %v803 = vmul.f32 %v742, %v798
      %v804 = vmul.f32 %v743, %v798
      %v805 = vmul.f32 %v744, %v798
      %v806 = vmul.f32 %v745, %v798
      %v807 = vmul.f32 %v746, %v798
      %v808 = vmul.f32 %v747, %v798
      %v809 = vmul.f32 %v748, %v798
      %v810 = vmul.f32 %v749, %v798
      %v811 = vmul.f32 %v750, %v798
      %v812 = vmul.f32 %v751, %v798
      %v813 = vmul.f32 %v752, %v798
      %v814 = vmul.f32 %v753, %v798
      %v815 = vmul.f32 %v754, %v798
      %v816 = vmul.f32 %v755, %v798
      %v817 = vmul.f32 %v756, %v798
      %v818 = vmul.f32 %v757, %v798
      %v819 = vmul.f32 %v758, %v798
      %v820 = vmul.f32 %v759, %v798
      %v821 = vmul.f32 %v760, %v798
      %v822 = vmul.f32 %v761, %v798
      %v823 = vmul.f32 %v762, %v798
      %v824 = vmul.f32 %v763, %v798
      %v825 = vmul.f32 %v764, %v798
      %v826 = vmul.f32 %v765, %v798
      %v827 = vmul.f32 %v766, %v798
      %v828 = vmul.f32 %v767, %v798
      %v829 = vmul.f32 %v768, %v798
      %v830 = vmul.f32 %v769, %v798
      %v831 = vmul.f32 %v770, %v798
      %v832 = vmul.f32 %v771, %v798
      %v833 = vmul.f32 %v772, %v798
      %v834 = vmul.f32 %v773, %v798
      %v835 = vmul.f32 %v774, %v798
      %v836 = vmul.f32 %v775, %v798
      %v837 = vmul.f32 %v776, %v798
      %v838 = vmul.f32 %v777, %v798
      %v839 = vmul.f32 %v778, %v798
      %v840 = vmul.f32 %v779, %v798
      %v841 = vmul.f32 %v780, %v798
      %v842 = vmul.f32 %v781, %v798
      %v843 = vmul.f32 %v782, %v798
      %v844 = vmul.f32 %v783, %v798
      %v845 = vmul.f32 %v784, %v798
      %v846 = vmul.f32 %v785, %v798
      %v847 = vmul.f32 %v786, %v798
      %v848 = vmul.f32 %v787, %v798
      %v849 = vmul.f32 %v788, %v798
      %v850 = vmul.f32 %v789, %v798
      %v851 = vmul.f32 %v790, %v798
      %v852 = vmul.f32 %v791, %v798
      %v853 = vmul.f32 %v792, %v798
      %v854 = vld [vmem:[%s4] sm:$0x1]
      %v856 = vlaneseq
      %v857 = vshrl.u32 %v856, 7
      %v858 = vsub.s32 0, %v857
      %v859 = vrot.slane %v854, %v858
      %v861 = vadd.f32 %v800, %v859
      %v862 = vadd.f32 %v801, %v859
      %v863 = vadd.f32 %v802, %v859
      %v864 = vadd.f32 %v803, %v859
      %v865 = vadd.f32 %v804, %v859
      %v866 = vadd.f32 %v805, %v859
      %v867 = vadd.f32 %v806, %v859
      %v868 = vadd.f32 %v807, %v859
      %v869 = vadd.f32 %v808, %v859
      %v870 = vadd.f32 %v809, %v859
      %v871 = vadd.f32 %v810, %v859
      %v872 = vadd.f32 %v811, %v859
      %v873 = vadd.f32 %v812, %v859
      %v874 = vadd.f32 %v813, %v859
      %v875 = vadd.f32 %v814, %v859
      %v876 = vadd.f32 %v815, %v859
      %v877 = vadd.f32 %v816, %v859
      %v878 = vadd.f32 %v817, %v859
      %v879 = vadd.f32 %v818, %v859
      %v880 = vadd.f32 %v819, %v859
      %v881 = vadd.f32 %v820, %v859
      %v882 = vadd.f32 %v821, %v859
      %v883 = vadd.f32 %v822, %v859
      %v884 = vadd.f32 %v823, %v859
      %v885 = vadd.f32 %v824, %v859
      %v886 = vadd.f32 %v825, %v859
      %v887 = vadd.f32 %v826, %v859
      %v888 = vadd.f32 %v827, %v859
      %v889 = vadd.f32 %v828, %v859
      %v890 = vadd.f32 %v829, %v859
      %v891 = vadd.f32 %v830, %v859
      %v892 = vadd.f32 %v831, %v859
      %v893 = vadd.f32 %v832, %v859
      %v894 = vadd.f32 %v833, %v859
      %v895 = vadd.f32 %v834, %v859
      %v896 = vadd.f32 %v835, %v859
      %v897 = vadd.f32 %v836, %v859
      %v898 = vadd.f32 %v837, %v859
      %v899 = vadd.f32 %v838, %v859
      %v900 = vadd.f32 %v839, %v859
      %v901 = vadd.f32 %v840, %v859
      %v902 = vadd.f32 %v841, %v859
      %v903 = vadd.f32 %v842, %v859
      %v904 = vadd.f32 %v843, %v859
      %v905 = vadd.f32 %v844, %v859
      %v906 = vadd.f32 %v845, %v859
      %v907 = vadd.f32 %v846, %v859
      %v908 = vadd.f32 %v847, %v859
      %v909 = vadd.f32 %v848, %v859
      %v910 = vadd.f32 %v849, %v859
      %v911 = vadd.f32 %v850, %v859
      %v912 = vadd.f32 %v851, %v859
      %v913 = vadd.f32 %v852, %v859
      %v914 = vadd.f32 %v853, %v859
      %v915 = vmax.f32 %v861, 0.0
      %v916 = vmax.f32 %v862, 0.0
      %v917 = vmax.f32 %v863, 0.0
      %v918 = vmax.f32 %v864, 0.0
      %v919 = vmax.f32 %v865, 0.0
      %v920 = vmax.f32 %v866, 0.0
      %v921 = vmax.f32 %v867, 0.0
      %v922 = vmax.f32 %v868, 0.0
      %v923 = vmax.f32 %v869, 0.0
      %v924 = vmax.f32 %v870, 0.0
      %v925 = vmax.f32 %v871, 0.0
      %v926 = vmax.f32 %v872, 0.0
      %v927 = vmax.f32 %v873, 0.0
      %v928 = vmax.f32 %v874, 0.0
      %v929 = vmax.f32 %v875, 0.0
      %v930 = vmax.f32 %v876, 0.0
      %v931 = vmax.f32 %v877, 0.0
      %v932 = vmax.f32 %v878, 0.0
      %v933 = vmax.f32 %v879, 0.0
      %v934 = vmax.f32 %v880, 0.0
      %v935 = vmax.f32 %v881, 0.0
      %v936 = vmax.f32 %v882, 0.0
      %v937 = vmax.f32 %v883, 0.0
      %v938 = vmax.f32 %v884, 0.0
      %v939 = vmax.f32 %v885, 0.0
      %v940 = vmax.f32 %v886, 0.0
      %v941 = vmax.f32 %v887, 0.0
      %v942 = vmax.f32 %v888, 0.0
      %v943 = vmax.f32 %v889, 0.0
      %v944 = vmax.f32 %v890, 0.0
      %v945 = vmax.f32 %v891, 0.0
      %v946 = vmax.f32 %v892, 0.0
      %v947 = vmax.f32 %v893, 0.0
      %v948 = vmax.f32 %v894, 0.0
      %v949 = vmax.f32 %v895, 0.0
      %v950 = vmax.f32 %v896, 0.0
      %v951 = vmax.f32 %v897, 0.0
      %v952 = vmax.f32 %v898, 0.0
      %v953 = vmax.f32 %v899, 0.0
      %v954 = vmax.f32 %v900, 0.0
      %v955 = vmax.f32 %v901, 0.0
      %v956 = vmax.f32 %v902, 0.0
      %v957 = vmax.f32 %v903, 0.0
      %v958 = vmax.f32 %v904, 0.0
      %v959 = vmax.f32 %v905, 0.0
      %v960 = vmax.f32 %v906, 0.0
      %v961 = vmax.f32 %v907, 0.0
      %v962 = vmax.f32 %v908, 0.0
      %v963 = vmax.f32 %v909, 0.0
      %v964 = vmax.f32 %v910, 0.0
      %v965 = vmax.f32 %v911, 0.0
      %v966 = vmax.f32 %v912, 0.0
      %v967 = vmax.f32 %v913, 0.0
      %v968 = vmax.f32 %v914, 0.0
      %v969 = vsel %vm685, 1, 0
      %v970 = vsel %vm686, 1, 0
      %v971 = vsel %vm687, 1, 0
      %v972 = vsel %vm688, 1, 0
      %v973 = vsel %vm689, 1, 0
      %v974 = vsel %vm690, 1, 0
      %v975 = vsel %vm691, 1, 0
      %v976 = vsel %vm692, 1, 0
      %v977 = vsel %vm693, 1, 0
      %v978 = vsel %vm694, 1, 0
      %v979 = vsel %vm695, 1, 0
      %v980 = vsel %vm696, 1, 0
      %v981 = vsel %vm697, 1, 0
      %v982 = vsel %vm698, 1, 0
      %v983 = vsel %vm699, 1, 0
      %v984 = vsel %vm700, 1, 0
      %v985 = vsel %vm701, 1, 0
      %v986 = vsel %vm702, 1, 0
      %v987 = vsel %vm703, 1, 0
      %v988 = vsel %vm704, 1, 0
      %v989 = vsel %vm705, 1, 0
      %v990 = vsel %vm706, 1, 0
      %v991 = vsel %vm707, 1, 0
      %v992 = vsel %vm708, 1, 0
      %v993 = vsel %vm709, 1, 0
      %v994 = vsel %vm710, 1, 0
      %v995 = vsel %vm711, 1, 0
      %v996 = vsel %vm712, 1, 0
      %v997 = vsel %vm713, 1, 0
      %v998 = vsel %vm714, 1, 0
      %v999 = vsel %vm715, 1, 0
      %v1000 = vsel %vm716, 1, 0
      %v1001 = vsel %vm717, 1, 0
      %v1002 = vsel %vm718, 1, 0
      %v1003 = vsel %vm719, 1, 0
      %v1004 = vsel %vm720, 1, 0
      %v1005 = vsel %vm721, 1, 0
      %v1006 = vsel %vm722, 1, 0
      %v1007 = vsel %vm723, 1, 0
      %v1008 = vsel %vm724, 1, 0
      %v1009 = vsel %vm725, 1, 0
      %v1010 = vsel %vm726, 1, 0
      %v1011 = vsel %vm727, 1, 0
      %v1012 = vsel %vm728, 1, 0
      %v1013 = vsel %vm729, 1, 0
      %v1014 = vsel %vm730, 1, 0
      %v1015 = vsel %vm731, 1, 0
      %v1016 = vsel %vm732, 1, 0
      %v1017 = vsel %vm733, 1, 0
      %v1018 = vsel %vm734, 1, 0
      %v1019 = vsel %vm735, 1, 0
      %v1020 = vsel %vm736, 1, 0
      %v1021 = vsel %vm737, 1, 0
      %v1022 = vsel %vm738, 1, 0
      %vm1023 = vcmp.eq.s32.totalorder %v969, 1
      %vm1024 = vcmp.eq.s32.totalorder %v970, 1
      %vm1025 = vcmp.eq.s32.totalorder %v971, 1
      %vm1026 = vcmp.eq.s32.totalorder %v972, 1
      %vm1027 = vcmp.eq.s32.totalorder %v973, 1
      %vm1028 = vcmp.eq.s32.totalorder %v974, 1
      %vm1029 = vcmp.eq.s32.totalorder %v975, 1
      %vm1030 = vcmp.eq.s32.totalorder %v976, 1
      %vm1031 = vcmp.eq.s32.totalorder %v977, 1
      %vm1032 = vcmp.eq.s32.totalorder %v978, 1
      %vm1033 = vcmp.eq.s32.totalorder %v979, 1
      %vm1034 = vcmp.eq.s32.totalorder %v980, 1
      %vm1035 = vcmp.eq.s32.totalorder %v981, 1
      %vm1036 = vcmp.eq.s32.totalorder %v982, 1
      %vm1037 = vcmp.eq.s32.totalorder %v983, 1
      %vm1038 = vcmp.eq.s32.totalorder %v984, 1
      %vm1039 = vcmp.eq.s32.totalorder %v985, 1
      %vm1040 = vcmp.eq.s32.totalorder %v986, 1
      %vm1041 = vcmp.eq.s32.totalorder %v987, 1
      %vm1042 = vcmp.eq.s32.totalorder %v988, 1
      %vm1043 = vcmp.eq.s32.totalorder %v989, 1
      %vm1044 = vcmp.eq.s32.totalorder %v990, 1
      %vm1045 = vcmp.eq.s32.totalorder %v991, 1
      %vm1046 = vcmp.eq.s32.totalorder %v992, 1
      %vm1047 = vcmp.eq.s32.totalorder %v993, 1
      %vm1048 = vcmp.eq.s32.totalorder %v994, 1
      %vm1049 = vcmp.eq.s32.totalorder %v995, 1
      %vm1050 = vcmp.eq.s32.totalorder %v996, 1
      %vm1051 = vcmp.eq.s32.totalorder %v997, 1
      %vm1052 = vcmp.eq.s32.totalorder %v998, 1
      %vm1053 = vcmp.eq.s32.totalorder %v999, 1
      %vm1054 = vcmp.eq.s32.totalorder %v1000, 1
      %vm1055 = vcmp.eq.s32.totalorder %v1001, 1
      %vm1056 = vcmp.eq.s32.totalorder %v1002, 1
      %vm1057 = vcmp.eq.s32.totalorder %v1003, 1
      %vm1058 = vcmp.eq.s32.totalorder %v1004, 1
      %vm1059 = vcmp.eq.s32.totalorder %v1005, 1
      %vm1060 = vcmp.eq.s32.totalorder %v1006, 1
      %vm1061 = vcmp.eq.s32.totalorder %v1007, 1
      %vm1062 = vcmp.eq.s32.totalorder %v1008, 1
      %vm1063 = vcmp.eq.s32.totalorder %v1009, 1
      %vm1064 = vcmp.eq.s32.totalorder %v1010, 1
      %vm1065 = vcmp.eq.s32.totalorder %v1011, 1
      %vm1066 = vcmp.eq.s32.totalorder %v1012, 1
      %vm1067 = vcmp.eq.s32.totalorder %v1013, 1
      %vm1068 = vcmp.eq.s32.totalorder %v1014, 1
      %vm1069 = vcmp.eq.s32.totalorder %v1015, 1
      %vm1070 = vcmp.eq.s32.totalorder %v1016, 1
      %vm1071 = vcmp.eq.s32.totalorder %v1017, 1
      %vm1072 = vcmp.eq.s32.totalorder %v1018, 1
      %vm1073 = vcmp.eq.s32.totalorder %v1019, 1
      %vm1074 = vcmp.eq.s32.totalorder %v1020, 1
      %vm1075 = vcmp.eq.s32.totalorder %v1021, 1
      %vm1076 = vcmp.eq.s32.totalorder %v1022, 1
      %v1077 = vsel %vm1023, %v915, 0.0
      %v1078 = vsel %vm1024, %v916, 0.0
      %v1079 = vsel %vm1025, %v917, 0.0
      %v1080 = vsel %vm1026, %v918, 0.0
      %v1081 = vsel %vm1027, %v919, 0.0
      %v1082 = vsel %vm1028, %v920, 0.0
      %v1083 = vsel %vm1029, %v921, 0.0
      %v1084 = vsel %vm1030, %v922, 0.0
      %v1085 = vsel %vm1031, %v923, 0.0
      %v1086 = vsel %vm1032, %v924, 0.0
      %v1087 = vsel %vm1033, %v925, 0.0
      %v1088 = vsel %vm1034, %v926, 0.0
      %v1089 = vsel %vm1035, %v927, 0.0
      %v1090 = vsel %vm1036, %v928, 0.0
      %v1091 = vsel %vm1037, %v929, 0.0
      %v1092 = vsel %vm1038, %v930, 0.0
      %v1093 = vsel %vm1039, %v931, 0.0
      %v1094 = vsel %vm1040, %v932, 0.0
      %v1095 = vsel %vm1041, %v933, 0.0
      %v1096 = vsel %vm1042, %v934, 0.0
      %v1097 = vsel %vm1043, %v935, 0.0
      %v1098 = vsel %vm1044, %v936, 0.0
      %v1099 = vsel %vm1045, %v937, 0.0
      %v1100 = vsel %vm1046, %v938, 0.0
      %v1101 = vsel %vm1047, %v939, 0.0
      %v1102 = vsel %vm1048, %v940, 0.0
      %v1103 = vsel %vm1049, %v941, 0.0
      %v1104 = vsel %vm1050, %v942, 0.0
      %v1105 = vsel %vm1051, %v943, 0.0
      %v1106 = vsel %vm1052, %v944, 0.0
      %v1107 = vsel %vm1053, %v945, 0.0
      %v1108 = vsel %vm1054, %v946, 0.0
      %v1109 = vsel %vm1055, %v947, 0.0
      %v1110 = vsel %vm1056, %v948, 0.0
      %v1111 = vsel %vm1057, %v949, 0.0
      %v1112 = vsel %vm1058, %v950, 0.0
      %v1113 = vsel %vm1059, %v951, 0.0
      %v1114 = vsel %vm1060, %v952, 0.0
      %v1115 = vsel %vm1061, %v953, 0.0
      %v1116 = vsel %vm1062, %v954, 0.0
      %v1117 = vsel %vm1063, %v955, 0.0
      %v1118 = vsel %vm1064, %v956, 0.0
      %v1119 = vsel %vm1065, %v957, 0.0
      %v1120 = vsel %vm1066, %v958, 0.0
      %v1121 = vsel %vm1067, %v959, 0.0
      %v1122 = vsel %vm1068, %v960, 0.0
      %v1123 = vsel %vm1069, %v961, 0.0
      %v1124 = vsel %vm1070, %v962, 0.0
      %v1125 = vsel %vm1071, %v963, 0.0
      %v1126 = vsel %vm1072, %v964, 0.0
      %v1127 = vsel %vm1073, %v965, 0.0
      %v1128 = vsel %vm1074, %v966, 0.0
      %v1129 = vsel %vm1075, %v967, 0.0
      %v1130 = vsel %vm1076, %v968, 0.0
      %v1131 = vpack.c.bf16 %v1078, %v1077
      %v1132 = vpack.c.bf16 %v1079, %v1079
      %v1133 = vpack.c.bf16 %v1081, %v1080
      %v1134 = vpack.c.bf16 %v1082, %v1082
      %v1135 = vpack.c.bf16 %v1084, %v1083
      %v1136 = vpack.c.bf16 %v1085, %v1085
      %v1137 = vpack.c.bf16 %v1087, %v1086
      %v1138 = vpack.c.bf16 %v1088, %v1088
      %v1139 = vpack.c.bf16 %v1090, %v1089
      %v1140 = vpack.c.bf16 %v1091, %v1091
      %v1141 = vpack.c.bf16 %v1093, %v1092
      %v1142 = vpack.c.bf16 %v1094, %v1094
      %v1143 = vpack.c.bf16 %v1096, %v1095
      %v1144 = vpack.c.bf16 %v1097, %v1097
      %v1145 = vpack.c.bf16 %v1099, %v1098
      %v1146 = vpack.c.bf16 %v1100, %v1100
      %v1147 = vpack.c.bf16 %v1102, %v1101
      %v1148 = vpack.c.bf16 %v1103, %v1103
      %v1149 = vpack.c.bf16 %v1105, %v1104
      %v1150 = vpack.c.bf16 %v1106, %v1106
      %v1151 = vpack.c.bf16 %v1108, %v1107
      %v1152 = vpack.c.bf16 %v1109, %v1109
      %v1153 = vpack.c.bf16 %v1111, %v1110
      %v1154 = vpack.c.bf16 %v1112, %v1112
      %v1155 = vpack.c.bf16 %v1114, %v1113
      %v1156 = vpack.c.bf16 %v1115, %v1115
      %v1157 = vpack.c.bf16 %v1117, %v1116
      %v1158 = vpack.c.bf16 %v1118, %v1118
      %v1159 = vpack.c.bf16 %v1120, %v1119
      %v1160 = vpack.c.bf16 %v1121, %v1121
      %v1161 = vpack.c.bf16 %v1123, %v1122
      %v1162 = vpack.c.bf16 %v1124, %v1124
      %v1163 = vpack.c.bf16 %v1126, %v1125
      %v1164 = vpack.c.bf16 %v1127, %v1127
      %v1165 = vpack.c.bf16 %v1129, %v1128
      %v1166 = vpack.c.bf16 %v1130, %v1130
      %vm1167 = vsmask.f32 7424
      %v1169 = vshrl.u32 %v1131, 16
      %v1171 = vshll.u32 %v1131, 16
      %v1173 = vrot.slane %v1171, 1
      %v1174 = vor.u32 %v1169, %v1173
      %v1176 = vshll.u32 %v1132, 16
      %v1178 = vrot.slane %v1176, 1
      %v1179 = vsel %vm1167, %v1174, %v1178
      %v1181 = vshrl.u32 %v1133, 16
      %v1183 = vshll.u32 %v1133, 16
      %v1185 = vrot.slane %v1183, 1
      %v1186 = vor.u32 %v1181, %v1185
      %v1188 = vshll.u32 %v1134, 16
      %v1190 = vrot.slane %v1188, 1
      %v1191 = vsel %vm1167, %v1186, %v1190
      %v1193 = vshrl.u32 %v1135, 16
      %v1195 = vshll.u32 %v1135, 16
      %v1197 = vrot.slane %v1195, 1
      %v1198 = vor.u32 %v1193, %v1197
      %v1200 = vshll.u32 %v1136, 16
      %v1202 = vrot.slane %v1200, 1
      %v1203 = vsel %vm1167, %v1198, %v1202
      %v1205 = vshrl.u32 %v1137, 16
      %v1207 = vshll.u32 %v1137, 16
      %v1209 = vrot.slane %v1207, 1
      %v1210 = vor.u32 %v1205, %v1209
      %v1212 = vshll.u32 %v1138, 16
      %v1214 = vrot.slane %v1212, 1
      %v1215 = vsel %vm1167, %v1210, %v1214
      %v1217 = vshrl.u32 %v1139, 16
      %v1219 = vshll.u32 %v1139, 16
      %v1221 = vrot.slane %v1219, 1
      %v1222 = vor.u32 %v1217, %v1221
      %v1224 = vshll.u32 %v1140, 16
      %v1226 = vrot.slane %v1224, 1
      %v1227 = vsel %vm1167, %v1222, %v1226
      %v1229 = vshrl.u32 %v1141, 16
      %v1231 = vshll.u32 %v1141, 16
      %v1233 = vrot.slane %v1231, 1
      %v1234 = vor.u32 %v1229, %v1233
      %v1236 = vshll.u32 %v1142, 16
      %v1238 = vrot.slane %v1236, 1
      %v1239 = vsel %vm1167, %v1234, %v1238
      %v1241 = vshrl.u32 %v1143, 16
      %v1243 = vshll.u32 %v1143, 16
      %v1245 = vrot.slane %v1243, 1
      %v1246 = vor.u32 %v1241, %v1245
      %v1248 = vshll.u32 %v1144, 16
      %v1250 = vrot.slane %v1248, 1
      %v1251 = vsel %vm1167, %v1246, %v1250
      %v1253 = vshrl.u32 %v1145, 16
      %v1255 = vshll.u32 %v1145, 16
      %v1257 = vrot.slane %v1255, 1
      %v1258 = vor.u32 %v1253, %v1257
      %v1260 = vshll.u32 %v1146, 16
      %v1262 = vrot.slane %v1260, 1
      %v1263 = vsel %vm1167, %v1258, %v1262
      %v1265 = vshrl.u32 %v1147, 16
      %v1267 = vshll.u32 %v1147, 16
      %v1269 = vrot.slane %v1267, 1
      %v1270 = vor.u32 %v1265, %v1269
      %v1272 = vshll.u32 %v1148, 16
      %v1274 = vrot.slane %v1272, 1
      %v1275 = vsel %vm1167, %v1270, %v1274
      %v1277 = vshrl.u32 %v1149, 16
      %v1279 = vshll.u32 %v1149, 16
      %v1281 = vrot.slane %v1279, 1
      %v1282 = vor.u32 %v1277, %v1281
      %v1284 = vshll.u32 %v1150, 16
      %v1286 = vrot.slane %v1284, 1
      %v1287 = vsel %vm1167, %v1282, %v1286
      %v1289 = vshrl.u32 %v1151, 16
      %v1291 = vshll.u32 %v1151, 16
      %v1293 = vrot.slane %v1291, 1
      %v1294 = vor.u32 %v1289, %v1293
      %v1296 = vshll.u32 %v1152, 16
      %v1298 = vrot.slane %v1296, 1
      %v1299 = vsel %vm1167, %v1294, %v1298
      %v1301 = vshrl.u32 %v1153, 16
      %v1303 = vshll.u32 %v1153, 16
      %v1305 = vrot.slane %v1303, 1
      %v1306 = vor.u32 %v1301, %v1305
      %v1308 = vshll.u32 %v1154, 16
      %v1310 = vrot.slane %v1308, 1
      %v1311 = vsel %vm1167, %v1306, %v1310
      %v1313 = vshrl.u32 %v1155, 16
      %v1315 = vshll.u32 %v1155, 16
      %v1317 = vrot.slane %v1315, 1
      %v1318 = vor.u32 %v1313, %v1317
      %v1320 = vshll.u32 %v1156, 16
      %v1322 = vrot.slane %v1320, 1
      %v1323 = vsel %vm1167, %v1318, %v1322
      %v1325 = vshrl.u32 %v1157, 16
      %v1327 = vshll.u32 %v1157, 16
      %v1329 = vrot.slane %v1327, 1
      %v1330 = vor.u32 %v1325, %v1329
      %v1332 = vshll.u32 %v1158, 16
      %v1334 = vrot.slane %v1332, 1
      %v1335 = vsel %vm1167, %v1330, %v1334
      %v1337 = vshrl.u32 %v1159, 16
      %v1339 = vshll.u32 %v1159, 16
      %v1341 = vrot.slane %v1339, 1
      %v1342 = vor.u32 %v1337, %v1341
      %v1344 = vshll.u32 %v1160, 16
      %v1346 = vrot.slane %v1344, 1
      %v1347 = vsel %vm1167, %v1342, %v1346
      %v1349 = vshrl.u32 %v1161, 16
      %v1351 = vshll.u32 %v1161, 16
      %v1353 = vrot.slane %v1351, 1
      %v1354 = vor.u32 %v1349, %v1353
      %v1356 = vshll.u32 %v1162, 16
      %v1358 = vrot.slane %v1356, 1
      %v1359 = vsel %vm1167, %v1354, %v1358
      %vm1408 = vcmask 1046528
      %v1409 = vrot.slane %v1131, 1
      %v1410 = vrot.slane %v1132, 1
      %v1411 = vsel %vm1408, %v1409, %v1410
      %v1412 = vrot.slane %v1133, 1
      %v1413 = vrot.slane %v1134, 1
      %v1414 = vsel %vm1408, %v1412, %v1413
      %v1415 = vrot.slane %v1135, 1
      %v1416 = vrot.slane %v1136, 1
      %v1417 = vsel %vm1408, %v1415, %v1416
      %v1418 = vrot.slane %v1137, 1
      %v1419 = vrot.slane %v1138, 1
      %v1420 = vsel %vm1408, %v1418, %v1419
      %v1421 = vrot.slane %v1139, 1
      %v1422 = vrot.slane %v1140, 1
      %v1423 = vsel %vm1408, %v1421, %v1422
      %v1424 = vrot.slane %v1141, 1
      %v1425 = vrot.slane %v1142, 1
      %v1426 = vsel %vm1408, %v1424, %v1425
      %v1427 = vrot.slane %v1143, 1
      %v1428 = vrot.slane %v1144, 1
      %v1429 = vsel %vm1408, %v1427, %v1428
      %v1430 = vrot.slane %v1145, 1
      %v1431 = vrot.slane %v1146, 1
      %v1432 = vsel %vm1408, %v1430, %v1431
      %v1433 = vrot.slane %v1147, 1
      %v1434 = vrot.slane %v1148, 1
      %v1435 = vsel %vm1408, %v1433, %v1434
      %v1436 = vrot.slane %v1149, 1
      %v1437 = vrot.slane %v1150, 1
      %v1438 = vsel %vm1408, %v1436, %v1437
      %v1439 = vrot.slane %v1151, 1
      %v1440 = vrot.slane %v1152, 1
      %v1441 = vsel %vm1408, %v1439, %v1440
      %v1442 = vrot.slane %v1153, 1
      %v1443 = vrot.slane %v1154, 1
      %v1444 = vsel %vm1408, %v1442, %v1443
      %v1445 = vrot.slane %v1155, 1
      %v1446 = vrot.slane %v1156, 1
      %v1447 = vsel %vm1408, %v1445, %v1446
      %v1448 = vrot.slane %v1157, 1
      %v1449 = vrot.slane %v1158, 1
      %v1450 = vsel %vm1408, %v1448, %v1449
      %v1451 = vrot.slane %v1159, 1
      %v1452 = vrot.slane %v1160, 1
      %v1453 = vsel %vm1408, %v1451, %v1452
      %v1454 = vrot.slane %v1161, 1
      %v1455 = vrot.slane %v1162, 1
      %v1456 = vsel %vm1408, %v1454, %v1455
      %v1473 = vld [vmem:[%s1] sm:$0xf]
      %v1474 = vld [vmem:[%s1 + $0x4] sm:$0xf]
      %v1475 = vld [vmem:[%s1 + $0x8] sm:$0xf]
      %v1476 = vld [vmem:[%s1 + $0xc] sm:$0xf]
      %v1477 = vld [vmem:[%s1 + $0x10] sm:$0xf]
      %v1478 = vld [vmem:[%s1 + $0x14] sm:$0xf]
      %v1479 = vld [vmem:[%s1 + $0x18] sm:$0xf]
      %v1480 = vld [vmem:[%s1 + $0x1c] sm:$0xf]
      %v1481 = vld [vmem:[%s1 + $0x20] sm:$0xf]
      %v1482 = vld [vmem:[%s1 + $0x24] sm:$0xf]
      %v1483 = vld [vmem:[%s1 + $0x28] sm:$0xf]
      %v1484 = vld [vmem:[%s1 + $0x2c] sm:$0xf]
      %v1485 = vld [vmem:[%s1 + $0x30] sm:$0xf]
      %v1486 = vld [vmem:[%s1 + $0x34] sm:$0xf]
      %v1487 = vld [vmem:[%s1 + $0x38] sm:$0xf]
      %v1488 = vld [vmem:[%s1 + $0x3c] sm:$0xf]
      %v1489 = vld [vmem:[%s1 + $0x40] sm:$0xf]
      %v1490 = vld [vmem:[%s1 + $0x44] sm:$0xf]
      %v1491 = vld [vmem:[%s1 + $0x48] sm:$0xf]
      %v1492 = vld [vmem:[%s1 + $0x4c] sm:$0xf]
      %v1493 = vld [vmem:[%s1 + $0x50] sm:$0xf]
      %v1494 = vld [vmem:[%s1 + $0x54] sm:$0xf]
      %v1495 = vld [vmem:[%s1 + $0x58] sm:$0xf]
      %v1496 = vld [vmem:[%s1 + $0x5c] sm:$0xf]
      %v1497 = vld [vmem:[%s1 + $0x60] sm:$0xf]
      %v1498 = vld [vmem:[%s1 + $0x64] sm:$0xf]
      %v1499 = vld [vmem:[%s1 + $0x68] sm:$0xf]
      %v1500 = vld [vmem:[%s1 + $0x6c] sm:$0xf]
      %v1501 = vld [vmem:[%s1 + $0x70] sm:$0xf]
      %v1502 = vld [vmem:[%s1 + $0x74] sm:$0xf]
      %v1503 = vld [vmem:[%s1 + $0x78] sm:$0xf]
      %v1504 = vld [vmem:[%s1 + $0x7c] sm:$0xf]
      %v1505 = vld [vmem:[%s1 + $0x80] sm:$0xf]
      %v1506 = vld [vmem:[%s1 + $0x84] sm:$0xf]
      %v1507 = vld [vmem:[%s1 + $0x88] sm:$0xf]
      %v1508 = vld [vmem:[%s1 + $0x8c] sm:$0xf]
      %v1509 = vld [vmem:[%s1 + $0x90] sm:$0xf]
      %v1510 = vld [vmem:[%s1 + $0x94] sm:$0xf]
      %v1511 = vld [vmem:[%s1 + $0x98] sm:$0xf]
      %v1512 = vld [vmem:[%s1 + $0x9c] sm:$0xf]
      %v1513 = vld [vmem:[%s1 + $0xa0] sm:$0xf]
      %v1514 = vld [vmem:[%s1 + $0xa4] sm:$0xf]
      %v1515 = vld [vmem:[%s1 + $0xa8] sm:$0xf]
      %v1516 = vld [vmem:[%s1 + $0xac] sm:$0xf]
      %v1517 = vld [vmem:[%s1 + $0xb0] sm:$0xf]
      %v1518 = vld [vmem:[%s1 + $0xb4] sm:$0xf]
      %v1519 = vld [vmem:[%s1 + $0xb8] sm:$0xf]
      %v1520 = vld [vmem:[%s1 + $0xbc] sm:$0xf]
      %v1522 = vshrl.u32 %v1163, 16
      %v1524 = vshll.u32 %v1163, 16
      %v1526 = vrot.slane %v1524, 1
      %v1527 = vor.u32 %v1522, %v1526
      %v1529 = vshll.u32 %v1164, 16
      %v1531 = vrot.slane %v1529, 1
      %v1532 = vsel %vm1167, %v1527, %v1531
      %v1536 = vrot.slane %v1163, 1
      %v1537 = vrot.slane %v1164, 1
      %v1538 = vsel %vm1408, %v1536, %v1537
      %s1540 = scalar_lea.vmem %s1, 192
      %v1541 = vld [vmem:[%s1540] sm:$0xf]
      %v1542 = vld [vmem:[%s1540 + $0x4] sm:$0xf]
      %v1543 = vld [vmem:[%s1540 + $0x8] sm:$0xf]
      %v1544 = vld [vmem:[%s1540 + $0xc] sm:$0xf]
      %v1545 = vld [vmem:[%s1540 + $0x10] sm:$0xf]
      %v1546 = vld [vmem:[%s1540 + $0x14] sm:$0xf]
      %v1547 = vld [vmem:[%s1540 + $0x18] sm:$0xf]
      %v1548 = vld [vmem:[%s1540 + $0x1c] sm:$0xf]
      %v1549 = vld [vmem:[%s1540 + $0x20] sm:$0xf]
      %v1550 = vld [vmem:[%s1540 + $0x24] sm:$0xf]
      %v1551 = vld [vmem:[%s1540 + $0x28] sm:$0xf]
      %v1552 = vld [vmem:[%s1540 + $0x2c] sm:$0xf]
      %v1553 = vld [vmem:[%s1540 + $0x30] sm:$0xf]
      %v1554 = vld [vmem:[%s1540 + $0x34] sm:$0xf]
      %v1555 = vld [vmem:[%s1540 + $0x38] sm:$0xf]
      %v1556 = vld [vmem:[%s1540 + $0x3c] sm:$0xf]
      %v1557 = vld [vmem:[%s1540 + $0x40] sm:$0xf]
      %v1558 = vld [vmem:[%s1540 + $0x44] sm:$0xf]
      %v1559 = vld [vmem:[%s1540 + $0x48] sm:$0xf]
      %v1560 = vld [vmem:[%s1540 + $0x4c] sm:$0xf]
      %v1561 = vld [vmem:[%s1540 + $0x50] sm:$0xf]
      %v1562 = vld [vmem:[%s1540 + $0x54] sm:$0xf]
      %v1563 = vld [vmem:[%s1540 + $0x58] sm:$0xf]
      %v1564 = vld [vmem:[%s1540 + $0x5c] sm:$0xf]
      %v1565 = vld [vmem:[%s1540 + $0x60] sm:$0xf]
      %v1566 = vld [vmem:[%s1540 + $0x64] sm:$0xf]
      %v1567 = vld [vmem:[%s1540 + $0x68] sm:$0xf]
      %v1568 = vld [vmem:[%s1540 + $0x6c] sm:$0xf]
      %v1569 = vld [vmem:[%s1540 + $0x70] sm:$0xf]
      %v1570 = vld [vmem:[%s1540 + $0x74] sm:$0xf]
      %v1571 = vld [vmem:[%s1540 + $0x78] sm:$0xf]
      %v1572 = vld [vmem:[%s1540 + $0x7c] sm:$0xf]
      %v1573 = vld [vmem:[%s1540 + $0x80] sm:$0xf]
      %v1574 = vld [vmem:[%s1540 + $0x84] sm:$0xf]
      %v1575 = vld [vmem:[%s1540 + $0x88] sm:$0xf]
      %v1576 = vld [vmem:[%s1540 + $0x8c] sm:$0xf]
      %v1577 = vld [vmem:[%s1540 + $0x90] sm:$0xf]
      %v1578 = vld [vmem:[%s1540 + $0x94] sm:$0xf]
      %v1579 = vld [vmem:[%s1540 + $0x98] sm:$0xf]
      %v1580 = vld [vmem:[%s1540 + $0x9c] sm:$0xf]
      %v1581 = vld [vmem:[%s1540 + $0xa0] sm:$0xf]
      %v1582 = vld [vmem:[%s1540 + $0xa4] sm:$0xf]
      %v1583 = vld [vmem:[%s1540 + $0xa8] sm:$0xf]
      %v1584 = vld [vmem:[%s1540 + $0xac] sm:$0xf]
      %v1585 = vld [vmem:[%s1540 + $0xb0] sm:$0xf]
      %v1586 = vld [vmem:[%s1540 + $0xb4] sm:$0xf]
      %v1587 = vld [vmem:[%s1540 + $0xb8] sm:$0xf]
      %v1588 = vld [vmem:[%s1540 + $0xbc] sm:$0xf]
      %v1637 = vunpack.c.l.b16 %v1541
      %v1638 = vunpack.c.l.b16 %v1542
      %v1639 = vunpack.c.l.b16 %v1543
      %v1640 = vunpack.c.l.b16 %v1544
      %v1641 = vunpack.c.l.b16 %v1545
      %v1642 = vunpack.c.l.b16 %v1546
      %v1643 = vunpack.c.l.b16 %v1547
      %v1644 = vunpack.c.l.b16 %v1548
      %v1645 = vunpack.c.l.b16 %v1549
      %v1646 = vunpack.c.l.b16 %v1550
      %v1647 = vunpack.c.l.b16 %v1551
      %v1648 = vunpack.c.l.b16 %v1552
      %v1649 = vunpack.c.l.b16 %v1553
      %v1650 = vunpack.c.l.b16 %v1554
      %v1651 = vunpack.c.l.b16 %v1555
      %v1652 = vunpack.c.l.b16 %v1556
      %v1653 = vunpack.c.l.b16 %v1557
      %v1654 = vunpack.c.l.b16 %v1558
      %v1655 = vunpack.c.l.b16 %v1559
      %v1656 = vunpack.c.l.b16 %v1560
      %v1657 = vunpack.c.l.b16 %v1561
      %v1658 = vunpack.c.l.b16 %v1562
      %v1659 = vunpack.c.l.b16 %v1563
      %v1660 = vunpack.c.l.b16 %v1564
      %v1661 = vunpack.c.l.b16 %v1565
      %v1662 = vunpack.c.l.b16 %v1566
      %v1663 = vunpack.c.l.b16 %v1567
      %v1664 = vunpack.c.l.b16 %v1568
      %v1665 = vunpack.c.l.b16 %v1569
      %v1666 = vunpack.c.l.b16 %v1570
      %v1667 = vunpack.c.l.b16 %v1571
      %v1668 = vunpack.c.l.b16 %v1572
      %v1669 = vunpack.c.l.b16 %v1573
      %v1670 = vunpack.c.l.b16 %v1574
      %v1671 = vunpack.c.l.b16 %v1575
      %v1672 = vunpack.c.l.b16 %v1576
      %v1673 = vunpack.c.l.b16 %v1577
      %v1674 = vunpack.c.l.b16 %v1578
      %v1675 = vunpack.c.l.b16 %v1579
      %v1676 = vunpack.c.l.b16 %v1580
      %v1677 = vunpack.c.l.b16 %v1581
      %v1678 = vunpack.c.l.b16 %v1582
      %v1679 = vunpack.c.l.b16 %v1583
      %v1680 = vunpack.c.l.b16 %v1584
      %v1681 = vunpack.c.l.b16 %v1585
      %v1682 = vunpack.c.l.b16 %v1586
      %v1683 = vunpack.c.l.b16 %v1587
      %v1684 = vunpack.c.l.b16 %v1588
      %v1685 = vpack.c.b16 %v1638, %v1637
      %v1686 = vpack.c.b16 %v1640, %v1639
      %v1687 = vpack.c.b16 %v1642, %v1641
      %v1688 = vpack.c.b16 %v1644, %v1643
      %v1689 = vpack.c.b16 %v1646, %v1645
      %v1690 = vpack.c.b16 %v1648, %v1647
      %v1691 = vpack.c.b16 %v1650, %v1649
      %v1692 = vpack.c.b16 %v1652, %v1651
      %v1693 = vpack.c.b16 %v1654, %v1653
      %v1694 = vpack.c.b16 %v1656, %v1655
      %v1695 = vpack.c.b16 %v1658, %v1657
      %v1696 = vpack.c.b16 %v1660, %v1659
      %v1697 = vpack.c.b16 %v1662, %v1661
      %v1698 = vpack.c.b16 %v1664, %v1663
      %v1699 = vpack.c.b16 %v1666, %v1665
      %v1700 = vpack.c.b16 %v1668, %v1667
      %v1701 = vpack.c.b16 %v1670, %v1669
      %v1702 = vpack.c.b16 %v1672, %v1671
      %v1703 = vpack.c.b16 %v1674, %v1673
      %v1704 = vpack.c.b16 %v1676, %v1675
      %v1705 = vpack.c.b16 %v1678, %v1677
      %v1706 = vpack.c.b16 %v1680, %v1679
      %v1707 = vpack.c.b16 %v1682, %v1681
      %v1708 = vpack.c.b16 %v1684, %v1683
      %1733 = vmatprep.subr.bf16.mxu0 0
      %1734 = vmatpush1.bf16.msra.mxu0 %v1685
      %1735 = vmatprep.subr.bf16.mxu0 0
      %1736 = vmatpush1.bf16.msra.mxu0 %v1686
      %1737 = vmatprep.subr.bf16.mxu0 0
      %1738 = vmatpush1.bf16.msra.mxu0 %v1687
      %1739 = vmatprep.subr.bf16.mxu0 0
      %1740 = vmatpush1.bf16.msra.mxu0 %v1688
      %1741 = vmatprep.subr.bf16.mxu0 0
      %1742 = vmatpush1.bf16.msra.mxu0 %v1689
      %1743 = vmatprep.subr.bf16.mxu0 0
      %1744 = vmatpush1.bf16.msra.mxu0 %v1690
      %1745 = vmatprep.subr.bf16.mxu0 0
      %1746 = vmatpush1.bf16.msra.mxu0 %v1691
      %1747 = vmatprep.subr.bf16.mxu0 0
      %1748 = vmatpush1.bf16.msra.mxu0 %v1692
      %1749 = vmatprep.subr.bf16.mxu0 0
      %1750 = vmatpush1.bf16.msra.mxu0 %v1693
      %1751 = vmatprep.subr.bf16.mxu0 0
      %1752 = vmatpush1.bf16.msra.mxu0 %v1694
      %1753 = vmatprep.subr.bf16.mxu0 0
      %1754 = vmatpush1.bf16.msra.mxu0 %v1695
      %1755 = vmatprep.subr.bf16.mxu0 0
      %1756 = vmatpush1.bf16.msra.mxu0 %v1696
      %1757 = vmatprep.subr.bf16.mxu0 0
      %1758 = vmatpush1.bf16.msra.mxu0 %v1697
      %1759 = vmatprep.subr.bf16.mxu0 0
      %1760 = vmatpush1.bf16.msra.mxu0 %v1698
      %1761 = vmatprep.subr.bf16.mxu0 0
      %1762 = vmatpush1.bf16.msra.mxu0 %v1699
      %1763 = vmatprep.subr.bf16.mxu0 0
      %1764 = vmatpush1.bf16.msra.mxu0 %v1700
      %1765 = vmatprep.mubr.bf16.mxu0 %v1191
      %1766 = vmatmul.mubr.bf16.gmra.mrb[0].mxu0 %v1133
      %v1767 = vpop.f32.mrb[0].mxu0
      %v1768 = vadd.f32 0.0, %v1767
      %v1769 = vpop.f32.mrb[0].mxu0
      %v1770 = vpop.f32.mrb[0].mxu0
      %v1771 = vadd.f32 0.0, %v1770
      %v1772 = vpop.f32.mrb[0].mxu0
      %1773 = vmatprep.mubr.bf16.mxu0 %v1203
      %1774 = vmatmul.mubr.bf16.gmra.mrb[0].mxu0 %v1135
      %v1775 = vpop.f32.mrb[0].mxu0
      %v1776 = vadd.f32 0.0, %v1775
      %v1777 = vpop.f32.mrb[0].mxu0
      %v1778 = vpop.f32.mrb[0].mxu0
      %v1779 = vadd.f32 0.0, %v1778
      %v1780 = vpop.f32.mrb[0].mxu0
      %1781 = vmatprep.mubr.bf16.mxu0 %v1215
      %1782 = vmatmul.mubr.bf16.gmra.mrb[0].mxu0 %v1137
      %v1783 = vpop.f32.mrb[0].mxu0
      %v1784 = vadd.f32 0.0, %v1783
      %v1785 = vpop.f32.mrb[0].mxu0
      %v1786 = vpop.f32.mrb[0].mxu0
      %v1787 = vadd.f32 0.0, %v1786
      %v1788 = vpop.f32.mrb[0].mxu0
      %1789 = vmatprep.mubr.bf16.mxu0 %v1227
      %1790 = vmatmul.mubr.bf16.gmra.mrb[0].mxu0 %v1139
      %v1791 = vpop.f32.mrb[0].mxu0
      %v1792 = vadd.f32 0.0, %v1791
      %v1793 = vpop.f32.mrb[0].mxu0
      %v1794 = vpop.f32.mrb[0].mxu0
      %v1795 = vadd.f32 0.0, %v1794
      %v1796 = vpop.f32.mrb[0].mxu0
      %1797 = vmatprep.mubr.bf16.mxu0 %v1239
      %1798 = vmatmul.mubr.bf16.gmra.mrb[0].mxu0 %v1141
      %v1799 = vpop.f32.mrb[0].mxu0
      %v1800 = vadd.f32 0.0, %v1799
      %v1801 = vpop.f32.mrb[0].mxu0
      %v1802 = vpop.f32.mrb[0].mxu0
      %v1803 = vadd.f32 0.0, %v1802
      %v1804 = vpop.f32.mrb[0].mxu0
      %1805 = vmatprep.mubr.bf16.mxu0 %v1251
      %1806 = vmatmul.mubr.bf16.gmra.mrb[0].mxu0 %v1143
      %v1807 = vpop.f32.mrb[0].mxu0
      %v1808 = vadd.f32 0.0, %v1807
      %v1809 = vpop.f32.mrb[0].mxu0
      %v1810 = vpop.f32.mrb[0].mxu0
      %v1811 = vadd.f32 0.0, %v1810
      %v1812 = vpop.f32.mrb[0].mxu0
      %1813 = vmatprep.mubr.bf16.mxu0 %v1263
      %1814 = vmatmul.mubr.bf16.gmra.mrb[0].mxu0 %v1145
      %v1815 = vpop.f32.mrb[0].mxu0
      %v1816 = vadd.f32 0.0, %v1815
      %v1817 = vpop.f32.mrb[0].mxu0
      %v1818 = vpop.f32.mrb[0].mxu0
      %v1819 = vadd.f32 0.0, %v1818
      %v1820 = vpop.f32.mrb[0].mxu0
      %1821 = vmatprep.mubr.bf16.mxu0 %v1275
      %1822 = vmatmul.mubr.bf16.gmra.mrb[0].mxu0 %v1147
      %v1823 = vpop.f32.mrb[0].mxu0
      %v1824 = vadd.f32 0.0, %v1823
      %v1825 = vpop.f32.mrb[0].mxu0
      %v1826 = vpop.f32.mrb[0].mxu0
      %v1827 = vadd.f32 0.0, %v1826
      %v1828 = vpop.f32.mrb[0].mxu0
      %1829 = vmatprep.mubr.bf16.mxu0 %v1287
      %1830 = vmatmul.mubr.bf16.gmra.mrb[0].mxu0 %v1149
      %v1831 = vpop.f32.mrb[0].mxu0
      %v1832 = vadd.f32 0.0, %v1831
      %v1833 = vpop.f32.mrb[0].mxu0
      %v1834 = vpop.f32.mrb[0].mxu0
      %v1835 = vadd.f32 0.0, %v1834
      %v1836 = vpop.f32.mrb[0].mxu0
      %1837 = vmatprep.mubr.bf16.mxu0 %v1299
      %1838 = vmatmul.mubr.bf16.gmra.mrb[0].mxu0 %v1151
      %v1839 = vpop.f32.mrb[0].mxu0
      %v1840 = vadd.f32 0.0, %v1839
      %v1841 = vpop.f32.mrb[0].mxu0
      %v1842 = vpop.f32.mrb[0].mxu0
      %v1843 = vadd.f32 0.0, %v1842
      %v1844 = vpop.f32.mrb[0].mxu0
      %1845 = vmatprep.mubr.bf16.mxu0 %v1311
      %1846 = vmatmul.mubr.bf16.gmra.mrb[0].mxu0 %v1153
      %v1847 = vpop.f32.mrb[0].mxu0
      %v1848 = vadd.f32 0.0, %v1847
      %v1849 = vpop.f32.mrb[0].mxu0
      %v1850 = vpop.f32.mrb[0].mxu0
      %v1851 = vadd.f32 0.0, %v1850
      %v1852 = vpop.f32.mrb[0].mxu0
      %1853 = vmatprep.mubr.bf16.mxu0 %v1323
      %1854 = vmatmul.mubr.bf16.gmra.mrb[0].mxu0 %v1155
      %v1855 = vpop.f32.mrb[0].mxu0
      %v1856 = vadd.f32 0.0, %v1855
      %v1857 = vpop.f32.mrb[0].mxu0
      %v1858 = vpop.f32.mrb[0].mxu0
      %v1859 = vadd.f32 0.0, %v1858
      %v1860 = vpop.f32.mrb[0].mxu0
      %1861 = vmatprep.mubr.bf16.mxu0 %v1335
      %1862 = vmatmul.mubr.bf16.gmra.mrb[0].mxu0 %v1157
      %v1863 = vpop.f32.mrb[0].mxu0
      %v1864 = vadd.f32 0.0, %v1863
      %v1865 = vpop.f32.mrb[0].mxu0
      %v1866 = vpop.f32.mrb[0].mxu0
      %v1867 = vadd.f32 0.0, %v1866
      %v1868 = vpop.f32.mrb[0].mxu0
      %1869 = vmatprep.mubr.bf16.mxu0 %v1347
      %1870 = vmatmul.mubr.bf16.gmra.mrb[0].mxu0 %v1159
      %v1871 = vpop.f32.mrb[0].mxu0
      %v1872 = vadd.f32 0.0, %v1871
      %v1873 = vpop.f32.mrb[0].mxu0
      %v1874 = vpop.f32.mrb[0].mxu0
      %v1875 = vadd.f32 0.0, %v1874
      %v1876 = vpop.f32.mrb[0].mxu0
      %1877 = vmatprep.mubr.bf16.mxu0 %v1359
      %1878 = vmatmul.mubr.bf16.gmra.mrb[0].mxu0 %v1161
      %v1879 = vpop.f32.mrb[0].mxu0
      %v1880 = vadd.f32 0.0, %v1879
      %v1881 = vpop.f32.mrb[0].mxu0
      %v1882 = vpop.f32.mrb[0].mxu0
      %v1883 = vadd.f32 0.0, %v1882
      %v1884 = vpop.f32.mrb[0].mxu0
      %1885 = vmatprep.mubr.bf16.mxu0 %v1532
      %1886 = vmatmul.mubr.bf16.gmra.mrb[0].mxu0 %v1163
      %v1887 = vpop.f32.mrb[0].mxu0
      %v1888 = vadd.f32 0.0, %v1887
      %v1889 = vpop.f32.mrb[0].mxu0
      %v1890 = vpop.f32.mrb[0].mxu0
      %v1891 = vadd.f32 0.0, %v1890
      %v1892 = vpop.f32.mrb[0].mxu0
      %1893 = vdwg.mxu0
      %1894 = vmatprep.subr.bf16.mxu0 0
      %1895 = vmatpush1.bf16.msra.mxu0 %v1701
      %1896 = vmatprep.subr.bf16.mxu0 0
      %1897 = vmatpush1.bf16.msra.mxu0 %v1702
      %1898 = vmatprep.subr.bf16.mxu0 0
      %1899 = vmatpush1.bf16.msra.mxu0 %v1703
      %1900 = vmatprep.subr.bf16.mxu0 0
      %1901 = vmatpush1.bf16.msra.mxu0 %v1704
      %1902 = vmatprep.subr.bf16.mxu0 0
      %1903 = vmatpush1.bf16.msra.mxu0 %v1705
      %1904 = vmatprep.subr.bf16.mxu0 0
      %1905 = vmatpush1.bf16.msra.mxu0 %v1706
      %1906 = vmatprep.subr.bf16.mxu0 0
      %1907 = vmatpush1.bf16.msra.mxu0 %v1707
      %1908 = vmatprep.subr.bf16.mxu0 0
      %1909 = vmatpush1.bf16.msra.mxu0 %v1708
      %1910 = vmatprep.subr.bf16.mxu0 0
      %1911 = vmatpush1.bf16.msra.mxu0 0
      %1912 = vmatprep.subr.bf16.mxu0 0
      %1913 = vmatpush1.bf16.msra.mxu0 0
      %1914 = vmatprep.subr.bf16.mxu0 0
      %1915 = vmatpush1.bf16.msra.mxu0 0
      %1916 = vmatprep.subr.bf16.mxu0 0
      %1917 = vmatpush1.bf16.msra.mxu0 0
      %1918 = vmatprep.subr.bf16.mxu0 0
      %1919 = vmatpush1.bf16.msra.mxu0 0
      %1920 = vmatprep.subr.bf16.mxu0 0
      %1921 = vmatpush1.bf16.msra.mxu0 0
      %1922 = vmatprep.subr.bf16.mxu0 0
      %1923 = vmatpush1.bf16.msra.mxu0 0
      %1924 = vmatprep.subr.bf16.mxu0 0
      %1925 = vmatpush1.bf16.msra.mxu0 0
      %1926 = vmatprep.mubr.bf16.mxu0 0
      %1927 = vmatmul.mubr.bf16.gmra.mrb[0].mxu0 %v1414
      %v1928 = vpop.f32.mrb[0].mxu0
      %v1929 = vadd.f32 %v1768, %v1928
      %v1930 = vpop.f32.mrb[0].mxu0
      %v1931 = vpop.f32.mrb[0].mxu0
      %v1932 = vadd.f32 %v1771, %v1931
      %v1933 = vpop.f32.mrb[0].mxu0
      %1934 = vmatprep.mubr.bf16.mxu0 0
      %1935 = vmatmul.mubr.bf16.gmra.mrb[0].mxu0 %v1417
      %v1936 = vpop.f32.mrb[0].mxu0
      %v1937 = vadd.f32 %v1776, %v1936
      %v1938 = vpop.f32.mrb[0].mxu0
      %v1939 = vpop.f32.mrb[0].mxu0
      %v1940 = vadd.f32 %v1779, %v1939
      %v1941 = vpop.f32.mrb[0].mxu0
      %1942 = vmatprep.mubr.bf16.mxu0 0
      %1943 = vmatmul.mubr.bf16.gmra.mrb[0].mxu0 %v1420
      %v1944 = vpop.f32.mrb[0].mxu0
      %v1945 = vadd.f32 %v1784, %v1944
      %v1946 = vpop.f32.mrb[0].mxu0
      %v1947 = vpop.f32.mrb[0].mxu0
      %v1948 = vadd.f32 %v1787, %v1947
      %v1949 = vpop.f32.mrb[0].mxu0
      %1950 = vmatprep.mubr.bf16.mxu0 0
      %1951 = vmatmul.mubr.bf16.gmra.mrb[0].mxu0 %v1423
      %v1952 = vpop.f32.mrb[0].mxu0
      %v1953 = vadd.f32 %v1792, %v1952
      %v1954 = vpop.f32.mrb[0].mxu0
      %v1955 = vpop.f32.mrb[0].mxu0
      %v1956 = vadd.f32 %v1795, %v1955
      %v1957 = vpop.f32.mrb[0].mxu0
      %1958 = vmatprep.mubr.bf16.mxu0 0
      %1959 = vmatmul.mubr.bf16.gmra.mrb[0].mxu0 %v1426
      %v1960 = vpop.f32.mrb[0].mxu0
      %v1961 = vadd.f32 %v1800, %v1960
      %v1962 = vpop.f32.mrb[0].mxu0
      %v1963 = vpop.f32.mrb[0].mxu0
      %v1964 = vadd.f32 %v1803, %v1963
      %v1965 = vpop.f32.mrb[0].mxu0
      %1966 = vmatprep.mubr.bf16.mxu0 0
      %1967 = vmatmul.mubr.bf16.gmra.mrb[0].mxu0 %v1429
      %v1968 = vpop.f32.mrb[0].mxu0
      %v1969 = vadd.f32 %v1808, %v1968
      %v1970 = vpop.f32.mrb[0].mxu0
      %v1971 = vpop.f32.mrb[0].mxu0
      %v1972 = vadd.f32 %v1811, %v1971
      %v1973 = vpop.f32.mrb[0].mxu0
      %1974 = vmatprep.mubr.bf16.mxu0 0
      %1975 = vmatmul.mubr.bf16.gmra.mrb[0].mxu0 %v1432
      %v1976 = vpop.f32.mrb[0].mxu0
      %v1977 = vadd.f32 %v1816, %v1976
      %v1978 = vpop.f32.mrb[0].mxu0
      %v1979 = vpop.f32.mrb[0].mxu0
      %v1980 = vadd.f32 %v1819, %v1979
      %v1981 = vpop.f32.mrb[0].mxu0
      %1982 = vmatprep.mubr.bf16.mxu0 0
      %1983 = vmatmul.mubr.bf16.gmra.mrb[0].mxu0 %v1435
      %v1984 = vpop.f32.mrb[0].mxu0
      %v1985 = vadd.f32 %v1824, %v1984
      %v1986 = vpop.f32.mrb[0].mxu0
      %v1987 = vpop.f32.mrb[0].mxu0
      %v1988 = vadd.f32 %v1827, %v1987
      %v1989 = vpop.f32.mrb[0].mxu0
      %1990 = vmatprep.mubr.bf16.mxu0 0
      %1991 = vmatmul.mubr.bf16.gmra.mrb[0].mxu0 %v1438
      %v1992 = vpop.f32.mrb[0].mxu0
      %v1993 = vadd.f32 %v1832, %v1992
      %v1994 = vpop.f32.mrb[0].mxu0
      %v1995 = vpop.f32.mrb[0].mxu0
      %v1996 = vadd.f32 %v1835, %v1995
      %v1997 = vpop.f32.mrb[0].mxu0
      %1998 = vmatprep.mubr.bf16.mxu0 0
      %1999 = vmatmul.mubr.bf16.gmra.mrb[0].mxu0 %v1441
      %v2000 = vpop.f32.mrb[0].mxu0
      %v2001 = vadd.f32 %v1840, %v2000
      %v2002 = vpop.f32.mrb[0].mxu0
      %v2003 = vpop.f32.mrb[0].mxu0
      %v2004 = vadd.f32 %v1843, %v2003
      %v2005 = vpop.f32.mrb[0].mxu0
      %2006 = vmatprep.mubr.bf16.mxu0 0
      %2007 = vmatmul.mubr.bf16.gmra.mrb[0].mxu0 %v1444
      %v2008 = vpop.f32.mrb[0].mxu0
      %v2009 = vadd.f32 %v1848, %v2008
      %v2010 = vpop.f32.mrb[0].mxu0
      %v2011 = vpop.f32.mrb[0].mxu0
      %v2012 = vadd.f32 %v1851, %v2011
      %v2013 = vpop.f32.mrb[0].mxu0
      %2014 = vmatprep.mubr.bf16.mxu0 0
      %2015 = vmatmul.mubr.bf16.gmra.mrb[0].mxu0 %v1447
      %v2016 = vpop.f32.mrb[0].mxu0
      %v2017 = vadd.f32 %v1856, %v2016
      %v2018 = vpop.f32.mrb[0].mxu0
      %v2019 = vpop.f32.mrb[0].mxu0
      %v2020 = vadd.f32 %v1859, %v2019
      %v2021 = vpop.f32.mrb[0].mxu0
      %2022 = vmatprep.mubr.bf16.mxu0 0
      %2023 = vmatmul.mubr.bf16.gmra.mrb[0].mxu0 %v1450
      %v2024 = vpop.f32.mrb[0].mxu0
      %v2025 = vadd.f32 %v1864, %v2024
      %v2026 = vpop.f32.mrb[0].mxu0
      %v2027 = vpop.f32.mrb[0].mxu0
      %v2028 = vadd.f32 %v1867, %v2027
      %v2029 = vpop.f32.mrb[0].mxu0
      %2030 = vmatprep.mubr.bf16.mxu0 0
      %2031 = vmatmul.mubr.bf16.gmra.mrb[0].mxu0 %v1453
      %v2032 = vpop.f32.mrb[0].mxu0
      %v2033 = vadd.f32 %v1872, %v2032
      %v2034 = vpop.f32.mrb[0].mxu0
      %v2035 = vpop.f32.mrb[0].mxu0
      %v2036 = vadd.f32 %v1875, %v2035
      %v2037 = vpop.f32.mrb[0].mxu0
      %2038 = vmatprep.mubr.bf16.mxu0 0
      %2039 = vmatmul.mubr.bf16.gmra.mrb[0].mxu0 %v1456
      %v2040 = vpop.f32.mrb[0].mxu0
      %v2041 = vadd.f32 %v1880, %v2040
      %v2042 = vpop.f32.mrb[0].mxu0
      %v2043 = vpop.f32.mrb[0].mxu0
      %v2044 = vadd.f32 %v1883, %v2043
      %v2045 = vpop.f32.mrb[0].mxu0
      %2046 = vmatprep.mubr.bf16.mxu0 0
      %2047 = vmatmul.mubr.bf16.gmra.mrb[0].mxu0 %v1538
      %v2048 = vpop.f32.mrb[0].mxu0
      %v2049 = vadd.f32 %v1888, %v2048
      %v2050 = vpop.f32.mrb[0].mxu0
      %v2051 = vpop.f32.mrb[0].mxu0
      %v2052 = vadd.f32 %v1891, %v2051
      %v2053 = vpop.f32.mrb[0].mxu0
      %2054 = vdwg.mxu0
      %v2103 = vunpack.c.l.b16 %v1473
      %v2104 = vunpack.c.l.b16 %v1474
      %v2105 = vunpack.c.l.b16 %v1475
      %v2106 = vunpack.c.l.b16 %v1476
      %v2107 = vunpack.c.l.b16 %v1477
      %v2108 = vunpack.c.l.b16 %v1478
      %v2109 = vunpack.c.l.b16 %v1479
      %v2110 = vunpack.c.l.b16 %v1480
      %v2111 = vunpack.c.l.b16 %v1481
      %v2112 = vunpack.c.l.b16 %v1482
      %v2113 = vunpack.c.l.b16 %v1483
      %v2114 = vunpack.c.l.b16 %v1484
      %v2115 = vunpack.c.l.b16 %v1485
      %v2116 = vunpack.c.l.b16 %v1486
      %v2117 = vunpack.c.l.b16 %v1487
      %v2118 = vunpack.c.l.b16 %v1488
      %v2119 = vunpack.c.l.b16 %v1489
      %v2120 = vunpack.c.l.b16 %v1490
      %v2121 = vunpack.c.l.b16 %v1491
      %v2122 = vunpack.c.l.b16 %v1492
      %v2123 = vunpack.c.l.b16 %v1493
      %v2124 = vunpack.c.l.b16 %v1494
      %v2125 = vunpack.c.l.b16 %v1495
      %v2126 = vunpack.c.l.b16 %v1496
      %v2127 = vunpack.c.l.b16 %v1497
      %v2128 = vunpack.c.l.b16 %v1498
      %v2129 = vunpack.c.l.b16 %v1499
      %v2130 = vunpack.c.l.b16 %v1500
      %v2131 = vunpack.c.l.b16 %v1501
      %v2132 = vunpack.c.l.b16 %v1502
      %v2133 = vunpack.c.l.b16 %v1503
      %v2134 = vunpack.c.l.b16 %v1504
      %v2135 = vunpack.c.l.b16 %v1505
      %v2136 = vunpack.c.l.b16 %v1506
      %v2137 = vunpack.c.l.b16 %v1507
      %v2138 = vunpack.c.l.b16 %v1508
      %v2139 = vunpack.c.l.b16 %v1509
      %v2140 = vunpack.c.l.b16 %v1510
      %v2141 = vunpack.c.l.b16 %v1511
      %v2142 = vunpack.c.l.b16 %v1512
      %v2143 = vunpack.c.l.b16 %v1513
      %v2144 = vunpack.c.l.b16 %v1514
      %v2145 = vunpack.c.l.b16 %v1515
      %v2146 = vunpack.c.l.b16 %v1516
      %v2147 = vunpack.c.l.b16 %v1517
      %v2148 = vunpack.c.l.b16 %v1518
      %v2149 = vunpack.c.l.b16 %v1519
      %v2150 = vunpack.c.l.b16 %v1520
      %v2151 = vpack.c.b16 %v2104, %v2103
      %v2152 = vpack.c.b16 %v2106, %v2105
      %v2153 = vpack.c.b16 %v2108, %v2107
      %v2154 = vpack.c.b16 %v2110, %v2109
      %v2155 = vpack.c.b16 %v2112, %v2111
      %v2156 = vpack.c.b16 %v2114, %v2113
      %v2157 = vpack.c.b16 %v2116, %v2115
      %v2158 = vpack.c.b16 %v2118, %v2117
      %v2159 = vpack.c.b16 %v2120, %v2119
      %v2160 = vpack.c.b16 %v2122, %v2121
      %v2161 = vpack.c.b16 %v2124, %v2123
      %v2162 = vpack.c.b16 %v2126, %v2125
      %v2163 = vpack.c.b16 %v2128, %v2127
      %v2164 = vpack.c.b16 %v2130, %v2129
      %v2165 = vpack.c.b16 %v2132, %v2131
      %v2166 = vpack.c.b16 %v2134, %v2133
      %v2167 = vpack.c.b16 %v2136, %v2135
      %v2168 = vpack.c.b16 %v2138, %v2137
      %v2169 = vpack.c.b16 %v2140, %v2139
      %v2170 = vpack.c.b16 %v2142, %v2141
      %v2171 = vpack.c.b16 %v2144, %v2143
      %v2172 = vpack.c.b16 %v2146, %v2145
      %v2173 = vpack.c.b16 %v2148, %v2147
      %v2174 = vpack.c.b16 %v2150, %v2149
      %2199 = vmatprep.subr.bf16.mxu0 0
      %2200 = vmatpush1.bf16.msra.mxu0 %v2151
      %2201 = vmatprep.subr.bf16.mxu0 0
      %2202 = vmatpush1.bf16.msra.mxu0 %v2152
      %2203 = vmatprep.subr.bf16.mxu0 0
      %2204 = vmatpush1.bf16.msra.mxu0 %v2153
      %2205 = vmatprep.subr.bf16.mxu0 0
      %2206 = vmatpush1.bf16.msra.mxu0 %v2154
      %2207 = vmatprep.subr.bf16.mxu0 0
      %2208 = vmatpush1.bf16.msra.mxu0 %v2155
      %2209 = vmatprep.subr.bf16.mxu0 0
      %2210 = vmatpush1.bf16.msra.mxu0 %v2156
      %2211 = vmatprep.subr.bf16.mxu0 0
      %2212 = vmatpush1.bf16.msra.mxu0 %v2157
      %2213 = vmatprep.subr.bf16.mxu0 0
      %2214 = vmatpush1.bf16.msra.mxu0 %v2158
      %2215 = vmatprep.subr.bf16.mxu0 0
      %2216 = vmatpush1.bf16.msra.mxu0 %v2159
      %2217 = vmatprep.subr.bf16.mxu0 0
      %2218 = vmatpush1.bf16.msra.mxu0 %v2160
      %2219 = vmatprep.subr.bf16.mxu0 0
      %2220 = vmatpush1.bf16.msra.mxu0 %v2161
      %2221 = vmatprep.subr.bf16.mxu0 0
      %2222 = vmatpush1.bf16.msra.mxu0 %v2162
      %2223 = vmatprep.subr.bf16.mxu0 0
      %2224 = vmatpush1.bf16.msra.mxu0 %v2163
      %2225 = vmatprep.subr.bf16.mxu0 0
      %2226 = vmatpush1.bf16.msra.mxu0 %v2164
      %2227 = vmatprep.subr.bf16.mxu0 0
      %2228 = vmatpush1.bf16.msra.mxu0 %v2165
      %2229 = vmatprep.subr.bf16.mxu0 0
      %2230 = vmatpush1.bf16.msra.mxu0 %v2166
      %2231 = vmatprep.mubr.bf16.mxu0 %v1179
      %2232 = vmatmul.mubr.bf16.gmra.mrb[0].mxu0 %v1131
      %v2233 = vpop.f32.mrb[0].mxu0
      %v2234 = vadd.f32 %v1929, %v2233
      %v2235 = vpop.f32.mrb[0].mxu0
      %v2236 = vpop.f32.mrb[0].mxu0
      %v2237 = vadd.f32 %v1932, %v2236
      %v2238 = vpop.f32.mrb[0].mxu0
      %2239 = vmatprep.mubr.bf16.mxu0 %v1191
      %2240 = vmatmul.mubr.bf16.gmra.mrb[0].mxu0 %v1133
      %v2241 = vpop.f32.mrb[0].mxu0
      %v2242 = vadd.f32 %v1937, %v2241
      %v2243 = vpop.f32.mrb[0].mxu0
      %v2244 = vpop.f32.mrb[0].mxu0
      %v2245 = vadd.f32 %v1940, %v2244
      %v2246 = vpop.f32.mrb[0].mxu0
      %2247 = vmatprep.mubr.bf16.mxu0 %v1203
      %2248 = vmatmul.mubr.bf16.gmra.mrb[0].mxu0 %v1135
      %v2249 = vpop.f32.mrb[0].mxu0
      %v2250 = vadd.f32 %v1945, %v2249
      %v2251 = vpop.f32.mrb[0].mxu0
      %v2252 = vpop.f32.mrb[0].mxu0
      %v2253 = vadd.f32 %v1948, %v2252
      %v2254 = vpop.f32.mrb[0].mxu0
      %2255 = vmatprep.mubr.bf16.mxu0 %v1215
      %2256 = vmatmul.mubr.bf16.gmra.mrb[0].mxu0 %v1137
      %v2257 = vpop.f32.mrb[0].mxu0
      %v2258 = vadd.f32 %v1953, %v2257
      %v2259 = vpop.f32.mrb[0].mxu0
      %v2260 = vpop.f32.mrb[0].mxu0
      %v2261 = vadd.f32 %v1956, %v2260
      %v2262 = vpop.f32.mrb[0].mxu0
      %2263 = vmatprep.mubr.bf16.mxu0 %v1227
      %2264 = vmatmul.mubr.bf16.gmra.mrb[0].mxu0 %v1139
      %v2265 = vpop.f32.mrb[0].mxu0
      %v2266 = vadd.f32 %v1961, %v2265
      %v2267 = vpop.f32.mrb[0].mxu0
      %v2268 = vpop.f32.mrb[0].mxu0
      %v2269 = vadd.f32 %v1964, %v2268
      %v2270 = vpop.f32.mrb[0].mxu0
      %2271 = vmatprep.mubr.bf16.mxu0 %v1239
      %2272 = vmatmul.mubr.bf16.gmra.mrb[0].mxu0 %v1141
      %v2273 = vpop.f32.mrb[0].mxu0
      %v2274 = vadd.f32 %v1969, %v2273
      %v2275 = vpop.f32.mrb[0].mxu0
      %v2276 = vpop.f32.mrb[0].mxu0
      %v2277 = vadd.f32 %v1972, %v2276
      %v2278 = vpop.f32.mrb[0].mxu0
      %2279 = vmatprep.mubr.bf16.mxu0 %v1251
      %2280 = vmatmul.mubr.bf16.gmra.mrb[0].mxu0 %v1143
      %v2281 = vpop.f32.mrb[0].mxu0
      %v2282 = vadd.f32 %v1977, %v2281
      %v2283 = vpop.f32.mrb[0].mxu0
      %v2284 = vpop.f32.mrb[0].mxu0
      %v2285 = vadd.f32 %v1980, %v2284
      %v2286 = vpop.f32.mrb[0].mxu0
      %2287 = vmatprep.mubr.bf16.mxu0 %v1263
      %2288 = vmatmul.mubr.bf16.gmra.mrb[0].mxu0 %v1145
      %v2289 = vpop.f32.mrb[0].mxu0
      %v2290 = vadd.f32 %v1985, %v2289
      %v2291 = vpop.f32.mrb[0].mxu0
      %v2292 = vpop.f32.mrb[0].mxu0
      %v2293 = vadd.f32 %v1988, %v2292
      %v2294 = vpop.f32.mrb[0].mxu0
      %2295 = vmatprep.mubr.bf16.mxu0 %v1275
      %2296 = vmatmul.mubr.bf16.gmra.mrb[0].mxu0 %v1147
      %v2297 = vpop.f32.mrb[0].mxu0
      %v2298 = vadd.f32 %v1993, %v2297
      %v2299 = vpop.f32.mrb[0].mxu0
      %v2300 = vpop.f32.mrb[0].mxu0
      %v2301 = vadd.f32 %v1996, %v2300
      %v2302 = vpop.f32.mrb[0].mxu0
      %2303 = vmatprep.mubr.bf16.mxu0 %v1287
      %2304 = vmatmul.mubr.bf16.gmra.mrb[0].mxu0 %v1149
      %v2305 = vpop.f32.mrb[0].mxu0
      %v2306 = vadd.f32 %v2001, %v2305
      %v2307 = vpop.f32.mrb[0].mxu0
      %v2308 = vpop.f32.mrb[0].mxu0
      %v2309 = vadd.f32 %v2004, %v2308
      %v2310 = vpop.f32.mrb[0].mxu0
      %2311 = vmatprep.mubr.bf16.mxu0 %v1299
      %2312 = vmatmul.mubr.bf16.gmra.mrb[0].mxu0 %v1151
      %v2313 = vpop.f32.mrb[0].mxu0
      %v2314 = vadd.f32 %v2009, %v2313
      %v2315 = vpop.f32.mrb[0].mxu0
      %v2316 = vpop.f32.mrb[0].mxu0
      %v2317 = vadd.f32 %v2012, %v2316
      %v2318 = vpop.f32.mrb[0].mxu0
      %2319 = vmatprep.mubr.bf16.mxu0 %v1311
      %2320 = vmatmul.mubr.bf16.gmra.mrb[0].mxu0 %v1153
      %v2321 = vpop.f32.mrb[0].mxu0
      %v2322 = vadd.f32 %v2017, %v2321
      %v2323 = vpop.f32.mrb[0].mxu0
      %v2324 = vpop.f32.mrb[0].mxu0
      %v2325 = vadd.f32 %v2020, %v2324
      %v2326 = vpop.f32.mrb[0].mxu0
      %2327 = vmatprep.mubr.bf16.mxu0 %v1323
      %2328 = vmatmul.mubr.bf16.gmra.mrb[0].mxu0 %v1155
      %v2329 = vpop.f32.mrb[0].mxu0
      %v2330 = vadd.f32 %v2025, %v2329
      %v2331 = vpop.f32.mrb[0].mxu0
      %v2332 = vpop.f32.mrb[0].mxu0
      %v2333 = vadd.f32 %v2028, %v2332
      %v2334 = vpop.f32.mrb[0].mxu0
      %2335 = vmatprep.mubr.bf16.mxu0 %v1335
      %2336 = vmatmul.mubr.bf16.gmra.mrb[0].mxu0 %v1157
      %v2337 = vpop.f32.mrb[0].mxu0
      %v2338 = vadd.f32 %v2033, %v2337
      %v2339 = vpop.f32.mrb[0].mxu0
      %v2340 = vpop.f32.mrb[0].mxu0
      %v2341 = vadd.f32 %v2036, %v2340
      %v2342 = vpop.f32.mrb[0].mxu0
      %2343 = vmatprep.mubr.bf16.mxu0 %v1347
      %2344 = vmatmul.mubr.bf16.gmra.mrb[0].mxu0 %v1159
      %v2345 = vpop.f32.mrb[0].mxu0
      %v2346 = vadd.f32 %v2041, %v2345
      %v2347 = vpop.f32.mrb[0].mxu0
      %v2348 = vpop.f32.mrb[0].mxu0
      %v2349 = vadd.f32 %v2044, %v2348
      %v2350 = vpop.f32.mrb[0].mxu0
      %2351 = vmatprep.mubr.bf16.mxu0 %v1359
      %2352 = vmatmul.mubr.bf16.gmra.mrb[0].mxu0 %v1161
      %v2353 = vpop.f32.mrb[0].mxu0
      %v2354 = vadd.f32 %v2049, %v2353
      %v2355 = vpop.f32.mrb[0].mxu0
      %v2356 = vpop.f32.mrb[0].mxu0
      %v2357 = vadd.f32 %v2052, %v2356
      %v2358 = vpop.f32.mrb[0].mxu0
      %2359 = vdwg.mxu0
      %2360 = vmatprep.subr.bf16.mxu0 0
      %2361 = vmatpush1.bf16.msra.mxu0 %v2167
      %2362 = vmatprep.subr.bf16.mxu0 0
      %2363 = vmatpush1.bf16.msra.mxu0 %v2168
      %2364 = vmatprep.subr.bf16.mxu0 0
      %2365 = vmatpush1.bf16.msra.mxu0 %v2169
      %2366 = vmatprep.subr.bf16.mxu0 0
      %2367 = vmatpush1.bf16.msra.mxu0 %v2170
      %2368 = vmatprep.subr.bf16.mxu0 0
      %2369 = vmatpush1.bf16.msra.mxu0 %v2171
      %2370 = vmatprep.subr.bf16.mxu0 0
      %2371 = vmatpush1.bf16.msra.mxu0 %v2172
      %2372 = vmatprep.subr.bf16.mxu0 0
      %2373 = vmatpush1.bf16.msra.mxu0 %v2173
      %2374 = vmatprep.subr.bf16.mxu0 0
      %2375 = vmatpush1.bf16.msra.mxu0 %v2174
      %2376 = vmatprep.subr.bf16.mxu0 0
      %2377 = vmatpush1.bf16.msra.mxu0 0
      %2378 = vmatprep.subr.bf16.mxu0 0
      %2379 = vmatpush1.bf16.msra.mxu0 0
      %2380 = vmatprep.subr.bf16.mxu0 0
      %2381 = vmatpush1.bf16.msra.mxu0 0
      %2382 = vmatprep.subr.bf16.mxu0 0
      %2383 = vmatpush1.bf16.msra.mxu0 0
      %2384 = vmatprep.subr.bf16.mxu0 0
      %2385 = vmatpush1.bf16.msra.mxu0 0
      %2386 = vmatprep.subr.bf16.mxu0 0
      %2387 = vmatpush1.bf16.msra.mxu0 0
      %2388 = vmatprep.subr.bf16.mxu0 0
      %2389 = vmatpush1.bf16.msra.mxu0 0
      %2390 = vmatprep.subr.bf16.mxu0 0
      %2391 = vmatpush1.bf16.msra.mxu0 0
      %2392 = vmatprep.mubr.bf16.mxu0 0
      %2393 = vmatmul.mubr.bf16.gmra.mrb[0].mxu0 %v1411
      %v2394 = vpop.f32.mrb[0].mxu0
      %v2395 = vadd.f32 %v2234, %v2394
      %v2396 = vpop.f32.mrb[0].mxu0
      %v2397 = vpop.f32.mrb[0].mxu0
      %v2398 = vadd.f32 %v2237, %v2397
      %v2399 = vpop.f32.mrb[0].mxu0
      %2400 = vmatprep.mubr.bf16.mxu0 0
      %2401 = vmatmul.mubr.bf16.gmra.mrb[0].mxu0 %v1414
      %v2402 = vpop.f32.mrb[0].mxu0
      %v2403 = vadd.f32 %v2242, %v2402
      %v2404 = vpop.f32.mrb[0].mxu0
      %v2405 = vpop.f32.mrb[0].mxu0
      %v2406 = vadd.f32 %v2245, %v2405
      %v2407 = vpop.f32.mrb[0].mxu0
      %2408 = vmatprep.mubr.bf16.mxu0 0
      %2409 = vmatmul.mubr.bf16.gmra.mrb[0].mxu0 %v1417
      %v2410 = vpop.f32.mrb[0].mxu0
      %v2411 = vadd.f32 %v2250, %v2410
      %v2412 = vpop.f32.mrb[0].mxu0
      %v2413 = vpop.f32.mrb[0].mxu0
      %v2414 = vadd.f32 %v2253, %v2413
      %v2415 = vpop.f32.mrb[0].mxu0
      %2416 = vmatprep.mubr.bf16.mxu0 0
      %2417 = vmatmul.mubr.bf16.gmra.mrb[0].mxu0 %v1420
      %v2418 = vpop.f32.mrb[0].mxu0
      %v2419 = vadd.f32 %v2258, %v2418
      %v2420 = vpop.f32.mrb[0].mxu0
      %v2421 = vpop.f32.mrb[0].mxu0
      %v2422 = vadd.f32 %v2261, %v2421
      %v2423 = vpop.f32.mrb[0].mxu0
      %2424 = vmatprep.mubr.bf16.mxu0 0
      %2425 = vmatmul.mubr.bf16.gmra.mrb[0].mxu0 %v1423
      %v2426 = vpop.f32.mrb[0].mxu0
      %v2427 = vadd.f32 %v2266, %v2426
      %v2428 = vpop.f32.mrb[0].mxu0
      %v2429 = vpop.f32.mrb[0].mxu0
      %v2430 = vadd.f32 %v2269, %v2429
      %v2431 = vpop.f32.mrb[0].mxu0
      %2432 = vmatprep.mubr.bf16.mxu0 0
      %2433 = vmatmul.mubr.bf16.gmra.mrb[0].mxu0 %v1426
      %v2434 = vpop.f32.mrb[0].mxu0
      %v2435 = vadd.f32 %v2274, %v2434
      %v2436 = vpop.f32.mrb[0].mxu0
      %v2437 = vpop.f32.mrb[0].mxu0
      %v2438 = vadd.f32 %v2277, %v2437
      %v2439 = vpop.f32.mrb[0].mxu0
      %2440 = vmatprep.mubr.bf16.mxu0 0
      %2441 = vmatmul.mubr.bf16.gmra.mrb[0].mxu0 %v1429
      %v2442 = vpop.f32.mrb[0].mxu0
      %v2443 = vadd.f32 %v2282, %v2442
      %v2444 = vpop.f32.mrb[0].mxu0
      %v2445 = vpop.f32.mrb[0].mxu0
      %v2446 = vadd.f32 %v2285, %v2445
      %v2447 = vpop.f32.mrb[0].mxu0
      %2448 = vmatprep.mubr.bf16.mxu0 0
      %2449 = vmatmul.mubr.bf16.gmra.mrb[0].mxu0 %v1432
      %v2450 = vpop.f32.mrb[0].mxu0
      %v2451 = vadd.f32 %v2290, %v2450
      %v2452 = vpop.f32.mrb[0].mxu0
      %v2453 = vpop.f32.mrb[0].mxu0
      %v2454 = vadd.f32 %v2293, %v2453
      %v2455 = vpop.f32.mrb[0].mxu0
      %2456 = vmatprep.mubr.bf16.mxu0 0
      %2457 = vmatmul.mubr.bf16.gmra.mrb[0].mxu0 %v1435
      %v2458 = vpop.f32.mrb[0].mxu0
      %v2459 = vadd.f32 %v2298, %v2458
      %v2460 = vpop.f32.mrb[0].mxu0
      %v2461 = vpop.f32.mrb[0].mxu0
      %v2462 = vadd.f32 %v2301, %v2461
      %v2463 = vpop.f32.mrb[0].mxu0
      %2464 = vmatprep.mubr.bf16.mxu0 0
      %2465 = vmatmul.mubr.bf16.gmra.mrb[0].mxu0 %v1438
      %v2466 = vpop.f32.mrb[0].mxu0
      %v2467 = vadd.f32 %v2306, %v2466
      %v2468 = vpop.f32.mrb[0].mxu0
      %v2469 = vpop.f32.mrb[0].mxu0
      %v2470 = vadd.f32 %v2309, %v2469
      %v2471 = vpop.f32.mrb[0].mxu0
      %2472 = vmatprep.mubr.bf16.mxu0 0
      %2473 = vmatmul.mubr.bf16.gmra.mrb[0].mxu0 %v1441
      %v2474 = vpop.f32.mrb[0].mxu0
      %v2475 = vadd.f32 %v2314, %v2474
      %v2476 = vpop.f32.mrb[0].mxu0
      %v2477 = vpop.f32.mrb[0].mxu0
      %v2478 = vadd.f32 %v2317, %v2477
      %v2479 = vpop.f32.mrb[0].mxu0
      %2480 = vmatprep.mubr.bf16.mxu0 0
      %2481 = vmatmul.mubr.bf16.gmra.mrb[0].mxu0 %v1444
      %v2482 = vpop.f32.mrb[0].mxu0
      %v2483 = vadd.f32 %v2322, %v2482
      %v2484 = vpop.f32.mrb[0].mxu0
      %v2485 = vpop.f32.mrb[0].mxu0
      %v2486 = vadd.f32 %v2325, %v2485
      %v2487 = vpop.f32.mrb[0].mxu0
      %2488 = vmatprep.mubr.bf16.mxu0 0
      %2489 = vmatmul.mubr.bf16.gmra.mrb[0].mxu0 %v1447
      %v2490 = vpop.f32.mrb[0].mxu0
      %v2491 = vadd.f32 %v2330, %v2490
      %v2492 = vpop.f32.mrb[0].mxu0
      %v2493 = vpop.f32.mrb[0].mxu0
      %v2494 = vadd.f32 %v2333, %v2493
      %v2495 = vpop.f32.mrb[0].mxu0
      %2496 = vmatprep.mubr.bf16.mxu0 0
      %2497 = vmatmul.mubr.bf16.gmra.mrb[0].mxu0 %v1450
      %v2498 = vpop.f32.mrb[0].mxu0
      %v2499 = vadd.f32 %v2338, %v2498
      %v2500 = vpop.f32.mrb[0].mxu0
      %v2501 = vpop.f32.mrb[0].mxu0
      %v2502 = vadd.f32 %v2341, %v2501
      %v2503 = vpop.f32.mrb[0].mxu0
      %2504 = vmatprep.mubr.bf16.mxu0 0
      %2505 = vmatmul.mubr.bf16.gmra.mrb[0].mxu0 %v1453
      %v2506 = vpop.f32.mrb[0].mxu0
      %v2507 = vadd.f32 %v2346, %v2506
      %v2508 = vpop.f32.mrb[0].mxu0
      %v2509 = vpop.f32.mrb[0].mxu0
      %v2510 = vadd.f32 %v2349, %v2509
      %v2511 = vpop.f32.mrb[0].mxu0
      %2512 = vmatprep.mubr.bf16.mxu0 0
      %2513 = vmatmul.mubr.bf16.gmra.mrb[0].mxu0 %v1456
      %v2514 = vpop.f32.mrb[0].mxu0
      %v2515 = vadd.f32 %v2354, %v2514
      %v2516 = vpop.f32.mrb[0].mxu0
      %v2517 = vpop.f32.mrb[0].mxu0
      %v2518 = vadd.f32 %v2357, %v2517
      %v2519 = vpop.f32.mrb[0].mxu0
      %2520 = vdwg.mxu0
      %v2522 = vshrl.u32 %v1165, 16
      %v2524 = vshll.u32 %v1165, 16
      %v2526 = vrot.slane %v2524, 1
      %v2527 = vor.u32 %v2522, %v2526
      %v2529 = vshll.u32 %v1166, 16
      %v2531 = vrot.slane %v2529, 1
      %v2532 = vsel %vm1167, %v2527, %v2531
      %v2536 = vrot.slane %v1165, 1
      %v2537 = vrot.slane %v1166, 1
      %v2538 = vsel %vm1408, %v2536, %v2537
      %s2540 = scalar_lea.vmem %s1, 384
      %v2541 = vld [vmem:[%s2540] sm:$0xf]
      %v2542 = vld [vmem:[%s2540 + $0x4] sm:$0xf]
      %v2543 = vld [vmem:[%s2540 + $0x8] sm:$0xf]
      %v2544 = vld [vmem:[%s2540 + $0xc] sm:$0xf]
      %v2545 = vld [vmem:[%s2540 + $0x10] sm:$0xf]
      %v2546 = vld [vmem:[%s2540 + $0x14] sm:$0xf]
      %v2547 = vld [vmem:[%s2540 + $0x18] sm:$0xf]
      %v2548 = vld [vmem:[%s2540 + $0x1c] sm:$0xf]
      %v2549 = vld [vmem:[%s2540 + $0x20] sm:$0xf]
      %v2550 = vld [vmem:[%s2540 + $0x24] sm:$0xf]
      %v2551 = vld [vmem:[%s2540 + $0x28] sm:$0xf]
      %v2552 = vld [vmem:[%s2540 + $0x2c] sm:$0xf]
      %v2553 = vld [vmem:[%s2540 + $0x30] sm:$0xf]
      %v2554 = vld [vmem:[%s2540 + $0x34] sm:$0xf]
      %v2555 = vld [vmem:[%s2540 + $0x38] sm:$0xf]
      %v2556 = vld [vmem:[%s2540 + $0x3c] sm:$0xf]
      %v2557 = vld [vmem:[%s2540 + $0x40] sm:$0xf]
      %v2558 = vld [vmem:[%s2540 + $0x44] sm:$0xf]
      %v2559 = vld [vmem:[%s2540 + $0x48] sm:$0xf]
      %v2560 = vld [vmem:[%s2540 + $0x4c] sm:$0xf]
      %v2561 = vld [vmem:[%s2540 + $0x50] sm:$0xf]
      %v2562 = vld [vmem:[%s2540 + $0x54] sm:$0xf]
      %v2563 = vld [vmem:[%s2540 + $0x58] sm:$0xf]
      %v2564 = vld [vmem:[%s2540 + $0x5c] sm:$0xf]
      %v2565 = vld [vmem:[%s2540 + $0x60] sm:$0xf]
      %v2566 = vld [vmem:[%s2540 + $0x64] sm:$0xf]
      %v2567 = vld [vmem:[%s2540 + $0x68] sm:$0xf]
      %v2568 = vld [vmem:[%s2540 + $0x6c] sm:$0xf]
      %v2569 = vld [vmem:[%s2540 + $0x70] sm:$0xf]
      %v2570 = vld [vmem:[%s2540 + $0x74] sm:$0xf]
      %v2571 = vld [vmem:[%s2540 + $0x78] sm:$0xf]
      %v2572 = vld [vmem:[%s2540 + $0x7c] sm:$0xf]
      %v2573 = vld [vmem:[%s2540 + $0x80] sm:$0xf]
      %v2574 = vld [vmem:[%s2540 + $0x84] sm:$0xf]
      %v2575 = vld [vmem:[%s2540 + $0x88] sm:$0xf]
      %v2576 = vld [vmem:[%s2540 + $0x8c] sm:$0xf]
      %v2577 = vld [vmem:[%s2540 + $0x90] sm:$0xf]
      %v2578 = vld [vmem:[%s2540 + $0x94] sm:$0xf]
      %v2579 = vld [vmem:[%s2540 + $0x98] sm:$0xf]
      %v2580 = vld [vmem:[%s2540 + $0x9c] sm:$0xf]
      %v2581 = vld [vmem:[%s2540 + $0xa0] sm:$0xf]
      %v2582 = vld [vmem:[%s2540 + $0xa4] sm:$0xf]
      %v2583 = vld [vmem:[%s2540 + $0xa8] sm:$0xf]
      %v2584 = vld [vmem:[%s2540 + $0xac] sm:$0xf]
      %v2585 = vld [vmem:[%s2540 + $0xb0] sm:$0xf]
      %v2586 = vld [vmem:[%s2540 + $0xb4] sm:$0xf]
      %v2587 = vld [vmem:[%s2540 + $0xb8] sm:$0xf]
      %v2588 = vld [vmem:[%s2540 + $0xbc] sm:$0xf]
      %v2637 = vunpack.c.l.b16 %v2541
      %v2638 = vunpack.c.l.b16 %v2542
      %v2639 = vunpack.c.l.b16 %v2543
      %v2640 = vunpack.c.l.b16 %v2544
      %v2641 = vunpack.c.l.b16 %v2545
      %v2642 = vunpack.c.l.b16 %v2546
      %v2643 = vunpack.c.l.b16 %v2547
      %v2644 = vunpack.c.l.b16 %v2548
      %v2645 = vunpack.c.l.b16 %v2549
      %v2646 = vunpack.c.l.b16 %v2550
      %v2647 = vunpack.c.l.b16 %v2551
      %v2648 = vunpack.c.l.b16 %v2552
      %v2649 = vunpack.c.l.b16 %v2553
      %v2650 = vunpack.c.l.b16 %v2554
      %v2651 = vunpack.c.l.b16 %v2555
      %v2652 = vunpack.c.l.b16 %v2556
      %v2653 = vunpack.c.l.b16 %v2557
      %v2654 = vunpack.c.l.b16 %v2558
      %v2655 = vunpack.c.l.b16 %v2559
      %v2656 = vunpack.c.l.b16 %v2560
      %v2657 = vunpack.c.l.b16 %v2561
      %v2658 = vunpack.c.l.b16 %v2562
      %v2659 = vunpack.c.l.b16 %v2563
      %v2660 = vunpack.c.l.b16 %v2564
      %v2661 = vunpack.c.l.b16 %v2565
      %v2662 = vunpack.c.l.b16 %v2566
      %v2663 = vunpack.c.l.b16 %v2567
      %v2664 = vunpack.c.l.b16 %v2568
      %v2665 = vunpack.c.l.b16 %v2569
      %v2666 = vunpack.c.l.b16 %v2570
      %v2667 = vunpack.c.l.b16 %v2571
      %v2668 = vunpack.c.l.b16 %v2572
      %v2669 = vunpack.c.l.b16 %v2573
      %v2670 = vunpack.c.l.b16 %v2574
      %v2671 = vunpack.c.l.b16 %v2575
      %v2672 = vunpack.c.l.b16 %v2576
      %v2673 = vunpack.c.l.b16 %v2577
      %v2674 = vunpack.c.l.b16 %v2578
      %v2675 = vunpack.c.l.b16 %v2579
      %v2676 = vunpack.c.l.b16 %v2580
      %v2677 = vunpack.c.l.b16 %v2581
      %v2678 = vunpack.c.l.b16 %v2582
      %v2679 = vunpack.c.l.b16 %v2583
      %v2680 = vunpack.c.l.b16 %v2584
      %v2681 = vunpack.c.l.b16 %v2585
      %v2682 = vunpack.c.l.b16 %v2586
      %v2683 = vunpack.c.l.b16 %v2587
      %v2684 = vunpack.c.l.b16 %v2588
      %v2685 = vpack.c.b16 %v2638, %v2637
      %v2686 = vpack.c.b16 %v2640, %v2639
      %v2687 = vpack.c.b16 %v2642, %v2641
      %v2688 = vpack.c.b16 %v2644, %v2643
      %v2689 = vpack.c.b16 %v2646, %v2645
      %v2690 = vpack.c.b16 %v2648, %v2647
      %v2691 = vpack.c.b16 %v2650, %v2649
      %v2692 = vpack.c.b16 %v2652, %v2651
      %v2693 = vpack.c.b16 %v2654, %v2653
      %v2694 = vpack.c.b16 %v2656, %v2655
      %v2695 = vpack.c.b16 %v2658, %v2657
      %v2696 = vpack.c.b16 %v2660, %v2659
      %v2697 = vpack.c.b16 %v2662, %v2661
      %v2698 = vpack.c.b16 %v2664, %v2663
      %v2699 = vpack.c.b16 %v2666, %v2665
      %v2700 = vpack.c.b16 %v2668, %v2667
      %v2701 = vpack.c.b16 %v2670, %v2669
      %v2702 = vpack.c.b16 %v2672, %v2671
      %v2703 = vpack.c.b16 %v2674, %v2673
      %v2704 = vpack.c.b16 %v2676, %v2675
      %v2705 = vpack.c.b16 %v2678, %v2677
      %v2706 = vpack.c.b16 %v2680, %v2679
      %v2707 = vpack.c.b16 %v2682, %v2681
      %v2708 = vpack.c.b16 %v2684, %v2683
      %2733 = vmatprep.subr.bf16.mxu0 0
      %2734 = vmatpush1.bf16.msra.mxu0 %v2685
      %2735 = vmatprep.subr.bf16.mxu0 0
      %2736 = vmatpush1.bf16.msra.mxu0 %v2686
      %2737 = vmatprep.subr.bf16.mxu0 0
      %2738 = vmatpush1.bf16.msra.mxu0 %v2687
      %2739 = vmatprep.subr.bf16.mxu0 0
      %2740 = vmatpush1.bf16.msra.mxu0 %v2688
      %2741 = vmatprep.subr.bf16.mxu0 0
      %2742 = vmatpush1.bf16.msra.mxu0 %v2689
      %2743 = vmatprep.subr.bf16.mxu0 0
      %2744 = vmatpush1.bf16.msra.mxu0 %v2690
      %2745 = vmatprep.subr.bf16.mxu0 0
      %2746 = vmatpush1.bf16.msra.mxu0 %v2691
      %2747 = vmatprep.subr.bf16.mxu0 0
      %2748 = vmatpush1.bf16.msra.mxu0 %v2692
      %2749 = vmatprep.subr.bf16.mxu0 0
      %2750 = vmatpush1.bf16.msra.mxu0 %v2693
      %2751 = vmatprep.subr.bf16.mxu0 0
      %2752 = vmatpush1.bf16.msra.mxu0 %v2694
      %2753 = vmatprep.subr.bf16.mxu0 0
      %2754 = vmatpush1.bf16.msra.mxu0 %v2695
      %2755 = vmatprep.subr.bf16.mxu0 0
      %2756 = vmatpush1.bf16.msra.mxu0 %v2696
      %2757 = vmatprep.subr.bf16.mxu0 0
      %2758 = vmatpush1.bf16.msra.mxu0 %v2697
      %2759 = vmatprep.subr.bf16.mxu0 0
      %2760 = vmatpush1.bf16.msra.mxu0 %v2698
      %2761 = vmatprep.subr.bf16.mxu0 0
      %2762 = vmatpush1.bf16.msra.mxu0 %v2699
      %2763 = vmatprep.subr.bf16.mxu0 0
      %2764 = vmatpush1.bf16.msra.mxu0 %v2700
      %2765 = vmatprep.mubr.bf16.mxu0 %v1203
      %2766 = vmatmul.mubr.bf16.gmra.mrb[0].mxu0 %v1135
      %v2767 = vpop.f32.mrb[0].mxu0
      %v2768 = vadd.f32 0.0, %v2767
      %v2769 = vpop.f32.mrb[0].mxu0
      %v2770 = vpop.f32.mrb[0].mxu0
      %v2771 = vadd.f32 0.0, %v2770
      %v2772 = vpop.f32.mrb[0].mxu0
      %2773 = vmatprep.mubr.bf16.mxu0 %v1215
      %2774 = vmatmul.mubr.bf16.gmra.mrb[0].mxu0 %v1137
      %v2775 = vpop.f32.mrb[0].mxu0
      %v2776 = vadd.f32 0.0, %v2775
      %v2777 = vpop.f32.mrb[0].mxu0
      %v2778 = vpop.f32.mrb[0].mxu0
      %v2779 = vadd.f32 0.0, %v2778
      %v2780 = vpop.f32.mrb[0].mxu0
      %2781 = vmatprep.mubr.bf16.mxu0 %v1227
      %2782 = vmatmul.mubr.bf16.gmra.mrb[0].mxu0 %v1139
      %v2783 = vpop.f32.mrb[0].mxu0
      %v2784 = vadd.f32 0.0, %v2783
      %v2785 = vpop.f32.mrb[0].mxu0
      %v2786 = vpop.f32.mrb[0].mxu0
      %v2787 = vadd.f32 0.0, %v2786
      %v2788 = vpop.f32.mrb[0].mxu0
      %2789 = vmatprep.mubr.bf16.mxu0 %v1239
      %2790 = vmatmul.mubr.bf16.gmra.mrb[0].mxu0 %v1141
      %v2791 = vpop.f32.mrb[0].mxu0
      %v2792 = vadd.f32 0.0, %v2791
      %v2793 = vpop.f32.mrb[0].mxu0
      %v2794 = vpop.f32.mrb[0].mxu0
      %v2795 = vadd.f32 0.0, %v2794
      %v2796 = vpop.f32.mrb[0].mxu0
      %2797 = vmatprep.mubr.bf16.mxu0 %v1251
      %2798 = vmatmul.mubr.bf16.gmra.mrb[0].mxu0 %v1143
      %v2799 = vpop.f32.mrb[0].mxu0
      %v2800 = vadd.f32 0.0, %v2799
      %v2801 = vpop.f32.mrb[0].mxu0
      %v2802 = vpop.f32.mrb[0].mxu0
      %v2803 = vadd.f32 0.0, %v2802
      %v2804 = vpop.f32.mrb[0].mxu0
      %2805 = vmatprep.mubr.bf16.mxu0 %v1263
      %2806 = vmatmul.mubr.bf16.gmra.mrb[0].mxu0 %v1145
      %v2807 = vpop.f32.mrb[0].mxu0
      %v2808 = vadd.f32 0.0, %v2807
      %v2809 = vpop.f32.mrb[0].mxu0
      %v2810 = vpop.f32.mrb[0].mxu0
      %v2811 = vadd.f32 0.0, %v2810
      %v2812 = vpop.f32.mrb[0].mxu0
      %2813 = vmatprep.mubr.bf16.mxu0 %v1275
      %2814 = vmatmul.mubr.bf16.gmra.mrb[0].mxu0 %v1147
      %v2815 = vpop.f32.mrb[0].mxu0
      %v2816 = vadd.f32 0.0, %v2815
      %v2817 = vpop.f32.mrb[0].mxu0
      %v2818 = vpop.f32.mrb[0].mxu0
      %v2819 = vadd.f32 0.0, %v2818
      %v2820 = vpop.f32.mrb[0].mxu0
      %2821 = vmatprep.mubr.bf16.mxu0 %v1287
      %2822 = vmatmul.mubr.bf16.gmra.mrb[0].mxu0 %v1149
      %v2823 = vpop.f32.mrb[0].mxu0
      %v2824 = vadd.f32 0.0, %v2823
      %v2825 = vpop.f32.mrb[0].mxu0
      %v2826 = vpop.f32.mrb[0].mxu0
      %v2827 = vadd.f32 0.0, %v2826
      %v2828 = vpop.f32.mrb[0].mxu0
      %2829 = vmatprep.mubr.bf16.mxu0 %v1299
      %2830 = vmatmul.mubr.bf16.gmra.mrb[0].mxu0 %v1151
      %v2831 = vpop.f32.mrb[0].mxu0
      %v2832 = vadd.f32 0.0, %v2831
      %v2833 = vpop.f32.mrb[0].mxu0
      %v2834 = vpop.f32.mrb[0].mxu0
      %v2835 = vadd.f32 0.0, %v2834
      %v2836 = vpop.f32.mrb[0].mxu0
      %2837 = vmatprep.mubr.bf16.mxu0 %v1311
      %2838 = vmatmul.mubr.bf16.gmra.mrb[0].mxu0 %v1153
      %v2839 = vpop.f32.mrb[0].mxu0
      %v2840 = vadd.f32 0.0, %v2839
      %v2841 = vpop.f32.mrb[0].mxu0
      %v2842 = vpop.f32.mrb[0].mxu0
      %v2843 = vadd.f32 0.0, %v2842
      %v2844 = vpop.f32.mrb[0].mxu0
      %2845 = vmatprep.mubr.bf16.mxu0 %v1323
      %2846 = vmatmul.mubr.bf16.gmra.mrb[0].mxu0 %v1155
      %v2847 = vpop.f32.mrb[0].mxu0
      %v2848 = vadd.f32 0.0, %v2847
      %v2849 = vpop.f32.mrb[0].mxu0
      %v2850 = vpop.f32.mrb[0].mxu0
      %v2851 = vadd.f32 0.0, %v2850
      %v2852 = vpop.f32.mrb[0].mxu0
      %2853 = vmatprep.mubr.bf16.mxu0 %v1335
      %2854 = vmatmul.mubr.bf16.gmra.mrb[0].mxu0 %v1157
      %v2855 = vpop.f32.mrb[0].mxu0
      %v2856 = vadd.f32 0.0, %v2855
      %v2857 = vpop.f32.mrb[0].mxu0
      %v2858 = vpop.f32.mrb[0].mxu0
      %v2859 = vadd.f32 0.0, %v2858
      %v2860 = vpop.f32.mrb[0].mxu0
      %2861 = vmatprep.mubr.bf16.mxu0 %v1347
      %2862 = vmatmul.mubr.bf16.gmra.mrb[0].mxu0 %v1159
      %v2863 = vpop.f32.mrb[0].mxu0
      %v2864 = vadd.f32 0.0, %v2863
      %v2865 = vpop.f32.mrb[0].mxu0
      %v2866 = vpop.f32.mrb[0].mxu0
      %v2867 = vadd.f32 0.0, %v2866
      %v2868 = vpop.f32.mrb[0].mxu0
      %2869 = vmatprep.mubr.bf16.mxu0 %v1359
      %2870 = vmatmul.mubr.bf16.gmra.mrb[0].mxu0 %v1161
      %v2871 = vpop.f32.mrb[0].mxu0
      %v2872 = vadd.f32 0.0, %v2871
      %v2873 = vpop.f32.mrb[0].mxu0
      %v2874 = vpop.f32.mrb[0].mxu0
      %v2875 = vadd.f32 0.0, %v2874
      %v2876 = vpop.f32.mrb[0].mxu0
      %2877 = vmatprep.mubr.bf16.mxu0 %v1532
      %2878 = vmatmul.mubr.bf16.gmra.mrb[0].mxu0 %v1163
      %v2879 = vpop.f32.mrb[0].mxu0
      %v2880 = vadd.f32 0.0, %v2879
      %v2881 = vpop.f32.mrb[0].mxu0
      %v2882 = vpop.f32.mrb[0].mxu0
      %v2883 = vadd.f32 0.0, %v2882
      %v2884 = vpop.f32.mrb[0].mxu0
      %2885 = vmatprep.mubr.bf16.mxu0 %v2532
      %2886 = vmatmul.mubr.bf16.gmra.mrb[0].mxu0 %v1165
      %v2887 = vpop.f32.mrb[0].mxu0
      %v2888 = vadd.f32 0.0, %v2887
      %v2889 = vpop.f32.mrb[0].mxu0
      %v2890 = vpop.f32.mrb[0].mxu0
      %v2891 = vadd.f32 0.0, %v2890
      %v2892 = vpop.f32.mrb[0].mxu0
      %2893 = vdwg.mxu0
      %2894 = vmatprep.subr.bf16.mxu0 0
      %2895 = vmatpush1.bf16.msra.mxu0 %v2701
      %2896 = vmatprep.subr.bf16.mxu0 0
      %2897 = vmatpush1.bf16.msra.mxu0 %v2702
      %2898 = vmatprep.subr.bf16.mxu0 0
      %2899 = vmatpush1.bf16.msra.mxu0 %v2703
      %2900 = vmatprep.subr.bf16.mxu0 0
      %2901 = vmatpush1.bf16.msra.mxu0 %v2704
      %2902 = vmatprep.subr.bf16.mxu0 0
      %2903 = vmatpush1.bf16.msra.mxu0 %v2705
      %2904 = vmatprep.subr.bf16.mxu0 0
      %2905 = vmatpush1.bf16.msra.mxu0 %v2706
      %2906 = vmatprep.subr.bf16.mxu0 0
      %2907 = vmatpush1.bf16.msra.mxu0 %v2707
      %2908 = vmatprep.subr.bf16.mxu0 0
      %2909 = vmatpush1.bf16.msra.mxu0 %v2708
      %2910 = vmatprep.subr.bf16.mxu0 0
      %2911 = vmatpush1.bf16.msra.mxu0 0
      %2912 = vmatprep.subr.bf16.mxu0 0
      %2913 = vmatpush1.bf16.msra.mxu0 0
      %2914 = vmatprep.subr.bf16.mxu0 0
      %2915 = vmatpush1.bf16.msra.mxu0 0
      %2916 = vmatprep.subr.bf16.mxu0 0
      %2917 = vmatpush1.bf16.msra.mxu0 0
      %2918 = vmatprep.subr.bf16.mxu0 0
      %2919 = vmatpush1.bf16.msra.mxu0 0
      %2920 = vmatprep.subr.bf16.mxu0 0
      %2921 = vmatpush1.bf16.msra.mxu0 0
      %2922 = vmatprep.subr.bf16.mxu0 0
      %2923 = vmatpush1.bf16.msra.mxu0 0
      %2924 = vmatprep.subr.bf16.mxu0 0
      %2925 = vmatpush1.bf16.msra.mxu0 0
      %2926 = vmatprep.mubr.bf16.mxu0 0
      %2927 = vmatmul.mubr.bf16.gmra.mrb[0].mxu0 %v1417
      %v2928 = vpop.f32.mrb[0].mxu0
      %v2929 = vadd.f32 %v2768, %v2928
      %v2930 = vpop.f32.mrb[0].mxu0
      %v2931 = vpop.f32.mrb[0].mxu0
      %v2932 = vadd.f32 %v2771, %v2931
      %v2933 = vpop.f32.mrb[0].mxu0
      %2934 = vmatprep.mubr.bf16.mxu0 0
      %2935 = vmatmul.mubr.bf16.gmra.mrb[0].mxu0 %v1420
      %v2936 = vpop.f32.mrb[0].mxu0
      %v2937 = vadd.f32 %v2776, %v2936
      %v2938 = vpop.f32.mrb[0].mxu0
      %v2939 = vpop.f32.mrb[0].mxu0
      %v2940 = vadd.f32 %v2779, %v2939
      %v2941 = vpop.f32.mrb[0].mxu0
      %2942 = vmatprep.mubr.bf16.mxu0 0
      %2943 = vmatmul.mubr.bf16.gmra.mrb[0].mxu0 %v1423
      %v2944 = vpop.f32.mrb[0].mxu0
      %v2945 = vadd.f32 %v2784, %v2944
      %v2946 = vpop.f32.mrb[0].mxu0
      %v2947 = vpop.f32.mrb[0].mxu0
      %v2948 = vadd.f32 %v2787, %v2947
      %v2949 = vpop.f32.mrb[0].mxu0
      %2950 = vmatprep.mubr.bf16.mxu0 0
      %2951 = vmatmul.mubr.bf16.gmra.mrb[0].mxu0 %v1426
      %v2952 = vpop.f32.mrb[0].mxu0
      %v2953 = vadd.f32 %v2792, %v2952
      %v2954 = vpop.f32.mrb[0].mxu0
      %v2955 = vpop.f32.mrb[0].mxu0
      %v2956 = vadd.f32 %v2795, %v2955
      %v2957 = vpop.f32.mrb[0].mxu0
      %2958 = vmatprep.mubr.bf16.mxu0 0
      %2959 = vmatmul.mubr.bf16.gmra.mrb[0].mxu0 %v1429
      %v2960 = vpop.f32.mrb[0].mxu0
      %v2961 = vadd.f32 %v2800, %v2960
      %v2962 = vpop.f32.mrb[0].mxu0
      %v2963 = vpop.f32.mrb[0].mxu0
      %v2964 = vadd.f32 %v2803, %v2963
      %v2965 = vpop.f32.mrb[0].mxu0
      %2966 = vmatprep.mubr.bf16.mxu0 0
      %2967 = vmatmul.mubr.bf16.gmra.mrb[0].mxu0 %v1432
      %v2968 = vpop.f32.mrb[0].mxu0
      %v2969 = vadd.f32 %v2808, %v2968
      %v2970 = vpop.f32.mrb[0].mxu0
      %v2971 = vpop.f32.mrb[0].mxu0
      %v2972 = vadd.f32 %v2811, %v2971
      %v2973 = vpop.f32.mrb[0].mxu0
      %2974 = vmatprep.mubr.bf16.mxu0 0
      %2975 = vmatmul.mubr.bf16.gmra.mrb[0].mxu0 %v1435
      %v2976 = vpop.f32.mrb[0].mxu0
      %v2977 = vadd.f32 %v2816, %v2976
      %v2978 = vpop.f32.mrb[0].mxu0
      %v2979 = vpop.f32.mrb[0].mxu0
      %v2980 = vadd.f32 %v2819, %v2979
      %v2981 = vpop.f32.mrb[0].mxu0
      %2982 = vmatprep.mubr.bf16.mxu0 0
      %2983 = vmatmul.mubr.bf16.gmra.mrb[0].mxu0 %v1438
      %v2984 = vpop.f32.mrb[0].mxu0
      %v2985 = vadd.f32 %v2824, %v2984
      %v2986 = vpop.f32.mrb[0].mxu0
      %v2987 = vpop.f32.mrb[0].mxu0
      %v2988 = vadd.f32 %v2827, %v2987
      %v2989 = vpop.f32.mrb[0].mxu0
      %2990 = vmatprep.mubr.bf16.mxu0 0
      %2991 = vmatmul.mubr.bf16.gmra.mrb[0].mxu0 %v1441
      %v2992 = vpop.f32.mrb[0].mxu0
      %v2993 = vadd.f32 %v2832, %v2992
      %v2994 = vpop.f32.mrb[0].mxu0
      %v2995 = vpop.f32.mrb[0].mxu0
      %v2996 = vadd.f32 %v2835, %v2995
      %v2997 = vpop.f32.mrb[0].mxu0
      %2998 = vmatprep.mubr.bf16.mxu0 0
      %2999 = vmatmul.mubr.bf16.gmra.mrb[0].mxu0 %v1444
      %v3000 = vpop.f32.mrb[0].mxu0
      %v3001 = vadd.f32 %v2840, %v3000
      %v3002 = vpop.f32.mrb[0].mxu0
      %v3003 = vpop.f32.mrb[0].mxu0
      %v3004 = vadd.f32 %v2843, %v3003
      %v3005 = vpop.f32.mrb[0].mxu0
      %3006 = vmatprep.mubr.bf16.mxu0 0
      %3007 = vmatmul.mubr.bf16.gmra.mrb[0].mxu0 %v1447
      %v3008 = vpop.f32.mrb[0].mxu0
      %v3009 = vadd.f32 %v2848, %v3008
      %v3010 = vpop.f32.mrb[0].mxu0
      %v3011 = vpop.f32.mrb[0].mxu0
      %v3012 = vadd.f32 %v2851, %v3011
      %v3013 = vpop.f32.mrb[0].mxu0
      %3014 = vmatprep.mubr.bf16.mxu0 0
      %3015 = vmatmul.mubr.bf16.gmra.mrb[0].mxu0 %v1450
      %v3016 = vpop.f32.mrb[0].mxu0
      %v3017 = vadd.f32 %v2856, %v3016
      %v3018 = vpop.f32.mrb[0].mxu0
      %v3019 = vpop.f32.mrb[0].mxu0
      %v3020 = vadd.f32 %v2859, %v3019
      %v3021 = vpop.f32.mrb[0].mxu0
      %3022 = vmatprep.mubr.bf16.mxu0 0
      %3023 = vmatmul.mubr.bf16.gmra.mrb[0].mxu0 %v1453
      %v3024 = vpop.f32.mrb[0].mxu0
      %v3025 = vadd.f32 %v2864, %v3024
      %v3026 = vpop.f32.mrb[0].mxu0
      %v3027 = vpop.f32.mrb[0].mxu0
      %v3028 = vadd.f32 %v2867, %v3027
      %v3029 = vpop.f32.mrb[0].mxu0
      %3030 = vmatprep.mubr.bf16.mxu0 0
      %3031 = vmatmul.mubr.bf16.gmra.mrb[0].mxu0 %v1456
      %v3032 = vpop.f32.mrb[0].mxu0
      %v3033 = vadd.f32 %v2872, %v3032
      %v3034 = vpop.f32.mrb[0].mxu0
      %v3035 = vpop.f32.mrb[0].mxu0
      %v3036 = vadd.f32 %v2875, %v3035
      %v3037 = vpop.f32.mrb[0].mxu0
      %3038 = vmatprep.mubr.bf16.mxu0 0
      %3039 = vmatmul.mubr.bf16.gmra.mrb[0].mxu0 %v1538
      %v3040 = vpop.f32.mrb[0].mxu0
      %v3041 = vadd.f32 %v2880, %v3040
      %v3042 = vpop.f32.mrb[0].mxu0
      %v3043 = vpop.f32.mrb[0].mxu0
      %v3044 = vadd.f32 %v2883, %v3043
      %v3045 = vpop.f32.mrb[0].mxu0
      %3046 = vmatprep.mubr.bf16.mxu0 0
      %3047 = vmatmul.mubr.bf16.gmra.mrb[0].mxu0 %v2538
      %v3048 = vpop.f32.mrb[0].mxu0
      %v3049 = vadd.f32 %v2888, %v3048
      %v3050 = vpop.f32.mrb[0].mxu0
      %v3051 = vpop.f32.mrb[0].mxu0
      %v3052 = vadd.f32 %v2891, %v3051
      %v3053 = vpop.f32.mrb[0].mxu0
      %3054 = vdwg.mxu0
      %v3055 = vadd.f32 %v2395, %v2929
      %v3056 = vadd.f32 %v2398, %v2932
      %v3057 = vadd.f32 %v2403, %v2937
      %v3058 = vadd.f32 %v2406, %v2940
      %v3059 = vadd.f32 %v2411, %v2945
      %v3060 = vadd.f32 %v2414, %v2948
      %v3061 = vadd.f32 %v2419, %v2953
      %v3062 = vadd.f32 %v2422, %v2956
      %v3063 = vadd.f32 %v2427, %v2961
      %v3064 = vadd.f32 %v2430, %v2964
      %v3065 = vadd.f32 %v2435, %v2969
      %v3066 = vadd.f32 %v2438, %v2972
      %v3067 = vadd.f32 %v2443, %v2977
      %v3068 = vadd.f32 %v2446, %v2980
      %v3069 = vadd.f32 %v2451, %v2985
      %v3070 = vadd.f32 %v2454, %v2988
      %v3071 = vadd.f32 %v2459, %v2993
      %v3072 = vadd.f32 %v2462, %v2996
      %v3073 = vadd.f32 %v2467, %v3001
      %v3074 = vadd.f32 %v2470, %v3004
      %v3075 = vadd.f32 %v2475, %v3009
      %v3076 = vadd.f32 %v2478, %v3012
      %v3077 = vadd.f32 %v2483, %v3017
      %v3078 = vadd.f32 %v2486, %v3020
      %v3079 = vadd.f32 %v2491, %v3025
      %v3080 = vadd.f32 %v2494, %v3028
      %v3081 = vadd.f32 %v2499, %v3033
      %v3082 = vadd.f32 %v2502, %v3036
      %v3083 = vadd.f32 %v2507, %v3041
      %v3084 = vadd.f32 %v2510, %v3044
      %v3085 = vadd.f32 %v2515, %v3049
      %v3086 = vadd.f32 %v2518, %v3052
      %v3087 = vadd.f32 %v3055, %v3056
      %v3088 = vadd.f32 %v3087, %v3057
      %v3089 = vadd.f32 %v3088, %v3058
      %v3090 = vadd.f32 %v3089, %v3059
      %v3091 = vadd.f32 %v3090, %v3060
      %v3092 = vadd.f32 %v3091, %v3061
      %v3093 = vadd.f32 %v3092, %v3062
      %v3094 = vadd.f32 %v3093, %v3063
      %v3095 = vadd.f32 %v3094, %v3064
      %v3096 = vadd.f32 %v3095, %v3065
      %v3097 = vadd.f32 %v3096, %v3066
      %v3098 = vadd.f32 %v3097, %v3067
      %v3099 = vadd.f32 %v3098, %v3068
      %v3100 = vadd.f32 %v3099, %v3069
      %v3101 = vadd.f32 %v3100, %v3070
      %v3102 = vadd.f32 %v3101, %v3071
      %v3103 = vadd.f32 %v3102, %v3072
      %v3104 = vadd.f32 %v3103, %v3073
      %v3105 = vadd.f32 %v3104, %v3074
      %v3106 = vadd.f32 %v3105, %v3075
      %v3107 = vadd.f32 %v3106, %v3076
      %v3108 = vadd.f32 %v3107, %v3077
      %v3109 = vadd.f32 %v3108, %v3078
      %v3110 = vadd.f32 %v3109, %v3079
      %v3111 = vadd.f32 %v3110, %v3080
      %v3112 = vadd.f32 %v3111, %v3081
      %v3113 = vadd.f32 %v3112, %v3082
      %v3114 = vadd.f32 %v3113, %v3083
      %v3115 = vadd.f32 %v3114, %v3084
      %v3116 = vadd.f32 %v3115, %v3085
      %v3117 = vadd.f32 %v3116, %v3086
      %v3118 = vrot.slane %v3117, 4
      %v3119 = vadd.f32 %v3117, %v3118
      %v3120 = vrot.slane %v3119, 2
      %v3121 = vadd.f32 %v3119, %v3120
      %v3122 = vrot.slane %v3121, 1
      %v3123 = vadd.f32 %v3121, %v3122
      %v3124 = vmul.f32 %v3055, %v3055
      %v3125 = vmul.f32 %v3056, %v3056
      %v3126 = vmul.f32 %v3057, %v3057
      %v3127 = vmul.f32 %v3058, %v3058
      %v3128 = vmul.f32 %v3059, %v3059
      %v3129 = vmul.f32 %v3060, %v3060
      %v3130 = vmul.f32 %v3061, %v3061
      %v3131 = vmul.f32 %v3062, %v3062
      %v3132 = vmul.f32 %v3063, %v3063
      %v3133 = vmul.f32 %v3064, %v3064
      %v3134 = vmul.f32 %v3065, %v3065
      %v3135 = vmul.f32 %v3066, %v3066
      %v3136 = vmul.f32 %v3067, %v3067
      %v3137 = vmul.f32 %v3068, %v3068
      %v3138 = vmul.f32 %v3069, %v3069
      %v3139 = vmul.f32 %v3070, %v3070
      %v3140 = vmul.f32 %v3071, %v3071
      %v3141 = vmul.f32 %v3072, %v3072
      %v3142 = vmul.f32 %v3073, %v3073
      %v3143 = vmul.f32 %v3074, %v3074
      %v3144 = vmul.f32 %v3075, %v3075
      %v3145 = vmul.f32 %v3076, %v3076
      %v3146 = vmul.f32 %v3077, %v3077
      %v3147 = vmul.f32 %v3078, %v3078
      %v3148 = vmul.f32 %v3079, %v3079
      %v3149 = vmul.f32 %v3080, %v3080
      %v3150 = vmul.f32 %v3081, %v3081
      %v3151 = vmul.f32 %v3082, %v3082
      %v3152 = vmul.f32 %v3083, %v3083
      %v3153 = vmul.f32 %v3084, %v3084
      %v3154 = vmul.f32 %v3085, %v3085
      %v3155 = vmul.f32 %v3086, %v3086
      %v3156 = vadd.f32 %v3124, %v3125
      %v3157 = vadd.f32 %v3156, %v3126
      %v3158 = vadd.f32 %v3157, %v3127
      %v3159 = vadd.f32 %v3158, %v3128
      %v3160 = vadd.f32 %v3159, %v3129
      %v3161 = vadd.f32 %v3160, %v3130
      %v3162 = vadd.f32 %v3161, %v3131
      %v3163 = vadd.f32 %v3162, %v3132
      %v3164 = vadd.f32 %v3163, %v3133
      %v3165 = vadd.f32 %v3164, %v3134
      %v3166 = vadd.f32 %v3165, %v3135
      %v3167 = vadd.f32 %v3166, %v3136
      %v3168 = vadd.f32 %v3167, %v3137
      %v3169 = vadd.f32 %v3168, %v3138
      %v3170 = vadd.f32 %v3169, %v3139
      %v3171 = vadd.f32 %v3170, %v3140
      %v3172 = vadd.f32 %v3171, %v3141
      %v3173 = vadd.f32 %v3172, %v3142
      %v3174 = vadd.f32 %v3173, %v3143
      %v3175 = vadd.f32 %v3174, %v3144
      %v3176 = vadd.f32 %v3175, %v3145
      %v3177 = vadd.f32 %v3176, %v3146
      %v3178 = vadd.f32 %v3177, %v3147
      %v3179 = vadd.f32 %v3178, %v3148
      %v3180 = vadd.f32 %v3179, %v3149
      %v3181 = vadd.f32 %v3180, %v3150
      %v3182 = vadd.f32 %v3181, %v3151
      %v3183 = vadd.f32 %v3182, %v3152
      %v3184 = vadd.f32 %v3183, %v3153
      %v3185 = vadd.f32 %v3184, %v3154
      %v3186 = vadd.f32 %v3185, %v3155
      %v3187 = vrot.slane %v3186, 4
      %v3188 = vadd.f32 %v3186, %v3187
      %v3189 = vrot.slane %v3188, 2
      %v3190 = vadd.f32 %v3188, %v3189
      %v3191 = vrot.slane %v3190, 1
      %v3192 = vadd.f32 %v3190, %v3191
      %vm3193 = vcmask 1040384
      %v3194 = vsel %vm3193, %v3123, %v3192
      %3195 = vst [vmem:[%s249] sm:$0x3] %v3194
      %v3196 = vld [vmem:[%s2] sm:$0x1]
      %v3198 = vlaneseq
      %v3199 = vshrl.u32 %v3198, 7
      %v3200 = vsub.s32 0, %v3199
      %v3201 = vrot.slane %v3196, %v3200
      %v3203 = vadd.f32 %v3055, %v3201
      %v3204 = vadd.f32 %v3056, %v3201
      %v3205 = vadd.f32 %v3057, %v3201
      %v3206 = vadd.f32 %v3058, %v3201
      %v3207 = vadd.f32 %v3059, %v3201
      %v3208 = vadd.f32 %v3060, %v3201
      %v3209 = vadd.f32 %v3061, %v3201
      %v3210 = vadd.f32 %v3062, %v3201
      %v3211 = vadd.f32 %v3063, %v3201
      %v3212 = vadd.f32 %v3064, %v3201
      %v3213 = vadd.f32 %v3065, %v3201
      %v3214 = vadd.f32 %v3066, %v3201
      %v3215 = vadd.f32 %v3067, %v3201
      %v3216 = vadd.f32 %v3068, %v3201
      %v3217 = vadd.f32 %v3069, %v3201
      %v3218 = vadd.f32 %v3070, %v3201
      %v3219 = vadd.f32 %v3071, %v3201
      %v3220 = vadd.f32 %v3072, %v3201
      %v3221 = vadd.f32 %v3073, %v3201
      %v3222 = vadd.f32 %v3074, %v3201
      %v3223 = vadd.f32 %v3075, %v3201
      %v3224 = vadd.f32 %v3076, %v3201
      %v3225 = vadd.f32 %v3077, %v3201
      %v3226 = vadd.f32 %v3078, %v3201
      %v3227 = vadd.f32 %v3079, %v3201
      %v3228 = vadd.f32 %v3080, %v3201
      %v3229 = vadd.f32 %v3081, %v3201
      %v3230 = vadd.f32 %v3082, %v3201
      %v3231 = vadd.f32 %v3083, %v3201
      %v3232 = vadd.f32 %v3084, %v3201
      %v3233 = vadd.f32 %v3085, %v3201
      %v3234 = vadd.f32 %v3086, %v3201
      %v3235 = vpack.c.bf16 %v3204, %v3203
      %v3236 = vpack.c.bf16 %v3206, %v3205
      %v3237 = vpack.c.bf16 %v3208, %v3207
      %v3238 = vpack.c.bf16 %v3210, %v3209
      %v3239 = vpack.c.bf16 %v3212, %v3211
      %v3240 = vpack.c.bf16 %v3214, %v3213
      %v3241 = vpack.c.bf16 %v3216, %v3215
      %v3242 = vpack.c.bf16 %v3218, %v3217
      %v3243 = vpack.c.bf16 %v3220, %v3219
      %v3244 = vpack.c.bf16 %v3222, %v3221
      %v3245 = vpack.c.bf16 %v3224, %v3223
      %v3246 = vpack.c.bf16 %v3226, %v3225
      %v3247 = vpack.c.bf16 %v3228, %v3227
      %v3248 = vpack.c.bf16 %v3230, %v3229
      %v3249 = vpack.c.bf16 %v3232, %v3231
      %v3250 = vpack.c.bf16 %v3234, %v3233
      %v3267 = vunpack.c.l.b16 %v3235
      %v3268 = vunpack.c.h.b16 %v3235
      %v3269 = vunpack.c.l.b16 %v3236
      %v3270 = vunpack.c.h.b16 %v3236
      %v3271 = vunpack.c.l.b16 %v3237
      %v3272 = vunpack.c.h.b16 %v3237
      %v3273 = vunpack.c.l.b16 %v3238
      %v3274 = vunpack.c.h.b16 %v3238
      %v3275 = vunpack.c.l.b16 %v3239
      %v3276 = vunpack.c.h.b16 %v3239
      %v3277 = vunpack.c.l.b16 %v3240
      %v3278 = vunpack.c.h.b16 %v3240
      %v3279 = vunpack.c.l.b16 %v3241
      %v3280 = vunpack.c.h.b16 %v3241
      %v3281 = vunpack.c.l.b16 %v3242
      %v3282 = vunpack.c.h.b16 %v3242
      %v3283 = vunpack.c.l.b16 %v3243
      %v3284 = vunpack.c.h.b16 %v3243
      %v3285 = vunpack.c.l.b16 %v3244
      %v3286 = vunpack.c.h.b16 %v3244
      %v3287 = vunpack.c.l.b16 %v3245
      %v3288 = vunpack.c.h.b16 %v3245
      %v3289 = vunpack.c.l.b16 %v3246
      %v3290 = vunpack.c.h.b16 %v3246
      %v3291 = vunpack.c.l.b16 %v3247
      %v3292 = vunpack.c.h.b16 %v3247
      %v3293 = vunpack.c.l.b16 %v3248
      %v3294 = vunpack.c.h.b16 %v3248
      %v3295 = vunpack.c.l.b16 %v3249
      %v3296 = vunpack.c.h.b16 %v3249
      %v3297 = vunpack.c.l.b16 %v3250
      %v3298 = vunpack.c.h.b16 %v3250
      %v3299 = vpack.c.b16 %v3267, %v3267
      %v3300 = vpack.c.b16 %v3268, %v3268
      %v3301 = vpack.c.b16 %v3269, %v3269
      %v3302 = vpack.c.b16 %v3270, %v3270
      %v3303 = vpack.c.b16 %v3271, %v3271
      %v3304 = vpack.c.b16 %v3272, %v3272
      %v3305 = vpack.c.b16 %v3273, %v3273
      %v3306 = vpack.c.b16 %v3274, %v3274
      %v3307 = vpack.c.b16 %v3275, %v3275
      %v3308 = vpack.c.b16 %v3276, %v3276
      %v3309 = vpack.c.b16 %v3277, %v3277
      %v3310 = vpack.c.b16 %v3278, %v3278
      %v3311 = vpack.c.b16 %v3279, %v3279
      %v3312 = vpack.c.b16 %v3280, %v3280
      %v3313 = vpack.c.b16 %v3281, %v3281
      %v3314 = vpack.c.b16 %v3282, %v3282
      %v3315 = vpack.c.b16 %v3283, %v3283
      %v3316 = vpack.c.b16 %v3284, %v3284
      %v3317 = vpack.c.b16 %v3285, %v3285
      %v3318 = vpack.c.b16 %v3286, %v3286
      %v3319 = vpack.c.b16 %v3287, %v3287
      %v3320 = vpack.c.b16 %v3288, %v3288
      %v3321 = vpack.c.b16 %v3289, %v3289
      %v3322 = vpack.c.b16 %v3290, %v3290
      %v3323 = vpack.c.b16 %v3291, %v3291
      %v3324 = vpack.c.b16 %v3292, %v3292
      %v3325 = vpack.c.b16 %v3293, %v3293
      %v3326 = vpack.c.b16 %v3294, %v3294
      %v3327 = vpack.c.b16 %v3295, %v3295
      %v3328 = vpack.c.b16 %v3296, %v3296
      %v3329 = vpack.c.b16 %v3297, %v3297
      %v3330 = vpack.c.b16 %v3298, %v3298
      %3363 = vst [vmem:[%s241] sm:$0xf] %v3299
      %3364 = vst [vmem:[%s241 + $0x4] sm:$0xf] %v3300
      %3365 = vst [vmem:[%s241 + $0x8] sm:$0xf] %v3301
      %3366 = vst [vmem:[%s241 + $0xc] sm:$0xf] %v3302
      %3367 = vst [vmem:[%s241 + $0x10] sm:$0xf] %v3303
      %3368 = vst [vmem:[%s241 + $0x14] sm:$0xf] %v3304
      %3369 = vst [vmem:[%s241 + $0x18] sm:$0xf] %v3305
      %3370 = vst [vmem:[%s241 + $0x1c] sm:$0xf] %v3306
      %3371 = vst [vmem:[%s241 + $0x20] sm:$0xf] %v3307
      %3372 = vst [vmem:[%s241 + $0x24] sm:$0xf] %v3308
      %3373 = vst [vmem:[%s241 + $0x28] sm:$0xf] %v3309
      %3374 = vst [vmem:[%s241 + $0x2c] sm:$0xf] %v3310
      %3375 = vst [vmem:[%s241 + $0x30] sm:$0xf] %v3311
      %3376 = vst [vmem:[%s241 + $0x34] sm:$0xf] %v3312
      %3377 = vst [vmem:[%s241 + $0x38] sm:$0xf] %v3313
      %3378 = vst [vmem:[%s241 + $0x3c] sm:$0xf] %v3314
      %3379 = vst [vmem:[%s241 + $0x40] sm:$0xf] %v3315
      %3380 = vst [vmem:[%s241 + $0x44] sm:$0xf] %v3316
      %3381 = vst [vmem:[%s241 + $0x48] sm:$0xf] %v3317
      %3382 = vst [vmem:[%s241 + $0x4c] sm:$0xf] %v3318
      %3383 = vst [vmem:[%s241 + $0x50] sm:$0xf] %v3319
      %3384 = vst [vmem:[%s241 + $0x54] sm:$0xf] %v3320
      %3385 = vst [vmem:[%s241 + $0x58] sm:$0xf] %v3321
      %3386 = vst [vmem:[%s241 + $0x5c] sm:$0xf] %v3322
      %3387 = vst [vmem:[%s241 + $0x60] sm:$0xf] %v3323
      %3388 = vst [vmem:[%s241 + $0x64] sm:$0xf] %v3324
      %3389 = vst [vmem:[%s241 + $0x68] sm:$0xf] %v3325
      %3390 = vst [vmem:[%s241 + $0x6c] sm:$0xf] %v3326
      %3391 = vst [vmem:[%s241 + $0x70] sm:$0xf] %v3327
      %3392 = vst [vmem:[%s241 + $0x74] sm:$0xf] %v3328
      %3393 = vst [vmem:[%s241 + $0x78] sm:$0xf] %v3329
      %3394 = vst [vmem:[%s241 + $0x7c] sm:$0xf] %v3330
      %s3395 = smul.u32 16, %s23
      %p3396 = scmp.lt.s32.totalorder %s22, 1
      %s3397 = scalar_select %p3396, %s22, 1
      %p3398 = scmp.lt.s32.totalorder %s3395, 15
      %s3399 = scalar_select %p3398, %s3395, 15
      %s3400 = smul.addr %s3399, 2
      %s3401 = smul.addr %s3397, 32
      %s3402 = sadd.s32 %s3400, %s3401
      %s3403 = smul.addr %s3402, 4
      %s3404 = scalar_lea.vmem %s5, %s3403
      %p3405 = scmp.lt.s32.totalorder %s22, 1
      %s3406 = scalar_select %p3405, %s22, 1
      %p3407 = scmp.lt.s32.totalorder %s23, 0
      %s3408 = scalar_select %p3407, %s23, 0
      %s3409 = sadd.s32 %s3408, %s3406
      %s3410 = smul.addr %s3409, 2
      %s3411 = scalar_lea.vmem %s6, %s3410
      // Predicated region
      $region113: #{decoder_block_2d.6} parent=35 // pred_check
        %p3412 = pneg %p134
      $region114: #{decoder_block_2d.6} parent=35 // pred_check_branch
        %3414 = sbr.rel (%p3412) target = $region116
      $region115: #{decoder_block_2d.6} parent=35 // pred_region
        %s3415 = smul.u32 16, %s23
      $region116: #{decoder_block_2d.6} parent=35 // pred_fallthru
        _
      // Predicated region
      $region117: #{decoder_block_2d.6} parent=35 // pred_check
        %p3416 = pneg %p162
      $region118: #{decoder_block_2d.6} parent=35 // pred_check_branch
        %3418 = sbr.rel (%p3416) target = $region120
      $region119: #{decoder_block_2d.6} parent=35 // pred_region
        _
      $region120: #{decoder_block_2d.6} parent=35 // pred_fallthru
        _
    $region36: #{decoder_block_2d.6} parent=5 // pred_fallthru
      _
    %p3419 = scmp.le.s32.totalorder 2, %s13
    // Predicated region
    $region121: #{decoder_block_2d.6} parent=5 // pred_check
      %p3420 = pneg %p3419
    $region122: #{decoder_block_2d.6} parent=5 // pred_check_branch
      %3422 = sbr.rel (%p3420) target = $region124
    $region123: #{decoder_block_2d.6} parent=5 // pred_region
      %s3423 = ssub.s32 %s13, 2
      // Predicated region
      $region125: #{decoder_block_2d.6} parent=123 // pred_check
        %p3424 = pneg %p140
      $region126: #{decoder_block_2d.6} parent=123 // pred_check_branch
        %3426 = sbr.rel (%p3424) target = $region128
      $region127: #{decoder_block_2d.6} parent=123 // pred_region
        %s3427 = smul.u32 16, %s25
        %p3428 = scmp.lt.s32.totalorder %s24, 1
        %s3429 = scalar_select %p3428, %s24, 1
        %p3430 = scmp.lt.s32.totalorder %s3427, 15
        %s3431 = scalar_select %p3430, %s3427, 15
        %s3432 = smul.addr %s3431, 2
        %s3433 = smul.addr %s3429, 32
        %s3434 = sadd.s32 %s3432, %s3433
        %s3435 = smul.addr %s3434, 4
        %s3436 = scalar_lea.vmem %s5, %s3435
      $region128: #{decoder_block_2d.6} parent=123 // pred_fallthru
        _
      // Predicated region
      $region129: #{decoder_block_2d.6} parent=123 // pred_check
        %p3437 = pneg %p168
      $region130: #{decoder_block_2d.6} parent=123 // pred_check_branch
        %3439 = sbr.rel (%p3437) target = $region132
      $region131: #{decoder_block_2d.6} parent=123 // pred_region
        %p3440 = scmp.lt.s32.totalorder %s24, 1
        %s3441 = scalar_select %p3440, %s24, 1
        %p3442 = scmp.lt.s32.totalorder %s25, 0
        %s3443 = scalar_select %p3442, %s25, 0
        %s3444 = sadd.s32 %s3443, %s3441
        %s3445 = smul.addr %s3444, 2
        %s3446 = scalar_lea.vmem %s6, %s3445
      $region132: #{decoder_block_2d.6} parent=123 // pred_fallthru
        _
    $region124: #{decoder_block_2d.6} parent=5 // pred_fallthru
      _
  $region6: #{decoder_block_2d.6} parent=0 // loop_footer
    %s17 = sadd.s32 1, %s13
  $region7: #{decoder_block_2d.6} parent=0 // loop_footer_branch
    %12 = sbr.rel target = $region3
  $region8: #{decoder_block_2d.6} parent=0 // loop_exit
    _
  %3447 = vsyncmov [#allocation3]
  %s3448 = vpop.sfrf %3447
  %p3449 = scmp.eq.s32.totalorder %s3448, 0
  %p3450 = pneg %p3449
  %3452 = shalt.err (%p3450)
  %s3453 = scalar_lea.sflag [#allocation3], 1
  %3454 = vsyncmov %s3453
  %s3455 = vpop.sfrf %3454
  %p3456 = scmp.eq.s32.totalorder %s3455, 0
  %p3457 = pneg %p3456
  %3459 = shalt.err (%p3457)

</llo_original>
